<compile_context>
chip_gen: v5e
topology: v5e:2x2
jax: 0.10.0
libtpu: 0.0.40
codegen_flags: <defaults>
</compile_context>

<pallas_src>
import numpy as np
import jax
import jax.numpy as jnp
from jax.experimental import pallas as pl
from jax.experimental.pallas import tpu as pltpu


# ----------------------------- layout constants -----------------------------

_LANES = 128          # channel lanes (16 / 32 real channels zero-padded to 128)
_N1 = 28 * 28         # conv1 output rows per image (row = h*28 + w)
_C1M = 112            # conv1 GEMM M-chunk (784 = 7*112, 112 = 14 sublanes of 8)
_W2P = 18             # conv2 padded grid width (14 + 2*2)
_N2 = _W2P * _W2P     # 324 flat conv2 grid rows
_IN2_ROWS = 400       # 324 + max tap shift (4*18 + 4 = 76)
_R2_ROWS = 256        # conv2 output rows computed (pool-2 reads rows <= 247)
_C2M = 128            # conv2 GEMM M-chunk
_NOUT = 16            # FC outputs, padded 10 -> 16
_FCROWS = 56          # FC weight rows: 49 pooled positions padded to 56


def _pick_img(batch):
    """Images per grid step: amortize per-step overhead, keep grid >= 2."""
    if batch >= 4 and batch % 2 == 0:
        return 2
    return 1


# ------------------------------- fused kernel --------------------------------


def _make_cnn_kernel(n_img):
    def kernel(x1_ref, w1_ref, b1_ref, w2_ref, b2_ref, w3_ref, b3_ref,
               o_ref, r1s, in2s, r2s):
        f32 = jnp.float32
        w1 = w1_ref[...]            # (32, 128)  [tap, cout]
        b1 = b1_ref[...]            # (1, 128)
        b2 = b2_ref[...]            # (1, 128)

        for img in range(n_img):
            r1b = img * _N1
            i2b = img * _IN2_ROWS
            r2b = img * _R2_ROWS

            # ---- conv1 (1->16, 5x5, pad 2) + bias + ReLU --------------------
            # One MXU GEMM per 112-row chunk; im2col (taps on lanes) was built
            # in the wrapper.  Lanes 16..127 of the result stay exactly zero
            # (zero weight columns / bias lanes) -- conv2's K-packing relies on
            # that invariant.
            for m0 in range(0, _N1, _C1M):
                xblk = x1_ref[img, pl.ds(m0, _C1M), :]            # (112, 32)
                y = jnp.dot(xblk, w1, preferred_element_type=f32) + b1
                r1s[pl.ds(r1b + m0, _C1M), :] = jnp.maximum(y, 0.0)

            # ---- maxpool1 (2x2) -> conv2 padded 18x18 flat grid -------------
            # Zero the padding ring / extension rows once, then write each
            # pooled row-group with 4 strided reads + 3 maxima (no selection
            # matmul).
            in2s[pl.ds(i2b, _IN2_ROWS), :] = jnp.zeros((_IN2_ROWS, _LANES), f32)
            for i in range(14):
                a = r1s[pl.ds(r1b + 56 * i,      14, stride=2), :]
                b = r1s[pl.ds(r1b + 56 * i + 1,  14, stride=2), :]
                c = r1s[pl.ds(r1b + 56 * i + 28, 14, stride=2), :]
                d = r1s[pl.ds(r1b + 56 * i + 29, 14, stride=2), :]
                in2s[pl.ds(i2b + (i + 2) * _W2P + 2, 14), :] = jnp.maximum(
                    jnp.maximum(a, b), jnp.maximum(c, d))

            # ---- conv2 (16->32, 5x5, pad 2) + bias + ReLU --------------------
            # 8 taps packed into the 128 K lanes (16 cin each) via lane rolls:
            # rolled real data lands on zero lanes, so 25 taps -> 4 dense GEMMs
            # per 128-row M chunk.  Flat rows with grid col >= 14 are garbage
            # (row wrap) but are never selected by the pool-2 anchors below.
            for m0 in range(0, _R2_ROWS, _C2M):
                acc = jnp.zeros((_C2M, _LANES), f32)
                for g in range(4):
                    t0 = 8 * g
                    packed = None
                    for tl in range(min(8, 25 - t0)):
                        kh, kw = divmod(t0 + tl, 5)
                        sl = in2s[pl.ds(i2b + m0 + kh * _W2P + kw, _C2M), :]
                        if tl:
                            sl = pltpu.roll(sl, 16 * tl, axis=1)
                        packed = sl if packed is None else packed + sl
                    acc = acc + jnp.dot(packed, w2_ref[g],
                                        preferred_element_type=f32)
                r2s[pl.ds(r2b + m0, _C2M), :] = jnp.maximum(acc + b2, 0.0)

            # ---- maxpool2 (2x2) + Linear(32*7*7 -> 10) ----------------------
            # Pool-2 row selection and the torch NCHW flatten are folded into
            # w3 (row = 7*i + j, lanes = cin).  Per-lane partial sums stay in
            # registers; one lane reduction + lane-dense (16,128) store.
            zsum = jnp.zeros((_NOUT, _LANES), f32)
            for i in range(7):
                a = r2s[pl.ds(r2b + 36 * i,      7, stride=2), :]
                b = r2s[pl.ds(r2b + 36 * i + 1,  7, stride=2), :]
                c = r2s[pl.ds(r2b + 36 * i + 18, 7, stride=2), :]
                d = r2s[pl.ds(r2b + 36 * i + 19, 7, stride=2), :]
                pooled = jnp.maximum(jnp.maximum(a, b), jnp.maximum(c, d))
                for j in range(7):
                    zsum = zsum + w3_ref[7 * i + j] * pooled[j:j + 1, :]
            logits = jnp.sum(zsum, axis=1, keepdims=True)          # (16, 1)
            o_ref[img] = jnp.broadcast_to(logits, (_NOUT, _LANES)) + b3_ref[...]

    return kernel


# ------------------------- parameter re-layout (once) ------------------------


def prepare_params(params):
    """One-time host-side re-layout of torch-style weights into packed form."""
    w1, b1, w2, b2, w3, b3 = (np.asarray(p, np.float32) for p in params)

    # conv1: [tap, cout], taps padded 25 -> 32, cout padded 16 -> 128.
    w1p = np.zeros((32, _LANES), np.float32)
    w1p[:25, :16] = w1[:, 0].transpose(1, 2, 0).reshape(25, 16)
    b1p = np.zeros((1, _LANES), np.float32)
    b1p[0, :16] = b1

    # conv2: 4 groups of 8 taps packed along K: row = 16*tl + cin, col = cout.
    w2g = np.zeros((4, _LANES, _LANES), np.float32)
    for t in range(25):
        g, tl = divmod(t, 8)
        kh, kw = divmod(t, 5)
        w2g[g, 16 * tl:16 * tl + 16, :32] = w2[:, :, kh, kw].T     # (cin, cout)
    b2p = np.zeros((1, _LANES), np.float32)
    b2p[0, :32] = b2

    # FC: row = pooled position 7*i + j (49 real, padded to 56), [row, n, cin];
    # torch NCHW flatten index is cin*49 + 7*i + j.
    w3c = np.zeros((_FCROWS, _NOUT, _LANES), np.float32)
    w3r = w3.reshape(10, 32, 7, 7)
    for i in range(7):
        for j in range(7):
            w3c[7 * i + j, :10, :32] = w3r[:, :, i, j]
    b3p = np.zeros((_NOUT, _LANES), np.float32)
    b3p[:10, :] = b3[:, None]

    return tuple(jnp.asarray(a) for a in (w1p, b1p, w2g, b2p, w3c, b3p))


# --------------------------------- forward -----------------------------------


def _conv1_im2col(x_nchw):
    """(B,1,28,28) -> (B,784,32) lane-dense conv1 im2col (25 taps, zero-padded)."""
    bsz = x_nchw.shape[0]
    xp = jnp.pad(x_nchw[:, 0], ((0, 0), (2, 2), (2, 2)))           # (B, 32, 32)
    taps = [xp[:, kh:kh + 28, kw:kw + 28]
            for kh in range(5) for kw in range(5)]
    cols = jnp.stack(taps, axis=-1).reshape(bsz, _N1, 25)
    return jnp.pad(cols, ((0, 0), (0, 0), (0, 7)))                 # (B, 784, 32)


@jax.jit
def cnn_forward(x_nchw, prepped):
    w1p, b1p, w2g, b2p, w3c, b3p = prepped
    bsz = x_nchw.shape[0]
    img = _pick_img(bsz)
    x1 = _conv1_im2col(x_nchw)

    out = pl.pallas_call(
        _make_cnn_kernel(img),
        out_shape=jax.ShapeDtypeStruct((bsz, _NOUT, _LANES), jnp.float32),
        grid=(bsz // img,),
        in_specs=[
            pl.BlockSpec((img, _N1, 32), lambda b: (b, 0, 0)),            # im2col x
            pl.BlockSpec((32, _LANES), lambda b: (0, 0)),                 # w1
            pl.BlockSpec((1, _LANES), lambda b: (0, 0)),                  # b1
            pl.BlockSpec((4, _LANES, _LANES), lambda b: (0, 0, 0)),       # w2 packed
            pl.BlockSpec((1, _LANES), lambda b: (0, 0)),                  # b2
            pl.BlockSpec((_FCROWS, _NOUT, _LANES), lambda b: (0, 0, 0)),  # w3 folded
            pl.BlockSpec((_NOUT, _LANES), lambda b: (0, 0)),              # b3
        ],
        out_specs=pl.BlockSpec((img, _NOUT, _LANES), lambda b: (b, 0, 0)),
        scratch_shapes=[
            pltpu.VMEM((img * _N1, _LANES), jnp.float32),        # conv1 ReLU out
            pltpu.VMEM((img * _IN2_ROWS, _LANES), jnp.float32),  # conv2 padded input
            pltpu.VMEM((img * _R2_ROWS, _LANES), jnp.float32),   # conv2 ReLU out
        ],
        compiler_params=pltpu.CompilerParams(
            dimension_semantics=("parallel",),
            vmem_limit_bytes=32 * 1024 * 1024,
        ),
    )(x1, w1p, b1p, w2g, b2p, w3c, b3p)

    return out[:, :10, 0]


# -------------------------- reference (pure JAX) ------------------------------


def ref_forward(x, params):
    w1, b1, w2, b2, w3, b3 = params

    def conv(x, w, b):
        y = jax.lax.conv_general_dilated(
            x, w, (1, 1), ((2, 2), (2, 2)),
            dimension_numbers=("NCHW", "OIHW", "NCHW"),
            precision=jax.lax.Precision.HIGHEST)
        return y + b[None, :, None, None]

    def pool(x):
        Bn, C, H, W = x.shape
        return x.reshape(Bn, C, H // 2, 2, W // 2, 2).max(axis=(3, 5))

    y = pool(jnp.maximum(conv(x, w1, b1), 0.0))
    y = pool(jnp.maximum(conv(y, w2, b2), 0.0))
    y = y.reshape(y.shape[0], -1)
    return jnp.dot(y, w3.T, precision=jax.lax.Precision.HIGHEST) + b3


# ----------------------------------- main -------------------------------------


def init_params(key):
    ks = jax.random.split(key, 6)
    w1 = 0.05 * jax.random.normal(ks[0], (16, 1, 5, 5), jnp.float32)
    b1 = 0.05 * jax.random.normal(ks[1], (16,), jnp.float32)
    w2 = 0.05 * jax.random.normal(ks[2], (32, 16, 5, 5), jnp.float32)
    b2 = 0.05 * jax.random.normal(ks[3], (32,), jnp.float32)
    w3 = 0.05 * jax.random.normal(ks[4], (10, 32 * 7 * 7), jnp.float32)
    b3 = 0.05 * jax.random.normal(ks[5], (10,), jnp.float32)
    return (w1, b1, w2, b2, w3, b3)


if __name__ == "__main__":
    key = jax.random.PRNGKey(0)
    k_x, k_p = jax.random.split(key)
    params = init_params(k_p)
    prepped = prepare_params(params)

    # Main check: batch=2 -> one image per grid step, grid=(2,).
    # 28x28 single-channel input is required by the 32*7*7 Linear layer.
    x2 = jax.random.normal(k_x, (2, 1, 28, 28), jnp.float32)
    out2 = jax.block_until_ready(cnn_forward(x2, prepped))
    ref2 = jax.block_until_ready(ref_forward(x2, params))
    np.testing.assert_allclose(np.asarray(out2), np.asarray(ref2),
                               rtol=2e-3, atol=2e-3)
    assert out2.shape == (2, 10) and out2.dtype == jnp.float32

    # Multi-image-per-step path: batch=4 -> 2 images per grid step, grid=(2,).
    x4 = jax.random.normal(jax.random.fold_in(k_x, 1), (4, 1, 28, 28),
                           jnp.float32)
    out4 = jax.block_until_ready(cnn_forward(x4, prepped))
    ref4 = jax.block_until_ready(ref_forward(x4, params))
    np.testing.assert_allclose(np.asarray(out4), np.asarray(ref4),
                               rtol=2e-3, atol=2e-3)

    print("KERNEL_OK")
</pallas_src>

<mosaic_0001>
module attributes {stable_mosaic.version = 11 : i64} {
  func.func @kernel(%arg0: i32, %arg1: memref<1x784x32xf32, #tpu.memory_space<vmem>>, %arg2: memref<32x128xf32, #tpu.memory_space<vmem>>, %arg3: memref<1x128xf32, #tpu.memory_space<vmem>>, %arg4: memref<4x128x128xf32, #tpu.memory_space<vmem>>, %arg5: memref<1x128xf32, #tpu.memory_space<vmem>>, %arg6: memref<56x16x128xf32, #tpu.memory_space<vmem>>, %arg7: memref<16x128xf32, #tpu.memory_space<vmem>>, %arg8: memref<1x16x128xf32, #tpu.memory_space<vmem>>, %arg9: memref<784x128xf32, #tpu.memory_space<vmem>>, %arg10: memref<400x128xf32, #tpu.memory_space<vmem>>, %arg11: memref<256x128xf32, #tpu.memory_space<vmem>>) attributes {dimension_semantics = [#tpu.dimension_semantics<parallel>], iteration_bounds = array<i64: 2>, scalar_prefetch = 0 : i64, scratch_operands = 3 : i64, tpu.core_type = #tpu.core_type<tc>, window_params = [{transform_indices = @transform_0, window_bounds = array<i64: 1, 784, 32>}, {pipeline_mode = #tpu.pipeline_mode<synchronous>, transform_indices = @transform_1, window_bounds = array<i64: 32, 128>}, {pipeline_mode = #tpu.pipeline_mode<synchronous>, transform_indices = @transform_2, window_bounds = array<i64: 1, 128>}, {pipeline_mode = #tpu.pipeline_mode<synchronous>, transform_indices = @transform_3, window_bounds = array<i64: 4, 128, 128>}, {pipeline_mode = #tpu.pipeline_mode<synchronous>, transform_indices = @transform_4, window_bounds = array<i64: 1, 128>}, {pipeline_mode = #tpu.pipeline_mode<synchronous>, transform_indices = @transform_5, window_bounds = array<i64: 56, 16, 128>}, {pipeline_mode = #tpu.pipeline_mode<synchronous>, transform_indices = @transform_6, window_bounds = array<i64: 16, 128>}, {transform_indices = @transform_7, window_bounds = array<i64: 1, 16, 128>}]} {
    %c0 = arith.constant 0 : index
    %c0_0 = arith.constant 0 : index
    %0 = vector.load %arg2[%c0, %c0_0] : memref<32x128xf32, #tpu.memory_space<vmem>>, vector<32x128xf32>
    %c0_1 = arith.constant 0 : index
    %c0_2 = arith.constant 0 : index
    %1 = vector.load %arg3[%c0_1, %c0_2] : memref<1x128xf32, #tpu.memory_space<vmem>>, vector<1x128xf32>
    %c0_3 = arith.constant 0 : index
    %c0_4 = arith.constant 0 : index
    %2 = vector.load %arg5[%c0_3, %c0_4] : memref<1x128xf32, #tpu.memory_space<vmem>>, vector<1x128xf32>
    %c0_5 = arith.constant 0 : index
    %c0_6 = arith.constant 0 : index
    %c0_7 = arith.constant 0 : index
    %3 = vector.load %arg1[%c0_5, %c0_6, %c0_7] : memref<1x784x32xf32, #tpu.memory_space<vmem>>, vector<1x112x32xf32>
    %4 = vector.shape_cast %3 : vector<1x112x32xf32> to vector<112x32xf32>
    %cst = arith.constant dense<0.000000e+00> : vector<112x128xf32>
    %5 = tpu.matmul %4, %0, %cst {dimension_numbers = #tpu.dot_dimension_numbers<[1], [0], [0], [1], [0, 0, 1, 1], [], []>} : vector<112x32xf32>, vector<32x128xf32>, vector<112x128xf32> -> vector<112x128xf32>
    %6 = vector.broadcast %1 : vector<1x128xf32> to vector<112x128xf32>
    %7 = arith.addf %5, %6 : vector<112x128xf32>
    %cst_8 = arith.constant 0.000000e+00 : f32
    %8 = vector.broadcast %cst_8 : f32 to vector<112x128xf32>
    %9 = arith.maximumf %7, %8 : vector<112x128xf32>
    %c0_9 = arith.constant 0 : index
    %c0_10 = arith.constant 0 : index
    %10 = vector.load %arg9[%c0_9, %c0_10] : memref<784x128xf32, #tpu.memory_space<vmem>>, vector<112x128xf32>
    tpu.vector_store %arg9[%c0_9, %c0_10], %9 {strides = array<i32>} : memref<784x128xf32, #tpu.memory_space<vmem>>, vector<112x128xf32>,
    %c0_11 = arith.constant 0 : index
    %c112 = arith.constant 112 : index
    %c0_12 = arith.constant 0 : index
    %11 = vector.load %arg1[%c0_11, %c112, %c0_12] : memref<1x784x32xf32, #tpu.memory_space<vmem>>, vector<1x112x32xf32>
    %12 = vector.shape_cast %11 : vector<1x112x32xf32> to vector<112x32xf32>
    %cst_13 = arith.constant dense<0.000000e+00> : vector<112x128xf32>
    %13 = tpu.matmul %12, %0, %cst_13 {dimension_numbers = #tpu.dot_dimension_numbers<[1], [0], [0], [1], [0, 0, 1, 1], [], []>} : vector<112x32xf32>, vector<32x128xf32>, vector<112x128xf32> -> vector<112x128xf32>
    %14 = vector.broadcast %1 : vector<1x128xf32> to vector<112x128xf32>
    %15 = arith.addf %13, %14 : vector<112x128xf32>
    %cst_14 = arith.constant 0.000000e+00 : f32
    %16 = vector.broadcast %cst_14 : f32 to vector<112x128xf32>
    %17 = arith.maximumf %15, %16 : vector<112x128xf32>
    %c112_15 = arith.constant 112 : index
    %c0_16 = arith.constant 0 : index
    %18 = vector.load %arg9[%c112_15, %c0_16] : memref<784x128xf32, #tpu.memory_space<vmem>>, vector<112x128xf32>
    tpu.vector_store %arg9[%c112_15, %c0_16], %17 {strides = array<i32>} : memref<784x128xf32, #tpu.memory_space<vmem>>, vector<112x128xf32>,
    %c0_17 = arith.constant 0 : index
    %c224 = arith.constant 224 : index
    %c0_18 = arith.constant 0 : index
    %19 = vector.load %arg1[%c0_17, %c224, %c0_18] : memref<1x784x32xf32, #tpu.memory_space<vmem>>, vector<1x112x32xf32>
    %20 = vector.shape_cast %19 : vector<1x112x32xf32> to vector<112x32xf32>
    %cst_19 = arith.constant dense<0.000000e+00> : vector<112x128xf32>
    %21 = tpu.matmul %20, %0, %cst_19 {dimension_numbers = #tpu.dot_dimension_numbers<[1], [0], [0], [1], [0, 0, 1, 1], [], []>} : vector<112x32xf32>, vector<32x128xf32>, vector<112x128xf32> -> vector<112x128xf32>
    %22 = vector.broadcast %1 : vector<1x128xf32> to vector<112x128xf32>
    %23 = arith.addf %21, %22 : vector<112x128xf32>
    %cst_20 = arith.constant 0.000000e+00 : f32
    %24 = vector.broadcast %cst_20 : f32 to vector<112x128xf32>
    %25 = arith.maximumf %23, %24 : vector<112x128xf32>
    %c224_21 = arith.constant 224 : index
    %c0_22 = arith.constant 0 : index
    %26 = vector.load %arg9[%c224_21, %c0_22] : memref<784x128xf32, #tpu.memory_space<vmem>>, vector<112x128xf32>
    tpu.vector_store %arg9[%c224_21, %c0_22], %25 {strides = array<i32>} : memref<784x128xf32, #tpu.memory_space<vmem>>, vector<112x128xf32>,
    %c0_23 = arith.constant 0 : index
    %c336 = arith.constant 336 : index
    %c0_24 = arith.constant 0 : index
    %27 = vector.load %arg1[%c0_23, %c336, %c0_24] : memref<1x784x32xf32, #tpu.memory_space<vmem>>, vector<1x112x32xf32>
    %28 = vector.shape_cast %27 : vector<1x112x32xf32> to vector<112x32xf32>
    %cst_25 = arith.constant dense<0.000000e+00> : vector<112x128xf32>
    %29 = tpu.matmul %28, %0, %cst_25 {dimension_numbers = #tpu.dot_dimension_numbers<[1], [0], [0], [1], [0, 0, 1, 1], [], []>} : vector<112x32xf32>, vector<32x128xf32>, vector<112x128xf32> -> vector<112x128xf32>
    %30 = vector.broadcast %1 : vector<1x128xf32> to vector<112x128xf32>
    %31 = arith.addf %29, %30 : vector<112x128xf32>
    %cst_26 = arith.constant 0.000000e+00 : f32
    %32 = vector.broadcast %cst_26 : f32 to vector<112x128xf32>
    %33 = arith.maximumf %31, %32 : vector<112x128xf32>
    %c336_27 = arith.constant 336 : index
    %c0_28 = arith.constant 0 : index
    %34 = vector.load %arg9[%c336_27, %c0_28] : memref<784x128xf32, #tpu.memory_space<vmem>>, vector<112x128xf32>
    tpu.vector_store %arg9[%c336_27, %c0_28], %33 {strides = array<i32>} : memref<784x128xf32, #tpu.memory_space<vmem>>, vector<112x128xf32>,
    %c0_29 = arith.constant 0 : index
    %c448 = arith.constant 448 : index
    %c0_30 = arith.constant 0 : index
    %35 = vector.load %arg1[%c0_29, %c448, %c0_30] : memref<1x784x32xf32, #tpu.memory_space<vmem>>, vector<1x112x32xf32>
    %36 = vector.shape_cast %35 : vector<1x112x32xf32> to vector<112x32xf32>
    %cst_31 = arith.constant dense<0.000000e+00> : vector<112x128xf32>
    %37 = tpu.matmul %36, %0, %cst_31 {dimension_numbers = #tpu.dot_dimension_numbers<[1], [0], [0], [1], [0, 0, 1, 1], [], []>} : vector<112x32xf32>, vector<32x128xf32>, vector<112x128xf32> -> vector<112x128xf32>
    %38 = vector.broadcast %1 : vector<1x128xf32> to vector<112x128xf32>
    %39 = arith.addf %37, %38 : vector<112x128xf32>
    %cst_32 = arith.constant 0.000000e+00 : f32
    %40 = vector.broadcast %cst_32 : f32 to vector<112x128xf32>
    %41 = arith.maximumf %39, %40 : vector<112x128xf32>
    %c448_33 = arith.constant 448 : index
    %c0_34 = arith.constant 0 : index
    %42 = vector.load %arg9[%c448_33, %c0_34] : memref<784x128xf32, #tpu.memory_space<vmem>>, vector<112x128xf32>
    tpu.vector_store %arg9[%c448_33, %c0_34], %41 {strides = array<i32>} : memref<784x128xf32, #tpu.memory_space<vmem>>, vector<112x128xf32>,
    %c0_35 = arith.constant 0 : index
    %c560 = arith.constant 560 : index
    %c0_36 = arith.constant 0 : index
    %43 = vector.load %arg1[%c0_35, %c560, %c0_36] : memref<1x784x32xf32, #tpu.memory_space<vmem>>, vector<1x112x32xf32>
    %44 = vector.shape_cast %43 : vector<1x112x32xf32> to vector<112x32xf32>
    %cst_37 = arith.constant dense<0.000000e+00> : vector<112x128xf32>
    %45 = tpu.matmul %44, %0, %cst_37 {dimension_numbers = #tpu.dot_dimension_numbers<[1], [0], [0], [1], [0, 0, 1, 1], [], []>} : vector<112x32xf32>, vector<32x128xf32>, vector<112x128xf32> -> vector<112x128xf32>
    %46 = vector.broadcast %1 : vector<1x128xf32> to vector<112x128xf32>
    %47 = arith.addf %45, %46 : vector<112x128xf32>
    %cst_38 = arith.constant 0.000000e+00 : f32
    %48 = vector.broadcast %cst_38 : f32 to vector<112x128xf32>
    %49 = arith.maximumf %47, %48 : vector<112x128xf32>
    %c560_39 = arith.constant 560 : index
    %c0_40 = arith.constant 0 : index
    %50 = vector.load %arg9[%c560_39, %c0_40] : memref<784x128xf32, #tpu.memory_space<vmem>>, vector<112x128xf32>
    tpu.vector_store %arg9[%c560_39, %c0_40], %49 {strides = array<i32>} : memref<784x128xf32, #tpu.memory_space<vmem>>, vector<112x128xf32>,
    %c0_41 = arith.constant 0 : index
    %c672 = arith.constant 672 : index
    %c0_42 = arith.constant 0 : index
    %51 = vector.load %arg1[%c0_41, %c672, %c0_42] : memref<1x784x32xf32, #tpu.memory_space<vmem>>, vector<1x112x32xf32>
    %52 = vector.shape_cast %51 : vector<1x112x32xf32> to vector<112x32xf32>
    %cst_43 = arith.constant dense<0.000000e+00> : vector<112x128xf32>
    %53 = tpu.matmul %52, %0, %cst_43 {dimension_numbers = #tpu.dot_dimension_numbers<[1], [0], [0], [1], [0, 0, 1, 1], [], []>} : vector<112x32xf32>, vector<32x128xf32>, vector<112x128xf32> -> vector<112x128xf32>
    %54 = vector.broadcast %1 : vector<1x128xf32> to vector<112x128xf32>
    %55 = arith.addf %53, %54 : vector<112x128xf32>
    %cst_44 = arith.constant 0.000000e+00 : f32
    %56 = vector.broadcast %cst_44 : f32 to vector<112x128xf32>
    %57 = arith.maximumf %55, %56 : vector<112x128xf32>
    %c672_45 = arith.constant 672 : index
    %c0_46 = arith.constant 0 : index
    %58 = vector.load %arg9[%c672_45, %c0_46] : memref<784x128xf32, #tpu.memory_space<vmem>>, vector<112x128xf32>
    tpu.vector_store %arg9[%c672_45, %c0_46], %57 {strides = array<i32>} : memref<784x128xf32, #tpu.memory_space<vmem>>, vector<112x128xf32>,
    %cst_47 = arith.constant 0.000000e+00 : f32
    %59 = vector.broadcast %cst_47 : f32 to vector<400x128xf32>
    %c0_48 = arith.constant 0 : index
    %c0_49 = arith.constant 0 : index
    %60 = vector.load %arg10[%c0_48, %c0_49] : memref<400x128xf32, #tpu.memory_space<vmem>>, vector<400x128xf32>
    tpu.vector_store %arg10[%c0_48, %c0_49], %59 {strides = array<i32>} : memref<400x128xf32, #tpu.memory_space<vmem>>, vector<400x128xf32>,
    %c0_50 = arith.constant 0 : index
    %c0_51 = arith.constant 0 : index
    %61 = tpu.strided_load %arg9[%c0_50, %c0_51] {strides = array<i32: 2, 1>} : memref<784x128xf32, #tpu.memory_space<vmem>>, vector<14x128xf32>
    %c1 = arith.constant 1 : index
    %c0_52 = arith.constant 0 : index
    %62 = tpu.strided_load %arg9[%c1, %c0_52] {strides = array<i32: 2, 1>} : memref<784x128xf32, #tpu.memory_space<vmem>>, vector<14x128xf32>
    %c28 = arith.constant 28 : index
    %c0_53 = arith.constant 0 : index
    %63 = tpu.strided_load %arg9[%c28, %c0_53] {strides = array<i32: 2, 1>} : memref<784x128xf32, #tpu.memory_space<vmem>>, vector<14x128xf32>
    %c29 = arith.constant 29 : index
    %c0_54 = arith.constant 0 : index
    %64 = tpu.strided_load %arg9[%c29, %c0_54] {strides = array<i32: 2, 1>} : memref<784x128xf32, #tpu.memory_space<vmem>>, vector<14x128xf32>
    %65 = arith.maximumf %61, %62 : vector<14x128xf32>
    %66 = arith.maximumf %63, %64 : vector<14x128xf32>
    %67 = arith.maximumf %65, %66 : vector<14x128xf32>
    %c38 = arith.constant 38 : index
    %c0_55 = arith.constant 0 : index
    %68 = vector.load %arg10[%c38, %c0_55] : memref<400x128xf32, #tpu.memory_space<vmem>>, vector<14x128xf32>
    tpu.vector_store %arg10[%c38, %c0_55], %67 {strides = array<i32>} : memref<400x128xf32, #tpu.memory_space<vmem>>, vector<14x128xf32>,
    %c56 = arith.constant 56 : index
    %c0_56 = arith.constant 0 : index
    %69 = tpu.strided_load %arg9[%c56, %c0_56] {strides = array<i32: 2, 1>} : memref<784x128xf32, #tpu.memory_space<vmem>>, vector<14x128xf32>
    %c57 = arith.constant 57 : index
    %c0_57 = arith.constant 0 : index
    %70 = tpu.strided_load %arg9[%c57, %c0_57] {strides = array<i32: 2, 1>} : memref<784x128xf32, #tpu.memory_space<vmem>>, vector<14x128xf32>
    %c84 = arith.constant 84 : index
    %c0_58 = arith.constant 0 : index
    %71 = tpu.strided_load %arg9[%c84, %c0_58] {strides = array<i32: 2, 1>} : memref<784x128xf32, #tpu.memory_space<vmem>>, vector<14x128xf32>
    %c85 = arith.constant 85 : index
    %c0_59 = arith.constant 0 : index
    %72 = tpu.strided_load %arg9[%c85, %c0_59] {strides = array<i32: 2, 1>} : memref<784x128xf32, #tpu.memory_space<vmem>>, vector<14x128xf32>
    %73 = arith.maximumf %69, %70 : vector<14x128xf32>
    %74 = arith.maximumf %71, %72 : vector<14x128xf32>
    %75 = arith.maximumf %73, %74 : vector<14x128xf32>
    %c56_60 = arith.constant 56 : index
    %c0_61 = arith.constant 0 : index
    %76 = vector.load %arg10[%c56_60, %c0_61] : memref<400x128xf32, #tpu.memory_space<vmem>>, vector<14x128xf32>
    tpu.vector_store %arg10[%c56_60, %c0_61], %75 {strides = array<i32>} : memref<400x128xf32, #tpu.memory_space<vmem>>, vector<14x128xf32>,
    %c112_62 = arith.constant 112 : index
    %c0_63 = arith.constant 0 : index
    %77 = tpu.strided_load %arg9[%c112_62, %c0_63] {strides = array<i32: 2, 1>} : memref<784x128xf32, #tpu.memory_space<vmem>>, vector<14x128xf32>
    %c113 = arith.constant 113 : index
    %c0_64 = arith.constant 0 : index
    %78 = tpu.strided_load %arg9[%c113, %c0_64] {strides = array<i32: 2, 1>} : memref<784x128xf32, #tpu.memory_space<vmem>>, vector<14x128xf32>
    %c140 = arith.constant 140 : index
    %c0_65 = arith.constant 0 : index
    %79 = tpu.strided_load %arg9[%c140, %c0_65] {strides = array<i32: 2, 1>} : memref<784x128xf32, #tpu.memory_space<vmem>>, vector<14x128xf32>
    %c141 = arith.constant 141 : index
    %c0_66 = arith.constant 0 : index
    %80 = tpu.strided_load %arg9[%c141, %c0_66] {strides = array<i32: 2, 1>} : memref<784x128xf32, #tpu.memory_space<vmem>>, vector<14x128xf32>
    %81 = arith.maximumf %77, %78 : vector<14x128xf32>
    %82 = arith.maximumf %79, %80 : vector<14x128xf32>
    %83 = arith.maximumf %81, %82 : vector<14x128xf32>
    %c74 = arith.constant 74 : index
    %c0_67 = arith.constant 0 : index
    %84 = vector.load %arg10[%c74, %c0_67] : memref<400x128xf32, #tpu.memory_space<vmem>>, vector<14x128xf32>
    tpu.vector_store %arg10[%c74, %c0_67], %83 {strides = array<i32>} : memref<400x128xf32, #tpu.memory_space<vmem>>, vector<14x128xf32>,
    %c168 = arith.constant 168 : index
    %c0_68 = arith.constant 0 : index
    %85 = tpu.strided_load %arg9[%c168, %c0_68] {strides = array<i32: 2, 1>} : memref<784x128xf32, #tpu.memory_space<vmem>>, vector<14x128xf32>
    %c169 = arith.constant 169 : index
    %c0_69 = arith.constant 0 : index
    %86 = tpu.strided_load %arg9[%c169, %c0_69] {strides = array<i32: 2, 1>} : memref<784x128xf32, #tpu.memory_space<vmem>>, vector<14x128xf32>
    %c196 = arith.constant 196 : index
    %c0_70 = arith.constant 0 : index
    %87 = tpu.strided_load %arg9[%c196, %c0_70] {strides = array<i32: 2, 1>} : memref<784x128xf32, #tpu.memory_space<vmem>>, vector<14x128xf32>
    %c197 = arith.constant 197 : index
    %c0_71 = arith.constant 0 : index
    %88 = tpu.strided_load %arg9[%c197, %c0_71] {strides = array<i32: 2, 1>} : memref<784x128xf32, #tpu.memory_space<vmem>>, vector<14x128xf32>
    %89 = arith.maximumf %85, %86 : vector<14x128xf32>
    %90 = arith.maximumf %87, %88 : vector<14x128xf32>
    %91 = arith.maximumf %89, %90 : vector<14x128xf32>
    %c92 = arith.constant 92 : index
    %c0_72 = arith.constant 0 : index
    %92 = vector.load %arg10[%c92, %c0_72] : memref<400x128xf32, #tpu.memory_space<vmem>>, vector<14x128xf32>
    tpu.vector_store %arg10[%c92, %c0_72], %91 {strides = array<i32>} : memref<400x128xf32, #tpu.memory_space<vmem>>, vector<14x128xf32>,
    %c224_73 = arith.constant 224 : index
    %c0_74 = arith.constant 0 : index
    %93 = tpu.strided_load %arg9[%c224_73, %c0_74] {strides = array<i32: 2, 1>} : memref<784x128xf32, #tpu.memory_space<vmem>>, vector<14x128xf32>
    %c225 = arith.constant 225 : index
    %c0_75 = arith.constant 0 : index
    %94 = tpu.strided_load %arg9[%c225, %c0_75] {strides = array<i32: 2, 1>} : memref<784x128xf32, #tpu.memory_space<vmem>>, vector<14x128xf32>
    %c252 = arith.constant 252 : index
    %c0_76 = arith.constant 0 : index
    %95 = tpu.strided_load %arg9[%c252, %c0_76] {strides = array<i32: 2, 1>} : memref<784x128xf32, #tpu.memory_space<vmem>>, vector<14x128xf32>
    %c253 = arith.constant 253 : index
    %c0_77 = arith.constant 0 : index
    %96 = tpu.strided_load %arg9[%c253, %c0_77] {strides = array<i32: 2, 1>} : memref<784x128xf32, #tpu.memory_space<vmem>>, vector<14x128xf32>
    %97 = arith.maximumf %93, %94 : vector<14x128xf32>
    %98 = arith.maximumf %95, %96 : vector<14x128xf32>
    %99 = arith.maximumf %97, %98 : vector<14x128xf32>
    %c110 = arith.constant 110 : index
    %c0_78 = arith.constant 0 : index
    %100 = vector.load %arg10[%c110, %c0_78] : memref<400x128xf32, #tpu.memory_space<vmem>>, vector<14x128xf32>
    tpu.vector_store %arg10[%c110, %c0_78], %99 {strides = array<i32>} : memref<400x128xf32, #tpu.memory_space<vmem>>, vector<14x128xf32>,
    %c280 = arith.constant 280 : index
    %c0_79 = arith.constant 0 : index
    %101 = tpu.strided_load %arg9[%c280, %c0_79] {strides = array<i32: 2, 1>} : memref<784x128xf32, #tpu.memory_space<vmem>>, vector<14x128xf32>
    %c281 = arith.constant 281 : index
    %c0_80 = arith.constant 0 : index
    %102 = tpu.strided_load %arg9[%c281, %c0_80] {strides = array<i32: 2, 1>} : memref<784x128xf32, #tpu.memory_space<vmem>>, vector<14x128xf32>
    %c308 = arith.constant 308 : index
    %c0_81 = arith.constant 0 : index
    %103 = tpu.strided_load %arg9[%c308, %c0_81] {strides = array<i32: 2, 1>} : memref<784x128xf32, #tpu.memory_space<vmem>>, vector<14x128xf32>
    %c309 = arith.constant 309 : index
    %c0_82 = arith.constant 0 : index
    %104 = tpu.strided_load %arg9[%c309, %c0_82] {strides = array<i32: 2, 1>} : memref<784x128xf32, #tpu.memory_space<vmem>>, vector<14x128xf32>
    %105 = arith.maximumf %101, %102 : vector<14x128xf32>
    %106 = arith.maximumf %103, %104 : vector<14x128xf32>
    %107 = arith.maximumf %105, %106 : vector<14x128xf32>
    %c128 = arith.constant 128 : index
    %c0_83 = arith.constant 0 : index
    %108 = vector.load %arg10[%c128, %c0_83] : memref<400x128xf32, #tpu.memory_space<vmem>>, vector<14x128xf32>
    tpu.vector_store %arg10[%c128, %c0_83], %107 {strides = array<i32>} : memref<400x128xf32, #tpu.memory_space<vmem>>, vector<14x128xf32>,
    %c336_84 = arith.constant 336 : index
    %c0_85 = arith.constant 0 : index
    %109 = tpu.strided_load %arg9[%c336_84, %c0_85] {strides = array<i32: 2, 1>} : memref<784x128xf32, #tpu.memory_space<vmem>>, vector<14x128xf32>
    %c337 = arith.constant 337 : index
    %c0_86 = arith.constant 0 : index
    %110 = tpu.strided_load %arg9[%c337, %c0_86] {strides = array<i32: 2, 1>} : memref<784x128xf32, #tpu.memory_space<vmem>>, vector<14x128xf32>
    %c364 = arith.constant 364 : index
    %c0_87 = arith.constant 0 : index
    %111 = tpu.strided_load %arg9[%c364, %c0_87] {strides = array<i32: 2, 1>} : memref<784x128xf32, #tpu.memory_space<vmem>>, vector<14x128xf32>
    %c365 = arith.constant 365 : index
    %c0_88 = arith.constant 0 : index
    %112 = tpu.strided_load %arg9[%c365, %c0_88] {strides = array<i32: 2, 1>} : memref<784x128xf32, #tpu.memory_space<vmem>>, vector<14x128xf32>
    %113 = arith.maximumf %109, %110 : vector<14x128xf32>
    %114 = arith.maximumf %111, %112 : vector<14x128xf32>
    %115 = arith.maximumf %113, %114 : vector<14x128xf32>
    %c146 = arith.constant 146 : index
    %c0_89 = arith.constant 0 : index
    %116 = vector.load %arg10[%c146, %c0_89] : memref<400x128xf32, #tpu.memory_space<vmem>>, vector<14x128xf32>
    tpu.vector_store %arg10[%c146, %c0_89], %115 {strides = array<i32>} : memref<400x128xf32, #tpu.memory_space<vmem>>, vector<14x128xf32>,
    %c392 = arith.constant 392 : index
    %c0_90 = arith.constant 0 : index
    %117 = tpu.strided_load %arg9[%c392, %c0_90] {strides = array<i32: 2, 1>} : memref<784x128xf32, #tpu.memory_space<vmem>>, vector<14x128xf32>
    %c393 = arith.constant 393 : index
    %c0_91 = arith.constant 0 : index
    %118 = tpu.strided_load %arg9[%c393, %c0_91] {strides = array<i32: 2, 1>} : memref<784x128xf32, #tpu.memory_space<vmem>>, vector<14x128xf32>
    %c420 = arith.constant 420 : index
    %c0_92 = arith.constant 0 : index
    %119 = tpu.strided_load %arg9[%c420, %c0_92] {strides = array<i32: 2, 1>} : memref<784x128xf32, #tpu.memory_space<vmem>>, vector<14x128xf32>
    %c421 = arith.constant 421 : index
    %c0_93 = arith.constant 0 : index
    %120 = tpu.strided_load %arg9[%c421, %c0_93] {strides = array<i32: 2, 1>} : memref<784x128xf32, #tpu.memory_space<vmem>>, vector<14x128xf32>
    %121 = arith.maximumf %117, %118 : vector<14x128xf32>
    %122 = arith.maximumf %119, %120 : vector<14x128xf32>
    %123 = arith.maximumf %121, %122 : vector<14x128xf32>
    %c164 = arith.constant 164 : index
    %c0_94 = arith.constant 0 : index
    %124 = vector.load %arg10[%c164, %c0_94] : memref<400x128xf32, #tpu.memory_space<vmem>>, vector<14x128xf32>
    tpu.vector_store %arg10[%c164, %c0_94], %123 {strides = array<i32>} : memref<400x128xf32, #tpu.memory_space<vmem>>, vector<14x128xf32>,
    %c448_95 = arith.constant 448 : index
    %c0_96 = arith.constant 0 : index
    %125 = tpu.strided_load %arg9[%c448_95, %c0_96] {strides = array<i32: 2, 1>} : memref<784x128xf32, #tpu.memory_space<vmem>>, vector<14x128xf32>
    %c449 = arith.constant 449 : index
    %c0_97 = arith.constant 0 : index
    %126 = tpu.strided_load %arg9[%c449, %c0_97] {strides = array<i32: 2, 1>} : memref<784x128xf32, #tpu.memory_space<vmem>>, vector<14x128xf32>
    %c476 = arith.constant 476 : index
    %c0_98 = arith.constant 0 : index
    %127 = tpu.strided_load %arg9[%c476, %c0_98] {strides = array<i32: 2, 1>} : memref<784x128xf32, #tpu.memory_space<vmem>>, vector<14x128xf32>
    %c477 = arith.constant 477 : index
    %c0_99 = arith.constant 0 : index
    %128 = tpu.strided_load %arg9[%c477, %c0_99] {strides = array<i32: 2, 1>} : memref<784x128xf32, #tpu.memory_space<vmem>>, vector<14x128xf32>
    %129 = arith.maximumf %125, %126 : vector<14x128xf32>
    %130 = arith.maximumf %127, %128 : vector<14x128xf32>
    %131 = arith.maximumf %129, %130 : vector<14x128xf32>
    %c182 = arith.constant 182 : index
    %c0_100 = arith.constant 0 : index
    %132 = vector.load %arg10[%c182, %c0_100] : memref<400x128xf32, #tpu.memory_space<vmem>>, vector<14x128xf32>
    tpu.vector_store %arg10[%c182, %c0_100], %131 {strides = array<i32>} : memref<400x128xf32, #tpu.memory_space<vmem>>, vector<14x128xf32>,
    %c504 = arith.constant 504 : index
    %c0_101 = arith.constant 0 : index
    %133 = tpu.strided_load %arg9[%c504, %c0_101] {strides = array<i32: 2, 1>} : memref<784x128xf32, #tpu.memory_space<vmem>>, vector<14x128xf32>
    %c505 = arith.constant 505 : index
    %c0_102 = arith.constant 0 : index
    %134 = tpu.strided_load %arg9[%c505, %c0_102] {strides = array<i32: 2, 1>} : memref<784x128xf32, #tpu.memory_space<vmem>>, vector<14x128xf32>
    %c532 = arith.constant 532 : index
    %c0_103 = arith.constant 0 : index
    %135 = tpu.strided_load %arg9[%c532, %c0_103] {strides = array<i32: 2, 1>} : memref<784x128xf32, #tpu.memory_space<vmem>>, vector<14x128xf32>
    %c533 = arith.constant 533 : index
    %c0_104 = arith.constant 0 : index
    %136 = tpu.strided_load %arg9[%c533, %c0_104] {strides = array<i32: 2, 1>} : memref<784x128xf32, #tpu.memory_space<vmem>>, vector<14x128xf32>
    %137 = arith.maximumf %133, %134 : vector<14x128xf32>
    %138 = arith.maximumf %135, %136 : vector<14x128xf32>
    %139 = arith.maximumf %137, %138 : vector<14x128xf32>
    %c200 = arith.constant 200 : index
    %c0_105 = arith.constant 0 : index
    %140 = vector.load %arg10[%c200, %c0_105] : memref<400x128xf32, #tpu.memory_space<vmem>>, vector<14x128xf32>
    tpu.vector_store %arg10[%c200, %c0_105], %139 {strides = array<i32>} : memref<400x128xf32, #tpu.memory_space<vmem>>, vector<14x128xf32>,
    %c560_106 = arith.constant 560 : index
    %c0_107 = arith.constant 0 : index
    %141 = tpu.strided_load %arg9[%c560_106, %c0_107] {strides = array<i32: 2, 1>} : memref<784x128xf32, #tpu.memory_space<vmem>>, vector<14x128xf32>
    %c561 = arith.constant 561 : index
    %c0_108 = arith.constant 0 : index
    %142 = tpu.strided_load %arg9[%c561, %c0_108] {strides = array<i32: 2, 1>} : memref<784x128xf32, #tpu.memory_space<vmem>>, vector<14x128xf32>
    %c588 = arith.constant 588 : index
    %c0_109 = arith.constant 0 : index
    %143 = tpu.strided_load %arg9[%c588, %c0_109] {strides = array<i32: 2, 1>} : memref<784x128xf32, #tpu.memory_space<vmem>>, vector<14x128xf32>
    %c589 = arith.constant 589 : index
    %c0_110 = arith.constant 0 : index
    %144 = tpu.strided_load %arg9[%c589, %c0_110] {strides = array<i32: 2, 1>} : memref<784x128xf32, #tpu.memory_space<vmem>>, vector<14x128xf32>
    %145 = arith.maximumf %141, %142 : vector<14x128xf32>
    %146 = arith.maximumf %143, %144 : vector<14x128xf32>
    %147 = arith.maximumf %145, %146 : vector<14x128xf32>
    %c218 = arith.constant 218 : index
    %c0_111 = arith.constant 0 : index
    %148 = vector.load %arg10[%c218, %c0_111] : memref<400x128xf32, #tpu.memory_space<vmem>>, vector<14x128xf32>
    tpu.vector_store %arg10[%c218, %c0_111], %147 {strides = array<i32>} : memref<400x128xf32, #tpu.memory_space<vmem>>, vector<14x128xf32>,
    %c616 = arith.constant 616 : index
    %c0_112 = arith.constant 0 : index
    %149 = tpu.strided_load %arg9[%c616, %c0_112] {strides = array<i32: 2, 1>} : memref<784x128xf32, #tpu.memory_space<vmem>>, vector<14x128xf32>
    %c617 = arith.constant 617 : index
    %c0_113 = arith.constant 0 : index
    %150 = tpu.strided_load %arg9[%c617, %c0_113] {strides = array<i32: 2, 1>} : memref<784x128xf32, #tpu.memory_space<vmem>>, vector<14x128xf32>
    %c644 = arith.constant 644 : index
    %c0_114 = arith.constant 0 : index
    %151 = tpu.strided_load %arg9[%c644, %c0_114] {strides = array<i32: 2, 1>} : memref<784x128xf32, #tpu.memory_space<vmem>>, vector<14x128xf32>
    %c645 = arith.constant 645 : index
    %c0_115 = arith.constant 0 : index
    %152 = tpu.strided_load %arg9[%c645, %c0_115] {strides = array<i32: 2, 1>} : memref<784x128xf32, #tpu.memory_space<vmem>>, vector<14x128xf32>
    %153 = arith.maximumf %149, %150 : vector<14x128xf32>
    %154 = arith.maximumf %151, %152 : vector<14x128xf32>
    %155 = arith.maximumf %153, %154 : vector<14x128xf32>
    %c236 = arith.constant 236 : index
    %c0_116 = arith.constant 0 : index
    %156 = vector.load %arg10[%c236, %c0_116] : memref<400x128xf32, #tpu.memory_space<vmem>>, vector<14x128xf32>
    tpu.vector_store %arg10[%c236, %c0_116], %155 {strides = array<i32>} : memref<400x128xf32, #tpu.memory_space<vmem>>, vector<14x128xf32>,
    %c672_117 = arith.constant 672 : index
    %c0_118 = arith.constant 0 : index
    %157 = tpu.strided_load %arg9[%c672_117, %c0_118] {strides = array<i32: 2, 1>} : memref<784x128xf32, #tpu.memory_space<vmem>>, vector<14x128xf32>
    %c673 = arith.constant 673 : index
    %c0_119 = arith.constant 0 : index
    %158 = tpu.strided_load %arg9[%c673, %c0_119] {strides = array<i32: 2, 1>} : memref<784x128xf32, #tpu.memory_space<vmem>>, vector<14x128xf32>
    %c700 = arith.constant 700 : index
    %c0_120 = arith.constant 0 : index
    %159 = tpu.strided_load %arg9[%c700, %c0_120] {strides = array<i32: 2, 1>} : memref<784x128xf32, #tpu.memory_space<vmem>>, vector<14x128xf32>
    %c701 = arith.constant 701 : index
    %c0_121 = arith.constant 0 : index
    %160 = tpu.strided_load %arg9[%c701, %c0_121] {strides = array<i32: 2, 1>} : memref<784x128xf32, #tpu.memory_space<vmem>>, vector<14x128xf32>
    %161 = arith.maximumf %157, %158 : vector<14x128xf32>
    %162 = arith.maximumf %159, %160 : vector<14x128xf32>
    %163 = arith.maximumf %161, %162 : vector<14x128xf32>
    %c254 = arith.constant 254 : index
    %c0_122 = arith.constant 0 : index
    %164 = vector.load %arg10[%c254, %c0_122] : memref<400x128xf32, #tpu.memory_space<vmem>>, vector<14x128xf32>
    tpu.vector_store %arg10[%c254, %c0_122], %163 {strides = array<i32>} : memref<400x128xf32, #tpu.memory_space<vmem>>, vector<14x128xf32>,
    %c728 = arith.constant 728 : index
    %c0_123 = arith.constant 0 : index
    %165 = tpu.strided_load %arg9[%c728, %c0_123] {strides = array<i32: 2, 1>} : memref<784x128xf32, #tpu.memory_space<vmem>>, vector<14x128xf32>
    %c729 = arith.constant 729 : index
    %c0_124 = arith.constant 0 : index
    %166 = tpu.strided_load %arg9[%c729, %c0_124] {strides = array<i32: 2, 1>} : memref<784x128xf32, #tpu.memory_space<vmem>>, vector<14x128xf32>
    %c756 = arith.constant 756 : index
    %c0_125 = arith.constant 0 : index
    %167 = tpu.strided_load %arg9[%c756, %c0_125] {strides = array<i32: 2, 1>} : memref<784x128xf32, #tpu.memory_space<vmem>>, vector<14x128xf32>
    %c757 = arith.constant 757 : index
    %c0_126 = arith.constant 0 : index
    %168 = tpu.strided_load %arg9[%c757, %c0_126] {strides = array<i32: 2, 1>} : memref<784x128xf32, #tpu.memory_space<vmem>>, vector<14x128xf32>
    %169 = arith.maximumf %165, %166 : vector<14x128xf32>
    %170 = arith.maximumf %167, %168 : vector<14x128xf32>
    %171 = arith.maximumf %169, %170 : vector<14x128xf32>
    %c272 = arith.constant 272 : index
    %c0_127 = arith.constant 0 : index
    %172 = vector.load %arg10[%c272, %c0_127] : memref<400x128xf32, #tpu.memory_space<vmem>>, vector<14x128xf32>
    tpu.vector_store %arg10[%c272, %c0_127], %171 {strides = array<i32>} : memref<400x128xf32, #tpu.memory_space<vmem>>, vector<14x128xf32>,
    %cst_128 = arith.constant 0.000000e+00 : f32
    %173 = vector.broadcast %cst_128 : f32 to vector<128x128xf32>
    %c0_129 = arith.constant 0 : index
    %c0_130 = arith.constant 0 : index
    %174 = vector.load %arg10[%c0_129, %c0_130] : memref<400x128xf32, #tpu.memory_space<vmem>>, vector<128x128xf32>
    %c1_131 = arith.constant 1 : index
    %c0_132 = arith.constant 0 : index
    %175 = vector.load %arg10[%c1_131, %c0_132] : memref<400x128xf32, #tpu.memory_space<vmem>>, vector<128x128xf32>
    %c16_i32 = arith.constant 16 : i32
    %176 = tpu.dynamic_rotate %175 by %c16_i32 dim 1 : vector<128x128xf32>, i32 -> vector<128x128xf32>
    %177 = arith.addf %174, %176 : vector<128x128xf32>
    %c2 = arith.constant 2 : index
    %c0_133 = arith.constant 0 : index
    %178 = vector.load %arg10[%c2, %c0_133] : memref<400x128xf32, #tpu.memory_space<vmem>>, vector<128x128xf32>
    %c32_i32 = arith.constant 32 : i32
    %179 = tpu.dynamic_rotate %178 by %c32_i32 dim 1 : vector<128x128xf32>, i32 -> vector<128x128xf32>
    %180 = arith.addf %177, %179 : vector<128x128xf32>
    %c3 = arith.constant 3 : index
    %c0_134 = arith.constant 0 : index
    %181 = vector.load %arg10[%c3, %c0_134] : memref<400x128xf32, #tpu.memory_space<vmem>>, vector<128x128xf32>
    %c48_i32 = arith.constant 48 : i32
    %182 = tpu.dynamic_rotate %181 by %c48_i32 dim 1 : vector<128x128xf32>, i32 -> vector<128x128xf32>
    %183 = arith.addf %180, %182 : vector<128x128xf32>
    %c4 = arith.constant 4 : index
    %c0_135 = arith.constant 0 : index
    %184 = vector.load %arg10[%c4, %c0_135] : memref<400x128xf32, #tpu.memory_space<vmem>>, vector<128x128xf32>
    %c64_i32 = arith.constant 64 : i32
    %185 = tpu.dynamic_rotate %184 by %c64_i32 dim 1 : vector<128x128xf32>, i32 -> vector<128x128xf32>
    %186 = arith.addf %183, %185 : vector<128x128xf32>
    %c18 = arith.constant 18 : index
    %c0_136 = arith.constant 0 : index
    %187 = vector.load %arg10[%c18, %c0_136] : memref<400x128xf32, #tpu.memory_space<vmem>>, vector<128x128xf32>
    %c80_i32 = arith.constant 80 : i32
    %188 = tpu.dynamic_rotate %187 by %c80_i32 dim 1 : vector<128x128xf32>, i32 -> vector<128x128xf32>
    %189 = arith.addf %186, %188 : vector<128x128xf32>
    %c19 = arith.constant 19 : index
    %c0_137 = arith.constant 0 : index
    %190 = vector.load %arg10[%c19, %c0_137] : memref<400x128xf32, #tpu.memory_space<vmem>>, vector<128x128xf32>
    %c96_i32 = arith.constant 96 : i32
    %191 = tpu.dynamic_rotate %190 by %c96_i32 dim 1 : vector<128x128xf32>, i32 -> vector<128x128xf32>
    %192 = arith.addf %189, %191 : vector<128x128xf32>
    %c20 = arith.constant 20 : index
    %c0_138 = arith.constant 0 : index
    %193 = vector.load %arg10[%c20, %c0_138] : memref<400x128xf32, #tpu.memory_space<vmem>>, vector<128x128xf32>
    %c112_i32 = arith.constant 112 : i32
    %194 = tpu.dynamic_rotate %193 by %c112_i32 dim 1 : vector<128x128xf32>, i32 -> vector<128x128xf32>
    %195 = arith.addf %192, %194 : vector<128x128xf32>
    %c0_139 = arith.constant 0 : index
    %c0_140 = arith.constant 0 : index
    %c0_141 = arith.constant 0 : index
    %196 = vector.load %arg4[%c0_139, %c0_140, %c0_141] : memref<4x128x128xf32, #tpu.memory_space<vmem>>, vector<1x128x128xf32>
    %197 = vector.shape_cast %196 : vector<1x128x128xf32> to vector<128x128xf32>
    %cst_142 = arith.constant dense<0.000000e+00> : vector<128x128xf32>
    %198 = tpu.matmul %195, %197, %cst_142 {dimension_numbers = #tpu.dot_dimension_numbers<[1], [0], [0], [1], [0, 0, 1, 1], [], []>} : vector<128x128xf32>, vector<128x128xf32>, vector<128x128xf32> -> vector<128x128xf32>
    %199 = arith.addf %173, %198 : vector<128x128xf32>
    %c21 = arith.constant 21 : index
    %c0_143 = arith.constant 0 : index
    %200 = vector.load %arg10[%c21, %c0_143] : memref<400x128xf32, #tpu.memory_space<vmem>>, vector<128x128xf32>
    %c22 = arith.constant 22 : index
    %c0_144 = arith.constant 0 : index
    %201 = vector.load %arg10[%c22, %c0_144] : memref<400x128xf32, #tpu.memory_space<vmem>>, vector<128x128xf32>
    %c16_i32_145 = arith.constant 16 : i32
    %202 = tpu.dynamic_rotate %201 by %c16_i32_145 dim 1 : vector<128x128xf32>, i32 -> vector<128x128xf32>
    %203 = arith.addf %200, %202 : vector<128x128xf32>
    %c36 = arith.constant 36 : index
    %c0_146 = arith.constant 0 : index
    %204 = vector.load %arg10[%c36, %c0_146] : memref<400x128xf32, #tpu.memory_space<vmem>>, vector<128x128xf32>
    %c32_i32_147 = arith.constant 32 : i32
    %205 = tpu.dynamic_rotate %204 by %c32_i32_147 dim 1 : vector<128x128xf32>, i32 -> vector<128x128xf32>
    %206 = arith.addf %203, %205 : vector<128x128xf32>
    %c37 = arith.constant 37 : index
    %c0_148 = arith.constant 0 : index
    %207 = vector.load %arg10[%c37, %c0_148] : memref<400x128xf32, #tpu.memory_space<vmem>>, vector<128x128xf32>
    %c48_i32_149 = arith.constant 48 : i32
    %208 = tpu.dynamic_rotate %207 by %c48_i32_149 dim 1 : vector<128x128xf32>, i32 -> vector<128x128xf32>
    %209 = arith.addf %206, %208 : vector<128x128xf32>
    %c38_150 = arith.constant 38 : index
    %c0_151 = arith.constant 0 : index
    %210 = vector.load %arg10[%c38_150, %c0_151] : memref<400x128xf32, #tpu.memory_space<vmem>>, vector<128x128xf32>
    %c64_i32_152 = arith.constant 64 : i32
    %211 = tpu.dynamic_rotate %210 by %c64_i32_152 dim 1 : vector<128x128xf32>, i32 -> vector<128x128xf32>
    %212 = arith.addf %209, %211 : vector<128x128xf32>
    %c39 = arith.constant 39 : index
    %c0_153 = arith.constant 0 : index
    %213 = vector.load %arg10[%c39, %c0_153] : memref<400x128xf32, #tpu.memory_space<vmem>>, vector<128x128xf32>
    %c80_i32_154 = arith.constant 80 : i32
    %214 = tpu.dynamic_rotate %213 by %c80_i32_154 dim 1 : vector<128x128xf32>, i32 -> vector<128x128xf32>
    %215 = arith.addf %212, %214 : vector<128x128xf32>
    %c40 = arith.constant 40 : index
    %c0_155 = arith.constant 0 : index
    %216 = vector.load %arg10[%c40, %c0_155] : memref<400x128xf32, #tpu.memory_space<vmem>>, vector<128x128xf32>
    %c96_i32_156 = arith.constant 96 : i32
    %217 = tpu.dynamic_rotate %216 by %c96_i32_156 dim 1 : vector<128x128xf32>, i32 -> vector<128x128xf32>
    %218 = arith.addf %215, %217 : vector<128x128xf32>
    %c54 = arith.constant 54 : index
    %c0_157 = arith.constant 0 : index
    %219 = vector.load %arg10[%c54, %c0_157] : memref<400x128xf32, #tpu.memory_space<vmem>>, vector<128x128xf32>
    %c112_i32_158 = arith.constant 112 : i32
    %220 = tpu.dynamic_rotate %219 by %c112_i32_158 dim 1 : vector<128x128xf32>, i32 -> vector<128x128xf32>
    %221 = arith.addf %218, %220 : vector<128x128xf32>
    %c1_159 = arith.constant 1 : index
    %c0_160 = arith.constant 0 : index
    %c0_161 = arith.constant 0 : index
    %222 = vector.load %arg4[%c1_159, %c0_160, %c0_161] : memref<4x128x128xf32, #tpu.memory_space<vmem>>, vector<1x128x128xf32>
    %223 = vector.shape_cast %222 : vector<1x128x128xf32> to vector<128x128xf32>
    %cst_162 = arith.constant dense<0.000000e+00> : vector<128x128xf32>
    %224 = tpu.matmul %221, %223, %cst_162 {dimension_numbers = #tpu.dot_dimension_numbers<[1], [0], [0], [1], [0, 0, 1, 1], [], []>} : vector<128x128xf32>, vector<128x128xf32>, vector<128x128xf32> -> vector<128x128xf32>
    %225 = arith.addf %199, %224 : vector<128x128xf32>
    %c55 = arith.constant 55 : index
    %c0_163 = arith.constant 0 : index
    %226 = vector.load %arg10[%c55, %c0_163] : memref<400x128xf32, #tpu.memory_space<vmem>>, vector<128x128xf32>
    %c56_164 = arith.constant 56 : index
    %c0_165 = arith.constant 0 : index
    %227 = vector.load %arg10[%c56_164, %c0_165] : memref<400x128xf32, #tpu.memory_space<vmem>>, vector<128x128xf32>
    %c16_i32_166 = arith.constant 16 : i32
    %228 = tpu.dynamic_rotate %227 by %c16_i32_166 dim 1 : vector<128x128xf32>, i32 -> vector<128x128xf32>
    %229 = arith.addf %226, %228 : vector<128x128xf32>
    %c57_167 = arith.constant 57 : index
    %c0_168 = arith.constant 0 : index
    %230 = vector.load %arg10[%c57_167, %c0_168] : memref<400x128xf32, #tpu.memory_space<vmem>>, vector<128x128xf32>
    %c32_i32_169 = arith.constant 32 : i32
    %231 = tpu.dynamic_rotate %230 by %c32_i32_169 dim 1 : vector<128x128xf32>, i32 -> vector<128x128xf32>
    %232 = arith.addf %229, %231 : vector<128x128xf32>
    %c58 = arith.constant 58 : index
    %c0_170 = arith.constant 0 : index
    %233 = vector.load %arg10[%c58, %c0_170] : memref<400x128xf32, #tpu.memory_space<vmem>>, vector<128x128xf32>
    %c48_i32_171 = arith.constant 48 : i32
    %234 = tpu.dynamic_rotate %233 by %c48_i32_171 dim 1 : vector<128x128xf32>, i32 -> vector<128x128xf32>
    %235 = arith.addf %232, %234 : vector<128x128xf32>
    %c72 = arith.constant 72 : index
    %c0_172 = arith.constant 0 : index
    %236 = vector.load %arg10[%c72, %c0_172] : memref<400x128xf32, #tpu.memory_space<vmem>>, vector<128x128xf32>
    %c64_i32_173 = arith.constant 64 : i32
    %237 = tpu.dynamic_rotate %236 by %c64_i32_173 dim 1 : vector<128x128xf32>, i32 -> vector<128x128xf32>
    %238 = arith.addf %235, %237 : vector<128x128xf32>
    %c73 = arith.constant 73 : index
    %c0_174 = arith.constant 0 : index
    %239 = vector.load %arg10[%c73, %c0_174] : memref<400x128xf32, #tpu.memory_space<vmem>>, vector<128x128xf32>
    %c80_i32_175 = arith.constant 80 : i32
    %240 = tpu.dynamic_rotate %239 by %c80_i32_175 dim 1 : vector<128x128xf32>, i32 -> vector<128x128xf32>
    %241 = arith.addf %238, %240 : vector<128x128xf32>
    %c74_176 = arith.constant 74 : index
    %c0_177 = arith.constant 0 : index
    %242 = vector.load %arg10[%c74_176, %c0_177] : memref<400x128xf32, #tpu.memory_space<vmem>>, vector<128x128xf32>
    %c96_i32_178 = arith.constant 96 : i32
    %243 = tpu.dynamic_rotate %242 by %c96_i32_178 dim 1 : vector<128x128xf32>, i32 -> vector<128x128xf32>
    %244 = arith.addf %241, %243 : vector<128x128xf32>
    %c75 = arith.constant 75 : index
    %c0_179 = arith.constant 0 : index
    %245 = vector.load %arg10[%c75, %c0_179] : memref<400x128xf32, #tpu.memory_space<vmem>>, vector<128x128xf32>
    %c112_i32_180 = arith.constant 112 : i32
    %246 = tpu.dynamic_rotate %245 by %c112_i32_180 dim 1 : vector<128x128xf32>, i32 -> vector<128x128xf32>
    %247 = arith.addf %244, %246 : vector<128x128xf32>
    %c2_181 = arith.constant 2 : index
    %c0_182 = arith.constant 0 : index
    %c0_183 = arith.constant 0 : index
    %248 = vector.load %arg4[%c2_181, %c0_182, %c0_183] : memref<4x128x128xf32, #tpu.memory_space<vmem>>, vector<1x128x128xf32>
    %249 = vector.shape_cast %248 : vector<1x128x128xf32> to vector<128x128xf32>
    %cst_184 = arith.constant dense<0.000000e+00> : vector<128x128xf32>
    %250 = tpu.matmul %247, %249, %cst_184 {dimension_numbers = #tpu.dot_dimension_numbers<[1], [0], [0], [1], [0, 0, 1, 1], [], []>} : vector<128x128xf32>, vector<128x128xf32>, vector<128x128xf32> -> vector<128x128xf32>
    %251 = arith.addf %225, %250 : vector<128x128xf32>
    %c76 = arith.constant 76 : index
    %c0_185 = arith.constant 0 : index
    %252 = vector.load %arg10[%c76, %c0_185] : memref<400x128xf32, #tpu.memory_space<vmem>>, vector<128x128xf32>
    %c3_186 = arith.constant 3 : index
    %c0_187 = arith.constant 0 : index
    %c0_188 = arith.constant 0 : index
    %253 = vector.load %arg4[%c3_186, %c0_187, %c0_188] : memref<4x128x128xf32, #tpu.memory_space<vmem>>, vector<1x128x128xf32>
    %254 = vector.shape_cast %253 : vector<1x128x128xf32> to vector<128x128xf32>
    %cst_189 = arith.constant dense<0.000000e+00> : vector<128x128xf32>
    %255 = tpu.matmul %252, %254, %cst_189 {dimension_numbers = #tpu.dot_dimension_numbers<[1], [0], [0], [1], [0, 0, 1, 1], [], []>} : vector<128x128xf32>, vector<128x128xf32>, vector<128x128xf32> -> vector<128x128xf32>
    %256 = arith.addf %251, %255 : vector<128x128xf32>
    %257 = vector.broadcast %2 : vector<1x128xf32> to vector<128x128xf32>
    %258 = arith.addf %256, %257 : vector<128x128xf32>
    %cst_190 = arith.constant 0.000000e+00 : f32
    %259 = vector.broadcast %cst_190 : f32 to vector<128x128xf32>
    %260 = arith.maximumf %258, %259 : vector<128x128xf32>
    %c0_191 = arith.constant 0 : index
    %c0_192 = arith.constant 0 : index
    %261 = vector.load %arg11[%c0_191, %c0_192] : memref<256x128xf32, #tpu.memory_space<vmem>>, vector<128x128xf32>
    tpu.vector_store %arg11[%c0_191, %c0_192], %260 {strides = array<i32>} : memref<256x128xf32, #tpu.memory_space<vmem>>, vector<128x128xf32>,
    %cst_193 = arith.constant 0.000000e+00 : f32
    %262 = vector.broadcast %cst_193 : f32 to vector<128x128xf32>
    %c128_194 = arith.constant 128 : index
    %c0_195 = arith.constant 0 : index
    %263 = vector.load %arg10[%c128_194, %c0_195] : memref<400x128xf32, #tpu.memory_space<vmem>>, vector<128x128xf32>
    %c129 = arith.constant 129 : index
    %c0_196 = arith.constant 0 : index
    %264 = vector.load %arg10[%c129, %c0_196] : memref<400x128xf32, #tpu.memory_space<vmem>>, vector<128x128xf32>
    %c16_i32_197 = arith.constant 16 : i32
    %265 = tpu.dynamic_rotate %264 by %c16_i32_197 dim 1 : vector<128x128xf32>, i32 -> vector<128x128xf32>
    %266 = arith.addf %263, %265 : vector<128x128xf32>
    %c130 = arith.constant 130 : index
    %c0_198 = arith.constant 0 : index
    %267 = vector.load %arg10[%c130, %c0_198] : memref<400x128xf32, #tpu.memory_space<vmem>>, vector<128x128xf32>
    %c32_i32_199 = arith.constant 32 : i32
    %268 = tpu.dynamic_rotate %267 by %c32_i32_199 dim 1 : vector<128x128xf32>, i32 -> vector<128x128xf32>
    %269 = arith.addf %266, %268 : vector<128x128xf32>
    %c131 = arith.constant 131 : index
    %c0_200 = arith.constant 0 : index
    %270 = vector.load %arg10[%c131, %c0_200] : memref<400x128xf32, #tpu.memory_space<vmem>>, vector<128x128xf32>
    %c48_i32_201 = arith.constant 48 : i32
    %271 = tpu.dynamic_rotate %270 by %c48_i32_201 dim 1 : vector<128x128xf32>, i32 -> vector<128x128xf32>
    %272 = arith.addf %269, %271 : vector<128x128xf32>
    %c132 = arith.constant 132 : index
    %c0_202 = arith.constant 0 : index
    %273 = vector.load %arg10[%c132, %c0_202] : memref<400x128xf32, #tpu.memory_space<vmem>>, vector<128x128xf32>
    %c64_i32_203 = arith.constant 64 : i32
    %274 = tpu.dynamic_rotate %273 by %c64_i32_203 dim 1 : vector<128x128xf32>, i32 -> vector<128x128xf32>
    %275 = arith.addf %272, %274 : vector<128x128xf32>
    %c146_204 = arith.constant 146 : index
    %c0_205 = arith.constant 0 : index
    %276 = vector.load %arg10[%c146_204, %c0_205] : memref<400x128xf32, #tpu.memory_space<vmem>>, vector<128x128xf32>
    %c80_i32_206 = arith.constant 80 : i32
    %277 = tpu.dynamic_rotate %276 by %c80_i32_206 dim 1 : vector<128x128xf32>, i32 -> vector<128x128xf32>
    %278 = arith.addf %275, %277 : vector<128x128xf32>
    %c147 = arith.constant 147 : index
    %c0_207 = arith.constant 0 : index
    %279 = vector.load %arg10[%c147, %c0_207] : memref<400x128xf32, #tpu.memory_space<vmem>>, vector<128x128xf32>
    %c96_i32_208 = arith.constant 96 : i32
    %280 = tpu.dynamic_rotate %279 by %c96_i32_208 dim 1 : vector<128x128xf32>, i32 -> vector<128x128xf32>
    %281 = arith.addf %278, %280 : vector<128x128xf32>
    %c148 = arith.constant 148 : index
    %c0_209 = arith.constant 0 : index
    %282 = vector.load %arg10[%c148, %c0_209] : memref<400x128xf32, #tpu.memory_space<vmem>>, vector<128x128xf32>
    %c112_i32_210 = arith.constant 112 : i32
    %283 = tpu.dynamic_rotate %282 by %c112_i32_210 dim 1 : vector<128x128xf32>, i32 -> vector<128x128xf32>
    %284 = arith.addf %281, %283 : vector<128x128xf32>
    %c0_211 = arith.constant 0 : index
    %c0_212 = arith.constant 0 : index
    %c0_213 = arith.constant 0 : index
    %285 = vector.load %arg4[%c0_211, %c0_212, %c0_213] : memref<4x128x128xf32, #tpu.memory_space<vmem>>, vector<1x128x128xf32>
    %286 = vector.shape_cast %285 : vector<1x128x128xf32> to vector<128x128xf32>
    %cst_214 = arith.constant dense<0.000000e+00> : vector<128x128xf32>
    %287 = tpu.matmul %284, %286, %cst_214 {dimension_numbers = #tpu.dot_dimension_numbers<[1], [0], [0], [1], [0, 0, 1, 1], [], []>} : vector<128x128xf32>, vector<128x128xf32>, vector<128x128xf32> -> vector<128x128xf32>
    %288 = arith.addf %262, %287 : vector<128x128xf32>
    %c149 = arith.constant 149 : index
    %c0_215 = arith.constant 0 : index
    %289 = vector.load %arg10[%c149, %c0_215] : memref<400x128xf32, #tpu.memory_space<vmem>>, vector<128x128xf32>
    %c150 = arith.constant 150 : index
    %c0_216 = arith.constant 0 : index
    %290 = vector.load %arg10[%c150, %c0_216] : memref<400x128xf32, #tpu.memory_space<vmem>>, vector<128x128xf32>
    %c16_i32_217 = arith.constant 16 : i32
    %291 = tpu.dynamic_rotate %290 by %c16_i32_217 dim 1 : vector<128x128xf32>, i32 -> vector<128x128xf32>
    %292 = arith.addf %289, %291 : vector<128x128xf32>
    %c164_218 = arith.constant 164 : index
    %c0_219 = arith.constant 0 : index
    %293 = vector.load %arg10[%c164_218, %c0_219] : memref<400x128xf32, #tpu.memory_space<vmem>>, vector<128x128xf32>
    %c32_i32_220 = arith.constant 32 : i32
    %294 = tpu.dynamic_rotate %293 by %c32_i32_220 dim 1 : vector<128x128xf32>, i32 -> vector<128x128xf32>
    %295 = arith.addf %292, %294 : vector<128x128xf32>
    %c165 = arith.constant 165 : index
    %c0_221 = arith.constant 0 : index
    %296 = vector.load %arg10[%c165, %c0_221] : memref<400x128xf32, #tpu.memory_space<vmem>>, vector<128x128xf32>
    %c48_i32_222 = arith.constant 48 : i32
    %297 = tpu.dynamic_rotate %296 by %c48_i32_222 dim 1 : vector<128x128xf32>, i32 -> vector<128x128xf32>
    %298 = arith.addf %295, %297 : vector<128x128xf32>
    %c166 = arith.constant 166 : index
    %c0_223 = arith.constant 0 : index
    %299 = vector.load %arg10[%c166, %c0_223] : memref<400x128xf32, #tpu.memory_space<vmem>>, vector<128x128xf32>
    %c64_i32_224 = arith.constant 64 : i32
    %300 = tpu.dynamic_rotate %299 by %c64_i32_224 dim 1 : vector<128x128xf32>, i32 -> vector<128x128xf32>
    %301 = arith.addf %298, %300 : vector<128x128xf32>
    %c167 = arith.constant 167 : index
    %c0_225 = arith.constant 0 : index
    %302 = vector.load %arg10[%c167, %c0_225] : memref<400x128xf32, #tpu.memory_space<vmem>>, vector<128x128xf32>
    %c80_i32_226 = arith.constant 80 : i32
    %303 = tpu.dynamic_rotate %302 by %c80_i32_226 dim 1 : vector<128x128xf32>, i32 -> vector<128x128xf32>
    %304 = arith.addf %301, %303 : vector<128x128xf32>
    %c168_227 = arith.constant 168 : index
    %c0_228 = arith.constant 0 : index
    %305 = vector.load %arg10[%c168_227, %c0_228] : memref<400x128xf32, #tpu.memory_space<vmem>>, vector<128x128xf32>
    %c96_i32_229 = arith.constant 96 : i32
    %306 = tpu.dynamic_rotate %305 by %c96_i32_229 dim 1 : vector<128x128xf32>, i32 -> vector<128x128xf32>
    %307 = arith.addf %304, %306 : vector<128x128xf32>
    %c182_230 = arith.constant 182 : index
    %c0_231 = arith.constant 0 : index
    %308 = vector.load %arg10[%c182_230, %c0_231] : memref<400x128xf32, #tpu.memory_space<vmem>>, vector<128x128xf32>
    %c112_i32_232 = arith.constant 112 : i32
    %309 = tpu.dynamic_rotate %308 by %c112_i32_232 dim 1 : vector<128x128xf32>, i32 -> vector<128x128xf32>
    %310 = arith.addf %307, %309 : vector<128x128xf32>
    %c1_233 = arith.constant 1 : index
    %c0_234 = arith.constant 0 : index
    %c0_235 = arith.constant 0 : index
    %311 = vector.load %arg4[%c1_233, %c0_234, %c0_235] : memref<4x128x128xf32, #tpu.memory_space<vmem>>, vector<1x128x128xf32>
    %312 = vector.shape_cast %311 : vector<1x128x128xf32> to vector<128x128xf32>
    %cst_236 = arith.constant dense<0.000000e+00> : vector<128x128xf32>
    %313 = tpu.matmul %310, %312, %cst_236 {dimension_numbers = #tpu.dot_dimension_numbers<[1], [0], [0], [1], [0, 0, 1, 1], [], []>} : vector<128x128xf32>, vector<128x128xf32>, vector<128x128xf32> -> vector<128x128xf32>
    %314 = arith.addf %288, %313 : vector<128x128xf32>
    %c183 = arith.constant 183 : index
    %c0_237 = arith.constant 0 : index
    %315 = vector.load %arg10[%c183, %c0_237] : memref<400x128xf32, #tpu.memory_space<vmem>>, vector<128x128xf32>
    %c184 = arith.constant 184 : index
    %c0_238 = arith.constant 0 : index
    %316 = vector.load %arg10[%c184, %c0_238] : memref<400x128xf32, #tpu.memory_space<vmem>>, vector<128x128xf32>
    %c16_i32_239 = arith.constant 16 : i32
    %317 = tpu.dynamic_rotate %316 by %c16_i32_239 dim 1 : vector<128x128xf32>, i32 -> vector<128x128xf32>
    %318 = arith.addf %315, %317 : vector<128x128xf32>
    %c185 = arith.constant 185 : index
    %c0_240 = arith.constant 0 : index
    %319 = vector.load %arg10[%c185, %c0_240] : memref<400x128xf32, #tpu.memory_space<vmem>>, vector<128x128xf32>
    %c32_i32_241 = arith.constant 32 : i32
    %320 = tpu.dynamic_rotate %319 by %c32_i32_241 dim 1 : vector<128x128xf32>, i32 -> vector<128x128xf32>
    %321 = arith.addf %318, %320 : vector<128x128xf32>
    %c186 = arith.constant 186 : index
    %c0_242 = arith.constant 0 : index
    %322 = vector.load %arg10[%c186, %c0_242] : memref<400x128xf32, #tpu.memory_space<vmem>>, vector<128x128xf32>
    %c48_i32_243 = arith.constant 48 : i32
    %323 = tpu.dynamic_rotate %322 by %c48_i32_243 dim 1 : vector<128x128xf32>, i32 -> vector<128x128xf32>
    %324 = arith.addf %321, %323 : vector<128x128xf32>
    %c200_244 = arith.constant 200 : index
    %c0_245 = arith.constant 0 : index
    %325 = vector.load %arg10[%c200_244, %c0_245] : memref<400x128xf32, #tpu.memory_space<vmem>>, vector<128x128xf32>
    %c64_i32_246 = arith.constant 64 : i32
    %326 = tpu.dynamic_rotate %325 by %c64_i32_246 dim 1 : vector<128x128xf32>, i32 -> vector<128x128xf32>
    %327 = arith.addf %324, %326 : vector<128x128xf32>
    %c201 = arith.constant 201 : index
    %c0_247 = arith.constant 0 : index
    %328 = vector.load %arg10[%c201, %c0_247] : memref<400x128xf32, #tpu.memory_space<vmem>>, vector<128x128xf32>
    %c80_i32_248 = arith.constant 80 : i32
    %329 = tpu.dynamic_rotate %328 by %c80_i32_248 dim 1 : vector<128x128xf32>, i32 -> vector<128x128xf32>
    %330 = arith.addf %327, %329 : vector<128x128xf32>
    %c202 = arith.constant 202 : index
    %c0_249 = arith.constant 0 : index
    %331 = vector.load %arg10[%c202, %c0_249] : memref<400x128xf32, #tpu.memory_space<vmem>>, vector<128x128xf32>
    %c96_i32_250 = arith.constant 96 : i32
    %332 = tpu.dynamic_rotate %331 by %c96_i32_250 dim 1 : vector<128x128xf32>, i32 -> vector<128x128xf32>
    %333 = arith.addf %330, %332 : vector<128x128xf32>
    %c203 = arith.constant 203 : index
    %c0_251 = arith.constant 0 : index
    %334 = vector.load %arg10[%c203, %c0_251] : memref<400x128xf32, #tpu.memory_space<vmem>>, vector<128x128xf32>
    %c112_i32_252 = arith.constant 112 : i32
    %335 = tpu.dynamic_rotate %334 by %c112_i32_252 dim 1 : vector<128x128xf32>, i32 -> vector<128x128xf32>
    %336 = arith.addf %333, %335 : vector<128x128xf32>
    %c2_253 = arith.constant 2 : index
    %c0_254 = arith.constant 0 : index
    %c0_255 = arith.constant 0 : index
    %337 = vector.load %arg4[%c2_253, %c0_254, %c0_255] : memref<4x128x128xf32, #tpu.memory_space<vmem>>, vector<1x128x128xf32>
    %338 = vector.shape_cast %337 : vector<1x128x128xf32> to vector<128x128xf32>
    %cst_256 = arith.constant dense<0.000000e+00> : vector<128x128xf32>
    %339 = tpu.matmul %336, %338, %cst_256 {dimension_numbers = #tpu.dot_dimension_numbers<[1], [0], [0], [1], [0, 0, 1, 1], [], []>} : vector<128x128xf32>, vector<128x128xf32>, vector<128x128xf32> -> vector<128x128xf32>
    %340 = arith.addf %314, %339 : vector<128x128xf32>
    %c204 = arith.constant 204 : index
    %c0_257 = arith.constant 0 : index
    %341 = vector.load %arg10[%c204, %c0_257] : memref<400x128xf32, #tpu.memory_space<vmem>>, vector<128x128xf32>
    %c3_258 = arith.constant 3 : index
    %c0_259 = arith.constant 0 : index
    %c0_260 = arith.constant 0 : index
    %342 = vector.load %arg4[%c3_258, %c0_259, %c0_260] : memref<4x128x128xf32, #tpu.memory_space<vmem>>, vector<1x128x128xf32>
    %343 = vector.shape_cast %342 : vector<1x128x128xf32> to vector<128x128xf32>
    %cst_261 = arith.constant dense<0.000000e+00> : vector<128x128xf32>
    %344 = tpu.matmul %341, %343, %cst_261 {dimension_numbers = #tpu.dot_dimension_numbers<[1], [0], [0], [1], [0, 0, 1, 1], [], []>} : vector<128x128xf32>, vector<128x128xf32>, vector<128x128xf32> -> vector<128x128xf32>
    %345 = arith.addf %340, %344 : vector<128x128xf32>
    %346 = vector.broadcast %2 : vector<1x128xf32> to vector<128x128xf32>
    %347 = arith.addf %345, %346 : vector<128x128xf32>
    %cst_262 = arith.constant 0.000000e+00 : f32
    %348 = vector.broadcast %cst_262 : f32 to vector<128x128xf32>
    %349 = arith.maximumf %347, %348 : vector<128x128xf32>
    %c128_263 = arith.constant 128 : index
    %c0_264 = arith.constant 0 : index
    %350 = vector.load %arg11[%c128_263, %c0_264] : memref<256x128xf32, #tpu.memory_space<vmem>>, vector<128x128xf32>
    tpu.vector_store %arg11[%c128_263, %c0_264], %349 {strides = array<i32>} : memref<256x128xf32, #tpu.memory_space<vmem>>, vector<128x128xf32>,
    %cst_265 = arith.constant 0.000000e+00 : f32
    %351 = vector.broadcast %cst_265 : f32 to vector<16x128xf32>
    %c0_266 = arith.constant 0 : index
    %c0_267 = arith.constant 0 : index
    %352 = tpu.strided_load %arg11[%c0_266, %c0_267] {strides = array<i32: 2, 1>} : memref<256x128xf32, #tpu.memory_space<vmem>>, vector<7x128xf32>
    %c1_268 = arith.constant 1 : index
    %c0_269 = arith.constant 0 : index
    %353 = tpu.strided_load %arg11[%c1_268, %c0_269] {strides = array<i32: 2, 1>} : memref<256x128xf32, #tpu.memory_space<vmem>>, vector<7x128xf32>
    %c18_270 = arith.constant 18 : index
    %c0_271 = arith.constant 0 : index
    %354 = tpu.strided_load %arg11[%c18_270, %c0_271] {strides = array<i32: 2, 1>} : memref<256x128xf32, #tpu.memory_space<vmem>>, vector<7x128xf32>
    %c19_272 = arith.constant 19 : index
    %c0_273 = arith.constant 0 : index
    %355 = tpu.strided_load %arg11[%c19_272, %c0_273] {strides = array<i32: 2, 1>} : memref<256x128xf32, #tpu.memory_space<vmem>>, vector<7x128xf32>
    %356 = arith.maximumf %352, %353 : vector<7x128xf32>
    %357 = arith.maximumf %354, %355 : vector<7x128xf32>
    %358 = arith.maximumf %356, %357 : vector<7x128xf32>
    %c0_274 = arith.constant 0 : index
    %c0_275 = arith.constant 0 : index
    %c0_276 = arith.constant 0 : index
    %359 = vector.load %arg6[%c0_274, %c0_275, %c0_276] : memref<56x16x128xf32, #tpu.memory_space<vmem>>, vector<1x16x128xf32>
    %360 = vector.shape_cast %359 : vector<1x16x128xf32> to vector<16x128xf32>
    %361 = vector.extract_strided_slice %358 {offsets = [0, 0], sizes = [1, 128], strides = [1, 1]} : vector<7x128xf32> to vector<1x128xf32>
    %362 = vector.broadcast %361 : vector<1x128xf32> to vector<16x128xf32>
    %363 = arith.mulf %360, %362 : vector<16x128xf32>
    %364 = arith.addf %351, %363 : vector<16x128xf32>
    %c1_277 = arith.constant 1 : index
    %c0_278 = arith.constant 0 : index
    %c0_279 = arith.constant 0 : index
    %365 = vector.load %arg6[%c1_277, %c0_278, %c0_279] : memref<56x16x128xf32, #tpu.memory_space<vmem>>, vector<1x16x128xf32>
    %366 = vector.shape_cast %365 : vector<1x16x128xf32> to vector<16x128xf32>
    %367 = vector.extract_strided_slice %358 {offsets = [1, 0], sizes = [1, 128], strides = [1, 1]} : vector<7x128xf32> to vector<1x128xf32>
    %368 = vector.broadcast %367 : vector<1x128xf32> to vector<16x128xf32>
    %369 = arith.mulf %366, %368 : vector<16x128xf32>
    %370 = arith.addf %364, %369 : vector<16x128xf32>
    %c2_280 = arith.constant 2 : index
    %c0_281 = arith.constant 0 : index
    %c0_282 = arith.constant 0 : index
    %371 = vector.load %arg6[%c2_280, %c0_281, %c0_282] : memref<56x16x128xf32, #tpu.memory_space<vmem>>, vector<1x16x128xf32>
    %372 = vector.shape_cast %371 : vector<1x16x128xf32> to vector<16x128xf32>
    %373 = vector.extract_strided_slice %358 {offsets = [2, 0], sizes = [1, 128], strides = [1, 1]} : vector<7x128xf32> to vector<1x128xf32>
    %374 = vector.broadcast %373 : vector<1x128xf32> to vector<16x128xf32>
    %375 = arith.mulf %372, %374 : vector<16x128xf32>
    %376 = arith.addf %370, %375 : vector<16x128xf32>
    %c3_283 = arith.constant 3 : index
    %c0_284 = arith.constant 0 : index
    %c0_285 = arith.constant 0 : index
    %377 = vector.load %arg6[%c3_283, %c0_284, %c0_285] : memref<56x16x128xf32, #tpu.memory_space<vmem>>, vector<1x16x128xf32>
    %378 = vector.shape_cast %377 : vector<1x16x128xf32> to vector<16x128xf32>
    %379 = vector.extract_strided_slice %358 {offsets = [3, 0], sizes = [1, 128], strides = [1, 1]} : vector<7x128xf32> to vector<1x128xf32>
    %380 = vector.broadcast %379 : vector<1x128xf32> to vector<16x128xf32>
    %381 = arith.mulf %378, %380 : vector<16x128xf32>
    %382 = arith.addf %376, %381 : vector<16x128xf32>
    %c4_286 = arith.constant 4 : index
    %c0_287 = arith.constant 0 : index
    %c0_288 = arith.constant 0 : index
    %383 = vector.load %arg6[%c4_286, %c0_287, %c0_288] : memref<56x16x128xf32, #tpu.memory_space<vmem>>, vector<1x16x128xf32>
    %384 = vector.shape_cast %383 : vector<1x16x128xf32> to vector<16x128xf32>
    %385 = vector.extract_strided_slice %358 {offsets = [4, 0], sizes = [1, 128], strides = [1, 1]} : vector<7x128xf32> to vector<1x128xf32>
    %386 = vector.broadcast %385 : vector<1x128xf32> to vector<16x128xf32>
    %387 = arith.mulf %384, %386 : vector<16x128xf32>
    %388 = arith.addf %382, %387 : vector<16x128xf32>
    %c5 = arith.constant 5 : index
    %c0_289 = arith.constant 0 : index
    %c0_290 = arith.constant 0 : index
    %389 = vector.load %arg6[%c5, %c0_289, %c0_290] : memref<56x16x128xf32, #tpu.memory_space<vmem>>, vector<1x16x128xf32>
    %390 = vector.shape_cast %389 : vector<1x16x128xf32> to vector<16x128xf32>
    %391 = vector.extract_strided_slice %358 {offsets = [5, 0], sizes = [1, 128], strides = [1, 1]} : vector<7x128xf32> to vector<1x128xf32>
    %392 = vector.broadcast %391 : vector<1x128xf32> to vector<16x128xf32>
    %393 = arith.mulf %390, %392 : vector<16x128xf32>
    %394 = arith.addf %388, %393 : vector<16x128xf32>
    %c6 = arith.constant 6 : index
    %c0_291 = arith.constant 0 : index
    %c0_292 = arith.constant 0 : index
    %395 = vector.load %arg6[%c6, %c0_291, %c0_292] : memref<56x16x128xf32, #tpu.memory_space<vmem>>, vector<1x16x128xf32>
    %396 = vector.shape_cast %395 : vector<1x16x128xf32> to vector<16x128xf32>
    %397 = vector.extract_strided_slice %358 {offsets = [6, 0], sizes = [1, 128], strides = [1, 1]} : vector<7x128xf32> to vector<1x128xf32>
    %398 = vector.broadcast %397 : vector<1x128xf32> to vector<16x128xf32>
    %399 = arith.mulf %396, %398 : vector<16x128xf32>
    %400 = arith.addf %394, %399 : vector<16x128xf32>
    %c36_293 = arith.constant 36 : index
    %c0_294 = arith.constant 0 : index
    %401 = tpu.strided_load %arg11[%c36_293, %c0_294] {strides = array<i32: 2, 1>} : memref<256x128xf32, #tpu.memory_space<vmem>>, vector<7x128xf32>
    %c37_295 = arith.constant 37 : index
    %c0_296 = arith.constant 0 : index
    %402 = tpu.strided_load %arg11[%c37_295, %c0_296] {strides = array<i32: 2, 1>} : memref<256x128xf32, #tpu.memory_space<vmem>>, vector<7x128xf32>
    %c54_297 = arith.constant 54 : index
    %c0_298 = arith.constant 0 : index
    %403 = tpu.strided_load %arg11[%c54_297, %c0_298] {strides = array<i32: 2, 1>} : memref<256x128xf32, #tpu.memory_space<vmem>>, vector<7x128xf32>
    %c55_299 = arith.constant 55 : index
    %c0_300 = arith.constant 0 : index
    %404 = tpu.strided_load %arg11[%c55_299, %c0_300] {strides = array<i32: 2, 1>} : memref<256x128xf32, #tpu.memory_space<vmem>>, vector<7x128xf32>
    %405 = arith.maximumf %401, %402 : vector<7x128xf32>
    %406 = arith.maximumf %403, %404 : vector<7x128xf32>
    %407 = arith.maximumf %405, %406 : vector<7x128xf32>
    %c7 = arith.constant 7 : index
    %c0_301 = arith.constant 0 : index
    %c0_302 = arith.constant 0 : index
    %408 = vector.load %arg6[%c7, %c0_301, %c0_302] : memref<56x16x128xf32, #tpu.memory_space<vmem>>, vector<1x16x128xf32>
    %409 = vector.shape_cast %408 : vector<1x16x128xf32> to vector<16x128xf32>
    %410 = vector.extract_strided_slice %407 {offsets = [0, 0], sizes = [1, 128], strides = [1, 1]} : vector<7x128xf32> to vector<1x128xf32>
    %411 = vector.broadcast %410 : vector<1x128xf32> to vector<16x128xf32>
    %412 = arith.mulf %409, %411 : vector<16x128xf32>
    %413 = arith.addf %400, %412 : vector<16x128xf32>
    %c8 = arith.constant 8 : index
    %c0_303 = arith.constant 0 : index
    %c0_304 = arith.constant 0 : index
    %414 = vector.load %arg6[%c8, %c0_303, %c0_304] : memref<56x16x128xf32, #tpu.memory_space<vmem>>, vector<1x16x128xf32>
    %415 = vector.shape_cast %414 : vector<1x16x128xf32> to vector<16x128xf32>
    %416 = vector.extract_strided_slice %407 {offsets = [1, 0], sizes = [1, 128], strides = [1, 1]} : vector<7x128xf32> to vector<1x128xf32>
    %417 = vector.broadcast %416 : vector<1x128xf32> to vector<16x128xf32>
    %418 = arith.mulf %415, %417 : vector<16x128xf32>
    %419 = arith.addf %413, %418 : vector<16x128xf32>
    %c9 = arith.constant 9 : index
    %c0_305 = arith.constant 0 : index
    %c0_306 = arith.constant 0 : index
    %420 = vector.load %arg6[%c9, %c0_305, %c0_306] : memref<56x16x128xf32, #tpu.memory_space<vmem>>, vector<1x16x128xf32>
    %421 = vector.shape_cast %420 : vector<1x16x128xf32> to vector<16x128xf32>
    %422 = vector.extract_strided_slice %407 {offsets = [2, 0], sizes = [1, 128], strides = [1, 1]} : vector<7x128xf32> to vector<1x128xf32>
    %423 = vector.broadcast %422 : vector<1x128xf32> to vector<16x128xf32>
    %424 = arith.mulf %421, %423 : vector<16x128xf32>
    %425 = arith.addf %419, %424 : vector<16x128xf32>
    %c10 = arith.constant 10 : index
    %c0_307 = arith.constant 0 : index
    %c0_308 = arith.constant 0 : index
    %426 = vector.load %arg6[%c10, %c0_307, %c0_308] : memref<56x16x128xf32, #tpu.memory_space<vmem>>, vector<1x16x128xf32>
    %427 = vector.shape_cast %426 : vector<1x16x128xf32> to vector<16x128xf32>
    %428 = vector.extract_strided_slice %407 {offsets = [3, 0], sizes = [1, 128], strides = [1, 1]} : vector<7x128xf32> to vector<1x128xf32>
    %429 = vector.broadcast %428 : vector<1x128xf32> to vector<16x128xf32>
    %430 = arith.mulf %427, %429 : vector<16x128xf32>
    %431 = arith.addf %425, %430 : vector<16x128xf32>
    %c11 = arith.constant 11 : index
    %c0_309 = arith.constant 0 : index
    %c0_310 = arith.constant 0 : index
    %432 = vector.load %arg6[%c11, %c0_309, %c0_310] : memref<56x16x128xf32, #tpu.memory_space<vmem>>, vector<1x16x128xf32>
    %433 = vector.shape_cast %432 : vector<1x16x128xf32> to vector<16x128xf32>
    %434 = vector.extract_strided_slice %407 {offsets = [4, 0], sizes = [1, 128], strides = [1, 1]} : vector<7x128xf32> to vector<1x128xf32>
    %435 = vector.broadcast %434 : vector<1x128xf32> to vector<16x128xf32>
    %436 = arith.mulf %433, %435 : vector<16x128xf32>
    %437 = arith.addf %431, %436 : vector<16x128xf32>
    %c12 = arith.constant 12 : index
    %c0_311 = arith.constant 0 : index
    %c0_312 = arith.constant 0 : index
    %438 = vector.load %arg6[%c12, %c0_311, %c0_312] : memref<56x16x128xf32, #tpu.memory_space<vmem>>, vector<1x16x128xf32>
    %439 = vector.shape_cast %438 : vector<1x16x128xf32> to vector<16x128xf32>
    %440 = vector.extract_strided_slice %407 {offsets = [5, 0], sizes = [1, 128], strides = [1, 1]} : vector<7x128xf32> to vector<1x128xf32>
    %441 = vector.broadcast %440 : vector<1x128xf32> to vector<16x128xf32>
    %442 = arith.mulf %439, %441 : vector<16x128xf32>
    %443 = arith.addf %437, %442 : vector<16x128xf32>
    %c13 = arith.constant 13 : index
    %c0_313 = arith.constant 0 : index
    %c0_314 = arith.constant 0 : index
    %444 = vector.load %arg6[%c13, %c0_313, %c0_314] : memref<56x16x128xf32, #tpu.memory_space<vmem>>, vector<1x16x128xf32>
    %445 = vector.shape_cast %444 : vector<1x16x128xf32> to vector<16x128xf32>
    %446 = vector.extract_strided_slice %407 {offsets = [6, 0], sizes = [1, 128], strides = [1, 1]} : vector<7x128xf32> to vector<1x128xf32>
    %447 = vector.broadcast %446 : vector<1x128xf32> to vector<16x128xf32>
    %448 = arith.mulf %445, %447 : vector<16x128xf32>
    %449 = arith.addf %443, %448 : vector<16x128xf32>
    %c72_315 = arith.constant 72 : index
    %c0_316 = arith.constant 0 : index
    %450 = tpu.strided_load %arg11[%c72_315, %c0_316] {strides = array<i32: 2, 1>} : memref<256x128xf32, #tpu.memory_space<vmem>>, vector<7x128xf32>
    %c73_317 = arith.constant 73 : index
    %c0_318 = arith.constant 0 : index
    %451 = tpu.strided_load %arg11[%c73_317, %c0_318] {strides = array<i32: 2, 1>} : memref<256x128xf32, #tpu.memory_space<vmem>>, vector<7x128xf32>
    %c90 = arith.constant 90 : index
    %c0_319 = arith.constant 0 : index
    %452 = tpu.strided_load %arg11[%c90, %c0_319] {strides = array<i32: 2, 1>} : memref<256x128xf32, #tpu.memory_space<vmem>>, vector<7x128xf32>
    %c91 = arith.constant 91 : index
    %c0_320 = arith.constant 0 : index
    %453 = tpu.strided_load %arg11[%c91, %c0_320] {strides = array<i32: 2, 1>} : memref<256x128xf32, #tpu.memory_space<vmem>>, vector<7x128xf32>
    %454 = arith.maximumf %450, %451 : vector<7x128xf32>
    %455 = arith.maximumf %452, %453 : vector<7x128xf32>
    %456 = arith.maximumf %454, %455 : vector<7x128xf32>
    %c14 = arith.constant 14 : index
    %c0_321 = arith.constant 0 : index
    %c0_322 = arith.constant 0 : index
    %457 = vector.load %arg6[%c14, %c0_321, %c0_322] : memref<56x16x128xf32, #tpu.memory_space<vmem>>, vector<1x16x128xf32>
    %458 = vector.shape_cast %457 : vector<1x16x128xf32> to vector<16x128xf32>
    %459 = vector.extract_strided_slice %456 {offsets = [0, 0], sizes = [1, 128], strides = [1, 1]} : vector<7x128xf32> to vector<1x128xf32>
    %460 = vector.broadcast %459 : vector<1x128xf32> to vector<16x128xf32>
    %461 = arith.mulf %458, %460 : vector<16x128xf32>
    %462 = arith.addf %449, %461 : vector<16x128xf32>
    %c15 = arith.constant 15 : index
    %c0_323 = arith.constant 0 : index
    %c0_324 = arith.constant 0 : index
    %463 = vector.load %arg6[%c15, %c0_323, %c0_324] : memref<56x16x128xf32, #tpu.memory_space<vmem>>, vector<1x16x128xf32>
    %464 = vector.shape_cast %463 : vector<1x16x128xf32> to vector<16x128xf32>
    %465 = vector.extract_strided_slice %456 {offsets = [1, 0], sizes = [1, 128], strides = [1, 1]} : vector<7x128xf32> to vector<1x128xf32>
    %466 = vector.broadcast %465 : vector<1x128xf32> to vector<16x128xf32>
    %467 = arith.mulf %464, %466 : vector<16x128xf32>
    %468 = arith.addf %462, %467 : vector<16x128xf32>
    %c16 = arith.constant 16 : index
    %c0_325 = arith.constant 0 : index
    %c0_326 = arith.constant 0 : index
    %469 = vector.load %arg6[%c16, %c0_325, %c0_326] : memref<56x16x128xf32, #tpu.memory_space<vmem>>, vector<1x16x128xf32>
    %470 = vector.shape_cast %469 : vector<1x16x128xf32> to vector<16x128xf32>
    %471 = vector.extract_strided_slice %456 {offsets = [2, 0], sizes = [1, 128], strides = [1, 1]} : vector<7x128xf32> to vector<1x128xf32>
    %472 = vector.broadcast %471 : vector<1x128xf32> to vector<16x128xf32>
    %473 = arith.mulf %470, %472 : vector<16x128xf32>
    %474 = arith.addf %468, %473 : vector<16x128xf32>
    %c17 = arith.constant 17 : index
    %c0_327 = arith.constant 0 : index
    %c0_328 = arith.constant 0 : index
    %475 = vector.load %arg6[%c17, %c0_327, %c0_328] : memref<56x16x128xf32, #tpu.memory_space<vmem>>, vector<1x16x128xf32>
    %476 = vector.shape_cast %475 : vector<1x16x128xf32> to vector<16x128xf32>
    %477 = vector.extract_strided_slice %456 {offsets = [3, 0], sizes = [1, 128], strides = [1, 1]} : vector<7x128xf32> to vector<1x128xf32>
    %478 = vector.broadcast %477 : vector<1x128xf32> to vector<16x128xf32>
    %479 = arith.mulf %476, %478 : vector<16x128xf32>
    %480 = arith.addf %474, %479 : vector<16x128xf32>
    %c18_329 = arith.constant 18 : index
    %c0_330 = arith.constant 0 : index
    %c0_331 = arith.constant 0 : index
    %481 = vector.load %arg6[%c18_329, %c0_330, %c0_331] : memref<56x16x128xf32, #tpu.memory_space<vmem>>, vector<1x16x128xf32>
    %482 = vector.shape_cast %481 : vector<1x16x128xf32> to vector<16x128xf32>
    %483 = vector.extract_strided_slice %456 {offsets = [4, 0], sizes = [1, 128], strides = [1, 1]} : vector<7x128xf32> to vector<1x128xf32>
    %484 = vector.broadcast %483 : vector<1x128xf32> to vector<16x128xf32>
    %485 = arith.mulf %482, %484 : vector<16x128xf32>
    %486 = arith.addf %480, %485 : vector<16x128xf32>
    %c19_332 = arith.constant 19 : index
    %c0_333 = arith.constant 0 : index
    %c0_334 = arith.constant 0 : index
    %487 = vector.load %arg6[%c19_332, %c0_333, %c0_334] : memref<56x16x128xf32, #tpu.memory_space<vmem>>, vector<1x16x128xf32>
    %488 = vector.shape_cast %487 : vector<1x16x128xf32> to vector<16x128xf32>
    %489 = vector.extract_strided_slice %456 {offsets = [5, 0], sizes = [1, 128], strides = [1, 1]} : vector<7x128xf32> to vector<1x128xf32>
    %490 = vector.broadcast %489 : vector<1x128xf32> to vector<16x128xf32>
    %491 = arith.mulf %488, %490 : vector<16x128xf32>
    %492 = arith.addf %486, %491 : vector<16x128xf32>
    %c20_335 = arith.constant 20 : index
    %c0_336 = arith.constant 0 : index
    %c0_337 = arith.constant 0 : index
    %493 = vector.load %arg6[%c20_335, %c0_336, %c0_337] : memref<56x16x128xf32, #tpu.memory_space<vmem>>, vector<1x16x128xf32>
    %494 = vector.shape_cast %493 : vector<1x16x128xf32> to vector<16x128xf32>
    %495 = vector.extract_strided_slice %456 {offsets = [6, 0], sizes = [1, 128], strides = [1, 1]} : vector<7x128xf32> to vector<1x128xf32>
    %496 = vector.broadcast %495 : vector<1x128xf32> to vector<16x128xf32>
    %497 = arith.mulf %494, %496 : vector<16x128xf32>
    %498 = arith.addf %492, %497 : vector<16x128xf32>
    %c108 = arith.constant 108 : index
    %c0_338 = arith.constant 0 : index
    %499 = tpu.strided_load %arg11[%c108, %c0_338] {strides = array<i32: 2, 1>} : memref<256x128xf32, #tpu.memory_space<vmem>>, vector<7x128xf32>
    %c109 = arith.constant 109 : index
    %c0_339 = arith.constant 0 : index
    %500 = tpu.strided_load %arg11[%c109, %c0_339] {strides = array<i32: 2, 1>} : memref<256x128xf32, #tpu.memory_space<vmem>>, vector<7x128xf32>
    %c126 = arith.constant 126 : index
    %c0_340 = arith.constant 0 : index
    %501 = tpu.strided_load %arg11[%c126, %c0_340] {strides = array<i32: 2, 1>} : memref<256x128xf32, #tpu.memory_space<vmem>>, vector<7x128xf32>
    %c127 = arith.constant 127 : index
    %c0_341 = arith.constant 0 : index
    %502 = tpu.strided_load %arg11[%c127, %c0_341] {strides = array<i32: 2, 1>} : memref<256x128xf32, #tpu.memory_space<vmem>>, vector<7x128xf32>
    %503 = arith.maximumf %499, %500 : vector<7x128xf32>
    %504 = arith.maximumf %501, %502 : vector<7x128xf32>
    %505 = arith.maximumf %503, %504 : vector<7x128xf32>
    %c21_342 = arith.constant 21 : index
    %c0_343 = arith.constant 0 : index
    %c0_344 = arith.constant 0 : index
    %506 = vector.load %arg6[%c21_342, %c0_343, %c0_344] : memref<56x16x128xf32, #tpu.memory_space<vmem>>, vector<1x16x128xf32>
    %507 = vector.shape_cast %506 : vector<1x16x128xf32> to vector<16x128xf32>
    %508 = vector.extract_strided_slice %505 {offsets = [0, 0], sizes = [1, 128], strides = [1, 1]} : vector<7x128xf32> to vector<1x128xf32>
    %509 = vector.broadcast %508 : vector<1x128xf32> to vector<16x128xf32>
    %510 = arith.mulf %507, %509 : vector<16x128xf32>
    %511 = arith.addf %498, %510 : vector<16x128xf32>
    %c22_345 = arith.constant 22 : index
    %c0_346 = arith.constant 0 : index
    %c0_347 = arith.constant 0 : index
    %512 = vector.load %arg6[%c22_345, %c0_346, %c0_347] : memref<56x16x128xf32, #tpu.memory_space<vmem>>, vector<1x16x128xf32>
    %513 = vector.shape_cast %512 : vector<1x16x128xf32> to vector<16x128xf32>
    %514 = vector.extract_strided_slice %505 {offsets = [1, 0], sizes = [1, 128], strides = [1, 1]} : vector<7x128xf32> to vector<1x128xf32>
    %515 = vector.broadcast %514 : vector<1x128xf32> to vector<16x128xf32>
    %516 = arith.mulf %513, %515 : vector<16x128xf32>
    %517 = arith.addf %511, %516 : vector<16x128xf32>
    %c23 = arith.constant 23 : index
    %c0_348 = arith.constant 0 : index
    %c0_349 = arith.constant 0 : index
    %518 = vector.load %arg6[%c23, %c0_348, %c0_349] : memref<56x16x128xf32, #tpu.memory_space<vmem>>, vector<1x16x128xf32>
    %519 = vector.shape_cast %518 : vector<1x16x128xf32> to vector<16x128xf32>
    %520 = vector.extract_strided_slice %505 {offsets = [2, 0], sizes = [1, 128], strides = [1, 1]} : vector<7x128xf32> to vector<1x128xf32>
    %521 = vector.broadcast %520 : vector<1x128xf32> to vector<16x128xf32>
    %522 = arith.mulf %519, %521 : vector<16x128xf32>
    %523 = arith.addf %517, %522 : vector<16x128xf32>
    %c24 = arith.constant 24 : index
    %c0_350 = arith.constant 0 : index
    %c0_351 = arith.constant 0 : index
    %524 = vector.load %arg6[%c24, %c0_350, %c0_351] : memref<56x16x128xf32, #tpu.memory_space<vmem>>, vector<1x16x128xf32>
    %525 = vector.shape_cast %524 : vector<1x16x128xf32> to vector<16x128xf32>
    %526 = vector.extract_strided_slice %505 {offsets = [3, 0], sizes = [1, 128], strides = [1, 1]} : vector<7x128xf32> to vector<1x128xf32>
    %527 = vector.broadcast %526 : vector<1x128xf32> to vector<16x128xf32>
    %528 = arith.mulf %525, %527 : vector<16x128xf32>
    %529 = arith.addf %523, %528 : vector<16x128xf32>
    %c25 = arith.constant 25 : index
    %c0_352 = arith.constant 0 : index
    %c0_353 = arith.constant 0 : index
    %530 = vector.load %arg6[%c25, %c0_352, %c0_353] : memref<56x16x128xf32, #tpu.memory_space<vmem>>, vector<1x16x128xf32>
    %531 = vector.shape_cast %530 : vector<1x16x128xf32> to vector<16x128xf32>
    %532 = vector.extract_strided_slice %505 {offsets = [4, 0], sizes = [1, 128], strides = [1, 1]} : vector<7x128xf32> to vector<1x128xf32>
    %533 = vector.broadcast %532 : vector<1x128xf32> to vector<16x128xf32>
    %534 = arith.mulf %531, %533 : vector<16x128xf32>
    %535 = arith.addf %529, %534 : vector<16x128xf32>
    %c26 = arith.constant 26 : index
    %c0_354 = arith.constant 0 : index
    %c0_355 = arith.constant 0 : index
    %536 = vector.load %arg6[%c26, %c0_354, %c0_355] : memref<56x16x128xf32, #tpu.memory_space<vmem>>, vector<1x16x128xf32>
    %537 = vector.shape_cast %536 : vector<1x16x128xf32> to vector<16x128xf32>
    %538 = vector.extract_strided_slice %505 {offsets = [5, 0], sizes = [1, 128], strides = [1, 1]} : vector<7x128xf32> to vector<1x128xf32>
    %539 = vector.broadcast %538 : vector<1x128xf32> to vector<16x128xf32>
    %540 = arith.mulf %537, %539 : vector<16x128xf32>
    %541 = arith.addf %535, %540 : vector<16x128xf32>
    %c27 = arith.constant 27 : index
    %c0_356 = arith.constant 0 : index
    %c0_357 = arith.constant 0 : index
    %542 = vector.load %arg6[%c27, %c0_356, %c0_357] : memref<56x16x128xf32, #tpu.memory_space<vmem>>, vector<1x16x128xf32>
    %543 = vector.shape_cast %542 : vector<1x16x128xf32> to vector<16x128xf32>
    %544 = vector.extract_strided_slice %505 {offsets = [6, 0], sizes = [1, 128], strides = [1, 1]} : vector<7x128xf32> to vector<1x128xf32>
    %545 = vector.broadcast %544 : vector<1x128xf32> to vector<16x128xf32>
    %546 = arith.mulf %543, %545 : vector<16x128xf32>
    %547 = arith.addf %541, %546 : vector<16x128xf32>
    %c144 = arith.constant 144 : index
    %c0_358 = arith.constant 0 : index
    %548 = tpu.strided_load %arg11[%c144, %c0_358] {strides = array<i32: 2, 1>} : memref<256x128xf32, #tpu.memory_space<vmem>>, vector<7x128xf32>
    %c145 = arith.constant 145 : index
    %c0_359 = arith.constant 0 : index
    %549 = tpu.strided_load %arg11[%c145, %c0_359] {strides = array<i32: 2, 1>} : memref<256x128xf32, #tpu.memory_space<vmem>>, vector<7x128xf32>
    %c162 = arith.constant 162 : index
    %c0_360 = arith.constant 0 : index
    %550 = tpu.strided_load %arg11[%c162, %c0_360] {strides = array<i32: 2, 1>} : memref<256x128xf32, #tpu.memory_space<vmem>>, vector<7x128xf32>
    %c163 = arith.constant 163 : index
    %c0_361 = arith.constant 0 : index
    %551 = tpu.strided_load %arg11[%c163, %c0_361] {strides = array<i32: 2, 1>} : memref<256x128xf32, #tpu.memory_space<vmem>>, vector<7x128xf32>
    %552 = arith.maximumf %548, %549 : vector<7x128xf32>
    %553 = arith.maximumf %550, %551 : vector<7x128xf32>
    %554 = arith.maximumf %552, %553 : vector<7x128xf32>
    %c28_362 = arith.constant 28 : index
    %c0_363 = arith.constant 0 : index
    %c0_364 = arith.constant 0 : index
    %555 = vector.load %arg6[%c28_362, %c0_363, %c0_364] : memref<56x16x128xf32, #tpu.memory_space<vmem>>, vector<1x16x128xf32>
    %556 = vector.shape_cast %555 : vector<1x16x128xf32> to vector<16x128xf32>
    %557 = vector.extract_strided_slice %554 {offsets = [0, 0], sizes = [1, 128], strides = [1, 1]} : vector<7x128xf32> to vector<1x128xf32>
    %558 = vector.broadcast %557 : vector<1x128xf32> to vector<16x128xf32>
    %559 = arith.mulf %556, %558 : vector<16x128xf32>
    %560 = arith.addf %547, %559 : vector<16x128xf32>
    %c29_365 = arith.constant 29 : index
    %c0_366 = arith.constant 0 : index
    %c0_367 = arith.constant 0 : index
    %561 = vector.load %arg6[%c29_365, %c0_366, %c0_367] : memref<56x16x128xf32, #tpu.memory_space<vmem>>, vector<1x16x128xf32>
    %562 = vector.shape_cast %561 : vector<1x16x128xf32> to vector<16x128xf32>
    %563 = vector.extract_strided_slice %554 {offsets = [1, 0], sizes = [1, 128], strides = [1, 1]} : vector<7x128xf32> to vector<1x128xf32>
    %564 = vector.broadcast %563 : vector<1x128xf32> to vector<16x128xf32>
    %565 = arith.mulf %562, %564 : vector<16x128xf32>
    %566 = arith.addf %560, %565 : vector<16x128xf32>
    %c30 = arith.constant 30 : index
    %c0_368 = arith.constant 0 : index
    %c0_369 = arith.constant 0 : index
    %567 = vector.load %arg6[%c30, %c0_368, %c0_369] : memref<56x16x128xf32, #tpu.memory_space<vmem>>, vector<1x16x128xf32>
    %568 = vector.shape_cast %567 : vector<1x16x128xf32> to vector<16x128xf32>
    %569 = vector.extract_strided_slice %554 {offsets = [2, 0], sizes = [1, 128], strides = [1, 1]} : vector<7x128xf32> to vector<1x128xf32>
    %570 = vector.broadcast %569 : vector<1x128xf32> to vector<16x128xf32>
    %571 = arith.mulf %568, %570 : vector<16x128xf32>
    %572 = arith.addf %566, %571 : vector<16x128xf32>
    %c31 = arith.constant 31 : index
    %c0_370 = arith.constant 0 : index
    %c0_371 = arith.constant 0 : index
    %573 = vector.load %arg6[%c31, %c0_370, %c0_371] : memref<56x16x128xf32, #tpu.memory_space<vmem>>, vector<1x16x128xf32>
    %574 = vector.shape_cast %573 : vector<1x16x128xf32> to vector<16x128xf32>
    %575 = vector.extract_strided_slice %554 {offsets = [3, 0], sizes = [1, 128], strides = [1, 1]} : vector<7x128xf32> to vector<1x128xf32>
    %576 = vector.broadcast %575 : vector<1x128xf32> to vector<16x128xf32>
    %577 = arith.mulf %574, %576 : vector<16x128xf32>
    %578 = arith.addf %572, %577 : vector<16x128xf32>
    %c32 = arith.constant 32 : index
    %c0_372 = arith.constant 0 : index
    %c0_373 = arith.constant 0 : index
    %579 = vector.load %arg6[%c32, %c0_372, %c0_373] : memref<56x16x128xf32, #tpu.memory_space<vmem>>, vector<1x16x128xf32>
    %580 = vector.shape_cast %579 : vector<1x16x128xf32> to vector<16x128xf32>
    %581 = vector.extract_strided_slice %554 {offsets = [4, 0], sizes = [1, 128], strides = [1, 1]} : vector<7x128xf32> to vector<1x128xf32>
    %582 = vector.broadcast %581 : vector<1x128xf32> to vector<16x128xf32>
    %583 = arith.mulf %580, %582 : vector<16x128xf32>
    %584 = arith.addf %578, %583 : vector<16x128xf32>
    %c33 = arith.constant 33 : index
    %c0_374 = arith.constant 0 : index
    %c0_375 = arith.constant 0 : index
    %585 = vector.load %arg6[%c33, %c0_374, %c0_375] : memref<56x16x128xf32, #tpu.memory_space<vmem>>, vector<1x16x128xf32>
    %586 = vector.shape_cast %585 : vector<1x16x128xf32> to vector<16x128xf32>
    %587 = vector.extract_strided_slice %554 {offsets = [5, 0], sizes = [1, 128], strides = [1, 1]} : vector<7x128xf32> to vector<1x128xf32>
    %588 = vector.broadcast %587 : vector<1x128xf32> to vector<16x128xf32>
    %589 = arith.mulf %586, %588 : vector<16x128xf32>
    %590 = arith.addf %584, %589 : vector<16x128xf32>
    %c34 = arith.constant 34 : index
    %c0_376 = arith.constant 0 : index
    %c0_377 = arith.constant 0 : index
    %591 = vector.load %arg6[%c34, %c0_376, %c0_377] : memref<56x16x128xf32, #tpu.memory_space<vmem>>, vector<1x16x128xf32>
    %592 = vector.shape_cast %591 : vector<1x16x128xf32> to vector<16x128xf32>
    %593 = vector.extract_strided_slice %554 {offsets = [6, 0], sizes = [1, 128], strides = [1, 1]} : vector<7x128xf32> to vector<1x128xf32>
    %594 = vector.broadcast %593 : vector<1x128xf32> to vector<16x128xf32>
    %595 = arith.mulf %592, %594 : vector<16x128xf32>
    %596 = arith.addf %590, %595 : vector<16x128xf32>
    %c180 = arith.constant 180 : index
    %c0_378 = arith.constant 0 : index
    %597 = tpu.strided_load %arg11[%c180, %c0_378] {strides = array<i32: 2, 1>} : memref<256x128xf32, #tpu.memory_space<vmem>>, vector<7x128xf32>
    %c181 = arith.constant 181 : index
    %c0_379 = arith.constant 0 : index
    %598 = tpu.strided_load %arg11[%c181, %c0_379] {strides = array<i32: 2, 1>} : memref<256x128xf32, #tpu.memory_space<vmem>>, vector<7x128xf32>
    %c198 = arith.constant 198 : index
    %c0_380 = arith.constant 0 : index
    %599 = tpu.strided_load %arg11[%c198, %c0_380] {strides = array<i32: 2, 1>} : memref<256x128xf32, #tpu.memory_space<vmem>>, vector<7x128xf32>
    %c199 = arith.constant 199 : index
    %c0_381 = arith.constant 0 : index
    %600 = tpu.strided_load %arg11[%c199, %c0_381] {strides = array<i32: 2, 1>} : memref<256x128xf32, #tpu.memory_space<vmem>>, vector<7x128xf32>
    %601 = arith.maximumf %597, %598 : vector<7x128xf32>
    %602 = arith.maximumf %599, %600 : vector<7x128xf32>
    %603 = arith.maximumf %601, %602 : vector<7x128xf32>
    %c35 = arith.constant 35 : index
    %c0_382 = arith.constant 0 : index
    %c0_383 = arith.constant 0 : index
    %604 = vector.load %arg6[%c35, %c0_382, %c0_383] : memref<56x16x128xf32, #tpu.memory_space<vmem>>, vector<1x16x128xf32>
    %605 = vector.shape_cast %604 : vector<1x16x128xf32> to vector<16x128xf32>
    %606 = vector.extract_strided_slice %603 {offsets = [0, 0], sizes = [1, 128], strides = [1, 1]} : vector<7x128xf32> to vector<1x128xf32>
    %607 = vector.broadcast %606 : vector<1x128xf32> to vector<16x128xf32>
    %608 = arith.mulf %605, %607 : vector<16x128xf32>
    %609 = arith.addf %596, %608 : vector<16x128xf32>
    %c36_384 = arith.constant 36 : index
    %c0_385 = arith.constant 0 : index
    %c0_386 = arith.constant 0 : index
    %610 = vector.load %arg6[%c36_384, %c0_385, %c0_386] : memref<56x16x128xf32, #tpu.memory_space<vmem>>, vector<1x16x128xf32>
    %611 = vector.shape_cast %610 : vector<1x16x128xf32> to vector<16x128xf32>
    %612 = vector.extract_strided_slice %603 {offsets = [1, 0], sizes = [1, 128], strides = [1, 1]} : vector<7x128xf32> to vector<1x128xf32>
    %613 = vector.broadcast %612 : vector<1x128xf32> to vector<16x128xf32>
    %614 = arith.mulf %611, %613 : vector<16x128xf32>
    %615 = arith.addf %609, %614 : vector<16x128xf32>
    %c37_387 = arith.constant 37 : index
    %c0_388 = arith.constant 0 : index
    %c0_389 = arith.constant 0 : index
    %616 = vector.load %arg6[%c37_387, %c0_388, %c0_389] : memref<56x16x128xf32, #tpu.memory_space<vmem>>, vector<1x16x128xf32>
    %617 = vector.shape_cast %616 : vector<1x16x128xf32> to vector<16x128xf32>
    %618 = vector.extract_strided_slice %603 {offsets = [2, 0], sizes = [1, 128], strides = [1, 1]} : vector<7x128xf32> to vector<1x128xf32>
    %619 = vector.broadcast %618 : vector<1x128xf32> to vector<16x128xf32>
    %620 = arith.mulf %617, %619 : vector<16x128xf32>
    %621 = arith.addf %615, %620 : vector<16x128xf32>
    %c38_390 = arith.constant 38 : index
    %c0_391 = arith.constant 0 : index
    %c0_392 = arith.constant 0 : index
    %622 = vector.load %arg6[%c38_390, %c0_391, %c0_392] : memref<56x16x128xf32, #tpu.memory_space<vmem>>, vector<1x16x128xf32>
    %623 = vector.shape_cast %622 : vector<1x16x128xf32> to vector<16x128xf32>
    %624 = vector.extract_strided_slice %603 {offsets = [3, 0], sizes = [1, 128], strides = [1, 1]} : vector<7x128xf32> to vector<1x128xf32>
    %625 = vector.broadcast %624 : vector<1x128xf32> to vector<16x128xf32>
    %626 = arith.mulf %623, %625 : vector<16x128xf32>
    %627 = arith.addf %621, %626 : vector<16x128xf32>
    %c39_393 = arith.constant 39 : index
    %c0_394 = arith.constant 0 : index
    %c0_395 = arith.constant 0 : index
    %628 = vector.load %arg6[%c39_393, %c0_394, %c0_395] : memref<56x16x128xf32, #tpu.memory_space<vmem>>, vector<1x16x128xf32>
    %629 = vector.shape_cast %628 : vector<1x16x128xf32> to vector<16x128xf32>
    %630 = vector.extract_strided_slice %603 {offsets = [4, 0], sizes = [1, 128], strides = [1, 1]} : vector<7x128xf32> to vector<1x128xf32>
    %631 = vector.broadcast %630 : vector<1x128xf32> to vector<16x128xf32>
    %632 = arith.mulf %629, %631 : vector<16x128xf32>
    %633 = arith.addf %627, %632 : vector<16x128xf32>
    %c40_396 = arith.constant 40 : index
    %c0_397 = arith.constant 0 : index
    %c0_398 = arith.constant 0 : index
    %634 = vector.load %arg6[%c40_396, %c0_397, %c0_398] : memref<56x16x128xf32, #tpu.memory_space<vmem>>, vector<1x16x128xf32>
    %635 = vector.shape_cast %634 : vector<1x16x128xf32> to vector<16x128xf32>
    %636 = vector.extract_strided_slice %603 {offsets = [5, 0], sizes = [1, 128], strides = [1, 1]} : vector<7x128xf32> to vector<1x128xf32>
    %637 = vector.broadcast %636 : vector<1x128xf32> to vector<16x128xf32>
    %638 = arith.mulf %635, %637 : vector<16x128xf32>
    %639 = arith.addf %633, %638 : vector<16x128xf32>
    %c41 = arith.constant 41 : index
    %c0_399 = arith.constant 0 : index
    %c0_400 = arith.constant 0 : index
    %640 = vector.load %arg6[%c41, %c0_399, %c0_400] : memref<56x16x128xf32, #tpu.memory_space<vmem>>, vector<1x16x128xf32>
    %641 = vector.shape_cast %640 : vector<1x16x128xf32> to vector<16x128xf32>
    %642 = vector.extract_strided_slice %603 {offsets = [6, 0], sizes = [1, 128], strides = [1, 1]} : vector<7x128xf32> to vector<1x128xf32>
    %643 = vector.broadcast %642 : vector<1x128xf32> to vector<16x128xf32>
    %644 = arith.mulf %641, %643 : vector<16x128xf32>
    %645 = arith.addf %639, %644 : vector<16x128xf32>
    %c216 = arith.constant 216 : index
    %c0_401 = arith.constant 0 : index
    %646 = tpu.strided_load %arg11[%c216, %c0_401] {strides = array<i32: 2, 1>} : memref<256x128xf32, #tpu.memory_space<vmem>>, vector<7x128xf32>
    %c217 = arith.constant 217 : index
    %c0_402 = arith.constant 0 : index
    %647 = tpu.strided_load %arg11[%c217, %c0_402] {strides = array<i32: 2, 1>} : memref<256x128xf32, #tpu.memory_space<vmem>>, vector<7x128xf32>
    %c234 = arith.constant 234 : index
    %c0_403 = arith.constant 0 : index
    %648 = tpu.strided_load %arg11[%c234, %c0_403] {strides = array<i32: 2, 1>} : memref<256x128xf32, #tpu.memory_space<vmem>>, vector<7x128xf32>
    %c235 = arith.constant 235 : index
    %c0_404 = arith.constant 0 : index
    %649 = tpu.strided_load %arg11[%c235, %c0_404] {strides = array<i32: 2, 1>} : memref<256x128xf32, #tpu.memory_space<vmem>>, vector<7x128xf32>
    %650 = arith.maximumf %646, %647 : vector<7x128xf32>
    %651 = arith.maximumf %648, %649 : vector<7x128xf32>
    %652 = arith.maximumf %650, %651 : vector<7x128xf32>
    %c42 = arith.constant 42 : index
    %c0_405 = arith.constant 0 : index
    %c0_406 = arith.constant 0 : index
    %653 = vector.load %arg6[%c42, %c0_405, %c0_406] : memref<56x16x128xf32, #tpu.memory_space<vmem>>, vector<1x16x128xf32>
    %654 = vector.shape_cast %653 : vector<1x16x128xf32> to vector<16x128xf32>
    %655 = vector.extract_strided_slice %652 {offsets = [0, 0], sizes = [1, 128], strides = [1, 1]} : vector<7x128xf32> to vector<1x128xf32>
    %656 = vector.broadcast %655 : vector<1x128xf32> to vector<16x128xf32>
    %657 = arith.mulf %654, %656 : vector<16x128xf32>
    %658 = arith.addf %645, %657 : vector<16x128xf32>
    %c43 = arith.constant 43 : index
    %c0_407 = arith.constant 0 : index
    %c0_408 = arith.constant 0 : index
    %659 = vector.load %arg6[%c43, %c0_407, %c0_408] : memref<56x16x128xf32, #tpu.memory_space<vmem>>, vector<1x16x128xf32>
    %660 = vector.shape_cast %659 : vector<1x16x128xf32> to vector<16x128xf32>
    %661 = vector.extract_strided_slice %652 {offsets = [1, 0], sizes = [1, 128], strides = [1, 1]} : vector<7x128xf32> to vector<1x128xf32>
    %662 = vector.broadcast %661 : vector<1x128xf32> to vector<16x128xf32>
    %663 = arith.mulf %660, %662 : vector<16x128xf32>
    %664 = arith.addf %658, %663 : vector<16x128xf32>
    %c44 = arith.constant 44 : index
    %c0_409 = arith.constant 0 : index
    %c0_410 = arith.constant 0 : index
    %665 = vector.load %arg6[%c44, %c0_409, %c0_410] : memref<56x16x128xf32, #tpu.memory_space<vmem>>, vector<1x16x128xf32>
    %666 = vector.shape_cast %665 : vector<1x16x128xf32> to vector<16x128xf32>
    %667 = vector.extract_strided_slice %652 {offsets = [2, 0], sizes = [1, 128], strides = [1, 1]} : vector<7x128xf32> to vector<1x128xf32>
    %668 = vector.broadcast %667 : vector<1x128xf32> to vector<16x128xf32>
    %669 = arith.mulf %666, %668 : vector<16x128xf32>
    %670 = arith.addf %664, %669 : vector<16x128xf32>
    %c45 = arith.constant 45 : index
    %c0_411 = arith.constant 0 : index
    %c0_412 = arith.constant 0 : index
    %671 = vector.load %arg6[%c45, %c0_411, %c0_412] : memref<56x16x128xf32, #tpu.memory_space<vmem>>, vector<1x16x128xf32>
    %672 = vector.shape_cast %671 : vector<1x16x128xf32> to vector<16x128xf32>
    %673 = vector.extract_strided_slice %652 {offsets = [3, 0], sizes = [1, 128], strides = [1, 1]} : vector<7x128xf32> to vector<1x128xf32>
    %674 = vector.broadcast %673 : vector<1x128xf32> to vector<16x128xf32>
    %675 = arith.mulf %672, %674 : vector<16x128xf32>
    %676 = arith.addf %670, %675 : vector<16x128xf32>
    %c46 = arith.constant 46 : index
    %c0_413 = arith.constant 0 : index
    %c0_414 = arith.constant 0 : index
    %677 = vector.load %arg6[%c46, %c0_413, %c0_414] : memref<56x16x128xf32, #tpu.memory_space<vmem>>, vector<1x16x128xf32>
    %678 = vector.shape_cast %677 : vector<1x16x128xf32> to vector<16x128xf32>
    %679 = vector.extract_strided_slice %652 {offsets = [4, 0], sizes = [1, 128], strides = [1, 1]} : vector<7x128xf32> to vector<1x128xf32>
    %680 = vector.broadcast %679 : vector<1x128xf32> to vector<16x128xf32>
    %681 = arith.mulf %678, %680 : vector<16x128xf32>
    %682 = arith.addf %676, %681 : vector<16x128xf32>
    %c47 = arith.constant 47 : index
    %c0_415 = arith.constant 0 : index
    %c0_416 = arith.constant 0 : index
    %683 = vector.load %arg6[%c47, %c0_415, %c0_416] : memref<56x16x128xf32, #tpu.memory_space<vmem>>, vector<1x16x128xf32>
    %684 = vector.shape_cast %683 : vector<1x16x128xf32> to vector<16x128xf32>
    %685 = vector.extract_strided_slice %652 {offsets = [5, 0], sizes = [1, 128], strides = [1, 1]} : vector<7x128xf32> to vector<1x128xf32>
    %686 = vector.broadcast %685 : vector<1x128xf32> to vector<16x128xf32>
    %687 = arith.mulf %684, %686 : vector<16x128xf32>
    %688 = arith.addf %682, %687 : vector<16x128xf32>
    %c48 = arith.constant 48 : index
    %c0_417 = arith.constant 0 : index
    %c0_418 = arith.constant 0 : index
    %689 = vector.load %arg6[%c48, %c0_417, %c0_418] : memref<56x16x128xf32, #tpu.memory_space<vmem>>, vector<1x16x128xf32>
    %690 = vector.shape_cast %689 : vector<1x16x128xf32> to vector<16x128xf32>
    %691 = vector.extract_strided_slice %652 {offsets = [6, 0], sizes = [1, 128], strides = [1, 1]} : vector<7x128xf32> to vector<1x128xf32>
    %692 = vector.broadcast %691 : vector<1x128xf32> to vector<16x128xf32>
    %693 = arith.mulf %690, %692 : vector<16x128xf32>
    %694 = arith.addf %688, %693 : vector<16x128xf32>
    %cst_419 = arith.constant dense<0.000000e+00> : vector<16xf32>
    %695 = vector.multi_reduction <add>, %694, %cst_419 [1] : vector<16x128xf32> to vector<16xf32>
    %696 = vector.shape_cast %695 : vector<16xf32> to vector<16x1xf32>
    %697 = vector.shape_cast %696 : vector<16x1xf32> to vector<16x1xf32>
    %698 = vector.broadcast %697 : vector<16x1xf32> to vector<16x128xf32>
    %c0_420 = arith.constant 0 : index
    %c0_421 = arith.constant 0 : index
    %699 = vector.load %arg7[%c0_420, %c0_421] : memref<16x128xf32, #tpu.memory_space<vmem>>, vector<16x128xf32>
    %700 = arith.addf %698, %699 : vector<16x128xf32>
    %c0_422 = arith.constant 0 : index
    %c0_423 = arith.constant 0 : index
    %c0_424 = arith.constant 0 : index
    %701 = vector.load %arg8[%c0_422, %c0_423, %c0_424] : memref<1x16x128xf32, #tpu.memory_space<vmem>>, vector<1x16x128xf32>
    %702 = vector.shape_cast %701 : vector<1x16x128xf32> to vector<16x128xf32>
    %703 = vector.shape_cast %700 : vector<16x128xf32> to vector<1x16x128xf32>
    tpu.vector_store %arg8[%c0_422, %c0_423, %c0_424], %703 {strides = array<i32>} : memref<1x16x128xf32, #tpu.memory_space<vmem>>, vector<1x16x128xf32>,
    return
  }
  func.func @transform_0(%arg0: i32) -> (i32, i32, i32) {
    %c0_i32 = arith.constant 0 : i32
    %c0_i32_0 = arith.constant 0 : i32
    %c0_i32_1 = arith.constant 0 : i32
    return %arg0, %c0_i32, %c0_i32_0 : i32, i32, i32
  }
  func.func @transform_1(%arg0: i32) -> (i32, i32) {
    %c0_i32 = arith.constant 0 : i32
    %c0_i32_0 = arith.constant 0 : i32
    %c0_i32_1 = arith.constant 0 : i32
    return %c0_i32, %c0_i32_0 : i32, i32
  }
  func.func @transform_2(%arg0: i32) -> (i32, i32) {
    %c0_i32 = arith.constant 0 : i32
    %c0_i32_0 = arith.constant 0 : i32
    %c0_i32_1 = arith.constant 0 : i32
    return %c0_i32, %c0_i32_0 : i32, i32
  }
  func.func @transform_3(%arg0: i32) -> (i32, i32, i32) {
    %c0_i32 = arith.constant 0 : i32
    %c0_i32_0 = arith.constant 0 : i32
    %c0_i32_1 = arith.constant 0 : i32
    %c0_i32_2 = arith.constant 0 : i32
    return %c0_i32, %c0_i32_0, %c0_i32_1 : i32, i32, i32
  }
  func.func @transform_4(%arg0: i32) -> (i32, i32) {
    %c0_i32 = arith.constant 0 : i32
    %c0_i32_0 = arith.constant 0 : i32
    %c0_i32_1 = arith.constant 0 : i32
    return %c0_i32, %c0_i32_0 : i32, i32
  }
  func.func @transform_5(%arg0: i32) -> (i32, i32, i32) {
    %c0_i32 = arith.constant 0 : i32
    %c0_i32_0 = arith.constant 0 : i32
    %c0_i32_1 = arith.constant 0 : i32
    %c0_i32_2 = arith.constant 0 : i32
    return %c0_i32, %c0_i32_0, %c0_i32_1 : i32, i32, i32
  }
  func.func @transform_6(%arg0: i32) -> (i32, i32) {
    %c0_i32 = arith.constant 0 : i32
    %c0_i32_0 = arith.constant 0 : i32
    %c0_i32_1 = arith.constant 0 : i32
    return %c0_i32, %c0_i32_0 : i32, i32
  }
  func.func @transform_7(%arg0: i32) -> (i32, i32, i32) {
    %c0_i32 = arith.constant 0 : i32
    %c0_i32_0 = arith.constant 0 : i32
    %c0_i32_1 = arith.constant 0 : i32
    return %arg0, %c0_i32, %c0_i32_0 : i32, i32, i32
  }
}

</mosaic_0001>

<llo_original>
// kernel: cnn_forward.1
$region0: #{cnn_forward.1}
  #allocation0 [shape = 'u32[]', space=smem, size = 0x4, offset = 0x4, fixed_abs, tag = 'smem constant byte address 0x4 - core index']
  #allocation1 [shape = 'u32[72,128]{1,0:T(1,128)}', space=vmem, size = 0x9000, scoped, tag = 'internal scratch']
  #allocation2 [shape = 'f32[784,128]{1,0:T(8,128)}', space=vmem, size = 0x62000, scoped, tag = 'scratch operand']
  #allocation3 [shape = 'f32[400,128]{1,0:T(8,128)}', space=vmem, size = 0x32000, scoped, tag = 'scratch operand']
  #allocation4 [shape = 'f32[256,128]{1,0:T(8,128)}', space=vmem, size = 0x20000, scoped, tag = 'scratch operand']
  %s0 = inlined_call_operand.vmem [shape: f32[2,784,32], index: 0, kind: input, shape index: {}]
  %s1 = inlined_call_operand.vmem [shape: f32[32,128], index: 1, kind: input, shape index: {}]
  %s2 = inlined_call_operand.vmem [shape: f32[1,128], index: 2, kind: input, shape index: {}]
  %s3 = inlined_call_operand.vmem [shape: f32[4,128,128], index: 3, kind: input, shape index: {}]
  %s4 = inlined_call_operand.vmem [shape: f32[1,128], index: 4, kind: input, shape index: {}]
  %s5 = inlined_call_operand.vmem [shape: f32[56,16,128], index: 5, kind: input, shape index: {}]
  %s6 = inlined_call_operand.vmem [shape: f32[16,128], index: 6, kind: input, shape index: {}]
  %s7 = inlined_call_operand.vmem [shape: f32[2,16,128], index: 7, kind: output, shape index: {}]
  %s8 = sld [smem:[#allocation0]]
  $region61: #{cnn_forward.1} parent=0
    _
  %s10 = ssub.s32 1, %s8
  %s11 = scalar_select 0, %s10, %s8
  loop: start=0, step=1, limit=4
  $region2: #{cnn_forward.1} parent=0 // loop_pre_header
    _
  $region3: #{cnn_forward.1} parent=0 // loop_header
    %s13 = sphi 0, %s17
    %p14 = scmp.ge.s32.totalorder %s13, 4
    %s23 = sphi 0, %s25
    %s26 = sphi 0, %s23
    %s27 = sphi 0, %s26
    %s43 = sphi 0, %s27
    %s47 = sphi 0, %s47
    %s49 = sphi 0, %s47
    %s50 = sphi 0, %s49
    %s64 = sphi 0, %s50
    %s68 = sphi 0, %s68
    %s70 = sphi 0, %s68
    %s71 = sphi 0, %s70
    %s85 = sphi 0, %s71
    %s89 = sphi 0, %s89
    %s91 = sphi 0, %s89
    %s92 = sphi 0, %s91
    %s106 = sphi 0, %s92
    %s110 = sphi 0, %s110
    %s112 = sphi 0, %s110
    %s113 = sphi 0, %s112
    %s127 = sphi 0, %s113
    %s131 = sphi 0, %s131
    %s133 = sphi 0, %s131
    %s134 = sphi 0, %s133
    %s148 = sphi 0, %s134
    %s152 = sphi 0, %s152
    %s154 = sphi 0, %s152
    %s155 = sphi 0, %s154
    %s169 = sphi 0, %s155
    %s175 = sphi 0, %s177
    %s178 = sphi 0, %s175
    %s179 = sphi 0, %s178
    %s195 = sphi 0, %s179
  $region4: #{cnn_forward.1} parent=0 // loop_header_branch
    %16 = sbr.rel (%p14) target = $region8
  $region5: #{cnn_forward.1} parent=0 // loop_body
    %s18 = ssub.s32 %s13, 1
    %s19 = ssub.s32 %s13, 2
    %s20 = sadd.s32 %s13, 1
    %s21 = ssub.s32 %s13, %s20
    %p22 = scmp.eq.s32.totalorder %s21, 0
    %s24 = sadd.s32 %s23, 1
    %s25 = scalar_select %p22, %s23, %s24
    %p28 = pneg %p22
    %p29 = scmp.eq.s32.totalorder %s13, 1
    %p30 = por %p28, %p29
    %p31 = scmp.ne.s32.totalorder %s23, %s26
    %p32 = scmp.eq.s32.totalorder %s13, 0
    %p33 = por %p31, %p32
    %p34 = scmp.ne.s32.totalorder %s23, %s26
    %p35 = scmp.eq.s32.totalorder %s18, 1
    %p36 = por %p34, %p35
    %p37 = scmp.ne.s32.totalorder %s26, %s27
    %p38 = scmp.eq.s32.totalorder %s18, 0
    %p39 = por %p37, %p38
    %p40 = scmp.ne.s32.totalorder %s26, %s27
    %p41 = scmp.eq.s32.totalorder %s19, 1
    %p42 = por %p40, %p41
    %p44 = scmp.ne.s32.totalorder %s27, %s43
    %p45 = scmp.eq.s32.totalorder %s19, 0
    %p46 = por %p44, %p45
    %s48 = sadd.s32 %s47, 1
    %p51 = scmp.eq.s32.totalorder %s13, 1
    %p52 = scmp.ne.s32.totalorder %s47, %s49
    %p53 = scmp.eq.s32.totalorder %s13, 0
    %p54 = por %p52, %p53
    %p55 = scmp.ne.s32.totalorder %s47, %s49
    %p56 = scmp.eq.s32.totalorder %s18, 1
    %p57 = por %p55, %p56
    %p58 = scmp.ne.s32.totalorder %s49, %s50
    %p59 = scmp.eq.s32.totalorder %s18, 0
    %p60 = por %p58, %p59
    %p61 = scmp.ne.s32.totalorder %s49, %s50
    %p62 = scmp.eq.s32.totalorder %s19, 1
    %p63 = por %p61, %p62
    %p65 = scmp.ne.s32.totalorder %s50, %s64
    %p66 = scmp.eq.s32.totalorder %s19, 0
    %p67 = por %p65, %p66
    %s69 = sadd.s32 %s68, 1
    %p72 = scmp.eq.s32.totalorder %s13, 1
    %p73 = scmp.ne.s32.totalorder %s68, %s70
    %p74 = scmp.eq.s32.totalorder %s13, 0
    %p75 = por %p73, %p74
    %p76 = scmp.ne.s32.totalorder %s68, %s70
    %p77 = scmp.eq.s32.totalorder %s18, 1
    %p78 = por %p76, %p77
    %p79 = scmp.ne.s32.totalorder %s70, %s71
    %p80 = scmp.eq.s32.totalorder %s18, 0
    %p81 = por %p79, %p80
    %p82 = scmp.ne.s32.totalorder %s70, %s71
    %p83 = scmp.eq.s32.totalorder %s19, 1
    %p84 = por %p82, %p83
    %p86 = scmp.ne.s32.totalorder %s71, %s85
    %p87 = scmp.eq.s32.totalorder %s19, 0
    %p88 = por %p86, %p87
    %s90 = sadd.s32 %s89, 1
    %p93 = scmp.eq.s32.totalorder %s13, 1
    %p94 = scmp.ne.s32.totalorder %s89, %s91
    %p95 = scmp.eq.s32.totalorder %s13, 0
    %p96 = por %p94, %p95
    %p97 = scmp.ne.s32.totalorder %s89, %s91
    %p98 = scmp.eq.s32.totalorder %s18, 1
    %p99 = por %p97, %p98
    %p100 = scmp.ne.s32.totalorder %s91, %s92
    %p101 = scmp.eq.s32.totalorder %s18, 0
    %p102 = por %p100, %p101
    %p103 = scmp.ne.s32.totalorder %s91, %s92
    %p104 = scmp.eq.s32.totalorder %s19, 1
    %p105 = por %p103, %p104
    %p107 = scmp.ne.s32.totalorder %s92, %s106
    %p108 = scmp.eq.s32.totalorder %s19, 0
    %p109 = por %p107, %p108
    %s111 = sadd.s32 %s110, 1
    %p114 = scmp.eq.s32.totalorder %s13, 1
    %p115 = scmp.ne.s32.totalorder %s110, %s112
    %p116 = scmp.eq.s32.totalorder %s13, 0
    %p117 = por %p115, %p116
    %p118 = scmp.ne.s32.totalorder %s110, %s112
    %p119 = scmp.eq.s32.totalorder %s18, 1
    %p120 = por %p118, %p119
    %p121 = scmp.ne.s32.totalorder %s112, %s113
    %p122 = scmp.eq.s32.totalorder %s18, 0
    %p123 = por %p121, %p122
    %p124 = scmp.ne.s32.totalorder %s112, %s113
    %p125 = scmp.eq.s32.totalorder %s19, 1
    %p126 = por %p124, %p125
    %p128 = scmp.ne.s32.totalorder %s113, %s127
    %p129 = scmp.eq.s32.totalorder %s19, 0
    %p130 = por %p128, %p129
    %s132 = sadd.s32 %s131, 1
    %p135 = scmp.eq.s32.totalorder %s13, 1
    %p136 = scmp.ne.s32.totalorder %s131, %s133
    %p137 = scmp.eq.s32.totalorder %s13, 0
    %p138 = por %p136, %p137
    %p139 = scmp.ne.s32.totalorder %s131, %s133
    %p140 = scmp.eq.s32.totalorder %s18, 1
    %p141 = por %p139, %p140
    %p142 = scmp.ne.s32.totalorder %s133, %s134
    %p143 = scmp.eq.s32.totalorder %s18, 0
    %p144 = por %p142, %p143
    %p145 = scmp.ne.s32.totalorder %s133, %s134
    %p146 = scmp.eq.s32.totalorder %s19, 1
    %p147 = por %p145, %p146
    %p149 = scmp.ne.s32.totalorder %s134, %s148
    %p150 = scmp.eq.s32.totalorder %s19, 0
    %p151 = por %p149, %p150
    %s153 = sadd.s32 %s152, 1
    %p156 = scmp.eq.s32.totalorder %s13, 1
    %p157 = scmp.ne.s32.totalorder %s152, %s154
    %p158 = scmp.eq.s32.totalorder %s13, 0
    %p159 = por %p157, %p158
    %p160 = scmp.ne.s32.totalorder %s152, %s154
    %p161 = scmp.eq.s32.totalorder %s18, 1
    %p162 = por %p160, %p161
    %p163 = scmp.ne.s32.totalorder %s154, %s155
    %p164 = scmp.eq.s32.totalorder %s18, 0
    %p165 = por %p163, %p164
    %p166 = scmp.ne.s32.totalorder %s154, %s155
    %p167 = scmp.eq.s32.totalorder %s19, 1
    %p168 = por %p166, %p167
    %p170 = scmp.ne.s32.totalorder %s155, %s169
    %p171 = scmp.eq.s32.totalorder %s19, 0
    %p172 = por %p170, %p171
    %s173 = ssub.s32 %s13, %s20
    %p174 = scmp.eq.s32.totalorder %s173, 0
    %s176 = sadd.s32 %s175, 1
    %s177 = scalar_select %p174, %s175, %s176
    %p180 = pneg %p174
    %p181 = scmp.eq.s32.totalorder %s13, 1
    %p182 = por %p180, %p181
    %p183 = scmp.ne.s32.totalorder %s175, %s178
    %p184 = scmp.eq.s32.totalorder %s13, 0
    %p185 = por %p183, %p184
    %p186 = scmp.ne.s32.totalorder %s175, %s178
    %p187 = scmp.eq.s32.totalorder %s18, 1
    %p188 = por %p186, %p187
    %p189 = scmp.ne.s32.totalorder %s178, %s179
    %p190 = scmp.eq.s32.totalorder %s18, 0
    %p191 = por %p189, %p190
    %p192 = scmp.ne.s32.totalorder %s178, %s179
    %p193 = scmp.eq.s32.totalorder %s19, 1
    %p194 = por %p192, %p193
    %p196 = scmp.ne.s32.totalorder %s179, %s195
    %p197 = scmp.eq.s32.totalorder %s19, 0
    %p198 = por %p196, %p197
    %p199 = scmp.le.s32.totalorder 1, %s13
    %p200 = scmp.lt.s32.totalorder %s13, 3
    %p201 = pnand %p199, %p200
    %p202 = pneg %p201
    // Predicated region
    $region9: #{cnn_forward.1} parent=5 // pred_check
      _
    $region10: #{cnn_forward.1} parent=5 // pred_check_branch
      %204 = sbr.rel (%p201) target = $region12
    $region11: #{cnn_forward.1} parent=5 // pred_region
      %s205 = ssub.s32 %s13, 1
      // Predicated region
      $region13: #{cnn_forward.1} parent=11 // pred_check
        %p206 = pneg %p60
      $region14: #{cnn_forward.1} parent=11 // pred_check_branch
        %208 = sbr.rel (%p206) target = $region16
      $region15: #{cnn_forward.1} parent=11 // pred_region
        _
      $region16: #{cnn_forward.1} parent=11 // pred_fallthru
        _
      // Predicated region
      $region17: #{cnn_forward.1} parent=11 // pred_check
        %p209 = pneg %p81
      $region18: #{cnn_forward.1} parent=11 // pred_check_branch
        %211 = sbr.rel (%p209) target = $region20
      $region19: #{cnn_forward.1} parent=11 // pred_region
        _
      $region20: #{cnn_forward.1} parent=11 // pred_fallthru
        _
      // Predicated region
      $region21: #{cnn_forward.1} parent=11 // pred_check
        %p212 = pneg %p102
      $region22: #{cnn_forward.1} parent=11 // pred_check_branch
        %214 = sbr.rel (%p212) target = $region24
      $region23: #{cnn_forward.1} parent=11 // pred_region
        _
      $region24: #{cnn_forward.1} parent=11 // pred_fallthru
        _
      // Predicated region
      $region25: #{cnn_forward.1} parent=11 // pred_check
        %p215 = pneg %p123
      $region26: #{cnn_forward.1} parent=11 // pred_check_branch
        %217 = sbr.rel (%p215) target = $region28
      $region27: #{cnn_forward.1} parent=11 // pred_region
        _
      $region28: #{cnn_forward.1} parent=11 // pred_fallthru
        _
      // Predicated region
      $region29: #{cnn_forward.1} parent=11 // pred_check
        %p218 = pneg %p144
      $region30: #{cnn_forward.1} parent=11 // pred_check_branch
        %220 = sbr.rel (%p218) target = $region32
      $region31: #{cnn_forward.1} parent=11 // pred_region
        _
      $region32: #{cnn_forward.1} parent=11 // pred_fallthru
        _
      // Predicated region
      $region33: #{cnn_forward.1} parent=11 // pred_check
        %p221 = pneg %p165
      $region34: #{cnn_forward.1} parent=11 // pred_check_branch
        %223 = sbr.rel (%p221) target = $region36
      $region35: #{cnn_forward.1} parent=11 // pred_region
        _
      $region36: #{cnn_forward.1} parent=11 // pred_fallthru
        _
    $region12: #{cnn_forward.1} parent=5 // pred_fallthru
      _
    %p224 = scmp.lt.s32.totalorder %s13, 2
    // Predicated region
    $region37: #{cnn_forward.1} parent=5 // pred_check
      %p225 = pneg %p224
    $region38: #{cnn_forward.1} parent=5 // pred_check_branch
      %227 = sbr.rel (%p225) target = $region40
    $region39: #{cnn_forward.1} parent=5 // pred_region
      // Predicated region
      $region41: #{cnn_forward.1} parent=39 // pred_check
        %p228 = pneg %p33
      $region42: #{cnn_forward.1} parent=39 // pred_check_branch
        %230 = sbr.rel (%p228) target = $region44
      $region43: #{cnn_forward.1} parent=39 // pred_region
        %p231 = scmp.lt.s32.totalorder %s13, 1
        %s232 = scalar_select %p231, %s13, 1
        %s233 = smul.addr %s232, 98
        %s234 = smul.addr %s233, 8
        %s235 = scalar_lea.vmem %s0, %s234
      $region44: #{cnn_forward.1} parent=39 // pred_fallthru
        _
    $region40: #{cnn_forward.1} parent=5 // pred_fallthru
      _
    %p236 = scmp.le.s32.totalorder 1, %s13
    %p237 = scmp.lt.s32.totalorder %s13, 3
    %p238 = pnand %p236, %p237
    %p239 = pneg %p238
    // Predicated region
    $region45: #{cnn_forward.1} parent=5 // pred_check
      _
    $region46: #{cnn_forward.1} parent=5 // pred_check_branch
      %241 = sbr.rel (%p238) target = $region48
    $region47: #{cnn_forward.1} parent=5 // pred_region
      %s242 = ssub.s32 %s13, 1
      %p243 = scmp.lt.s32.totalorder %s18, 1
      %s244 = scalar_select %p243, %s18, 1
      %s245 = smul.addr %s244, 98
      %s246 = smul.addr %s245, 8
      %s247 = scalar_lea.vmem %s0, %s246
      %p248 = pneg %p39
      %p249 = pneg %p36
      %p250 = pneg %p60
      %p251 = pneg %p57
      %p252 = pneg %p81
      %p253 = pneg %p78
      %p254 = pneg %p102
      %p255 = pneg %p99
      %p256 = pneg %p123
      %p257 = pneg %p120
      %p258 = pneg %p144
      %p259 = pneg %p141
      %p260 = pneg %p165
      %p261 = pneg %p162
      %p262 = pneg %p191
      %p263 = pneg %p188
      %p264 = scmp.lt.s32.totalorder %s18, 1
      %s265 = scalar_select %p264, %s18, 1
      %s266 = smul.addr %s265, 2
      %s267 = smul.addr %s266, 8
      %s268 = scalar_lea.vmem %s7, %s267
      %p269 = scmp.lt.s32.totalorder %s18, 1
      %s270 = scalar_select %p269, %s18, 1
      %s271 = smul.addr %s270, 98
      %s272 = smul.addr %s271, 8
      %s273 = scalar_lea.vmem %s0, %s272
      %p274 = scmp.lt.s32.totalorder %s18, 1
      %s275 = scalar_select %p274, %s18, 1
      %s276 = smul.addr %s275, 2
      %s277 = smul.addr %s276, 8
      %s278 = scalar_lea.vmem %s7, %s277
      %v279 = vld [vmem:[%s1] sm:$0xff]
      %v280 = vld [vmem:[%s1 + $0x8] sm:$0xff]
      %v281 = vld [vmem:[%s1 + $0x10] sm:$0xff]
      %v282 = vld [vmem:[%s1 + $0x18] sm:$0xff]
      %v283 = vld [vmem:[%s2] sm:$0x1]
      %v284 = vld [vmem:[%s4] sm:$0x1]
      %v285 = vld [vmem:[%s273] sm:$0xff]
      %v286 = vld [vmem:[%s273 + $0x8] sm:$0xff]
      %v287 = vld [vmem:[%s273 + $0x10] sm:$0xff]
      %v288 = vld [vmem:[%s273 + $0x18] sm:$0xff]
      %v289 = vld [vmem:[%s273 + $0x20] sm:$0xff]
      %v290 = vld [vmem:[%s273 + $0x28] sm:$0xff]
      %v291 = vld [vmem:[%s273 + $0x30] sm:$0xff]
      %v292 = vld [vmem:[%s273 + $0x38] sm:$0xff]
      %v293 = vld [vmem:[%s273 + $0x40] sm:$0xff]
      %v294 = vld [vmem:[%s273 + $0x48] sm:$0xff]
      %v295 = vld [vmem:[%s273 + $0x50] sm:$0xff]
      %v296 = vld [vmem:[%s273 + $0x58] sm:$0xff]
      %v297 = vld [vmem:[%s273 + $0x60] sm:$0xff]
      %v298 = vld [vmem:[%s273 + $0x68] sm:$0xff]
      %v300 = vperm.slane %v283, 0
      %vm302 = vcmask 261120
      %v304 = vsel %vm302, %v285, 0
      %v307 = vsel %vm302, %v286, 0
      %v310 = vsel %vm302, %v287, 0
      %v313 = vsel %vm302, %v288, 0
      %v316 = vsel %vm302, %v289, 0
      %v319 = vsel %vm302, %v290, 0
      %v322 = vsel %vm302, %v291, 0
      %v325 = vsel %vm302, %v292, 0
      %v328 = vsel %vm302, %v293, 0
      %v331 = vsel %vm302, %v294, 0
      %v334 = vsel %vm302, %v295, 0
      %v337 = vsel %vm302, %v296, 0
      %v340 = vsel %vm302, %v297, 0
      %v343 = vsel %vm302, %v298, 0
      %345 = vmatpush.msra.mxu0 0.0
      %346 = vmatpush.msra.mxu0 0.0
      %347 = vmatpush.msra.mxu0 0.0
      %348 = vmatpush.msra.mxu0 0.0
      %349 = vmatpush.msra.mxu0 0.0
      %350 = vmatpush.msra.mxu0 0.0
      %351 = vmatpush.msra.mxu0 0.0
      %352 = vmatpush.msra.mxu0 0.0
      %353 = vmatpush.msra.mxu0 0.0
      %354 = vmatpush.msra.mxu0 0.0
      %355 = vmatpush.msra.mxu0 0.0
      %356 = vmatpush.msra.mxu0 0.0
      %357 = vmatpush.msra.mxu0 %v282
      %358 = vmatpush.msra.mxu0 %v281
      %359 = vmatpush.msra.mxu0 %v280
      %360 = vmatpush.msra.mxu0 %v279
      %361 = vmatmul.f32.gmra.mxu0 %v304
      %v362 = vpop.f32.mrf.mxu0
      %v363 = vadd.f32 %v300, %v362
      %364 = vmatmul.f32.gmra.mxu0 %v307
      %v365 = vpop.f32.mrf.mxu0
      %v366 = vadd.f32 %v300, %v365
      %367 = vmatmul.f32.gmra.mxu0 %v310
      %v368 = vpop.f32.mrf.mxu0
      %v369 = vadd.f32 %v300, %v368
      %370 = vmatmul.f32.gmra.mxu0 %v313
      %v371 = vpop.f32.mrf.mxu0
      %v372 = vadd.f32 %v300, %v371
      %373 = vmatmul.f32.gmra.mxu0 %v316
      %v374 = vpop.f32.mrf.mxu0
      %v375 = vadd.f32 %v300, %v374
      %376 = vmatmul.f32.gmra.mxu0 %v319
      %v377 = vpop.f32.mrf.mxu0
      %v378 = vadd.f32 %v300, %v377
      %379 = vmatmul.f32.gmra.mxu0 %v322
      %v380 = vpop.f32.mrf.mxu0
      %v381 = vadd.f32 %v300, %v380
      %382 = vmatmul.f32.gmra.mxu0 %v325
      %v383 = vpop.f32.mrf.mxu0
      %v384 = vadd.f32 %v300, %v383
      %385 = vmatmul.f32.gmra.mxu0 %v328
      %v386 = vpop.f32.mrf.mxu0
      %v387 = vadd.f32 %v300, %v386
      %388 = vmatmul.f32.gmra.mxu0 %v331
      %v389 = vpop.f32.mrf.mxu0
      %v390 = vadd.f32 %v300, %v389
      %391 = vmatmul.f32.gmra.mxu0 %v334
      %v392 = vpop.f32.mrf.mxu0
      %v393 = vadd.f32 %v300, %v392
      %394 = vmatmul.f32.gmra.mxu0 %v337
      %v395 = vpop.f32.mrf.mxu0
      %v396 = vadd.f32 %v300, %v395
      %397 = vmatmul.f32.gmra.mxu0 %v340
      %v398 = vpop.f32.mrf.mxu0
      %v399 = vadd.f32 %v300, %v398
      %400 = vmatmul.f32.gmra.mxu0 %v343
      %v401 = vpop.f32.mrf.mxu0
      %v402 = vadd.f32 %v300, %v401
      %403 = vdwg.mxu0
      %v404 = vmax.f32 %v363, 0.0
      %v405 = vmax.f32 %v366, 0.0
      %v406 = vmax.f32 %v369, 0.0
      %v407 = vmax.f32 %v372, 0.0
      %v408 = vmax.f32 %v375, 0.0
      %v409 = vmax.f32 %v378, 0.0
      %v410 = vmax.f32 %v381, 0.0
      %v411 = vmax.f32 %v384, 0.0
      %v412 = vmax.f32 %v387, 0.0
      %v413 = vmax.f32 %v390, 0.0
      %v414 = vmax.f32 %v393, 0.0
      %v415 = vmax.f32 %v396, 0.0
      %v416 = vmax.f32 %v399, 0.0
      %v417 = vmax.f32 %v402, 0.0
      %418 = vst [vmem:[#allocation2] sm:$0xff] %v404
      %419 = vst [vmem:[#allocation2 + $0x8] sm:$0xff] %v405
      %420 = vst [vmem:[#allocation2 + $0x10] sm:$0xff] %v406
      %421 = vst [vmem:[#allocation2 + $0x18] sm:$0xff] %v407
      %422 = vst [vmem:[#allocation2 + $0x20] sm:$0xff] %v408
      %423 = vst [vmem:[#allocation2 + $0x28] sm:$0xff] %v409
      %424 = vst [vmem:[#allocation2 + $0x30] sm:$0xff] %v410
      %425 = vst [vmem:[#allocation2 + $0x38] sm:$0xff] %v411
      %426 = vst [vmem:[#allocation2 + $0x40] sm:$0xff] %v412
      %427 = vst [vmem:[#allocation2 + $0x48] sm:$0xff] %v413
      %428 = vst [vmem:[#allocation2 + $0x50] sm:$0xff] %v414
      %429 = vst [vmem:[#allocation2 + $0x58] sm:$0xff] %v415
      %430 = vst [vmem:[#allocation2 + $0x60] sm:$0xff] %v416
      %431 = vst [vmem:[#allocation2 + $0x68] sm:$0xff] %v417
      %v432 = vld [vmem:[%s273 + $0x70] sm:$0xff]
      %v433 = vld [vmem:[%s273 + $0x78] sm:$0xff]
      %v434 = vld [vmem:[%s273 + $0x80] sm:$0xff]
      %v435 = vld [vmem:[%s273 + $0x88] sm:$0xff]
      %v436 = vld [vmem:[%s273 + $0x90] sm:$0xff]
      %v437 = vld [vmem:[%s273 + $0x98] sm:$0xff]
      %v438 = vld [vmem:[%s273 + $0xa0] sm:$0xff]
      %v439 = vld [vmem:[%s273 + $0xa8] sm:$0xff]
      %v440 = vld [vmem:[%s273 + $0xb0] sm:$0xff]
      %v441 = vld [vmem:[%s273 + $0xb8] sm:$0xff]
      %v442 = vld [vmem:[%s273 + $0xc0] sm:$0xff]
      %v443 = vld [vmem:[%s273 + $0xc8] sm:$0xff]
      %v444 = vld [vmem:[%s273 + $0xd0] sm:$0xff]
      %v445 = vld [vmem:[%s273 + $0xd8] sm:$0xff]
      %v447 = vsel %vm302, %v432, 0
      %v450 = vsel %vm302, %v433, 0
      %v453 = vsel %vm302, %v434, 0
      %v456 = vsel %vm302, %v435, 0
      %v459 = vsel %vm302, %v436, 0
      %v462 = vsel %vm302, %v437, 0
      %v465 = vsel %vm302, %v438, 0
      %v468 = vsel %vm302, %v439, 0
      %v471 = vsel %vm302, %v440, 0
      %v474 = vsel %vm302, %v441, 0
      %v477 = vsel %vm302, %v442, 0
      %v480 = vsel %vm302, %v443, 0
      %v483 = vsel %vm302, %v444, 0
      %v486 = vsel %vm302, %v445, 0
      %488 = vmatpush.msra.mxu0 0.0
      %489 = vmatpush.msra.mxu0 0.0
      %490 = vmatpush.msra.mxu0 0.0
      %491 = vmatpush.msra.mxu0 0.0
      %492 = vmatpush.msra.mxu0 0.0
      %493 = vmatpush.msra.mxu0 0.0
      %494 = vmatpush.msra.mxu0 0.0
      %495 = vmatpush.msra.mxu0 0.0
      %496 = vmatpush.msra.mxu0 0.0
      %497 = vmatpush.msra.mxu0 0.0
      %498 = vmatpush.msra.mxu0 0.0
      %499 = vmatpush.msra.mxu0 0.0
      %500 = vmatpush.msra.mxu0 %v282
      %501 = vmatpush.msra.mxu0 %v281
      %502 = vmatpush.msra.mxu0 %v280
      %503 = vmatpush.msra.mxu0 %v279
      %504 = vmatmul.f32.gmra.mxu0 %v447
      %v505 = vpop.f32.mrf.mxu0
      %v506 = vadd.f32 %v300, %v505
      %507 = vmatmul.f32.gmra.mxu0 %v450
      %v508 = vpop.f32.mrf.mxu0
      %v509 = vadd.f32 %v300, %v508
      %510 = vmatmul.f32.gmra.mxu0 %v453
      %v511 = vpop.f32.mrf.mxu0
      %v512 = vadd.f32 %v300, %v511
      %513 = vmatmul.f32.gmra.mxu0 %v456
      %v514 = vpop.f32.mrf.mxu0
      %v515 = vadd.f32 %v300, %v514
      %516 = vmatmul.f32.gmra.mxu0 %v459
      %v517 = vpop.f32.mrf.mxu0
      %v518 = vadd.f32 %v300, %v517
      %519 = vmatmul.f32.gmra.mxu0 %v462
      %v520 = vpop.f32.mrf.mxu0
      %v521 = vadd.f32 %v300, %v520
      %522 = vmatmul.f32.gmra.mxu0 %v465
      %v523 = vpop.f32.mrf.mxu0
      %v524 = vadd.f32 %v300, %v523
      %525 = vmatmul.f32.gmra.mxu0 %v468
      %v526 = vpop.f32.mrf.mxu0
      %v527 = vadd.f32 %v300, %v526
      %528 = vmatmul.f32.gmra.mxu0 %v471
      %v529 = vpop.f32.mrf.mxu0
      %v530 = vadd.f32 %v300, %v529
      %531 = vmatmul.f32.gmra.mxu0 %v474
      %v532 = vpop.f32.mrf.mxu0
      %v533 = vadd.f32 %v300, %v532
      %534 = vmatmul.f32.gmra.mxu0 %v477
      %v535 = vpop.f32.mrf.mxu0
      %v536 = vadd.f32 %v300, %v535
      %537 = vmatmul.f32.gmra.mxu0 %v480
      %v538 = vpop.f32.mrf.mxu0
      %v539 = vadd.f32 %v300, %v538
      %540 = vmatmul.f32.gmra.mxu0 %v483
      %v541 = vpop.f32.mrf.mxu0
      %v542 = vadd.f32 %v300, %v541
      %543 = vmatmul.f32.gmra.mxu0 %v486
      %v544 = vpop.f32.mrf.mxu0
      %v545 = vadd.f32 %v300, %v544
      %546 = vdwg.mxu0
      %v547 = vmax.f32 %v506, 0.0
      %v548 = vmax.f32 %v509, 0.0
      %v549 = vmax.f32 %v512, 0.0
      %v550 = vmax.f32 %v515, 0.0
      %v551 = vmax.f32 %v518, 0.0
      %v552 = vmax.f32 %v521, 0.0
      %v553 = vmax.f32 %v524, 0.0
      %v554 = vmax.f32 %v527, 0.0
      %v555 = vmax.f32 %v530, 0.0
      %v556 = vmax.f32 %v533, 0.0
      %v557 = vmax.f32 %v536, 0.0
      %v558 = vmax.f32 %v539, 0.0
      %v559 = vmax.f32 %v542, 0.0
      %v560 = vmax.f32 %v545, 0.0
      %561 = vst [vmem:[#allocation2 + $0x70] sm:$0xff] %v547
      %562 = vst [vmem:[#allocation2 + $0x78] sm:$0xff] %v548
      %563 = vst [vmem:[#allocation2 + $0x80] sm:$0xff] %v549
      %564 = vst [vmem:[#allocation2 + $0x88] sm:$0xff] %v550
      %565 = vst [vmem:[#allocation2 + $0x90] sm:$0xff] %v551
      %566 = vst [vmem:[#allocation2 + $0x98] sm:$0xff] %v552
      %567 = vst [vmem:[#allocation2 + $0xa0] sm:$0xff] %v553
      %568 = vst [vmem:[#allocation2 + $0xa8] sm:$0xff] %v554
      %569 = vst [vmem:[#allocation2 + $0xb0] sm:$0xff] %v555
      %570 = vst [vmem:[#allocation2 + $0xb8] sm:$0xff] %v556
      %571 = vst [vmem:[#allocation2 + $0xc0] sm:$0xff] %v557
      %572 = vst [vmem:[#allocation2 + $0xc8] sm:$0xff] %v558
      %573 = vst [vmem:[#allocation2 + $0xd0] sm:$0xff] %v559
      %574 = vst [vmem:[#allocation2 + $0xd8] sm:$0xff] %v560
      %v575 = vld [vmem:[%s273 + $0xe0] sm:$0xff]
      %v576 = vld [vmem:[%s273 + $0xe8] sm:$0xff]
      %v577 = vld [vmem:[%s273 + $0xf0] sm:$0xff]
      %v578 = vld [vmem:[%s273 + $0xf8] sm:$0xff]
      %v579 = vld [vmem:[%s273 + $0x100] sm:$0xff]
      %v580 = vld [vmem:[%s273 + $0x108] sm:$0xff]
      %v581 = vld [vmem:[%s273 + $0x110] sm:$0xff]
      %v582 = vld [vmem:[%s273 + $0x118] sm:$0xff]
      %v583 = vld [vmem:[%s273 + $0x120] sm:$0xff]
      %v584 = vld [vmem:[%s273 + $0x128] sm:$0xff]
      %v585 = vld [vmem:[%s273 + $0x130] sm:$0xff]
      %v586 = vld [vmem:[%s273 + $0x138] sm:$0xff]
      %v587 = vld [vmem:[%s273 + $0x140] sm:$0xff]
      %v588 = vld [vmem:[%s273 + $0x148] sm:$0xff]
      %v590 = vsel %vm302, %v575, 0
      %v593 = vsel %vm302, %v576, 0
      %v596 = vsel %vm302, %v577, 0
      %v599 = vsel %vm302, %v578, 0
      %v602 = vsel %vm302, %v579, 0
      %v605 = vsel %vm302, %v580, 0
      %v608 = vsel %vm302, %v581, 0
      %v611 = vsel %vm302, %v582, 0
      %v614 = vsel %vm302, %v583, 0
      %v617 = vsel %vm302, %v584, 0
      %v620 = vsel %vm302, %v585, 0
      %v623 = vsel %vm302, %v586, 0
      %v626 = vsel %vm302, %v587, 0
      %v629 = vsel %vm302, %v588, 0
      %631 = vmatpush.msra.mxu0 0.0
      %632 = vmatpush.msra.mxu0 0.0
      %633 = vmatpush.msra.mxu0 0.0
      %634 = vmatpush.msra.mxu0 0.0
      %635 = vmatpush.msra.mxu0 0.0
      %636 = vmatpush.msra.mxu0 0.0
      %637 = vmatpush.msra.mxu0 0.0
      %638 = vmatpush.msra.mxu0 0.0
      %639 = vmatpush.msra.mxu0 0.0
      %640 = vmatpush.msra.mxu0 0.0
      %641 = vmatpush.msra.mxu0 0.0
      %642 = vmatpush.msra.mxu0 0.0
      %643 = vmatpush.msra.mxu0 %v282
      %644 = vmatpush.msra.mxu0 %v281
      %645 = vmatpush.msra.mxu0 %v280
      %646 = vmatpush.msra.mxu0 %v279
      %647 = vmatmul.f32.gmra.mxu0 %v590
      %v648 = vpop.f32.mrf.mxu0
      %v649 = vadd.f32 %v300, %v648
      %650 = vmatmul.f32.gmra.mxu0 %v593
      %v651 = vpop.f32.mrf.mxu0
      %v652 = vadd.f32 %v300, %v651
      %653 = vmatmul.f32.gmra.mxu0 %v596
      %v654 = vpop.f32.mrf.mxu0
      %v655 = vadd.f32 %v300, %v654
      %656 = vmatmul.f32.gmra.mxu0 %v599
      %v657 = vpop.f32.mrf.mxu0
      %v658 = vadd.f32 %v300, %v657
      %659 = vmatmul.f32.gmra.mxu0 %v602
      %v660 = vpop.f32.mrf.mxu0
      %v661 = vadd.f32 %v300, %v660
      %662 = vmatmul.f32.gmra.mxu0 %v605
      %v663 = vpop.f32.mrf.mxu0
      %v664 = vadd.f32 %v300, %v663
      %665 = vmatmul.f32.gmra.mxu0 %v608
      %v666 = vpop.f32.mrf.mxu0
      %v667 = vadd.f32 %v300, %v666
      %668 = vmatmul.f32.gmra.mxu0 %v611
      %v669 = vpop.f32.mrf.mxu0
      %v670 = vadd.f32 %v300, %v669
      %671 = vmatmul.f32.gmra.mxu0 %v614
      %v672 = vpop.f32.mrf.mxu0
      %v673 = vadd.f32 %v300, %v672
      %674 = vmatmul.f32.gmra.mxu0 %v617
      %v675 = vpop.f32.mrf.mxu0
      %v676 = vadd.f32 %v300, %v675
      %677 = vmatmul.f32.gmra.mxu0 %v620
      %v678 = vpop.f32.mrf.mxu0
      %v679 = vadd.f32 %v300, %v678
      %680 = vmatmul.f32.gmra.mxu0 %v623
      %v681 = vpop.f32.mrf.mxu0
      %v682 = vadd.f32 %v300, %v681
      %683 = vmatmul.f32.gmra.mxu0 %v626
      %v684 = vpop.f32.mrf.mxu0
      %v685 = vadd.f32 %v300, %v684
      %686 = vmatmul.f32.gmra.mxu0 %v629
      %v687 = vpop.f32.mrf.mxu0
      %v688 = vadd.f32 %v300, %v687
      %689 = vdwg.mxu0
      %v690 = vmax.f32 %v649, 0.0
      %v691 = vmax.f32 %v652, 0.0
      %v692 = vmax.f32 %v655, 0.0
      %v693 = vmax.f32 %v658, 0.0
      %v694 = vmax.f32 %v661, 0.0
      %v695 = vmax.f32 %v664, 0.0
      %v696 = vmax.f32 %v667, 0.0
      %v697 = vmax.f32 %v670, 0.0
      %v698 = vmax.f32 %v673, 0.0
      %v699 = vmax.f32 %v676, 0.0
      %v700 = vmax.f32 %v679, 0.0
      %v701 = vmax.f32 %v682, 0.0
      %v702 = vmax.f32 %v685, 0.0
      %v703 = vmax.f32 %v688, 0.0
      %704 = vst [vmem:[#allocation2 + $0xe0] sm:$0xff] %v690
      %705 = vst [vmem:[#allocation2 + $0xe8] sm:$0xff] %v691
      %706 = vst [vmem:[#allocation2 + $0xf0] sm:$0xff] %v692
      %707 = vst [vmem:[#allocation2 + $0xf8] sm:$0xff] %v693
      %708 = vst [vmem:[#allocation2 + $0x100] sm:$0xff] %v694
      %709 = vst [vmem:[#allocation2 + $0x108] sm:$0xff] %v695
      %710 = vst [vmem:[#allocation2 + $0x110] sm:$0xff] %v696
      %711 = vst [vmem:[#allocation2 + $0x118] sm:$0xff] %v697
      %712 = vst [vmem:[#allocation2 + $0x120] sm:$0xff] %v698
      %713 = vst [vmem:[#allocation2 + $0x128] sm:$0xff] %v699
      %714 = vst [vmem:[#allocation2 + $0x130] sm:$0xff] %v700
      %715 = vst [vmem:[#allocation2 + $0x138] sm:$0xff] %v701
      %716 = vst [vmem:[#allocation2 + $0x140] sm:$0xff] %v702
      %717 = vst [vmem:[#allocation2 + $0x148] sm:$0xff] %v703
      %v718 = vld [vmem:[%s273 + $0x150] sm:$0xff]
      %v719 = vld [vmem:[%s273 + $0x158] sm:$0xff]
      %v720 = vld [vmem:[%s273 + $0x160] sm:$0xff]
      %v721 = vld [vmem:[%s273 + $0x168] sm:$0xff]
      %v722 = vld [vmem:[%s273 + $0x170] sm:$0xff]
      %v723 = vld [vmem:[%s273 + $0x178] sm:$0xff]
      %v724 = vld [vmem:[%s273 + $0x180] sm:$0xff]
      %v725 = vld [vmem:[%s273 + $0x188] sm:$0xff]
      %v726 = vld [vmem:[%s273 + $0x190] sm:$0xff]
      %v727 = vld [vmem:[%s273 + $0x198] sm:$0xff]
      %v728 = vld [vmem:[%s273 + $0x1a0] sm:$0xff]
      %v729 = vld [vmem:[%s273 + $0x1a8] sm:$0xff]
      %v730 = vld [vmem:[%s273 + $0x1b0] sm:$0xff]
      %v731 = vld [vmem:[%s273 + $0x1b8] sm:$0xff]
      %v733 = vsel %vm302, %v718, 0
      %v736 = vsel %vm302, %v719, 0
      %v739 = vsel %vm302, %v720, 0
      %v742 = vsel %vm302, %v721, 0
      %v745 = vsel %vm302, %v722, 0
      %v748 = vsel %vm302, %v723, 0
      %v751 = vsel %vm302, %v724, 0
      %v754 = vsel %vm302, %v725, 0
      %v757 = vsel %vm302, %v726, 0
      %v760 = vsel %vm302, %v727, 0
      %v763 = vsel %vm302, %v728, 0
      %v766 = vsel %vm302, %v729, 0
      %v769 = vsel %vm302, %v730, 0
      %v772 = vsel %vm302, %v731, 0
      %774 = vmatpush.msra.mxu0 0.0
      %775 = vmatpush.msra.mxu0 0.0
      %776 = vmatpush.msra.mxu0 0.0
      %777 = vmatpush.msra.mxu0 0.0
      %778 = vmatpush.msra.mxu0 0.0
      %779 = vmatpush.msra.mxu0 0.0
      %780 = vmatpush.msra.mxu0 0.0
      %781 = vmatpush.msra.mxu0 0.0
      %782 = vmatpush.msra.mxu0 0.0
      %783 = vmatpush.msra.mxu0 0.0
      %784 = vmatpush.msra.mxu0 0.0
      %785 = vmatpush.msra.mxu0 0.0
      %786 = vmatpush.msra.mxu0 %v282
      %787 = vmatpush.msra.mxu0 %v281
      %788 = vmatpush.msra.mxu0 %v280
      %789 = vmatpush.msra.mxu0 %v279
      %790 = vmatmul.f32.gmra.mxu0 %v733
      %v791 = vpop.f32.mrf.mxu0
      %v792 = vadd.f32 %v300, %v791
      %793 = vmatmul.f32.gmra.mxu0 %v736
      %v794 = vpop.f32.mrf.mxu0
      %v795 = vadd.f32 %v300, %v794
      %796 = vmatmul.f32.gmra.mxu0 %v739
      %v797 = vpop.f32.mrf.mxu0
      %v798 = vadd.f32 %v300, %v797
      %799 = vmatmul.f32.gmra.mxu0 %v742
      %v800 = vpop.f32.mrf.mxu0
      %v801 = vadd.f32 %v300, %v800
      %802 = vmatmul.f32.gmra.mxu0 %v745
      %v803 = vpop.f32.mrf.mxu0
      %v804 = vadd.f32 %v300, %v803
      %805 = vmatmul.f32.gmra.mxu0 %v748
      %v806 = vpop.f32.mrf.mxu0
      %v807 = vadd.f32 %v300, %v806
      %808 = vmatmul.f32.gmra.mxu0 %v751
      %v809 = vpop.f32.mrf.mxu0
      %v810 = vadd.f32 %v300, %v809
      %811 = vmatmul.f32.gmra.mxu0 %v754
      %v812 = vpop.f32.mrf.mxu0
      %v813 = vadd.f32 %v300, %v812
      %814 = vmatmul.f32.gmra.mxu0 %v757
      %v815 = vpop.f32.mrf.mxu0
      %v816 = vadd.f32 %v300, %v815
      %817 = vmatmul.f32.gmra.mxu0 %v760
      %v818 = vpop.f32.mrf.mxu0
      %v819 = vadd.f32 %v300, %v818
      %820 = vmatmul.f32.gmra.mxu0 %v763
      %v821 = vpop.f32.mrf.mxu0
      %v822 = vadd.f32 %v300, %v821
      %823 = vmatmul.f32.gmra.mxu0 %v766
      %v824 = vpop.f32.mrf.mxu0
      %v825 = vadd.f32 %v300, %v824
      %826 = vmatmul.f32.gmra.mxu0 %v769
      %v827 = vpop.f32.mrf.mxu0
      %v828 = vadd.f32 %v300, %v827
      %829 = vmatmul.f32.gmra.mxu0 %v772
      %v830 = vpop.f32.mrf.mxu0
      %v831 = vadd.f32 %v300, %v830
      %832 = vdwg.mxu0
      %v833 = vmax.f32 %v792, 0.0
      %v834 = vmax.f32 %v795, 0.0
      %v835 = vmax.f32 %v798, 0.0
      %v836 = vmax.f32 %v801, 0.0
      %v837 = vmax.f32 %v804, 0.0
      %v838 = vmax.f32 %v807, 0.0
      %v839 = vmax.f32 %v810, 0.0
      %v840 = vmax.f32 %v813, 0.0
      %v841 = vmax.f32 %v816, 0.0
      %v842 = vmax.f32 %v819, 0.0
      %v843 = vmax.f32 %v822, 0.0
      %v844 = vmax.f32 %v825, 0.0
      %v845 = vmax.f32 %v828, 0.0
      %v846 = vmax.f32 %v831, 0.0
      %847 = vst [vmem:[#allocation2 + $0x150] sm:$0xff] %v833
      %848 = vst [vmem:[#allocation2 + $0x158] sm:$0xff] %v834
      %849 = vst [vmem:[#allocation2 + $0x160] sm:$0xff] %v835
      %850 = vst [vmem:[#allocation2 + $0x168] sm:$0xff] %v836
      %851 = vst [vmem:[#allocation2 + $0x170] sm:$0xff] %v837
      %852 = vst [vmem:[#allocation2 + $0x178] sm:$0xff] %v838
      %853 = vst [vmem:[#allocation2 + $0x180] sm:$0xff] %v839
      %854 = vst [vmem:[#allocation2 + $0x188] sm:$0xff] %v840
      %855 = vst [vmem:[#allocation2 + $0x190] sm:$0xff] %v841
      %856 = vst [vmem:[#allocation2 + $0x198] sm:$0xff] %v842
      %857 = vst [vmem:[#allocation2 + $0x1a0] sm:$0xff] %v843
      %858 = vst [vmem:[#allocation2 + $0x1a8] sm:$0xff] %v844
      %859 = vst [vmem:[#allocation2 + $0x1b0] sm:$0xff] %v845
      %860 = vst [vmem:[#allocation2 + $0x1b8] sm:$0xff] %v846
      %v861 = vld [vmem:[%s273 + $0x1c0] sm:$0xff]
      %v862 = vld [vmem:[%s273 + $0x1c8] sm:$0xff]
      %v863 = vld [vmem:[%s273 + $0x1d0] sm:$0xff]
      %v864 = vld [vmem:[%s273 + $0x1d8] sm:$0xff]
      %v865 = vld [vmem:[%s273 + $0x1e0] sm:$0xff]
      %v866 = vld [vmem:[%s273 + $0x1e8] sm:$0xff]
      %v867 = vld [vmem:[%s273 + $0x1f0] sm:$0xff]
      %v868 = vld [vmem:[%s273 + $0x1f8] sm:$0xff]
      %v869 = vld [vmem:[%s273 + $0x200] sm:$0xff]
      %v870 = vld [vmem:[%s273 + $0x208] sm:$0xff]
      %v871 = vld [vmem:[%s273 + $0x210] sm:$0xff]
      %v872 = vld [vmem:[%s273 + $0x218] sm:$0xff]
      %v873 = vld [vmem:[%s273 + $0x220] sm:$0xff]
      %v874 = vld [vmem:[%s273 + $0x228] sm:$0xff]
      %v876 = vsel %vm302, %v861, 0
      %v879 = vsel %vm302, %v862, 0
      %v882 = vsel %vm302, %v863, 0
      %v885 = vsel %vm302, %v864, 0
      %v888 = vsel %vm302, %v865, 0
      %v891 = vsel %vm302, %v866, 0
      %v894 = vsel %vm302, %v867, 0
      %v897 = vsel %vm302, %v868, 0
      %v900 = vsel %vm302, %v869, 0
      %v903 = vsel %vm302, %v870, 0
      %v906 = vsel %vm302, %v871, 0
      %v909 = vsel %vm302, %v872, 0
      %v912 = vsel %vm302, %v873, 0
      %v915 = vsel %vm302, %v874, 0
      %917 = vmatpush.msra.mxu0 0.0
      %918 = vmatpush.msra.mxu0 0.0
      %919 = vmatpush.msra.mxu0 0.0
      %920 = vmatpush.msra.mxu0 0.0
      %921 = vmatpush.msra.mxu0 0.0
      %922 = vmatpush.msra.mxu0 0.0
      %923 = vmatpush.msra.mxu0 0.0
      %924 = vmatpush.msra.mxu0 0.0
      %925 = vmatpush.msra.mxu0 0.0
      %926 = vmatpush.msra.mxu0 0.0
      %927 = vmatpush.msra.mxu0 0.0
      %928 = vmatpush.msra.mxu0 0.0
      %929 = vmatpush.msra.mxu0 %v282
      %930 = vmatpush.msra.mxu0 %v281
      %931 = vmatpush.msra.mxu0 %v280
      %932 = vmatpush.msra.mxu0 %v279
      %933 = vmatmul.f32.gmra.mxu0 %v876
      %v934 = vpop.f32.mrf.mxu0
      %v935 = vadd.f32 %v300, %v934
      %936 = vmatmul.f32.gmra.mxu0 %v879
      %v937 = vpop.f32.mrf.mxu0
      %v938 = vadd.f32 %v300, %v937
      %939 = vmatmul.f32.gmra.mxu0 %v882
      %v940 = vpop.f32.mrf.mxu0
      %v941 = vadd.f32 %v300, %v940
      %942 = vmatmul.f32.gmra.mxu0 %v885
      %v943 = vpop.f32.mrf.mxu0
      %v944 = vadd.f32 %v300, %v943
      %945 = vmatmul.f32.gmra.mxu0 %v888
      %v946 = vpop.f32.mrf.mxu0
      %v947 = vadd.f32 %v300, %v946
      %948 = vmatmul.f32.gmra.mxu0 %v891
      %v949 = vpop.f32.mrf.mxu0
      %v950 = vadd.f32 %v300, %v949
      %951 = vmatmul.f32.gmra.mxu0 %v894
      %v952 = vpop.f32.mrf.mxu0
      %v953 = vadd.f32 %v300, %v952
      %954 = vmatmul.f32.gmra.mxu0 %v897
      %v955 = vpop.f32.mrf.mxu0
      %v956 = vadd.f32 %v300, %v955
      %957 = vmatmul.f32.gmra.mxu0 %v900
      %v958 = vpop.f32.mrf.mxu0
      %v959 = vadd.f32 %v300, %v958
      %960 = vmatmul.f32.gmra.mxu0 %v903
      %v961 = vpop.f32.mrf.mxu0
      %v962 = vadd.f32 %v300, %v961
      %963 = vmatmul.f32.gmra.mxu0 %v906
      %v964 = vpop.f32.mrf.mxu0
      %v965 = vadd.f32 %v300, %v964
      %966 = vmatmul.f32.gmra.mxu0 %v909
      %v967 = vpop.f32.mrf.mxu0
      %v968 = vadd.f32 %v300, %v967
      %969 = vmatmul.f32.gmra.mxu0 %v912
      %v970 = vpop.f32.mrf.mxu0
      %v971 = vadd.f32 %v300, %v970
      %972 = vmatmul.f32.gmra.mxu0 %v915
      %v973 = vpop.f32.mrf.mxu0
      %v974 = vadd.f32 %v300, %v973
      %975 = vdwg.mxu0
      %v976 = vmax.f32 %v935, 0.0
      %v977 = vmax.f32 %v938, 0.0
      %v978 = vmax.f32 %v941, 0.0
      %v979 = vmax.f32 %v944, 0.0
      %v980 = vmax.f32 %v947, 0.0
      %v981 = vmax.f32 %v950, 0.0
      %v982 = vmax.f32 %v953, 0.0
      %v983 = vmax.f32 %v956, 0.0
      %v984 = vmax.f32 %v959, 0.0
      %v985 = vmax.f32 %v962, 0.0
      %v986 = vmax.f32 %v965, 0.0
      %v987 = vmax.f32 %v968, 0.0
      %v988 = vmax.f32 %v971, 0.0
      %v989 = vmax.f32 %v974, 0.0
      %990 = vst [vmem:[#allocation2 + $0x1c0] sm:$0xff] %v976
      %991 = vst [vmem:[#allocation2 + $0x1c8] sm:$0xff] %v977
      %992 = vst [vmem:[#allocation2 + $0x1d0] sm:$0xff] %v978
      %993 = vst [vmem:[#allocation2 + $0x1d8] sm:$0xff] %v979
      %994 = vst [vmem:[#allocation2 + $0x1e0] sm:$0xff] %v980
      %995 = vst [vmem:[#allocation2 + $0x1e8] sm:$0xff] %v981
      %996 = vst [vmem:[#allocation2 + $0x1f0] sm:$0xff] %v982
      %997 = vst [vmem:[#allocation2 + $0x1f8] sm:$0xff] %v983
      %998 = vst [vmem:[#allocation2 + $0x200] sm:$0xff] %v984
      %999 = vst [vmem:[#allocation2 + $0x208] sm:$0xff] %v985
      %1000 = vst [vmem:[#allocation2 + $0x210] sm:$0xff] %v986
      %1001 = vst [vmem:[#allocation2 + $0x218] sm:$0xff] %v987
      %1002 = vst [vmem:[#allocation2 + $0x220] sm:$0xff] %v988
      %1003 = vst [vmem:[#allocation2 + $0x228] sm:$0xff] %v989
      %v1004 = vld [vmem:[%s273 + $0x230] sm:$0xff]
      %v1005 = vld [vmem:[%s273 + $0x238] sm:$0xff]
      %v1006 = vld [vmem:[%s273 + $0x240] sm:$0xff]
      %v1007 = vld [vmem:[%s273 + $0x248] sm:$0xff]
      %v1008 = vld [vmem:[%s273 + $0x250] sm:$0xff]
      %v1009 = vld [vmem:[%s273 + $0x258] sm:$0xff]
      %v1010 = vld [vmem:[%s273 + $0x260] sm:$0xff]
      %v1011 = vld [vmem:[%s273 + $0x268] sm:$0xff]
      %v1012 = vld [vmem:[%s273 + $0x270] sm:$0xff]
      %v1013 = vld [vmem:[%s273 + $0x278] sm:$0xff]
      %v1014 = vld [vmem:[%s273 + $0x280] sm:$0xff]
      %v1015 = vld [vmem:[%s273 + $0x288] sm:$0xff]
      %v1016 = vld [vmem:[%s273 + $0x290] sm:$0xff]
      %v1017 = vld [vmem:[%s273 + $0x298] sm:$0xff]
      %v1019 = vsel %vm302, %v1004, 0
      %v1022 = vsel %vm302, %v1005, 0
      %v1025 = vsel %vm302, %v1006, 0
      %v1028 = vsel %vm302, %v1007, 0
      %v1031 = vsel %vm302, %v1008, 0
      %v1034 = vsel %vm302, %v1009, 0
      %v1037 = vsel %vm302, %v1010, 0
      %v1040 = vsel %vm302, %v1011, 0
      %v1043 = vsel %vm302, %v1012, 0
      %v1046 = vsel %vm302, %v1013, 0
      %v1049 = vsel %vm302, %v1014, 0
      %v1052 = vsel %vm302, %v1015, 0
      %v1055 = vsel %vm302, %v1016, 0
      %v1058 = vsel %vm302, %v1017, 0
      %1060 = vmatpush.msra.mxu0 0.0
      %1061 = vmatpush.msra.mxu0 0.0
      %1062 = vmatpush.msra.mxu0 0.0
      %1063 = vmatpush.msra.mxu0 0.0
      %1064 = vmatpush.msra.mxu0 0.0
      %1065 = vmatpush.msra.mxu0 0.0
      %1066 = vmatpush.msra.mxu0 0.0
      %1067 = vmatpush.msra.mxu0 0.0
      %1068 = vmatpush.msra.mxu0 0.0
      %1069 = vmatpush.msra.mxu0 0.0
      %1070 = vmatpush.msra.mxu0 0.0
      %1071 = vmatpush.msra.mxu0 0.0
      %1072 = vmatpush.msra.mxu0 %v282
      %1073 = vmatpush.msra.mxu0 %v281
      %1074 = vmatpush.msra.mxu0 %v280
      %1075 = vmatpush.msra.mxu0 %v279
      %1076 = vmatmul.f32.gmra.mxu0 %v1019
      %v1077 = vpop.f32.mrf.mxu0
      %v1078 = vadd.f32 %v300, %v1077
      %1079 = vmatmul.f32.gmra.mxu0 %v1022
      %v1080 = vpop.f32.mrf.mxu0
      %v1081 = vadd.f32 %v300, %v1080
      %1082 = vmatmul.f32.gmra.mxu0 %v1025
      %v1083 = vpop.f32.mrf.mxu0
      %v1084 = vadd.f32 %v300, %v1083
      %1085 = vmatmul.f32.gmra.mxu0 %v1028
      %v1086 = vpop.f32.mrf.mxu0
      %v1087 = vadd.f32 %v300, %v1086
      %1088 = vmatmul.f32.gmra.mxu0 %v1031
      %v1089 = vpop.f32.mrf.mxu0
      %v1090 = vadd.f32 %v300, %v1089
      %1091 = vmatmul.f32.gmra.mxu0 %v1034
      %v1092 = vpop.f32.mrf.mxu0
      %v1093 = vadd.f32 %v300, %v1092
      %1094 = vmatmul.f32.gmra.mxu0 %v1037
      %v1095 = vpop.f32.mrf.mxu0
      %v1096 = vadd.f32 %v300, %v1095
      %1097 = vmatmul.f32.gmra.mxu0 %v1040
      %v1098 = vpop.f32.mrf.mxu0
      %v1099 = vadd.f32 %v300, %v1098
      %1100 = vmatmul.f32.gmra.mxu0 %v1043
      %v1101 = vpop.f32.mrf.mxu0
      %v1102 = vadd.f32 %v300, %v1101
      %1103 = vmatmul.f32.gmra.mxu0 %v1046
      %v1104 = vpop.f32.mrf.mxu0
      %v1105 = vadd.f32 %v300, %v1104
      %1106 = vmatmul.f32.gmra.mxu0 %v1049
      %v1107 = vpop.f32.mrf.mxu0
      %v1108 = vadd.f32 %v300, %v1107
      %1109 = vmatmul.f32.gmra.mxu0 %v1052
      %v1110 = vpop.f32.mrf.mxu0
      %v1111 = vadd.f32 %v300, %v1110
      %1112 = vmatmul.f32.gmra.mxu0 %v1055
      %v1113 = vpop.f32.mrf.mxu0
      %v1114 = vadd.f32 %v300, %v1113
      %1115 = vmatmul.f32.gmra.mxu0 %v1058
      %v1116 = vpop.f32.mrf.mxu0
      %v1117 = vadd.f32 %v300, %v1116
      %1118 = vdwg.mxu0
      %v1119 = vmax.f32 %v1078, 0.0
      %v1120 = vmax.f32 %v1081, 0.0
      %v1121 = vmax.f32 %v1084, 0.0
      %v1122 = vmax.f32 %v1087, 0.0
      %v1123 = vmax.f32 %v1090, 0.0
      %v1124 = vmax.f32 %v1093, 0.0
      %v1125 = vmax.f32 %v1096, 0.0
      %v1126 = vmax.f32 %v1099, 0.0
      %v1127 = vmax.f32 %v1102, 0.0
      %v1128 = vmax.f32 %v1105, 0.0
      %v1129 = vmax.f32 %v1108, 0.0
      %v1130 = vmax.f32 %v1111, 0.0
      %v1131 = vmax.f32 %v1114, 0.0
      %v1132 = vmax.f32 %v1117, 0.0
      %1133 = vst [vmem:[#allocation2 + $0x230] sm:$0xff] %v1119
      %1134 = vst [vmem:[#allocation2 + $0x238] sm:$0xff] %v1120
      %1135 = vst [vmem:[#allocation2 + $0x240] sm:$0xff] %v1121
      %1136 = vst [vmem:[#allocation2 + $0x248] sm:$0xff] %v1122
      %1137 = vst [vmem:[#allocation2 + $0x250] sm:$0xff] %v1123
      %1138 = vst [vmem:[#allocation2 + $0x258] sm:$0xff] %v1124
      %1139 = vst [vmem:[#allocation2 + $0x260] sm:$0xff] %v1125
      %1140 = vst [vmem:[#allocation2 + $0x268] sm:$0xff] %v1126
      %1141 = vst [vmem:[#allocation2 + $0x270] sm:$0xff] %v1127
      %1142 = vst [vmem:[#allocation2 + $0x278] sm:$0xff] %v1128
      %1143 = vst [vmem:[#allocation2 + $0x280] sm:$0xff] %v1129
      %1144 = vst [vmem:[#allocation2 + $0x288] sm:$0xff] %v1130
      %1145 = vst [vmem:[#allocation2 + $0x290] sm:$0xff] %v1131
      %1146 = vst [vmem:[#allocation2 + $0x298] sm:$0xff] %v1132
      %v1147 = vld [vmem:[%s273 + $0x2a0] sm:$0xff]
      %v1148 = vld [vmem:[%s273 + $0x2a8] sm:$0xff]
      %v1149 = vld [vmem:[%s273 + $0x2b0] sm:$0xff]
      %v1150 = vld [vmem:[%s273 + $0x2b8] sm:$0xff]
      %v1151 = vld [vmem:[%s273 + $0x2c0] sm:$0xff]
      %v1152 = vld [vmem:[%s273 + $0x2c8] sm:$0xff]
      %v1153 = vld [vmem:[%s273 + $0x2d0] sm:$0xff]
      %v1154 = vld [vmem:[%s273 + $0x2d8] sm:$0xff]
      %v1155 = vld [vmem:[%s273 + $0x2e0] sm:$0xff]
      %v1156 = vld [vmem:[%s273 + $0x2e8] sm:$0xff]
      %v1157 = vld [vmem:[%s273 + $0x2f0] sm:$0xff]
      %v1158 = vld [vmem:[%s273 + $0x2f8] sm:$0xff]
      %v1159 = vld [vmem:[%s273 + $0x300] sm:$0xff]
      %v1160 = vld [vmem:[%s273 + $0x308] sm:$0xff]
      %v1162 = vsel %vm302, %v1147, 0
      %v1165 = vsel %vm302, %v1148, 0
      %v1168 = vsel %vm302, %v1149, 0
      %v1171 = vsel %vm302, %v1150, 0
      %v1174 = vsel %vm302, %v1151, 0
      %v1177 = vsel %vm302, %v1152, 0
      %v1180 = vsel %vm302, %v1153, 0
      %v1183 = vsel %vm302, %v1154, 0
      %v1186 = vsel %vm302, %v1155, 0
      %v1189 = vsel %vm302, %v1156, 0
      %v1192 = vsel %vm302, %v1157, 0
      %v1195 = vsel %vm302, %v1158, 0
      %v1198 = vsel %vm302, %v1159, 0
      %v1201 = vsel %vm302, %v1160, 0
      %1203 = vmatpush.msra.mxu0 0.0
      %1204 = vmatpush.msra.mxu0 0.0
      %1205 = vmatpush.msra.mxu0 0.0
      %1206 = vmatpush.msra.mxu0 0.0
      %1207 = vmatpush.msra.mxu0 0.0
      %1208 = vmatpush.msra.mxu0 0.0
      %1209 = vmatpush.msra.mxu0 0.0
      %1210 = vmatpush.msra.mxu0 0.0
      %1211 = vmatpush.msra.mxu0 0.0
      %1212 = vmatpush.msra.mxu0 0.0
      %1213 = vmatpush.msra.mxu0 0.0
      %1214 = vmatpush.msra.mxu0 0.0
      %1215 = vmatpush.msra.mxu0 %v282
      %1216 = vmatpush.msra.mxu0 %v281
      %1217 = vmatpush.msra.mxu0 %v280
      %1218 = vmatpush.msra.mxu0 %v279
      %1219 = vmatmul.f32.gmra.mxu0 %v1162
      %v1220 = vpop.f32.mrf.mxu0
      %v1221 = vadd.f32 %v300, %v1220
      %1222 = vmatmul.f32.gmra.mxu0 %v1165
      %v1223 = vpop.f32.mrf.mxu0
      %v1224 = vadd.f32 %v300, %v1223
      %1225 = vmatmul.f32.gmra.mxu0 %v1168
      %v1226 = vpop.f32.mrf.mxu0
      %v1227 = vadd.f32 %v300, %v1226
      %1228 = vmatmul.f32.gmra.mxu0 %v1171
      %v1229 = vpop.f32.mrf.mxu0
      %v1230 = vadd.f32 %v300, %v1229
      %1231 = vmatmul.f32.gmra.mxu0 %v1174
      %v1232 = vpop.f32.mrf.mxu0
      %v1233 = vadd.f32 %v300, %v1232
      %1234 = vmatmul.f32.gmra.mxu0 %v1177
      %v1235 = vpop.f32.mrf.mxu0
      %v1236 = vadd.f32 %v300, %v1235
      %1237 = vmatmul.f32.gmra.mxu0 %v1180
      %v1238 = vpop.f32.mrf.mxu0
      %v1239 = vadd.f32 %v300, %v1238
      %1240 = vmatmul.f32.gmra.mxu0 %v1183
      %v1241 = vpop.f32.mrf.mxu0
      %v1242 = vadd.f32 %v300, %v1241
      %1243 = vmatmul.f32.gmra.mxu0 %v1186
      %v1244 = vpop.f32.mrf.mxu0
      %v1245 = vadd.f32 %v300, %v1244
      %1246 = vmatmul.f32.gmra.mxu0 %v1189
      %v1247 = vpop.f32.mrf.mxu0
      %v1248 = vadd.f32 %v300, %v1247
      %1249 = vmatmul.f32.gmra.mxu0 %v1192
      %v1250 = vpop.f32.mrf.mxu0
      %v1251 = vadd.f32 %v300, %v1250
      %1252 = vmatmul.f32.gmra.mxu0 %v1195
      %v1253 = vpop.f32.mrf.mxu0
      %v1254 = vadd.f32 %v300, %v1253
      %1255 = vmatmul.f32.gmra.mxu0 %v1198
      %v1256 = vpop.f32.mrf.mxu0
      %v1257 = vadd.f32 %v300, %v1256
      %1258 = vmatmul.f32.gmra.mxu0 %v1201
      %v1259 = vpop.f32.mrf.mxu0
      %v1260 = vadd.f32 %v300, %v1259
      %1261 = vdwg.mxu0
      %v1262 = vmax.f32 %v1221, 0.0
      %v1263 = vmax.f32 %v1224, 0.0
      %v1264 = vmax.f32 %v1227, 0.0
      %v1265 = vmax.f32 %v1230, 0.0
      %v1266 = vmax.f32 %v1233, 0.0
      %v1267 = vmax.f32 %v1236, 0.0
      %v1268 = vmax.f32 %v1239, 0.0
      %v1269 = vmax.f32 %v1242, 0.0
      %v1270 = vmax.f32 %v1245, 0.0
      %v1271 = vmax.f32 %v1248, 0.0
      %v1272 = vmax.f32 %v1251, 0.0
      %v1273 = vmax.f32 %v1254, 0.0
      %v1274 = vmax.f32 %v1257, 0.0
      %v1275 = vmax.f32 %v1260, 0.0
      %1276 = vst [vmem:[#allocation2 + $0x2a0] sm:$0xff] %v1262
      %1277 = vst [vmem:[#allocation2 + $0x2a8] sm:$0xff] %v1263
      %1278 = vst [vmem:[#allocation2 + $0x2b0] sm:$0xff] %v1264
      %1279 = vst [vmem:[#allocation2 + $0x2b8] sm:$0xff] %v1265
      %1280 = vst [vmem:[#allocation2 + $0x2c0] sm:$0xff] %v1266
      %1281 = vst [vmem:[#allocation2 + $0x2c8] sm:$0xff] %v1267
      %1282 = vst [vmem:[#allocation2 + $0x2d0] sm:$0xff] %v1268
      %1283 = vst [vmem:[#allocation2 + $0x2d8] sm:$0xff] %v1269
      %1284 = vst [vmem:[#allocation2 + $0x2e0] sm:$0xff] %v1270
      %1285 = vst [vmem:[#allocation2 + $0x2e8] sm:$0xff] %v1271
      %1286 = vst [vmem:[#allocation2 + $0x2f0] sm:$0xff] %v1272
      %1287 = vst [vmem:[#allocation2 + $0x2f8] sm:$0xff] %v1273
      %1288 = vst [vmem:[#allocation2 + $0x300] sm:$0xff] %v1274
      %1289 = vst [vmem:[#allocation2 + $0x308] sm:$0xff] %v1275
      %1290 = vst [vmem:[#allocation3] sm:$0xff] 0.0
      %1291 = vst [vmem:[#allocation3 + $0x8] sm:$0xff] 0.0
      %1292 = vst [vmem:[#allocation3 + $0x10] sm:$0xff] 0.0
      %1293 = vst [vmem:[#allocation3 + $0x18] sm:$0xff] 0.0
      %1294 = vst [vmem:[#allocation3 + $0x20] sm:$0xff] 0.0
      %1295 = vst [vmem:[#allocation3 + $0x28] sm:$0xff] 0.0
      %1296 = vst [vmem:[#allocation3 + $0x30] sm:$0xff] 0.0
      %1297 = vst [vmem:[#allocation3 + $0x38] sm:$0xff] 0.0
      %1298 = vst [vmem:[#allocation3 + $0x40] sm:$0xff] 0.0
      %1299 = vst [vmem:[#allocation3 + $0x48] sm:$0xff] 0.0
      %1300 = vst [vmem:[#allocation3 + $0x50] sm:$0xff] 0.0
      %1301 = vst [vmem:[#allocation3 + $0x58] sm:$0xff] 0.0
      %1302 = vst [vmem:[#allocation3 + $0x60] sm:$0xff] 0.0
      %1303 = vst [vmem:[#allocation3 + $0x68] sm:$0xff] 0.0
      %1304 = vst [vmem:[#allocation3 + $0x70] sm:$0xff] 0.0
      %1305 = vst [vmem:[#allocation3 + $0x78] sm:$0xff] 0.0
      %1306 = vst [vmem:[#allocation3 + $0x80] sm:$0xff] 0.0
      %1307 = vst [vmem:[#allocation3 + $0x88] sm:$0xff] 0.0
      %1308 = vst [vmem:[#allocation3 + $0x90] sm:$0xff] 0.0
      %1309 = vst [vmem:[#allocation3 + $0x98] sm:$0xff] 0.0
      %1310 = vst [vmem:[#allocation3 + $0xa0] sm:$0xff] 0.0
      %1311 = vst [vmem:[#allocation3 + $0xa8] sm:$0xff] 0.0
      %1312 = vst [vmem:[#allocation3 + $0xb0] sm:$0xff] 0.0
      %1313 = vst [vmem:[#allocation3 + $0xb8] sm:$0xff] 0.0
      %1314 = vst [vmem:[#allocation3 + $0xc0] sm:$0xff] 0.0
      %1315 = vst [vmem:[#allocation3 + $0xc8] sm:$0xff] 0.0
      %1316 = vst [vmem:[#allocation3 + $0xd0] sm:$0xff] 0.0
      %1317 = vst [vmem:[#allocation3 + $0xd8] sm:$0xff] 0.0
      %1318 = vst [vmem:[#allocation3 + $0xe0] sm:$0xff] 0.0
      %1319 = vst [vmem:[#allocation3 + $0xe8] sm:$0xff] 0.0
      %1320 = vst [vmem:[#allocation3 + $0xf0] sm:$0xff] 0.0
      %1321 = vst [vmem:[#allocation3 + $0xf8] sm:$0xff] 0.0
      %1322 = vst [vmem:[#allocation3 + $0x100] sm:$0xff] 0.0
      %1323 = vst [vmem:[#allocation3 + $0x108] sm:$0xff] 0.0
      %1324 = vst [vmem:[#allocation3 + $0x110] sm:$0xff] 0.0
      %1325 = vst [vmem:[#allocation3 + $0x118] sm:$0xff] 0.0
      %1326 = vst [vmem:[#allocation3 + $0x120] sm:$0xff] 0.0
      %1327 = vst [vmem:[#allocation3 + $0x128] sm:$0xff] 0.0
      %1328 = vst [vmem:[#allocation3 + $0x130] sm:$0xff] 0.0
      %1329 = vst [vmem:[#allocation3 + $0x138] sm:$0xff] 0.0
      %1330 = vst [vmem:[#allocation3 + $0x140] sm:$0xff] 0.0
      %1331 = vst [vmem:[#allocation3 + $0x148] sm:$0xff] 0.0
      %1332 = vst [vmem:[#allocation3 + $0x150] sm:$0xff] 0.0
      %1333 = vst [vmem:[#allocation3 + $0x158] sm:$0xff] 0.0
      %1334 = vst [vmem:[#allocation3 + $0x160] sm:$0xff] 0.0
      %1335 = vst [vmem:[#allocation3 + $0x168] sm:$0xff] 0.0
      %1336 = vst [vmem:[#allocation3 + $0x170] sm:$0xff] 0.0
      %1337 = vst [vmem:[#allocation3 + $0x178] sm:$0xff] 0.0
      %1338 = vst [vmem:[#allocation3 + $0x180] sm:$0xff] 0.0
      %1339 = vst [vmem:[#allocation3 + $0x188] sm:$0xff] 0.0
      %v1340 = vld [vmem:[#allocation2] ss:$2 sm:$0xff]
      %s1341 = scalar_lea.vmem [#allocation2], 16
      %v1342 = vld [vmem:[%s1341] ss:$2 sm:$0x3f]
      %s1343 = scalar_lea.vmem [#allocation2], 1
      %v1344 = vld [vmem:[%s1343] ss:$2 sm:$0xff]
      %s1345 = scalar_lea.vmem [#allocation2], 17
      %v1346 = vld [vmem:[%s1345] ss:$2 sm:$0x3f]
      %s1347 = scalar_lea.vmem [#allocation2], 28
      %v1348 = vld [vmem:[%s1347] ss:$2 sm:$0xff]
      %s1349 = scalar_lea.vmem [#allocation2], 44
      %v1350 = vld [vmem:[%s1349] ss:$2 sm:$0x3f]
      %s1351 = scalar_lea.vmem [#allocation2], 29
      %v1352 = vld [vmem:[%s1351] ss:$2 sm:$0xff]
      %s1353 = scalar_lea.vmem [#allocation2], 45
      %v1354 = vld [vmem:[%s1353] ss:$2 sm:$0x3f]
      %v1355 = vmax.f32 %v1340, %v1344
      %v1356 = vmax.f32 %v1342, %v1346
      %v1357 = vmax.f32 %v1348, %v1352
      %v1358 = vmax.f32 %v1350, %v1354
      %v1359 = vmax.f32 %v1355, %v1357
      %v1360 = vmax.f32 %v1356, %v1358
      %1361 = vst [vmem:[#allocation3 + $0x26] sm:$0xff] %v1359
      %1362 = vst [vmem:[#allocation3 + $0x2e] sm:$0x3f] %v1360
      %s1363 = scalar_lea.vmem [#allocation2], 56
      %v1364 = vld [vmem:[%s1363] ss:$2 sm:$0xff]
      %s1365 = scalar_lea.vmem [#allocation2], 72
      %v1366 = vld [vmem:[%s1365] ss:$2 sm:$0x3f]
      %s1367 = scalar_lea.vmem [#allocation2], 57
      %v1368 = vld [vmem:[%s1367] ss:$2 sm:$0xff]
      %s1369 = scalar_lea.vmem [#allocation2], 73
      %v1370 = vld [vmem:[%s1369] ss:$2 sm:$0x3f]
      %s1371 = scalar_lea.vmem [#allocation2], 84
      %v1372 = vld [vmem:[%s1371] ss:$2 sm:$0xff]
      %s1373 = scalar_lea.vmem [#allocation2], 100
      %v1374 = vld [vmem:[%s1373] ss:$2 sm:$0x3f]
      %s1375 = scalar_lea.vmem [#allocation2], 85
      %v1376 = vld [vmem:[%s1375] ss:$2 sm:$0xff]
      %s1377 = scalar_lea.vmem [#allocation2], 101
      %v1378 = vld [vmem:[%s1377] ss:$2 sm:$0x3f]
      %v1379 = vmax.f32 %v1364, %v1368
      %v1380 = vmax.f32 %v1366, %v1370
      %v1381 = vmax.f32 %v1372, %v1376
      %v1382 = vmax.f32 %v1374, %v1378
      %v1383 = vmax.f32 %v1379, %v1381
      %v1384 = vmax.f32 %v1380, %v1382
      %1385 = vst [vmem:[#allocation3 + $0x38] sm:$0xff] %v1383
      %1386 = vst [vmem:[#allocation3 + $0x40] sm:$0x3f] %v1384
      %s1387 = scalar_lea.vmem [#allocation2], 112
      %v1388 = vld [vmem:[%s1387] ss:$2 sm:$0xff]
      %s1389 = scalar_lea.vmem [#allocation2], 128
      %v1390 = vld [vmem:[%s1389] ss:$2 sm:$0x3f]
      %s1391 = scalar_lea.vmem [#allocation2], 113
      %v1392 = vld [vmem:[%s1391] ss:$2 sm:$0xff]
      %s1393 = scalar_lea.vmem [#allocation2], 129
      %v1394 = vld [vmem:[%s1393] ss:$2 sm:$0x3f]
      %s1395 = scalar_lea.vmem [#allocation2], 140
      %v1396 = vld [vmem:[%s1395] ss:$2 sm:$0xff]
      %s1397 = scalar_lea.vmem [#allocation2], 156
      %v1398 = vld [vmem:[%s1397] ss:$2 sm:$0x3f]
      %s1399 = scalar_lea.vmem [#allocation2], 141
      %v1400 = vld [vmem:[%s1399] ss:$2 sm:$0xff]
      %s1401 = scalar_lea.vmem [#allocation2], 157
      %v1402 = vld [vmem:[%s1401] ss:$2 sm:$0x3f]
      %v1403 = vmax.f32 %v1388, %v1392
      %v1404 = vmax.f32 %v1390, %v1394
      %v1405 = vmax.f32 %v1396, %v1400
      %v1406 = vmax.f32 %v1398, %v1402
      %v1407 = vmax.f32 %v1403, %v1405
      %v1408 = vmax.f32 %v1404, %v1406
      %1409 = vst [vmem:[#allocation3 + $0x4a] sm:$0xff] %v1407
      %1410 = vst [vmem:[#allocation3 + $0x52] sm:$0x3f] %v1408
      %s1411 = scalar_lea.vmem [#allocation2], 168
      %v1412 = vld [vmem:[%s1411] ss:$2 sm:$0xff]
      %s1413 = scalar_lea.vmem [#allocation2], 184
      %v1414 = vld [vmem:[%s1413] ss:$2 sm:$0x3f]
      %s1415 = scalar_lea.vmem [#allocation2], 169
      %v1416 = vld [vmem:[%s1415] ss:$2 sm:$0xff]
      %s1417 = scalar_lea.vmem [#allocation2], 185
      %v1418 = vld [vmem:[%s1417] ss:$2 sm:$0x3f]
      %s1419 = scalar_lea.vmem [#allocation2], 196
      %v1420 = vld [vmem:[%s1419] ss:$2 sm:$0xff]
      %s1421 = scalar_lea.vmem [#allocation2], 212
      %v1422 = vld [vmem:[%s1421] ss:$2 sm:$0x3f]
      %s1423 = scalar_lea.vmem [#allocation2], 197
      %v1424 = vld [vmem:[%s1423] ss:$2 sm:$0xff]
      %s1425 = scalar_lea.vmem [#allocation2], 213
      %v1426 = vld [vmem:[%s1425] ss:$2 sm:$0x3f]
      %v1427 = vmax.f32 %v1412, %v1416
      %v1428 = vmax.f32 %v1414, %v1418
      %v1429 = vmax.f32 %v1420, %v1424
      %v1430 = vmax.f32 %v1422, %v1426
      %v1431 = vmax.f32 %v1427, %v1429
      %v1432 = vmax.f32 %v1428, %v1430
      %1433 = vst [vmem:[#allocation3 + $0x5c] sm:$0xff] %v1431
      %1434 = vst [vmem:[#allocation3 + $0x64] sm:$0x3f] %v1432
      %s1435 = scalar_lea.vmem [#allocation2], 224
      %v1436 = vld [vmem:[%s1435] ss:$2 sm:$0xff]
      %s1437 = scalar_lea.vmem [#allocation2], 240
      %v1438 = vld [vmem:[%s1437] ss:$2 sm:$0x3f]
      %s1439 = scalar_lea.vmem [#allocation2], 225
      %v1440 = vld [vmem:[%s1439] ss:$2 sm:$0xff]
      %s1441 = scalar_lea.vmem [#allocation2], 241
      %v1442 = vld [vmem:[%s1441] ss:$2 sm:$0x3f]
      %s1443 = scalar_lea.vmem [#allocation2], 252
      %v1444 = vld [vmem:[%s1443] ss:$2 sm:$0xff]
      %s1445 = scalar_lea.vmem [#allocation2], 268
      %v1446 = vld [vmem:[%s1445] ss:$2 sm:$0x3f]
      %s1447 = scalar_lea.vmem [#allocation2], 253
      %v1448 = vld [vmem:[%s1447] ss:$2 sm:$0xff]
      %s1449 = scalar_lea.vmem [#allocation2], 269
      %v1450 = vld [vmem:[%s1449] ss:$2 sm:$0x3f]
      %v1451 = vmax.f32 %v1436, %v1440
      %v1452 = vmax.f32 %v1438, %v1442
      %v1453 = vmax.f32 %v1444, %v1448
      %v1454 = vmax.f32 %v1446, %v1450
      %v1455 = vmax.f32 %v1451, %v1453
      %v1456 = vmax.f32 %v1452, %v1454
      %1457 = vst [vmem:[#allocation3 + $0x6e] sm:$0xff] %v1455
      %1458 = vst [vmem:[#allocation3 + $0x76] sm:$0x3f] %v1456
      %s1459 = scalar_lea.vmem [#allocation2], 280
      %v1460 = vld [vmem:[%s1459] ss:$2 sm:$0xff]
      %s1461 = scalar_lea.vmem [#allocation2], 296
      %v1462 = vld [vmem:[%s1461] ss:$2 sm:$0x3f]
      %s1463 = scalar_lea.vmem [#allocation2], 281
      %v1464 = vld [vmem:[%s1463] ss:$2 sm:$0xff]
      %s1465 = scalar_lea.vmem [#allocation2], 297
      %v1466 = vld [vmem:[%s1465] ss:$2 sm:$0x3f]
      %s1467 = scalar_lea.vmem [#allocation2], 308
      %v1468 = vld [vmem:[%s1467] ss:$2 sm:$0xff]
      %s1469 = scalar_lea.vmem [#allocation2], 324
      %v1470 = vld [vmem:[%s1469] ss:$2 sm:$0x3f]
      %s1471 = scalar_lea.vmem [#allocation2], 309
      %v1472 = vld [vmem:[%s1471] ss:$2 sm:$0xff]
      %s1473 = scalar_lea.vmem [#allocation2], 325
      %v1474 = vld [vmem:[%s1473] ss:$2 sm:$0x3f]
      %v1475 = vmax.f32 %v1460, %v1464
      %v1476 = vmax.f32 %v1462, %v1466
      %v1477 = vmax.f32 %v1468, %v1472
      %v1478 = vmax.f32 %v1470, %v1474
      %v1479 = vmax.f32 %v1475, %v1477
      %v1480 = vmax.f32 %v1476, %v1478
      %1481 = vst [vmem:[#allocation3 + $0x80] sm:$0xff] %v1479
      %1482 = vst [vmem:[#allocation3 + $0x88] sm:$0x3f] %v1480
      %s1483 = scalar_lea.vmem [#allocation2], 336
      %v1484 = vld [vmem:[%s1483] ss:$2 sm:$0xff]
      %s1485 = scalar_lea.vmem [#allocation2], 352
      %v1486 = vld [vmem:[%s1485] ss:$2 sm:$0x3f]
      %s1487 = scalar_lea.vmem [#allocation2], 337
      %v1488 = vld [vmem:[%s1487] ss:$2 sm:$0xff]
      %s1489 = scalar_lea.vmem [#allocation2], 353
      %v1490 = vld [vmem:[%s1489] ss:$2 sm:$0x3f]
      %s1491 = scalar_lea.vmem [#allocation2], 364
      %v1492 = vld [vmem:[%s1491] ss:$2 sm:$0xff]
      %s1493 = scalar_lea.vmem [#allocation2], 380
      %v1494 = vld [vmem:[%s1493] ss:$2 sm:$0x3f]
      %s1495 = scalar_lea.vmem [#allocation2], 365
      %v1496 = vld [vmem:[%s1495] ss:$2 sm:$0xff]
      %s1497 = scalar_lea.vmem [#allocation2], 381
      %v1498 = vld [vmem:[%s1497] ss:$2 sm:$0x3f]
      %v1499 = vmax.f32 %v1484, %v1488
      %v1500 = vmax.f32 %v1486, %v1490
      %v1501 = vmax.f32 %v1492, %v1496
      %v1502 = vmax.f32 %v1494, %v1498
      %v1503 = vmax.f32 %v1499, %v1501
      %v1504 = vmax.f32 %v1500, %v1502
      %1505 = vst [vmem:[#allocation3 + $0x92] sm:$0xff] %v1503
      %1506 = vst [vmem:[#allocation3 + $0x9a] sm:$0x3f] %v1504
      %s1507 = scalar_lea.vmem [#allocation2], 392
      %v1508 = vld [vmem:[%s1507] ss:$2 sm:$0xff]
      %s1509 = scalar_lea.vmem [#allocation2], 408
      %v1510 = vld [vmem:[%s1509] ss:$2 sm:$0x3f]
      %s1511 = scalar_lea.vmem [#allocation2], 393
      %v1512 = vld [vmem:[%s1511] ss:$2 sm:$0xff]
      %s1513 = scalar_lea.vmem [#allocation2], 409
      %v1514 = vld [vmem:[%s1513] ss:$2 sm:$0x3f]
      %s1515 = scalar_lea.vmem [#allocation2], 420
      %v1516 = vld [vmem:[%s1515] ss:$2 sm:$0xff]
      %s1517 = scalar_lea.vmem [#allocation2], 436
      %v1518 = vld [vmem:[%s1517] ss:$2 sm:$0x3f]
      %s1519 = scalar_lea.vmem [#allocation2], 421
      %v1520 = vld [vmem:[%s1519] ss:$2 sm:$0xff]
      %s1521 = scalar_lea.vmem [#allocation2], 437
      %v1522 = vld [vmem:[%s1521] ss:$2 sm:$0x3f]
      %v1523 = vmax.f32 %v1508, %v1512
      %v1524 = vmax.f32 %v1510, %v1514
      %v1525 = vmax.f32 %v1516, %v1520
      %v1526 = vmax.f32 %v1518, %v1522
      %v1527 = vmax.f32 %v1523, %v1525
      %v1528 = vmax.f32 %v1524, %v1526
      %1529 = vst [vmem:[#allocation3 + $0xa4] sm:$0xff] %v1527
      %1530 = vst [vmem:[#allocation3 + $0xac] sm:$0x3f] %v1528
      %s1531 = scalar_lea.vmem [#allocation2], 448
      %v1532 = vld [vmem:[%s1531] ss:$2 sm:$0xff]
      %s1533 = scalar_lea.vmem [#allocation2], 464
      %v1534 = vld [vmem:[%s1533] ss:$2 sm:$0x3f]
      %s1535 = scalar_lea.vmem [#allocation2], 449
      %v1536 = vld [vmem:[%s1535] ss:$2 sm:$0xff]
      %s1537 = scalar_lea.vmem [#allocation2], 465
      %v1538 = vld [vmem:[%s1537] ss:$2 sm:$0x3f]
      %s1539 = scalar_lea.vmem [#allocation2], 476
      %v1540 = vld [vmem:[%s1539] ss:$2 sm:$0xff]
      %s1541 = scalar_lea.vmem [#allocation2], 492
      %v1542 = vld [vmem:[%s1541] ss:$2 sm:$0x3f]
      %s1543 = scalar_lea.vmem [#allocation2], 477
      %v1544 = vld [vmem:[%s1543] ss:$2 sm:$0xff]
      %s1545 = scalar_lea.vmem [#allocation2], 493
      %v1546 = vld [vmem:[%s1545] ss:$2 sm:$0x3f]
      %v1547 = vmax.f32 %v1532, %v1536
      %v1548 = vmax.f32 %v1534, %v1538
      %v1549 = vmax.f32 %v1540, %v1544
      %v1550 = vmax.f32 %v1542, %v1546
      %v1551 = vmax.f32 %v1547, %v1549
      %v1552 = vmax.f32 %v1548, %v1550
      %1553 = vst [vmem:[#allocation3 + $0xb6] sm:$0xff] %v1551
      %1554 = vst [vmem:[#allocation3 + $0xbe] sm:$0x3f] %v1552
      %s1555 = scalar_lea.vmem [#allocation2], 504
      %v1556 = vld [vmem:[%s1555] ss:$2 sm:$0xff]
      %s1557 = scalar_lea.vmem [#allocation2], 520
      %v1558 = vld [vmem:[%s1557] ss:$2 sm:$0x3f]
      %s1559 = scalar_lea.vmem [#allocation2], 505
      %v1560 = vld [vmem:[%s1559] ss:$2 sm:$0xff]
      %s1561 = scalar_lea.vmem [#allocation2], 521
      %v1562 = vld [vmem:[%s1561] ss:$2 sm:$0x3f]
      %s1563 = scalar_lea.vmem [#allocation2], 532
      %v1564 = vld [vmem:[%s1563] ss:$2 sm:$0xff]
      %s1565 = scalar_lea.vmem [#allocation2], 548
      %v1566 = vld [vmem:[%s1565] ss:$2 sm:$0x3f]
      %s1567 = scalar_lea.vmem [#allocation2], 533
      %v1568 = vld [vmem:[%s1567] ss:$2 sm:$0xff]
      %s1569 = scalar_lea.vmem [#allocation2], 549
      %v1570 = vld [vmem:[%s1569] ss:$2 sm:$0x3f]
      %v1571 = vmax.f32 %v1556, %v1560
      %v1572 = vmax.f32 %v1558, %v1562
      %v1573 = vmax.f32 %v1564, %v1568
      %v1574 = vmax.f32 %v1566, %v1570
      %v1575 = vmax.f32 %v1571, %v1573
      %v1576 = vmax.f32 %v1572, %v1574
      %1577 = vst [vmem:[#allocation3 + $0xc8] sm:$0xff] %v1575
      %1578 = vst [vmem:[#allocation3 + $0xd0] sm:$0x3f] %v1576
      %s1579 = scalar_lea.vmem [#allocation2], 560
      %v1580 = vld [vmem:[%s1579] ss:$2 sm:$0xff]
      %s1581 = scalar_lea.vmem [#allocation2], 576
      %v1582 = vld [vmem:[%s1581] ss:$2 sm:$0x3f]
      %s1583 = scalar_lea.vmem [#allocation2], 561
      %v1584 = vld [vmem:[%s1583] ss:$2 sm:$0xff]
      %s1585 = scalar_lea.vmem [#allocation2], 577
      %v1586 = vld [vmem:[%s1585] ss:$2 sm:$0x3f]
      %s1587 = scalar_lea.vmem [#allocation2], 588
      %v1588 = vld [vmem:[%s1587] ss:$2 sm:$0xff]
      %s1589 = scalar_lea.vmem [#allocation2], 604
      %v1590 = vld [vmem:[%s1589] ss:$2 sm:$0x3f]
      %s1591 = scalar_lea.vmem [#allocation2], 589
      %v1592 = vld [vmem:[%s1591] ss:$2 sm:$0xff]
      %s1593 = scalar_lea.vmem [#allocation2], 605
      %v1594 = vld [vmem:[%s1593] ss:$2 sm:$0x3f]
      %v1595 = vmax.f32 %v1580, %v1584
      %v1596 = vmax.f32 %v1582, %v1586
      %v1597 = vmax.f32 %v1588, %v1592
      %v1598 = vmax.f32 %v1590, %v1594
      %v1599 = vmax.f32 %v1595, %v1597
      %v1600 = vmax.f32 %v1596, %v1598
      %1601 = vst [vmem:[#allocation3 + $0xda] sm:$0xff] %v1599
      %1602 = vst [vmem:[#allocation3 + $0xe2] sm:$0x3f] %v1600
      %s1603 = scalar_lea.vmem [#allocation2], 616
      %v1604 = vld [vmem:[%s1603] ss:$2 sm:$0xff]
      %s1605 = scalar_lea.vmem [#allocation2], 632
      %v1606 = vld [vmem:[%s1605] ss:$2 sm:$0x3f]
      %s1607 = scalar_lea.vmem [#allocation2], 617
      %v1608 = vld [vmem:[%s1607] ss:$2 sm:$0xff]
      %s1609 = scalar_lea.vmem [#allocation2], 633
      %v1610 = vld [vmem:[%s1609] ss:$2 sm:$0x3f]
      %s1611 = scalar_lea.vmem [#allocation2], 644
      %v1612 = vld [vmem:[%s1611] ss:$2 sm:$0xff]
      %s1613 = scalar_lea.vmem [#allocation2], 660
      %v1614 = vld [vmem:[%s1613] ss:$2 sm:$0x3f]
      %s1615 = scalar_lea.vmem [#allocation2], 645
      %v1616 = vld [vmem:[%s1615] ss:$2 sm:$0xff]
      %s1617 = scalar_lea.vmem [#allocation2], 661
      %v1618 = vld [vmem:[%s1617] ss:$2 sm:$0x3f]
      %v1619 = vmax.f32 %v1604, %v1608
      %v1620 = vmax.f32 %v1606, %v1610
      %v1621 = vmax.f32 %v1612, %v1616
      %v1622 = vmax.f32 %v1614, %v1618
      %v1623 = vmax.f32 %v1619, %v1621
      %v1624 = vmax.f32 %v1620, %v1622
      %1625 = vst [vmem:[#allocation3 + $0xec] sm:$0xff] %v1623
      %1626 = vst [vmem:[#allocation3 + $0xf4] sm:$0x3f] %v1624
      %s1627 = scalar_lea.vmem [#allocation2], 672
      %v1628 = vld [vmem:[%s1627] ss:$2 sm:$0xff]
      %s1629 = scalar_lea.vmem [#allocation2], 688
      %v1630 = vld [vmem:[%s1629] ss:$2 sm:$0x3f]
      %s1631 = scalar_lea.vmem [#allocation2], 673
      %v1632 = vld [vmem:[%s1631] ss:$2 sm:$0xff]
      %s1633 = scalar_lea.vmem [#allocation2], 689
      %v1634 = vld [vmem:[%s1633] ss:$2 sm:$0x3f]
      %s1635 = scalar_lea.vmem [#allocation2], 700
      %v1636 = vld [vmem:[%s1635] ss:$2 sm:$0xff]
      %s1637 = scalar_lea.vmem [#allocation2], 716
      %v1638 = vld [vmem:[%s1637] ss:$2 sm:$0x3f]
      %s1639 = scalar_lea.vmem [#allocation2], 701
      %v1640 = vld [vmem:[%s1639] ss:$2 sm:$0xff]
      %s1641 = scalar_lea.vmem [#allocation2], 717
      %v1642 = vld [vmem:[%s1641] ss:$2 sm:$0x3f]
      %v1643 = vmax.f32 %v1628, %v1632
      %v1644 = vmax.f32 %v1630, %v1634
      %v1645 = vmax.f32 %v1636, %v1640
      %v1646 = vmax.f32 %v1638, %v1642
      %v1647 = vmax.f32 %v1643, %v1645
      %v1648 = vmax.f32 %v1644, %v1646
      %1649 = vst [vmem:[#allocation3 + $0xfe] sm:$0xff] %v1647
      %1650 = vst [vmem:[#allocation3 + $0x106] sm:$0x3f] %v1648
      %s1651 = scalar_lea.vmem [#allocation2], 728
      %v1652 = vld [vmem:[%s1651] ss:$2 sm:$0xff]
      %s1653 = scalar_lea.vmem [#allocation2], 744
      %v1654 = vld [vmem:[%s1653] ss:$2 sm:$0x3f]
      %s1655 = scalar_lea.vmem [#allocation2], 729
      %v1656 = vld [vmem:[%s1655] ss:$2 sm:$0xff]
      %s1657 = scalar_lea.vmem [#allocation2], 745
      %v1658 = vld [vmem:[%s1657] ss:$2 sm:$0x3f]
      %s1659 = scalar_lea.vmem [#allocation2], 756
      %v1660 = vld [vmem:[%s1659] ss:$2 sm:$0xff]
      %s1661 = scalar_lea.vmem [#allocation2], 772
      %v1662 = vld [vmem:[%s1661] ss:$2 sm:$0x3f]
      %s1663 = scalar_lea.vmem [#allocation2], 757
      %v1664 = vld [vmem:[%s1663] ss:$2 sm:$0xff]
      %s1665 = scalar_lea.vmem [#allocation2], 773
      %v1666 = vld [vmem:[%s1665] ss:$2 sm:$0x3f]
      %v1667 = vmax.f32 %v1652, %v1656
      %v1668 = vmax.f32 %v1654, %v1658
      %v1669 = vmax.f32 %v1660, %v1664
      %v1670 = vmax.f32 %v1662, %v1666
      %v1671 = vmax.f32 %v1667, %v1669
      %v1672 = vmax.f32 %v1668, %v1670
      %1673 = vst [vmem:[#allocation3 + $0x110] sm:$0xff] %v1671
      %1674 = vst [vmem:[#allocation3 + $0x118] sm:$0x3f] %v1672
      %v1675 = vld [vmem:[#allocation3] sm:$0xff]
      %v1676 = vld [vmem:[#allocation3 + $0x8] sm:$0xff]
      %v1677 = vld [vmem:[#allocation3 + $0x10] sm:$0xff]
      %v1678 = vld [vmem:[#allocation3 + $0x18] sm:$0xff]
      %v1679 = vld [vmem:[#allocation3 + $0x20] sm:$0xff]
      %v1680 = vld [vmem:[#allocation3 + $0x28] sm:$0xff]
      %v1681 = vld [vmem:[#allocation3 + $0x30] sm:$0xff]
      %v1682 = vld [vmem:[#allocation3 + $0x38] sm:$0xff]
      %v1683 = vld [vmem:[#allocation3 + $0x40] sm:$0xff]
      %v1684 = vld [vmem:[#allocation3 + $0x48] sm:$0xff]
      %v1685 = vld [vmem:[#allocation3 + $0x50] sm:$0xff]
      %v1686 = vld [vmem:[#allocation3 + $0x58] sm:$0xff]
      %v1687 = vld [vmem:[#allocation3 + $0x60] sm:$0xff]
      %v1688 = vld [vmem:[#allocation3 + $0x68] sm:$0xff]
      %v1689 = vld [vmem:[#allocation3 + $0x70] sm:$0xff]
      %v1690 = vld [vmem:[#allocation3 + $0x78] sm:$0xff]
      %v1691 = vld [vmem:[#allocation3 + $0x1] sm:$0xff]
      %v1692 = vld [vmem:[#allocation3 + $0x9] sm:$0xff]
      %v1693 = vld [vmem:[#allocation3 + $0x11] sm:$0xff]
      %v1694 = vld [vmem:[#allocation3 + $0x19] sm:$0xff]
      %v1695 = vld [vmem:[#allocation3 + $0x21] sm:$0xff]
      %v1696 = vld [vmem:[#allocation3 + $0x29] sm:$0xff]
      %v1697 = vld [vmem:[#allocation3 + $0x31] sm:$0xff]
      %v1698 = vld [vmem:[#allocation3 + $0x39] sm:$0xff]
      %v1699 = vld [vmem:[#allocation3 + $0x41] sm:$0xff]
      %v1700 = vld [vmem:[#allocation3 + $0x49] sm:$0xff]
      %v1701 = vld [vmem:[#allocation3 + $0x51] sm:$0xff]
      %v1702 = vld [vmem:[#allocation3 + $0x59] sm:$0xff]
      %v1703 = vld [vmem:[#allocation3 + $0x61] sm:$0xff]
      %v1704 = vld [vmem:[#allocation3 + $0x69] sm:$0xff]
      %v1705 = vld [vmem:[#allocation3 + $0x71] sm:$0xff]
      %v1706 = vld [vmem:[#allocation3 + $0x79] sm:$0xff]
      %1707 = vrot.lane.b32.xlu0 %v1691, 16
      %v1708 = vpop.permute.xlu0 %1707
      %1709 = vrot.lane.b32.xlu0 %v1692, 16
      %v1710 = vpop.permute.xlu0 %1709
      %1711 = vrot.lane.b32.xlu0 %v1693, 16
      %v1712 = vpop.permute.xlu0 %1711
      %1713 = vrot.lane.b32.xlu0 %v1694, 16
      %v1714 = vpop.permute.xlu0 %1713
      %1715 = vrot.lane.b32.xlu0 %v1695, 16
      %v1716 = vpop.permute.xlu0 %1715
      %1717 = vrot.lane.b32.xlu0 %v1696, 16
      %v1718 = vpop.permute.xlu0 %1717
      %1719 = vrot.lane.b32.xlu0 %v1697, 16
      %v1720 = vpop.permute.xlu0 %1719
      %1721 = vrot.lane.b32.xlu0 %v1698, 16
      %v1722 = vpop.permute.xlu0 %1721
      %1723 = vrot.lane.b32.xlu0 %v1699, 16
      %v1724 = vpop.permute.xlu0 %1723
      %1725 = vrot.lane.b32.xlu0 %v1700, 16
      %v1726 = vpop.permute.xlu0 %1725
      %1727 = vrot.lane.b32.xlu0 %v1701, 16
      %v1728 = vpop.permute.xlu0 %1727
      %1729 = vrot.lane.b32.xlu0 %v1702, 16
      %v1730 = vpop.permute.xlu0 %1729
      %1731 = vrot.lane.b32.xlu0 %v1703, 16
      %v1732 = vpop.permute.xlu0 %1731
      %1733 = vrot.lane.b32.xlu0 %v1704, 16
      %v1734 = vpop.permute.xlu0 %1733
      %1735 = vrot.lane.b32.xlu0 %v1705, 16
      %v1736 = vpop.permute.xlu0 %1735
      %1737 = vrot.lane.b32.xlu0 %v1706, 16
      %v1738 = vpop.permute.xlu0 %1737
      %v1739 = vadd.f32 %v1675, %v1708
      %v1740 = vadd.f32 %v1676, %v1710
      %v1741 = vadd.f32 %v1677, %v1712
      %v1742 = vadd.f32 %v1678, %v1714
      %v1743 = vadd.f32 %v1679, %v1716
      %v1744 = vadd.f32 %v1680, %v1718
      %v1745 = vadd.f32 %v1681, %v1720
      %v1746 = vadd.f32 %v1682, %v1722
      %v1747 = vadd.f32 %v1683, %v1724
      %v1748 = vadd.f32 %v1684, %v1726
      %v1749 = vadd.f32 %v1685, %v1728
      %v1750 = vadd.f32 %v1686, %v1730
      %v1751 = vadd.f32 %v1687, %v1732
      %v1752 = vadd.f32 %v1688, %v1734
      %v1753 = vadd.f32 %v1689, %v1736
      %v1754 = vadd.f32 %v1690, %v1738
      %v1755 = vld [vmem:[#allocation3 + $0x2] sm:$0xff]
      %v1756 = vld [vmem:[#allocation3 + $0xa] sm:$0xff]
      %v1757 = vld [vmem:[#allocation3 + $0x12] sm:$0xff]
      %v1758 = vld [vmem:[#allocation3 + $0x1a] sm:$0xff]
      %v1759 = vld [vmem:[#allocation3 + $0x22] sm:$0xff]
      %v1760 = vld [vmem:[#allocation3 + $0x2a] sm:$0xff]
      %v1761 = vld [vmem:[#allocation3 + $0x32] sm:$0xff]
      %v1762 = vld [vmem:[#allocation3 + $0x3a] sm:$0xff]
      %v1763 = vld [vmem:[#allocation3 + $0x42] sm:$0xff]
      %v1764 = vld [vmem:[#allocation3 + $0x4a] sm:$0xff]
      %v1765 = vld [vmem:[#allocation3 + $0x52] sm:$0xff]
      %v1766 = vld [vmem:[#allocation3 + $0x5a] sm:$0xff]
      %v1767 = vld [vmem:[#allocation3 + $0x62] sm:$0xff]
      %v1768 = vld [vmem:[#allocation3 + $0x6a] sm:$0xff]
      %v1769 = vld [vmem:[#allocation3 + $0x72] sm:$0xff]
      %v1770 = vld [vmem:[#allocation3 + $0x7a] sm:$0xff]
      %1771 = vrot.lane.b32.xlu0 %v1755, 32
      %v1772 = vpop.permute.xlu0 %1771
      %1773 = vrot.lane.b32.xlu0 %v1756, 32
      %v1774 = vpop.permute.xlu0 %1773
      %1775 = vrot.lane.b32.xlu0 %v1757, 32
      %v1776 = vpop.permute.xlu0 %1775
      %1777 = vrot.lane.b32.xlu0 %v1758, 32
      %v1778 = vpop.permute.xlu0 %1777
      %1779 = vrot.lane.b32.xlu0 %v1759, 32
      %v1780 = vpop.permute.xlu0 %1779
      %1781 = vrot.lane.b32.xlu0 %v1760, 32
      %v1782 = vpop.permute.xlu0 %1781
      %1783 = vrot.lane.b32.xlu0 %v1761, 32
      %v1784 = vpop.permute.xlu0 %1783
      %1785 = vrot.lane.b32.xlu0 %v1762, 32
      %v1786 = vpop.permute.xlu0 %1785
      %1787 = vrot.lane.b32.xlu0 %v1763, 32
      %v1788 = vpop.permute.xlu0 %1787
      %1789 = vrot.lane.b32.xlu0 %v1764, 32
      %v1790 = vpop.permute.xlu0 %1789
      %1791 = vrot.lane.b32.xlu0 %v1765, 32
      %v1792 = vpop.permute.xlu0 %1791
      %1793 = vrot.lane.b32.xlu0 %v1766, 32
      %v1794 = vpop.permute.xlu0 %1793
      %1795 = vrot.lane.b32.xlu0 %v1767, 32
      %v1796 = vpop.permute.xlu0 %1795
      %1797 = vrot.lane.b32.xlu0 %v1768, 32
      %v1798 = vpop.permute.xlu0 %1797
      %1799 = vrot.lane.b32.xlu0 %v1769, 32
      %v1800 = vpop.permute.xlu0 %1799
      %1801 = vrot.lane.b32.xlu0 %v1770, 32
      %v1802 = vpop.permute.xlu0 %1801
      %v1803 = vadd.f32 %v1739, %v1772
      %v1804 = vadd.f32 %v1740, %v1774
      %v1805 = vadd.f32 %v1741, %v1776
      %v1806 = vadd.f32 %v1742, %v1778
      %v1807 = vadd.f32 %v1743, %v1780
      %v1808 = vadd.f32 %v1744, %v1782
      %v1809 = vadd.f32 %v1745, %v1784
      %v1810 = vadd.f32 %v1746, %v1786
      %v1811 = vadd.f32 %v1747, %v1788
      %v1812 = vadd.f32 %v1748, %v1790
      %v1813 = vadd.f32 %v1749, %v1792
      %v1814 = vadd.f32 %v1750, %v1794
      %v1815 = vadd.f32 %v1751, %v1796
      %v1816 = vadd.f32 %v1752, %v1798
      %v1817 = vadd.f32 %v1753, %v1800
      %v1818 = vadd.f32 %v1754, %v1802
      %v1819 = vld [vmem:[#allocation3 + $0x3] sm:$0xff]
      %v1820 = vld [vmem:[#allocation3 + $0xb] sm:$0xff]
      %v1821 = vld [vmem:[#allocation3 + $0x13] sm:$0xff]
      %v1822 = vld [vmem:[#allocation3 + $0x1b] sm:$0xff]
      %v1823 = vld [vmem:[#allocation3 + $0x23] sm:$0xff]
      %v1824 = vld [vmem:[#allocation3 + $0x2b] sm:$0xff]
      %v1825 = vld [vmem:[#allocation3 + $0x33] sm:$0xff]
      %v1826 = vld [vmem:[#allocation3 + $0x3b] sm:$0xff]
      %v1827 = vld [vmem:[#allocation3 + $0x43] sm:$0xff]
      %v1828 = vld [vmem:[#allocation3 + $0x4b] sm:$0xff]
      %v1829 = vld [vmem:[#allocation3 + $0x53] sm:$0xff]
      %v1830 = vld [vmem:[#allocation3 + $0x5b] sm:$0xff]
      %v1831 = vld [vmem:[#allocation3 + $0x63] sm:$0xff]
      %v1832 = vld [vmem:[#allocation3 + $0x6b] sm:$0xff]
      %v1833 = vld [vmem:[#allocation3 + $0x73] sm:$0xff]
      %v1834 = vld [vmem:[#allocation3 + $0x7b] sm:$0xff]
      %1835 = vrot.lane.b32.xlu0 %v1819, 48
      %v1836 = vpop.permute.xlu0 %1835
      %1837 = vrot.lane.b32.xlu0 %v1820, 48
      %v1838 = vpop.permute.xlu0 %1837
      %1839 = vrot.lane.b32.xlu0 %v1821, 48
      %v1840 = vpop.permute.xlu0 %1839
      %1841 = vrot.lane.b32.xlu0 %v1822, 48
      %v1842 = vpop.permute.xlu0 %1841
      %1843 = vrot.lane.b32.xlu0 %v1823, 48
      %v1844 = vpop.permute.xlu0 %1843
      %1845 = vrot.lane.b32.xlu0 %v1824, 48
      %v1846 = vpop.permute.xlu0 %1845
      %1847 = vrot.lane.b32.xlu0 %v1825, 48
      %v1848 = vpop.permute.xlu0 %1847
      %1849 = vrot.lane.b32.xlu0 %v1826, 48
      %v1850 = vpop.permute.xlu0 %1849
      %1851 = vrot.lane.b32.xlu0 %v1827, 48
      %v1852 = vpop.permute.xlu0 %1851
      %1853 = vrot.lane.b32.xlu0 %v1828, 48
      %v1854 = vpop.permute.xlu0 %1853
      %1855 = vrot.lane.b32.xlu0 %v1829, 48
      %v1856 = vpop.permute.xlu0 %1855
      %1857 = vrot.lane.b32.xlu0 %v1830, 48
      %v1858 = vpop.permute.xlu0 %1857
      %1859 = vrot.lane.b32.xlu0 %v1831, 48
      %v1860 = vpop.permute.xlu0 %1859
      %1861 = vrot.lane.b32.xlu0 %v1832, 48
      %v1862 = vpop.permute.xlu0 %1861
      %1863 = vrot.lane.b32.xlu0 %v1833, 48
      %v1864 = vpop.permute.xlu0 %1863
      %1865 = vrot.lane.b32.xlu0 %v1834, 48
      %v1866 = vpop.permute.xlu0 %1865
      %v1867 = vadd.f32 %v1803, %v1836
      %v1868 = vadd.f32 %v1804, %v1838
      %v1869 = vadd.f32 %v1805, %v1840
      %v1870 = vadd.f32 %v1806, %v1842
      %v1871 = vadd.f32 %v1807, %v1844
      %v1872 = vadd.f32 %v1808, %v1846
      %v1873 = vadd.f32 %v1809, %v1848
      %v1874 = vadd.f32 %v1810, %v1850
      %v1875 = vadd.f32 %v1811, %v1852
      %v1876 = vadd.f32 %v1812, %v1854
      %v1877 = vadd.f32 %v1813, %v1856
      %v1878 = vadd.f32 %v1814, %v1858
      %v1879 = vadd.f32 %v1815, %v1860
      %v1880 = vadd.f32 %v1816, %v1862
      %v1881 = vadd.f32 %v1817, %v1864
      %v1882 = vadd.f32 %v1818, %v1866
      %v1883 = vld [vmem:[#allocation3 + $0x4] sm:$0xff]
      %v1884 = vld [vmem:[#allocation3 + $0xc] sm:$0xff]
      %v1885 = vld [vmem:[#allocation3 + $0x14] sm:$0xff]
      %v1886 = vld [vmem:[#allocation3 + $0x1c] sm:$0xff]
      %v1887 = vld [vmem:[#allocation3 + $0x24] sm:$0xff]
      %v1888 = vld [vmem:[#allocation3 + $0x2c] sm:$0xff]
      %v1889 = vld [vmem:[#allocation3 + $0x34] sm:$0xff]
      %v1890 = vld [vmem:[#allocation3 + $0x3c] sm:$0xff]
      %v1891 = vld [vmem:[#allocation3 + $0x44] sm:$0xff]
      %v1892 = vld [vmem:[#allocation3 + $0x4c] sm:$0xff]
      %v1893 = vld [vmem:[#allocation3 + $0x54] sm:$0xff]
      %v1894 = vld [vmem:[#allocation3 + $0x5c] sm:$0xff]
      %v1895 = vld [vmem:[#allocation3 + $0x64] sm:$0xff]
      %v1896 = vld [vmem:[#allocation3 + $0x6c] sm:$0xff]
      %v1897 = vld [vmem:[#allocation3 + $0x74] sm:$0xff]
      %v1898 = vld [vmem:[#allocation3 + $0x7c] sm:$0xff]
      %1899 = vrot.lane.b32.xlu0 %v1883, 64
      %v1900 = vpop.permute.xlu0 %1899
      %1901 = vrot.lane.b32.xlu0 %v1884, 64
      %v1902 = vpop.permute.xlu0 %1901
      %1903 = vrot.lane.b32.xlu0 %v1885, 64
      %v1904 = vpop.permute.xlu0 %1903
      %1905 = vrot.lane.b32.xlu0 %v1886, 64
      %v1906 = vpop.permute.xlu0 %1905
      %1907 = vrot.lane.b32.xlu0 %v1887, 64
      %v1908 = vpop.permute.xlu0 %1907
      %1909 = vrot.lane.b32.xlu0 %v1888, 64
      %v1910 = vpop.permute.xlu0 %1909
      %1911 = vrot.lane.b32.xlu0 %v1889, 64
      %v1912 = vpop.permute.xlu0 %1911
      %1913 = vrot.lane.b32.xlu0 %v1890, 64
      %v1914 = vpop.permute.xlu0 %1913
      %1915 = vrot.lane.b32.xlu0 %v1891, 64
      %v1916 = vpop.permute.xlu0 %1915
      %1917 = vrot.lane.b32.xlu0 %v1892, 64
      %v1918 = vpop.permute.xlu0 %1917
      %1919 = vrot.lane.b32.xlu0 %v1893, 64
      %v1920 = vpop.permute.xlu0 %1919
      %1921 = vrot.lane.b32.xlu0 %v1894, 64
      %v1922 = vpop.permute.xlu0 %1921
      %1923 = vrot.lane.b32.xlu0 %v1895, 64
      %v1924 = vpop.permute.xlu0 %1923
      %1925 = vrot.lane.b32.xlu0 %v1896, 64
      %v1926 = vpop.permute.xlu0 %1925
      %1927 = vrot.lane.b32.xlu0 %v1897, 64
      %v1928 = vpop.permute.xlu0 %1927
      %1929 = vrot.lane.b32.xlu0 %v1898, 64
      %v1930 = vpop.permute.xlu0 %1929
      %v1931 = vadd.f32 %v1867, %v1900
      %v1932 = vadd.f32 %v1868, %v1902
      %v1933 = vadd.f32 %v1869, %v1904
      %v1934 = vadd.f32 %v1870, %v1906
      %v1935 = vadd.f32 %v1871, %v1908
      %v1936 = vadd.f32 %v1872, %v1910
      %v1937 = vadd.f32 %v1873, %v1912
      %v1938 = vadd.f32 %v1874, %v1914
      %v1939 = vadd.f32 %v1875, %v1916
      %v1940 = vadd.f32 %v1876, %v1918
      %v1941 = vadd.f32 %v1877, %v1920
      %v1942 = vadd.f32 %v1878, %v1922
      %v1943 = vadd.f32 %v1879, %v1924
      %v1944 = vadd.f32 %v1880, %v1926
      %v1945 = vadd.f32 %v1881, %v1928
      %v1946 = vadd.f32 %v1882, %v1930
      %v1947 = vld [vmem:[#allocation3 + $0x82] sm:$0xff]
      %v1948 = vld [vmem:[#allocation3 + $0x8a] sm:$0xff]
      %1949 = vrot.lane.b32.xlu0 %v1757, 80
      %v1950 = vpop.permute.xlu0 %1949
      %1951 = vrot.lane.b32.xlu0 %v1758, 80
      %v1952 = vpop.permute.xlu0 %1951
      %1953 = vrot.lane.b32.xlu0 %v1759, 80
      %v1954 = vpop.permute.xlu0 %1953
      %1955 = vrot.lane.b32.xlu0 %v1760, 80
      %v1956 = vpop.permute.xlu0 %1955
      %1957 = vrot.lane.b32.xlu0 %v1761, 80
      %v1958 = vpop.permute.xlu0 %1957
      %1959 = vrot.lane.b32.xlu0 %v1762, 80
      %v1960 = vpop.permute.xlu0 %1959
      %1961 = vrot.lane.b32.xlu0 %v1763, 80
      %v1962 = vpop.permute.xlu0 %1961
      %1963 = vrot.lane.b32.xlu0 %v1764, 80
      %v1964 = vpop.permute.xlu0 %1963
      %1965 = vrot.lane.b32.xlu0 %v1765, 80
      %v1966 = vpop.permute.xlu0 %1965
      %1967 = vrot.lane.b32.xlu0 %v1766, 80
      %v1968 = vpop.permute.xlu0 %1967
      %1969 = vrot.lane.b32.xlu0 %v1767, 80
      %v1970 = vpop.permute.xlu0 %1969
      %1971 = vrot.lane.b32.xlu0 %v1768, 80
      %v1972 = vpop.permute.xlu0 %1971
      %1973 = vrot.lane.b32.xlu0 %v1769, 80
      %v1974 = vpop.permute.xlu0 %1973
      %1975 = vrot.lane.b32.xlu0 %v1770, 80
      %v1976 = vpop.permute.xlu0 %1975
      %1977 = vrot.lane.b32.xlu0 %v1947, 80
      %v1978 = vpop.permute.xlu0 %1977
      %1979 = vrot.lane.b32.xlu0 %v1948, 80
      %v1980 = vpop.permute.xlu0 %1979
      %v1981 = vadd.f32 %v1931, %v1950
      %v1982 = vadd.f32 %v1932, %v1952
      %v1983 = vadd.f32 %v1933, %v1954
      %v1984 = vadd.f32 %v1934, %v1956
      %v1985 = vadd.f32 %v1935, %v1958
      %v1986 = vadd.f32 %v1936, %v1960
      %v1987 = vadd.f32 %v1937, %v1962
      %v1988 = vadd.f32 %v1938, %v1964
      %v1989 = vadd.f32 %v1939, %v1966
      %v1990 = vadd.f32 %v1940, %v1968
      %v1991 = vadd.f32 %v1941, %v1970
      %v1992 = vadd.f32 %v1942, %v1972
      %v1993 = vadd.f32 %v1943, %v1974
      %v1994 = vadd.f32 %v1944, %v1976
      %v1995 = vadd.f32 %v1945, %v1978
      %v1996 = vadd.f32 %v1946, %v1980
      %v1997 = vld [vmem:[#allocation3 + $0x83] sm:$0xff]
      %v1998 = vld [vmem:[#allocation3 + $0x8b] sm:$0xff]
      %1999 = vrot.lane.b32.xlu0 %v1821, 96
      %v2000 = vpop.permute.xlu0 %1999
      %2001 = vrot.lane.b32.xlu0 %v1822, 96
      %v2002 = vpop.permute.xlu0 %2001
      %2003 = vrot.lane.b32.xlu0 %v1823, 96
      %v2004 = vpop.permute.xlu0 %2003
      %2005 = vrot.lane.b32.xlu0 %v1824, 96
      %v2006 = vpop.permute.xlu0 %2005
      %2007 = vrot.lane.b32.xlu0 %v1825, 96
      %v2008 = vpop.permute.xlu0 %2007
      %2009 = vrot.lane.b32.xlu0 %v1826, 96
      %v2010 = vpop.permute.xlu0 %2009
      %2011 = vrot.lane.b32.xlu0 %v1827, 96
      %v2012 = vpop.permute.xlu0 %2011
      %2013 = vrot.lane.b32.xlu0 %v1828, 96
      %v2014 = vpop.permute.xlu0 %2013
      %2015 = vrot.lane.b32.xlu0 %v1829, 96
      %v2016 = vpop.permute.xlu0 %2015
      %2017 = vrot.lane.b32.xlu0 %v1830, 96
      %v2018 = vpop.permute.xlu0 %2017
      %2019 = vrot.lane.b32.xlu0 %v1831, 96
      %v2020 = vpop.permute.xlu0 %2019
      %2021 = vrot.lane.b32.xlu0 %v1832, 96
      %v2022 = vpop.permute.xlu0 %2021
      %2023 = vrot.lane.b32.xlu0 %v1833, 96
      %v2024 = vpop.permute.xlu0 %2023
      %2025 = vrot.lane.b32.xlu0 %v1834, 96
      %v2026 = vpop.permute.xlu0 %2025
      %2027 = vrot.lane.b32.xlu0 %v1997, 96
      %v2028 = vpop.permute.xlu0 %2027
      %2029 = vrot.lane.b32.xlu0 %v1998, 96
      %v2030 = vpop.permute.xlu0 %2029
      %v2031 = vadd.f32 %v1981, %v2000
      %v2032 = vadd.f32 %v1982, %v2002
      %v2033 = vadd.f32 %v1983, %v2004
      %v2034 = vadd.f32 %v1984, %v2006
      %v2035 = vadd.f32 %v1985, %v2008
      %v2036 = vadd.f32 %v1986, %v2010
      %v2037 = vadd.f32 %v1987, %v2012
      %v2038 = vadd.f32 %v1988, %v2014
      %v2039 = vadd.f32 %v1989, %v2016
      %v2040 = vadd.f32 %v1990, %v2018
      %v2041 = vadd.f32 %v1991, %v2020
      %v2042 = vadd.f32 %v1992, %v2022
      %v2043 = vadd.f32 %v1993, %v2024
      %v2044 = vadd.f32 %v1994, %v2026
      %v2045 = vadd.f32 %v1995, %v2028
      %v2046 = vadd.f32 %v1996, %v2030
      %v2047 = vld [vmem:[#allocation3 + $0x84] sm:$0xff]
      %v2048 = vld [vmem:[#allocation3 + $0x8c] sm:$0xff]
      %2049 = vrot.lane.b32.xlu0 %v1885, 112
      %v2050 = vpop.permute.xlu0 %2049
      %2051 = vrot.lane.b32.xlu0 %v1886, 112
      %v2052 = vpop.permute.xlu0 %2051
      %2053 = vrot.lane.b32.xlu0 %v1887, 112
      %v2054 = vpop.permute.xlu0 %2053
      %2055 = vrot.lane.b32.xlu0 %v1888, 112
      %v2056 = vpop.permute.xlu0 %2055
      %2057 = vrot.lane.b32.xlu0 %v1889, 112
      %v2058 = vpop.permute.xlu0 %2057
      %2059 = vrot.lane.b32.xlu0 %v1890, 112
      %v2060 = vpop.permute.xlu0 %2059
      %2061 = vrot.lane.b32.xlu0 %v1891, 112
      %v2062 = vpop.permute.xlu0 %2061
      %2063 = vrot.lane.b32.xlu0 %v1892, 112
      %v2064 = vpop.permute.xlu0 %2063
      %2065 = vrot.lane.b32.xlu0 %v1893, 112
      %v2066 = vpop.permute.xlu0 %2065
      %2067 = vrot.lane.b32.xlu0 %v1894, 112
      %v2068 = vpop.permute.xlu0 %2067
      %2069 = vrot.lane.b32.xlu0 %v1895, 112
      %v2070 = vpop.permute.xlu0 %2069
      %2071 = vrot.lane.b32.xlu0 %v1896, 112
      %v2072 = vpop.permute.xlu0 %2071
      %2073 = vrot.lane.b32.xlu0 %v1897, 112
      %v2074 = vpop.permute.xlu0 %2073
      %2075 = vrot.lane.b32.xlu0 %v1898, 112
      %v2076 = vpop.permute.xlu0 %2075
      %2077 = vrot.lane.b32.xlu0 %v2047, 112
      %v2078 = vpop.permute.xlu0 %2077
      %2079 = vrot.lane.b32.xlu0 %v2048, 112
      %v2080 = vpop.permute.xlu0 %2079
      %v2081 = vadd.f32 %v2031, %v2050
      %v2082 = vadd.f32 %v2032, %v2052
      %v2083 = vadd.f32 %v2033, %v2054
      %v2084 = vadd.f32 %v2034, %v2056
      %v2085 = vadd.f32 %v2035, %v2058
      %v2086 = vadd.f32 %v2036, %v2060
      %v2087 = vadd.f32 %v2037, %v2062
      %v2088 = vadd.f32 %v2038, %v2064
      %v2089 = vadd.f32 %v2039, %v2066
      %v2090 = vadd.f32 %v2040, %v2068
      %v2091 = vadd.f32 %v2041, %v2070
      %v2092 = vadd.f32 %v2042, %v2072
      %v2093 = vadd.f32 %v2043, %v2074
      %v2094 = vadd.f32 %v2044, %v2076
      %v2095 = vadd.f32 %v2045, %v2078
      %v2096 = vadd.f32 %v2046, %v2080
      %v2097 = vld [vmem:[%s3] sm:$0xff]
      %v2098 = vld [vmem:[%s3 + $0x8] sm:$0xff]
      %v2099 = vld [vmem:[%s3 + $0x10] sm:$0xff]
      %v2100 = vld [vmem:[%s3 + $0x18] sm:$0xff]
      %v2101 = vld [vmem:[%s3 + $0x20] sm:$0xff]
      %v2102 = vld [vmem:[%s3 + $0x28] sm:$0xff]
      %v2103 = vld [vmem:[%s3 + $0x30] sm:$0xff]
      %v2104 = vld [vmem:[%s3 + $0x38] sm:$0xff]
      %v2105 = vld [vmem:[%s3 + $0x40] sm:$0xff]
      %v2106 = vld [vmem:[%s3 + $0x48] sm:$0xff]
      %v2107 = vld [vmem:[%s3 + $0x50] sm:$0xff]
      %v2108 = vld [vmem:[%s3 + $0x58] sm:$0xff]
      %v2109 = vld [vmem:[%s3 + $0x60] sm:$0xff]
      %v2110 = vld [vmem:[%s3 + $0x68] sm:$0xff]
      %v2111 = vld [vmem:[%s3 + $0x70] sm:$0xff]
      %v2112 = vld [vmem:[%s3 + $0x78] sm:$0xff]
      %v2113 = vld [vmem:[#allocation3 + $0x15] sm:$0xff]
      %v2114 = vld [vmem:[#allocation3 + $0x1d] sm:$0xff]
      %v2115 = vld [vmem:[#allocation3 + $0x25] sm:$0xff]
      %v2116 = vld [vmem:[#allocation3 + $0x2d] sm:$0xff]
      %v2117 = vld [vmem:[#allocation3 + $0x35] sm:$0xff]
      %v2118 = vld [vmem:[#allocation3 + $0x3d] sm:$0xff]
      %v2119 = vld [vmem:[#allocation3 + $0x45] sm:$0xff]
      %v2120 = vld [vmem:[#allocation3 + $0x4d] sm:$0xff]
      %v2121 = vld [vmem:[#allocation3 + $0x55] sm:$0xff]
      %v2122 = vld [vmem:[#allocation3 + $0x5d] sm:$0xff]
      %v2123 = vld [vmem:[#allocation3 + $0x65] sm:$0xff]
      %v2124 = vld [vmem:[#allocation3 + $0x6d] sm:$0xff]
      %v2125 = vld [vmem:[#allocation3 + $0x75] sm:$0xff]
      %v2126 = vld [vmem:[#allocation3 + $0x7d] sm:$0xff]
      %v2127 = vld [vmem:[#allocation3 + $0x85] sm:$0xff]
      %v2128 = vld [vmem:[#allocation3 + $0x8d] sm:$0xff]
      %v2129 = vld [vmem:[#allocation3 + $0x16] sm:$0xff]
      %v2130 = vld [vmem:[#allocation3 + $0x1e] sm:$0xff]
      %v2131 = vld [vmem:[#allocation3 + $0x26] sm:$0xff]
      %v2132 = vld [vmem:[#allocation3 + $0x2e] sm:$0xff]
      %v2133 = vld [vmem:[#allocation3 + $0x36] sm:$0xff]
      %v2134 = vld [vmem:[#allocation3 + $0x3e] sm:$0xff]
      %v2135 = vld [vmem:[#allocation3 + $0x46] sm:$0xff]
      %v2136 = vld [vmem:[#allocation3 + $0x4e] sm:$0xff]
      %v2137 = vld [vmem:[#allocation3 + $0x56] sm:$0xff]
      %v2138 = vld [vmem:[#allocation3 + $0x5e] sm:$0xff]
      %v2139 = vld [vmem:[#allocation3 + $0x66] sm:$0xff]
      %v2140 = vld [vmem:[#allocation3 + $0x6e] sm:$0xff]
      %v2141 = vld [vmem:[#allocation3 + $0x76] sm:$0xff]
      %v2142 = vld [vmem:[#allocation3 + $0x7e] sm:$0xff]
      %v2143 = vld [vmem:[#allocation3 + $0x86] sm:$0xff]
      %v2144 = vld [vmem:[#allocation3 + $0x8e] sm:$0xff]
      %2145 = vrot.lane.b32.xlu0 %v2129, 16
      %v2146 = vpop.permute.xlu0 %2145
      %2147 = vrot.lane.b32.xlu0 %v2130, 16
      %v2148 = vpop.permute.xlu0 %2147
      %2149 = vrot.lane.b32.xlu0 %v2131, 16
      %v2150 = vpop.permute.xlu0 %2149
      %2151 = vrot.lane.b32.xlu0 %v2132, 16
      %v2152 = vpop.permute.xlu0 %2151
      %2153 = vrot.lane.b32.xlu0 %v2133, 16
      %v2154 = vpop.permute.xlu0 %2153
      %2155 = vrot.lane.b32.xlu0 %v2134, 16
      %v2156 = vpop.permute.xlu0 %2155
      %2157 = vrot.lane.b32.xlu0 %v2135, 16
      %v2158 = vpop.permute.xlu0 %2157
      %2159 = vrot.lane.b32.xlu0 %v2136, 16
      %v2160 = vpop.permute.xlu0 %2159
      %2161 = vrot.lane.b32.xlu0 %v2137, 16
      %v2162 = vpop.permute.xlu0 %2161
      %2163 = vrot.lane.b32.xlu0 %v2138, 16
      %v2164 = vpop.permute.xlu0 %2163
      %2165 = vrot.lane.b32.xlu0 %v2139, 16
      %v2166 = vpop.permute.xlu0 %2165
      %2167 = vrot.lane.b32.xlu0 %v2140, 16
      %v2168 = vpop.permute.xlu0 %2167
      %2169 = vrot.lane.b32.xlu0 %v2141, 16
      %v2170 = vpop.permute.xlu0 %2169
      %2171 = vrot.lane.b32.xlu0 %v2142, 16
      %v2172 = vpop.permute.xlu0 %2171
      %2173 = vrot.lane.b32.xlu0 %v2143, 16
      %v2174 = vpop.permute.xlu0 %2173
      %2175 = vrot.lane.b32.xlu0 %v2144, 16
      %v2176 = vpop.permute.xlu0 %2175
      %v2177 = vadd.f32 %v2113, %v2146
      %v2178 = vadd.f32 %v2114, %v2148
      %v2179 = vadd.f32 %v2115, %v2150
      %v2180 = vadd.f32 %v2116, %v2152
      %v2181 = vadd.f32 %v2117, %v2154
      %v2182 = vadd.f32 %v2118, %v2156
      %v2183 = vadd.f32 %v2119, %v2158
      %v2184 = vadd.f32 %v2120, %v2160
      %v2185 = vadd.f32 %v2121, %v2162
      %v2186 = vadd.f32 %v2122, %v2164
      %v2187 = vadd.f32 %v2123, %v2166
      %v2188 = vadd.f32 %v2124, %v2168
      %v2189 = vadd.f32 %v2125, %v2170
      %v2190 = vadd.f32 %v2126, %v2172
      %v2191 = vadd.f32 %v2127, %v2174
      %v2192 = vadd.f32 %v2128, %v2176
      %v2193 = vld [vmem:[#allocation3 + $0x94] sm:$0xff]
      %v2194 = vld [vmem:[#allocation3 + $0x9c] sm:$0xff]
      %2195 = vrot.lane.b32.xlu0 %v1887, 32
      %v2196 = vpop.permute.xlu0 %2195
      %2197 = vrot.lane.b32.xlu0 %v1888, 32
      %v2198 = vpop.permute.xlu0 %2197
      %2199 = vrot.lane.b32.xlu0 %v1889, 32
      %v2200 = vpop.permute.xlu0 %2199
      %2201 = vrot.lane.b32.xlu0 %v1890, 32
      %v2202 = vpop.permute.xlu0 %2201
      %2203 = vrot.lane.b32.xlu0 %v1891, 32
      %v2204 = vpop.permute.xlu0 %2203
      %2205 = vrot.lane.b32.xlu0 %v1892, 32
      %v2206 = vpop.permute.xlu0 %2205
      %2207 = vrot.lane.b32.xlu0 %v1893, 32
      %v2208 = vpop.permute.xlu0 %2207
      %2209 = vrot.lane.b32.xlu0 %v1894, 32
      %v2210 = vpop.permute.xlu0 %2209
      %2211 = vrot.lane.b32.xlu0 %v1895, 32
      %v2212 = vpop.permute.xlu0 %2211
      %2213 = vrot.lane.b32.xlu0 %v1896, 32
      %v2214 = vpop.permute.xlu0 %2213
      %2215 = vrot.lane.b32.xlu0 %v1897, 32
      %v2216 = vpop.permute.xlu0 %2215
      %2217 = vrot.lane.b32.xlu0 %v1898, 32
      %v2218 = vpop.permute.xlu0 %2217
      %2219 = vrot.lane.b32.xlu0 %v2047, 32
      %v2220 = vpop.permute.xlu0 %2219
      %2221 = vrot.lane.b32.xlu0 %v2048, 32
      %v2222 = vpop.permute.xlu0 %2221
      %2223 = vrot.lane.b32.xlu0 %v2193, 32
      %v2224 = vpop.permute.xlu0 %2223
      %2225 = vrot.lane.b32.xlu0 %v2194, 32
      %v2226 = vpop.permute.xlu0 %2225
      %v2227 = vadd.f32 %v2177, %v2196
      %v2228 = vadd.f32 %v2178, %v2198
      %v2229 = vadd.f32 %v2179, %v2200
      %v2230 = vadd.f32 %v2180, %v2202
      %v2231 = vadd.f32 %v2181, %v2204
      %v2232 = vadd.f32 %v2182, %v2206
      %v2233 = vadd.f32 %v2183, %v2208
      %v2234 = vadd.f32 %v2184, %v2210
      %v2235 = vadd.f32 %v2185, %v2212
      %v2236 = vadd.f32 %v2186, %v2214
      %v2237 = vadd.f32 %v2187, %v2216
      %v2238 = vadd.f32 %v2188, %v2218
      %v2239 = vadd.f32 %v2189, %v2220
      %v2240 = vadd.f32 %v2190, %v2222
      %v2241 = vadd.f32 %v2191, %v2224
      %v2242 = vadd.f32 %v2192, %v2226
      %v2243 = vld [vmem:[#allocation3 + $0x95] sm:$0xff]
      %v2244 = vld [vmem:[#allocation3 + $0x9d] sm:$0xff]
      %2245 = vrot.lane.b32.xlu0 %v2115, 48
      %v2246 = vpop.permute.xlu0 %2245
      %2247 = vrot.lane.b32.xlu0 %v2116, 48
      %v2248 = vpop.permute.xlu0 %2247
      %2249 = vrot.lane.b32.xlu0 %v2117, 48
      %v2250 = vpop.permute.xlu0 %2249
      %2251 = vrot.lane.b32.xlu0 %v2118, 48
      %v2252 = vpop.permute.xlu0 %2251
      %2253 = vrot.lane.b32.xlu0 %v2119, 48
      %v2254 = vpop.permute.xlu0 %2253
      %2255 = vrot.lane.b32.xlu0 %v2120, 48
      %v2256 = vpop.permute.xlu0 %2255
      %2257 = vrot.lane.b32.xlu0 %v2121, 48
      %v2258 = vpop.permute.xlu0 %2257
      %2259 = vrot.lane.b32.xlu0 %v2122, 48
      %v2260 = vpop.permute.xlu0 %2259
      %2261 = vrot.lane.b32.xlu0 %v2123, 48
      %v2262 = vpop.permute.xlu0 %2261
      %2263 = vrot.lane.b32.xlu0 %v2124, 48
      %v2264 = vpop.permute.xlu0 %2263
      %2265 = vrot.lane.b32.xlu0 %v2125, 48
      %v2266 = vpop.permute.xlu0 %2265
      %2267 = vrot.lane.b32.xlu0 %v2126, 48
      %v2268 = vpop.permute.xlu0 %2267
      %2269 = vrot.lane.b32.xlu0 %v2127, 48
      %v2270 = vpop.permute.xlu0 %2269
      %2271 = vrot.lane.b32.xlu0 %v2128, 48
      %v2272 = vpop.permute.xlu0 %2271
      %2273 = vrot.lane.b32.xlu0 %v2243, 48
      %v2274 = vpop.permute.xlu0 %2273
      %2275 = vrot.lane.b32.xlu0 %v2244, 48
      %v2276 = vpop.permute.xlu0 %2275
      %v2277 = vadd.f32 %v2227, %v2246
      %v2278 = vadd.f32 %v2228, %v2248
      %v2279 = vadd.f32 %v2229, %v2250
      %v2280 = vadd.f32 %v2230, %v2252
      %v2281 = vadd.f32 %v2231, %v2254
      %v2282 = vadd.f32 %v2232, %v2256
      %v2283 = vadd.f32 %v2233, %v2258
      %v2284 = vadd.f32 %v2234, %v2260
      %v2285 = vadd.f32 %v2235, %v2262
      %v2286 = vadd.f32 %v2236, %v2264
      %v2287 = vadd.f32 %v2237, %v2266
      %v2288 = vadd.f32 %v2238, %v2268
      %v2289 = vadd.f32 %v2239, %v2270
      %v2290 = vadd.f32 %v2240, %v2272
      %v2291 = vadd.f32 %v2241, %v2274
      %v2292 = vadd.f32 %v2242, %v2276
      %v2293 = vld [vmem:[#allocation3 + $0x96] sm:$0xff]
      %v2294 = vld [vmem:[#allocation3 + $0x9e] sm:$0xff]
      %2295 = vrot.lane.b32.xlu0 %v2131, 64
      %v2296 = vpop.permute.xlu0 %2295
      %2297 = vrot.lane.b32.xlu0 %v2132, 64
      %v2298 = vpop.permute.xlu0 %2297
      %2299 = vrot.lane.b32.xlu0 %v2133, 64
      %v2300 = vpop.permute.xlu0 %2299
      %2301 = vrot.lane.b32.xlu0 %v2134, 64
      %v2302 = vpop.permute.xlu0 %2301
      %2303 = vrot.lane.b32.xlu0 %v2135, 64
      %v2304 = vpop.permute.xlu0 %2303
      %2305 = vrot.lane.b32.xlu0 %v2136, 64
      %v2306 = vpop.permute.xlu0 %2305
      %2307 = vrot.lane.b32.xlu0 %v2137, 64
      %v2308 = vpop.permute.xlu0 %2307
      %2309 = vrot.lane.b32.xlu0 %v2138, 64
      %v2310 = vpop.permute.xlu0 %2309
      %2311 = vrot.lane.b32.xlu0 %v2139, 64
      %v2312 = vpop.permute.xlu0 %2311
      %2313 = vrot.lane.b32.xlu0 %v2140, 64
      %v2314 = vpop.permute.xlu0 %2313
      %2315 = vrot.lane.b32.xlu0 %v2141, 64
      %v2316 = vpop.permute.xlu0 %2315
      %2317 = vrot.lane.b32.xlu0 %v2142, 64
      %v2318 = vpop.permute.xlu0 %2317
      %2319 = vrot.lane.b32.xlu0 %v2143, 64
      %v2320 = vpop.permute.xlu0 %2319
      %2321 = vrot.lane.b32.xlu0 %v2144, 64
      %v2322 = vpop.permute.xlu0 %2321
      %2323 = vrot.lane.b32.xlu0 %v2293, 64
      %v2324 = vpop.permute.xlu0 %2323
      %2325 = vrot.lane.b32.xlu0 %v2294, 64
      %v2326 = vpop.permute.xlu0 %2325
      %v2327 = vadd.f32 %v2277, %v2296
      %v2328 = vadd.f32 %v2278, %v2298
      %v2329 = vadd.f32 %v2279, %v2300
      %v2330 = vadd.f32 %v2280, %v2302
      %v2331 = vadd.f32 %v2281, %v2304
      %v2332 = vadd.f32 %v2282, %v2306
      %v2333 = vadd.f32 %v2283, %v2308
      %v2334 = vadd.f32 %v2284, %v2310
      %v2335 = vadd.f32 %v2285, %v2312
      %v2336 = vadd.f32 %v2286, %v2314
      %v2337 = vadd.f32 %v2287, %v2316
      %v2338 = vadd.f32 %v2288, %v2318
      %v2339 = vadd.f32 %v2289, %v2320
      %v2340 = vadd.f32 %v2290, %v2322
      %v2341 = vadd.f32 %v2291, %v2324
      %v2342 = vadd.f32 %v2292, %v2326
      %v2343 = vld [vmem:[#allocation3 + $0x27] sm:$0xff]
      %v2344 = vld [vmem:[#allocation3 + $0x2f] sm:$0xff]
      %v2345 = vld [vmem:[#allocation3 + $0x37] sm:$0xff]
      %v2346 = vld [vmem:[#allocation3 + $0x3f] sm:$0xff]
      %v2347 = vld [vmem:[#allocation3 + $0x47] sm:$0xff]
      %v2348 = vld [vmem:[#allocation3 + $0x4f] sm:$0xff]
      %v2349 = vld [vmem:[#allocation3 + $0x57] sm:$0xff]
      %v2350 = vld [vmem:[#allocation3 + $0x5f] sm:$0xff]
      %v2351 = vld [vmem:[#allocation3 + $0x67] sm:$0xff]
      %v2352 = vld [vmem:[#allocation3 + $0x6f] sm:$0xff]
      %v2353 = vld [vmem:[#allocation3 + $0x77] sm:$0xff]
      %v2354 = vld [vmem:[#allocation3 + $0x7f] sm:$0xff]
      %v2355 = vld [vmem:[#allocation3 + $0x87] sm:$0xff]
      %v2356 = vld [vmem:[#allocation3 + $0x8f] sm:$0xff]
      %v2357 = vld [vmem:[#allocation3 + $0x97] sm:$0xff]
      %v2358 = vld [vmem:[#allocation3 + $0x9f] sm:$0xff]
      %2359 = vrot.lane.b32.xlu0 %v2343, 80
      %v2360 = vpop.permute.xlu0 %2359
      %2361 = vrot.lane.b32.xlu0 %v2344, 80
      %v2362 = vpop.permute.xlu0 %2361
      %2363 = vrot.lane.b32.xlu0 %v2345, 80
      %v2364 = vpop.permute.xlu0 %2363
      %2365 = vrot.lane.b32.xlu0 %v2346, 80
      %v2366 = vpop.permute.xlu0 %2365
      %2367 = vrot.lane.b32.xlu0 %v2347, 80
      %v2368 = vpop.permute.xlu0 %2367
      %2369 = vrot.lane.b32.xlu0 %v2348, 80
      %v2370 = vpop.permute.xlu0 %2369
      %2371 = vrot.lane.b32.xlu0 %v2349, 80
      %v2372 = vpop.permute.xlu0 %2371
      %2373 = vrot.lane.b32.xlu0 %v2350, 80
      %v2374 = vpop.permute.xlu0 %2373
      %2375 = vrot.lane.b32.xlu0 %v2351, 80
      %v2376 = vpop.permute.xlu0 %2375
      %2377 = vrot.lane.b32.xlu0 %v2352, 80
      %v2378 = vpop.permute.xlu0 %2377
      %2379 = vrot.lane.b32.xlu0 %v2353, 80
      %v2380 = vpop.permute.xlu0 %2379
      %2381 = vrot.lane.b32.xlu0 %v2354, 80
      %v2382 = vpop.permute.xlu0 %2381
      %2383 = vrot.lane.b32.xlu0 %v2355, 80
      %v2384 = vpop.permute.xlu0 %2383
      %2385 = vrot.lane.b32.xlu0 %v2356, 80
      %v2386 = vpop.permute.xlu0 %2385
      %2387 = vrot.lane.b32.xlu0 %v2357, 80
      %v2388 = vpop.permute.xlu0 %2387
      %2389 = vrot.lane.b32.xlu0 %v2358, 80
      %v2390 = vpop.permute.xlu0 %2389
      %v2391 = vadd.f32 %v2327, %v2360
      %v2392 = vadd.f32 %v2328, %v2362
      %v2393 = vadd.f32 %v2329, %v2364
      %v2394 = vadd.f32 %v2330, %v2366
      %v2395 = vadd.f32 %v2331, %v2368
      %v2396 = vadd.f32 %v2332, %v2370
      %v2397 = vadd.f32 %v2333, %v2372
      %v2398 = vadd.f32 %v2334, %v2374
      %v2399 = vadd.f32 %v2335, %v2376
      %v2400 = vadd.f32 %v2336, %v2378
      %v2401 = vadd.f32 %v2337, %v2380
      %v2402 = vadd.f32 %v2338, %v2382
      %v2403 = vadd.f32 %v2339, %v2384
      %v2404 = vadd.f32 %v2340, %v2386
      %v2405 = vadd.f32 %v2341, %v2388
      %v2406 = vadd.f32 %v2342, %v2390
      %v2407 = vld [vmem:[#allocation3 + $0x80] sm:$0xff]
      %v2408 = vld [vmem:[#allocation3 + $0x88] sm:$0xff]
      %v2409 = vld [vmem:[#allocation3 + $0x90] sm:$0xff]
      %v2410 = vld [vmem:[#allocation3 + $0x98] sm:$0xff]
      %v2411 = vld [vmem:[#allocation3 + $0xa0] sm:$0xff]
      %2412 = vrot.lane.b32.xlu0 %v1680, 96
      %v2413 = vpop.permute.xlu0 %2412
      %2414 = vrot.lane.b32.xlu0 %v1681, 96
      %v2415 = vpop.permute.xlu0 %2414
      %2416 = vrot.lane.b32.xlu0 %v1682, 96
      %v2417 = vpop.permute.xlu0 %2416
      %2418 = vrot.lane.b32.xlu0 %v1683, 96
      %v2419 = vpop.permute.xlu0 %2418
      %2420 = vrot.lane.b32.xlu0 %v1684, 96
      %v2421 = vpop.permute.xlu0 %2420
      %2422 = vrot.lane.b32.xlu0 %v1685, 96
      %v2423 = vpop.permute.xlu0 %2422
      %2424 = vrot.lane.b32.xlu0 %v1686, 96
      %v2425 = vpop.permute.xlu0 %2424
      %2426 = vrot.lane.b32.xlu0 %v1687, 96
      %v2427 = vpop.permute.xlu0 %2426
      %2428 = vrot.lane.b32.xlu0 %v1688, 96
      %v2429 = vpop.permute.xlu0 %2428
      %2430 = vrot.lane.b32.xlu0 %v1689, 96
      %v2431 = vpop.permute.xlu0 %2430
      %2432 = vrot.lane.b32.xlu0 %v1690, 96
      %v2433 = vpop.permute.xlu0 %2432
      %2434 = vrot.lane.b32.xlu0 %v2407, 96
      %v2435 = vpop.permute.xlu0 %2434
      %2436 = vrot.lane.b32.xlu0 %v2408, 96
      %v2437 = vpop.permute.xlu0 %2436
      %2438 = vrot.lane.b32.xlu0 %v2409, 96
      %v2439 = vpop.permute.xlu0 %2438
      %2440 = vrot.lane.b32.xlu0 %v2410, 96
      %v2441 = vpop.permute.xlu0 %2440
      %2442 = vrot.lane.b32.xlu0 %v2411, 96
      %v2443 = vpop.permute.xlu0 %2442
      %v2444 = vadd.f32 %v2391, %v2413
      %v2445 = vadd.f32 %v2392, %v2415
      %v2446 = vadd.f32 %v2393, %v2417
      %v2447 = vadd.f32 %v2394, %v2419
      %v2448 = vadd.f32 %v2395, %v2421
      %v2449 = vadd.f32 %v2396, %v2423
      %v2450 = vadd.f32 %v2397, %v2425
      %v2451 = vadd.f32 %v2398, %v2427
      %v2452 = vadd.f32 %v2399, %v2429
      %v2453 = vadd.f32 %v2400, %v2431
      %v2454 = vadd.f32 %v2401, %v2433
      %v2455 = vadd.f32 %v2402, %v2435
      %v2456 = vadd.f32 %v2403, %v2437
      %v2457 = vadd.f32 %v2404, %v2439
      %v2458 = vadd.f32 %v2405, %v2441
      %v2459 = vadd.f32 %v2406, %v2443
      %v2460 = vld [vmem:[#allocation3 + $0xa6] sm:$0xff]
      %v2461 = vld [vmem:[#allocation3 + $0xae] sm:$0xff]
      %2462 = vrot.lane.b32.xlu0 %v2133, 112
      %v2463 = vpop.permute.xlu0 %2462
      %2464 = vrot.lane.b32.xlu0 %v2134, 112
      %v2465 = vpop.permute.xlu0 %2464
      %2466 = vrot.lane.b32.xlu0 %v2135, 112
      %v2467 = vpop.permute.xlu0 %2466
      %2468 = vrot.lane.b32.xlu0 %v2136, 112
      %v2469 = vpop.permute.xlu0 %2468
      %2470 = vrot.lane.b32.xlu0 %v2137, 112
      %v2471 = vpop.permute.xlu0 %2470
      %2472 = vrot.lane.b32.xlu0 %v2138, 112
      %v2473 = vpop.permute.xlu0 %2472
      %2474 = vrot.lane.b32.xlu0 %v2139, 112
      %v2475 = vpop.permute.xlu0 %2474
      %2476 = vrot.lane.b32.xlu0 %v2140, 112
      %v2477 = vpop.permute.xlu0 %2476
      %2478 = vrot.lane.b32.xlu0 %v2141, 112
      %v2479 = vpop.permute.xlu0 %2478
      %2480 = vrot.lane.b32.xlu0 %v2142, 112
      %v2481 = vpop.permute.xlu0 %2480
      %2482 = vrot.lane.b32.xlu0 %v2143, 112
      %v2483 = vpop.permute.xlu0 %2482
      %2484 = vrot.lane.b32.xlu0 %v2144, 112
      %v2485 = vpop.permute.xlu0 %2484
      %2486 = vrot.lane.b32.xlu0 %v2293, 112
      %v2487 = vpop.permute.xlu0 %2486
      %2488 = vrot.lane.b32.xlu0 %v2294, 112
      %v2489 = vpop.permute.xlu0 %2488
      %2490 = vrot.lane.b32.xlu0 %v2460, 112
      %v2491 = vpop.permute.xlu0 %2490
      %2492 = vrot.lane.b32.xlu0 %v2461, 112
      %v2493 = vpop.permute.xlu0 %2492
      %v2494 = vadd.f32 %v2444, %v2463
      %v2495 = vadd.f32 %v2445, %v2465
      %v2496 = vadd.f32 %v2446, %v2467
      %v2497 = vadd.f32 %v2447, %v2469
      %v2498 = vadd.f32 %v2448, %v2471
      %v2499 = vadd.f32 %v2449, %v2473
      %v2500 = vadd.f32 %v2450, %v2475
      %v2501 = vadd.f32 %v2451, %v2477
      %v2502 = vadd.f32 %v2452, %v2479
      %v2503 = vadd.f32 %v2453, %v2481
      %v2504 = vadd.f32 %v2454, %v2483
      %v2505 = vadd.f32 %v2455, %v2485
      %v2506 = vadd.f32 %v2456, %v2487
      %v2507 = vadd.f32 %v2457, %v2489
      %v2508 = vadd.f32 %v2458, %v2491
      %v2509 = vadd.f32 %v2459, %v2493
      %s2510 = scalar_lea.vmem %s3, 128
      %v2511 = vld [vmem:[%s2510] sm:$0xff]
      %v2512 = vld [vmem:[%s2510 + $0x8] sm:$0xff]
      %v2513 = vld [vmem:[%s2510 + $0x10] sm:$0xff]
      %v2514 = vld [vmem:[%s2510 + $0x18] sm:$0xff]
      %v2515 = vld [vmem:[%s2510 + $0x20] sm:$0xff]
      %v2516 = vld [vmem:[%s2510 + $0x28] sm:$0xff]
      %v2517 = vld [vmem:[%s2510 + $0x30] sm:$0xff]
      %v2518 = vld [vmem:[%s2510 + $0x38] sm:$0xff]
      %v2519 = vld [vmem:[%s2510 + $0x40] sm:$0xff]
      %v2520 = vld [vmem:[%s2510 + $0x48] sm:$0xff]
      %v2521 = vld [vmem:[%s2510 + $0x50] sm:$0xff]
      %v2522 = vld [vmem:[%s2510 + $0x58] sm:$0xff]
      %v2523 = vld [vmem:[%s2510 + $0x60] sm:$0xff]
      %v2524 = vld [vmem:[%s2510 + $0x68] sm:$0xff]
      %v2525 = vld [vmem:[%s2510 + $0x70] sm:$0xff]
      %v2526 = vld [vmem:[%s2510 + $0x78] sm:$0xff]
      %2527 = vmatpush.msra.mxu0 %v2526
      %2528 = vmatpush.msra.mxu0 %v2525
      %2529 = vmatpush.msra.mxu0 %v2524
      %2530 = vmatpush.msra.mxu0 %v2523
      %2531 = vmatpush.msra.mxu0 %v2522
      %2532 = vmatpush.msra.mxu0 %v2521
      %2533 = vmatpush.msra.mxu0 %v2520
      %2534 = vmatpush.msra.mxu0 %v2519
      %2535 = vmatpush.msra.mxu0 %v2518
      %2536 = vmatpush.msra.mxu0 %v2517
      %2537 = vmatpush.msra.mxu0 %v2516
      %2538 = vmatpush.msra.mxu0 %v2515
      %2539 = vmatpush.msra.mxu0 %v2514
      %2540 = vmatpush.msra.mxu0 %v2513
      %2541 = vmatpush.msra.mxu0 %v2512
      %2542 = vmatpush.msra.mxu0 %v2511
      %2543 = vmatmul.f32.gmra.mxu0 %v2494
      %v2544 = vpop.f32.mrf.mxu0
      %v2545 = vadd.f32 0.0, %v2544
      %2546 = vmatmul.f32.gmra.mxu0 %v2495
      %v2547 = vpop.f32.mrf.mxu0
      %v2548 = vadd.f32 0.0, %v2547
      %2549 = vmatmul.f32.gmra.mxu0 %v2496
      %v2550 = vpop.f32.mrf.mxu0
      %v2551 = vadd.f32 0.0, %v2550
      %2552 = vmatmul.f32.gmra.mxu0 %v2497
      %v2553 = vpop.f32.mrf.mxu0
      %v2554 = vadd.f32 0.0, %v2553
      %2555 = vmatmul.f32.gmra.mxu0 %v2498
      %v2556 = vpop.f32.mrf.mxu0
      %v2557 = vadd.f32 0.0, %v2556
      %2558 = vmatmul.f32.gmra.mxu0 %v2499
      %v2559 = vpop.f32.mrf.mxu0
      %v2560 = vadd.f32 0.0, %v2559
      %2561 = vmatmul.f32.gmra.mxu0 %v2500
      %v2562 = vpop.f32.mrf.mxu0
      %v2563 = vadd.f32 0.0, %v2562
      %2564 = vmatmul.f32.gmra.mxu0 %v2501
      %v2565 = vpop.f32.mrf.mxu0
      %v2566 = vadd.f32 0.0, %v2565
      %2567 = vmatmul.f32.gmra.mxu0 %v2502
      %v2568 = vpop.f32.mrf.mxu0
      %v2569 = vadd.f32 0.0, %v2568
      %2570 = vmatmul.f32.gmra.mxu0 %v2503
      %v2571 = vpop.f32.mrf.mxu0
      %v2572 = vadd.f32 0.0, %v2571
      %2573 = vmatmul.f32.gmra.mxu0 %v2504
      %v2574 = vpop.f32.mrf.mxu0
      %v2575 = vadd.f32 0.0, %v2574
      %2576 = vmatmul.f32.gmra.mxu0 %v2505
      %v2577 = vpop.f32.mrf.mxu0
      %v2578 = vadd.f32 0.0, %v2577
      %2579 = vmatmul.f32.gmra.mxu0 %v2506
      %v2580 = vpop.f32.mrf.mxu0
      %v2581 = vadd.f32 0.0, %v2580
      %2582 = vmatmul.f32.gmra.mxu0 %v2507
      %v2583 = vpop.f32.mrf.mxu0
      %v2584 = vadd.f32 0.0, %v2583
      %2585 = vmatmul.f32.gmra.mxu0 %v2508
      %v2586 = vpop.f32.mrf.mxu0
      %v2587 = vadd.f32 0.0, %v2586
      %2588 = vmatmul.f32.gmra.mxu0 %v2509
      %v2589 = vpop.f32.mrf.mxu0
      %v2590 = vadd.f32 0.0, %v2589
      %2591 = vdwg.mxu0
      %2592 = vmatpush.msra.mxu0 %v2112
      %2593 = vmatpush.msra.mxu0 %v2111
      %2594 = vmatpush.msra.mxu0 %v2110
      %2595 = vmatpush.msra.mxu0 %v2109
      %2596 = vmatpush.msra.mxu0 %v2108
      %2597 = vmatpush.msra.mxu0 %v2107
      %2598 = vmatpush.msra.mxu0 %v2106
      %2599 = vmatpush.msra.mxu0 %v2105
      %2600 = vmatpush.msra.mxu0 %v2104
      %2601 = vmatpush.msra.mxu0 %v2103
      %2602 = vmatpush.msra.mxu0 %v2102
      %2603 = vmatpush.msra.mxu0 %v2101
      %2604 = vmatpush.msra.mxu0 %v2100
      %2605 = vmatpush.msra.mxu0 %v2099
      %2606 = vmatpush.msra.mxu0 %v2098
      %2607 = vmatpush.msra.mxu0 %v2097
      %2608 = vmatmul.f32.gmra.mxu0 %v2081
      %v2609 = vpop.f32.mrf.mxu0
      %v2610 = vadd.f32 %v2545, %v2609
      %2611 = vmatmul.f32.gmra.mxu0 %v2082
      %v2612 = vpop.f32.mrf.mxu0
      %v2613 = vadd.f32 %v2548, %v2612
      %2614 = vmatmul.f32.gmra.mxu0 %v2083
      %v2615 = vpop.f32.mrf.mxu0
      %v2616 = vadd.f32 %v2551, %v2615
      %2617 = vmatmul.f32.gmra.mxu0 %v2084
      %v2618 = vpop.f32.mrf.mxu0
      %v2619 = vadd.f32 %v2554, %v2618
      %2620 = vmatmul.f32.gmra.mxu0 %v2085
      %v2621 = vpop.f32.mrf.mxu0
      %v2622 = vadd.f32 %v2557, %v2621
      %2623 = vmatmul.f32.gmra.mxu0 %v2086
      %v2624 = vpop.f32.mrf.mxu0
      %v2625 = vadd.f32 %v2560, %v2624
      %2626 = vmatmul.f32.gmra.mxu0 %v2087
      %v2627 = vpop.f32.mrf.mxu0
      %v2628 = vadd.f32 %v2563, %v2627
      %2629 = vmatmul.f32.gmra.mxu0 %v2088
      %v2630 = vpop.f32.mrf.mxu0
      %v2631 = vadd.f32 %v2566, %v2630
      %2632 = vmatmul.f32.gmra.mxu0 %v2089
      %v2633 = vpop.f32.mrf.mxu0
      %v2634 = vadd.f32 %v2569, %v2633
      %2635 = vmatmul.f32.gmra.mxu0 %v2090
      %v2636 = vpop.f32.mrf.mxu0
      %v2637 = vadd.f32 %v2572, %v2636
      %2638 = vmatmul.f32.gmra.mxu0 %v2091
      %v2639 = vpop.f32.mrf.mxu0
      %v2640 = vadd.f32 %v2575, %v2639
      %2641 = vmatmul.f32.gmra.mxu0 %v2092
      %v2642 = vpop.f32.mrf.mxu0
      %v2643 = vadd.f32 %v2578, %v2642
      %2644 = vmatmul.f32.gmra.mxu0 %v2093
      %v2645 = vpop.f32.mrf.mxu0
      %v2646 = vadd.f32 %v2581, %v2645
      %2647 = vmatmul.f32.gmra.mxu0 %v2094
      %v2648 = vpop.f32.mrf.mxu0
      %v2649 = vadd.f32 %v2584, %v2648
      %2650 = vmatmul.f32.gmra.mxu0 %v2095
      %v2651 = vpop.f32.mrf.mxu0
      %v2652 = vadd.f32 %v2587, %v2651
      %2653 = vmatmul.f32.gmra.mxu0 %v2096
      %v2654 = vpop.f32.mrf.mxu0
      %v2655 = vadd.f32 %v2590, %v2654
      %2656 = vdwg.mxu0
      %v2657 = vld [vmem:[#allocation3 + $0x37] sm:$0xff]
      %v2658 = vld [vmem:[#allocation3 + $0x3f] sm:$0xff]
      %v2659 = vld [vmem:[#allocation3 + $0x47] sm:$0xff]
      %v2660 = vld [vmem:[#allocation3 + $0x4f] sm:$0xff]
      %v2661 = vld [vmem:[#allocation3 + $0x57] sm:$0xff]
      %v2662 = vld [vmem:[#allocation3 + $0x5f] sm:$0xff]
      %v2663 = vld [vmem:[#allocation3 + $0x67] sm:$0xff]
      %v2664 = vld [vmem:[#allocation3 + $0x6f] sm:$0xff]
      %v2665 = vld [vmem:[#allocation3 + $0x77] sm:$0xff]
      %v2666 = vld [vmem:[#allocation3 + $0x7f] sm:$0xff]
      %v2667 = vld [vmem:[#allocation3 + $0x87] sm:$0xff]
      %v2668 = vld [vmem:[#allocation3 + $0x8f] sm:$0xff]
      %v2669 = vld [vmem:[#allocation3 + $0x97] sm:$0xff]
      %v2670 = vld [vmem:[#allocation3 + $0x9f] sm:$0xff]
      %v2671 = vld [vmem:[#allocation3 + $0xa7] sm:$0xff]
      %v2672 = vld [vmem:[#allocation3 + $0xaf] sm:$0xff]
      %v2673 = vld [vmem:[#allocation3 + $0x38] sm:$0xff]
      %v2674 = vld [vmem:[#allocation3 + $0x40] sm:$0xff]
      %v2675 = vld [vmem:[#allocation3 + $0x48] sm:$0xff]
      %v2676 = vld [vmem:[#allocation3 + $0x50] sm:$0xff]
      %v2677 = vld [vmem:[#allocation3 + $0x58] sm:$0xff]
      %v2678 = vld [vmem:[#allocation3 + $0x60] sm:$0xff]
      %v2679 = vld [vmem:[#allocation3 + $0x68] sm:$0xff]
      %v2680 = vld [vmem:[#allocation3 + $0x70] sm:$0xff]
      %v2681 = vld [vmem:[#allocation3 + $0x78] sm:$0xff]
      %v2682 = vld [vmem:[#allocation3 + $0x80] sm:$0xff]
      %v2683 = vld [vmem:[#allocation3 + $0x88] sm:$0xff]
      %v2684 = vld [vmem:[#allocation3 + $0x90] sm:$0xff]
      %v2685 = vld [vmem:[#allocation3 + $0x98] sm:$0xff]
      %v2686 = vld [vmem:[#allocation3 + $0xa0] sm:$0xff]
      %v2687 = vld [vmem:[#allocation3 + $0xa8] sm:$0xff]
      %v2688 = vld [vmem:[#allocation3 + $0xb0] sm:$0xff]
      %2689 = vrot.lane.b32.xlu0 %v2673, 16
      %v2690 = vpop.permute.xlu0 %2689
      %2691 = vrot.lane.b32.xlu0 %v2674, 16
      %v2692 = vpop.permute.xlu0 %2691
      %2693 = vrot.lane.b32.xlu0 %v2675, 16
      %v2694 = vpop.permute.xlu0 %2693
      %2695 = vrot.lane.b32.xlu0 %v2676, 16
      %v2696 = vpop.permute.xlu0 %2695
      %2697 = vrot.lane.b32.xlu0 %v2677, 16
      %v2698 = vpop.permute.xlu0 %2697
      %2699 = vrot.lane.b32.xlu0 %v2678, 16
      %v2700 = vpop.permute.xlu0 %2699
      %2701 = vrot.lane.b32.xlu0 %v2679, 16
      %v2702 = vpop.permute.xlu0 %2701
      %2703 = vrot.lane.b32.xlu0 %v2680, 16
      %v2704 = vpop.permute.xlu0 %2703
      %2705 = vrot.lane.b32.xlu0 %v2681, 16
      %v2706 = vpop.permute.xlu0 %2705
      %2707 = vrot.lane.b32.xlu0 %v2682, 16
      %v2708 = vpop.permute.xlu0 %2707
      %2709 = vrot.lane.b32.xlu0 %v2683, 16
      %v2710 = vpop.permute.xlu0 %2709
      %2711 = vrot.lane.b32.xlu0 %v2684, 16
      %v2712 = vpop.permute.xlu0 %2711
      %2713 = vrot.lane.b32.xlu0 %v2685, 16
      %v2714 = vpop.permute.xlu0 %2713
      %2715 = vrot.lane.b32.xlu0 %v2686, 16
      %v2716 = vpop.permute.xlu0 %2715
      %2717 = vrot.lane.b32.xlu0 %v2687, 16
      %v2718 = vpop.permute.xlu0 %2717
      %2719 = vrot.lane.b32.xlu0 %v2688, 16
      %v2720 = vpop.permute.xlu0 %2719
      %v2721 = vadd.f32 %v2657, %v2690
      %v2722 = vadd.f32 %v2658, %v2692
      %v2723 = vadd.f32 %v2659, %v2694
      %v2724 = vadd.f32 %v2660, %v2696
      %v2725 = vadd.f32 %v2661, %v2698
      %v2726 = vadd.f32 %v2662, %v2700
      %v2727 = vadd.f32 %v2663, %v2702
      %v2728 = vadd.f32 %v2664, %v2704
      %v2729 = vadd.f32 %v2665, %v2706
      %v2730 = vadd.f32 %v2666, %v2708
      %v2731 = vadd.f32 %v2667, %v2710
      %v2732 = vadd.f32 %v2668, %v2712
      %v2733 = vadd.f32 %v2669, %v2714
      %v2734 = vadd.f32 %v2670, %v2716
      %v2735 = vadd.f32 %v2671, %v2718
      %v2736 = vadd.f32 %v2672, %v2720
      %v2737 = vld [vmem:[#allocation3 + $0x39] sm:$0xff]
      %v2738 = vld [vmem:[#allocation3 + $0x41] sm:$0xff]
      %v2739 = vld [vmem:[#allocation3 + $0x49] sm:$0xff]
      %v2740 = vld [vmem:[#allocation3 + $0x51] sm:$0xff]
      %v2741 = vld [vmem:[#allocation3 + $0x59] sm:$0xff]
      %v2742 = vld [vmem:[#allocation3 + $0x61] sm:$0xff]
      %v2743 = vld [vmem:[#allocation3 + $0x69] sm:$0xff]
      %v2744 = vld [vmem:[#allocation3 + $0x71] sm:$0xff]
      %v2745 = vld [vmem:[#allocation3 + $0x79] sm:$0xff]
      %v2746 = vld [vmem:[#allocation3 + $0x81] sm:$0xff]
      %v2747 = vld [vmem:[#allocation3 + $0x89] sm:$0xff]
      %v2748 = vld [vmem:[#allocation3 + $0x91] sm:$0xff]
      %v2749 = vld [vmem:[#allocation3 + $0x99] sm:$0xff]
      %v2750 = vld [vmem:[#allocation3 + $0xa1] sm:$0xff]
      %v2751 = vld [vmem:[#allocation3 + $0xa9] sm:$0xff]
      %v2752 = vld [vmem:[#allocation3 + $0xb1] sm:$0xff]
      %2753 = vrot.lane.b32.xlu0 %v2737, 32
      %v2754 = vpop.permute.xlu0 %2753
      %2755 = vrot.lane.b32.xlu0 %v2738, 32
      %v2756 = vpop.permute.xlu0 %2755
      %2757 = vrot.lane.b32.xlu0 %v2739, 32
      %v2758 = vpop.permute.xlu0 %2757
      %2759 = vrot.lane.b32.xlu0 %v2740, 32
      %v2760 = vpop.permute.xlu0 %2759
      %2761 = vrot.lane.b32.xlu0 %v2741, 32
      %v2762 = vpop.permute.xlu0 %2761
      %2763 = vrot.lane.b32.xlu0 %v2742, 32
      %v2764 = vpop.permute.xlu0 %2763
      %2765 = vrot.lane.b32.xlu0 %v2743, 32
      %v2766 = vpop.permute.xlu0 %2765
      %2767 = vrot.lane.b32.xlu0 %v2744, 32
      %v2768 = vpop.permute.xlu0 %2767
      %2769 = vrot.lane.b32.xlu0 %v2745, 32
      %v2770 = vpop.permute.xlu0 %2769
      %2771 = vrot.lane.b32.xlu0 %v2746, 32
      %v2772 = vpop.permute.xlu0 %2771
      %2773 = vrot.lane.b32.xlu0 %v2747, 32
      %v2774 = vpop.permute.xlu0 %2773
      %2775 = vrot.lane.b32.xlu0 %v2748, 32
      %v2776 = vpop.permute.xlu0 %2775
      %2777 = vrot.lane.b32.xlu0 %v2749, 32
      %v2778 = vpop.permute.xlu0 %2777
      %2779 = vrot.lane.b32.xlu0 %v2750, 32
      %v2780 = vpop.permute.xlu0 %2779
      %2781 = vrot.lane.b32.xlu0 %v2751, 32
      %v2782 = vpop.permute.xlu0 %2781
      %2783 = vrot.lane.b32.xlu0 %v2752, 32
      %v2784 = vpop.permute.xlu0 %2783
      %v2785 = vadd.f32 %v2721, %v2754
      %v2786 = vadd.f32 %v2722, %v2756
      %v2787 = vadd.f32 %v2723, %v2758
      %v2788 = vadd.f32 %v2724, %v2760
      %v2789 = vadd.f32 %v2725, %v2762
      %v2790 = vadd.f32 %v2726, %v2764
      %v2791 = vadd.f32 %v2727, %v2766
      %v2792 = vadd.f32 %v2728, %v2768
      %v2793 = vadd.f32 %v2729, %v2770
      %v2794 = vadd.f32 %v2730, %v2772
      %v2795 = vadd.f32 %v2731, %v2774
      %v2796 = vadd.f32 %v2732, %v2776
      %v2797 = vadd.f32 %v2733, %v2778
      %v2798 = vadd.f32 %v2734, %v2780
      %v2799 = vadd.f32 %v2735, %v2782
      %v2800 = vadd.f32 %v2736, %v2784
      %v2801 = vld [vmem:[#allocation3 + $0x3a] sm:$0xff]
      %v2802 = vld [vmem:[#allocation3 + $0x42] sm:$0xff]
      %v2803 = vld [vmem:[#allocation3 + $0x4a] sm:$0xff]
      %v2804 = vld [vmem:[#allocation3 + $0x52] sm:$0xff]
      %v2805 = vld [vmem:[#allocation3 + $0x5a] sm:$0xff]
      %v2806 = vld [vmem:[#allocation3 + $0x62] sm:$0xff]
      %v2807 = vld [vmem:[#allocation3 + $0x6a] sm:$0xff]
      %v2808 = vld [vmem:[#allocation3 + $0x72] sm:$0xff]
      %v2809 = vld [vmem:[#allocation3 + $0x7a] sm:$0xff]
      %v2810 = vld [vmem:[#allocation3 + $0x82] sm:$0xff]
      %v2811 = vld [vmem:[#allocation3 + $0x8a] sm:$0xff]
      %v2812 = vld [vmem:[#allocation3 + $0x92] sm:$0xff]
      %v2813 = vld [vmem:[#allocation3 + $0x9a] sm:$0xff]
      %v2814 = vld [vmem:[#allocation3 + $0xa2] sm:$0xff]
      %v2815 = vld [vmem:[#allocation3 + $0xaa] sm:$0xff]
      %v2816 = vld [vmem:[#allocation3 + $0xb2] sm:$0xff]
      %2817 = vrot.lane.b32.xlu0 %v2801, 48
      %v2818 = vpop.permute.xlu0 %2817
      %2819 = vrot.lane.b32.xlu0 %v2802, 48
      %v2820 = vpop.permute.xlu0 %2819
      %2821 = vrot.lane.b32.xlu0 %v2803, 48
      %v2822 = vpop.permute.xlu0 %2821
      %2823 = vrot.lane.b32.xlu0 %v2804, 48
      %v2824 = vpop.permute.xlu0 %2823
      %2825 = vrot.lane.b32.xlu0 %v2805, 48
      %v2826 = vpop.permute.xlu0 %2825
      %2827 = vrot.lane.b32.xlu0 %v2806, 48
      %v2828 = vpop.permute.xlu0 %2827
      %2829 = vrot.lane.b32.xlu0 %v2807, 48
      %v2830 = vpop.permute.xlu0 %2829
      %2831 = vrot.lane.b32.xlu0 %v2808, 48
      %v2832 = vpop.permute.xlu0 %2831
      %2833 = vrot.lane.b32.xlu0 %v2809, 48
      %v2834 = vpop.permute.xlu0 %2833
      %2835 = vrot.lane.b32.xlu0 %v2810, 48
      %v2836 = vpop.permute.xlu0 %2835
      %2837 = vrot.lane.b32.xlu0 %v2811, 48
      %v2838 = vpop.permute.xlu0 %2837
      %2839 = vrot.lane.b32.xlu0 %v2812, 48
      %v2840 = vpop.permute.xlu0 %2839
      %2841 = vrot.lane.b32.xlu0 %v2813, 48
      %v2842 = vpop.permute.xlu0 %2841
      %2843 = vrot.lane.b32.xlu0 %v2814, 48
      %v2844 = vpop.permute.xlu0 %2843
      %2845 = vrot.lane.b32.xlu0 %v2815, 48
      %v2846 = vpop.permute.xlu0 %2845
      %2847 = vrot.lane.b32.xlu0 %v2816, 48
      %v2848 = vpop.permute.xlu0 %2847
      %v2849 = vadd.f32 %v2785, %v2818
      %v2850 = vadd.f32 %v2786, %v2820
      %v2851 = vadd.f32 %v2787, %v2822
      %v2852 = vadd.f32 %v2788, %v2824
      %v2853 = vadd.f32 %v2789, %v2826
      %v2854 = vadd.f32 %v2790, %v2828
      %v2855 = vadd.f32 %v2791, %v2830
      %v2856 = vadd.f32 %v2792, %v2832
      %v2857 = vadd.f32 %v2793, %v2834
      %v2858 = vadd.f32 %v2794, %v2836
      %v2859 = vadd.f32 %v2795, %v2838
      %v2860 = vadd.f32 %v2796, %v2840
      %v2861 = vadd.f32 %v2797, %v2842
      %v2862 = vadd.f32 %v2798, %v2844
      %v2863 = vadd.f32 %v2799, %v2846
      %v2864 = vadd.f32 %v2800, %v2848
      %v2865 = vld [vmem:[#allocation3 + $0xb8] sm:$0xff]
      %v2866 = vld [vmem:[#allocation3 + $0xc0] sm:$0xff]
      %2867 = vrot.lane.b32.xlu0 %v2675, 64
      %v2868 = vpop.permute.xlu0 %2867
      %2869 = vrot.lane.b32.xlu0 %v2676, 64
      %v2870 = vpop.permute.xlu0 %2869
      %2871 = vrot.lane.b32.xlu0 %v2677, 64
      %v2872 = vpop.permute.xlu0 %2871
      %2873 = vrot.lane.b32.xlu0 %v2678, 64
      %v2874 = vpop.permute.xlu0 %2873
      %2875 = vrot.lane.b32.xlu0 %v2679, 64
      %v2876 = vpop.permute.xlu0 %2875
      %2877 = vrot.lane.b32.xlu0 %v2680, 64
      %v2878 = vpop.permute.xlu0 %2877
      %2879 = vrot.lane.b32.xlu0 %v2681, 64
      %v2880 = vpop.permute.xlu0 %2879
      %2881 = vrot.lane.b32.xlu0 %v2682, 64
      %v2882 = vpop.permute.xlu0 %2881
      %2883 = vrot.lane.b32.xlu0 %v2683, 64
      %v2884 = vpop.permute.xlu0 %2883
      %2885 = vrot.lane.b32.xlu0 %v2684, 64
      %v2886 = vpop.permute.xlu0 %2885
      %2887 = vrot.lane.b32.xlu0 %v2685, 64
      %v2888 = vpop.permute.xlu0 %2887
      %2889 = vrot.lane.b32.xlu0 %v2686, 64
      %v2890 = vpop.permute.xlu0 %2889
      %2891 = vrot.lane.b32.xlu0 %v2687, 64
      %v2892 = vpop.permute.xlu0 %2891
      %2893 = vrot.lane.b32.xlu0 %v2688, 64
      %v2894 = vpop.permute.xlu0 %2893
      %2895 = vrot.lane.b32.xlu0 %v2865, 64
      %v2896 = vpop.permute.xlu0 %2895
      %2897 = vrot.lane.b32.xlu0 %v2866, 64
      %v2898 = vpop.permute.xlu0 %2897
      %v2899 = vadd.f32 %v2849, %v2868
      %v2900 = vadd.f32 %v2850, %v2870
      %v2901 = vadd.f32 %v2851, %v2872
      %v2902 = vadd.f32 %v2852, %v2874
      %v2903 = vadd.f32 %v2853, %v2876
      %v2904 = vadd.f32 %v2854, %v2878
      %v2905 = vadd.f32 %v2855, %v2880
      %v2906 = vadd.f32 %v2856, %v2882
      %v2907 = vadd.f32 %v2857, %v2884
      %v2908 = vadd.f32 %v2858, %v2886
      %v2909 = vadd.f32 %v2859, %v2888
      %v2910 = vadd.f32 %v2860, %v2890
      %v2911 = vadd.f32 %v2861, %v2892
      %v2912 = vadd.f32 %v2862, %v2894
      %v2913 = vadd.f32 %v2863, %v2896
      %v2914 = vadd.f32 %v2864, %v2898
      %v2915 = vld [vmem:[#allocation3 + $0xb9] sm:$0xff]
      %v2916 = vld [vmem:[#allocation3 + $0xc1] sm:$0xff]
      %2917 = vrot.lane.b32.xlu0 %v2739, 80
      %v2918 = vpop.permute.xlu0 %2917
      %2919 = vrot.lane.b32.xlu0 %v2740, 80
      %v2920 = vpop.permute.xlu0 %2919
      %2921 = vrot.lane.b32.xlu0 %v2741, 80
      %v2922 = vpop.permute.xlu0 %2921
      %2923 = vrot.lane.b32.xlu0 %v2742, 80
      %v2924 = vpop.permute.xlu0 %2923
      %2925 = vrot.lane.b32.xlu0 %v2743, 80
      %v2926 = vpop.permute.xlu0 %2925
      %2927 = vrot.lane.b32.xlu0 %v2744, 80
      %v2928 = vpop.permute.xlu0 %2927
      %2929 = vrot.lane.b32.xlu0 %v2745, 80
      %v2930 = vpop.permute.xlu0 %2929
      %2931 = vrot.lane.b32.xlu0 %v2746, 80
      %v2932 = vpop.permute.xlu0 %2931
      %2933 = vrot.lane.b32.xlu0 %v2747, 80
      %v2934 = vpop.permute.xlu0 %2933
      %2935 = vrot.lane.b32.xlu0 %v2748, 80
      %v2936 = vpop.permute.xlu0 %2935
      %2937 = vrot.lane.b32.xlu0 %v2749, 80
      %v2938 = vpop.permute.xlu0 %2937
      %2939 = vrot.lane.b32.xlu0 %v2750, 80
      %v2940 = vpop.permute.xlu0 %2939
      %2941 = vrot.lane.b32.xlu0 %v2751, 80
      %v2942 = vpop.permute.xlu0 %2941
      %2943 = vrot.lane.b32.xlu0 %v2752, 80
      %v2944 = vpop.permute.xlu0 %2943
      %2945 = vrot.lane.b32.xlu0 %v2915, 80
      %v2946 = vpop.permute.xlu0 %2945
      %2947 = vrot.lane.b32.xlu0 %v2916, 80
      %v2948 = vpop.permute.xlu0 %2947
      %v2949 = vadd.f32 %v2899, %v2918
      %v2950 = vadd.f32 %v2900, %v2920
      %v2951 = vadd.f32 %v2901, %v2922
      %v2952 = vadd.f32 %v2902, %v2924
      %v2953 = vadd.f32 %v2903, %v2926
      %v2954 = vadd.f32 %v2904, %v2928
      %v2955 = vadd.f32 %v2905, %v2930
      %v2956 = vadd.f32 %v2906, %v2932
      %v2957 = vadd.f32 %v2907, %v2934
      %v2958 = vadd.f32 %v2908, %v2936
      %v2959 = vadd.f32 %v2909, %v2938
      %v2960 = vadd.f32 %v2910, %v2940
      %v2961 = vadd.f32 %v2911, %v2942
      %v2962 = vadd.f32 %v2912, %v2944
      %v2963 = vadd.f32 %v2913, %v2946
      %v2964 = vadd.f32 %v2914, %v2948
      %v2965 = vld [vmem:[#allocation3 + $0xba] sm:$0xff]
      %v2966 = vld [vmem:[#allocation3 + $0xc2] sm:$0xff]
      %2967 = vrot.lane.b32.xlu0 %v2803, 96
      %v2968 = vpop.permute.xlu0 %2967
      %2969 = vrot.lane.b32.xlu0 %v2804, 96
      %v2970 = vpop.permute.xlu0 %2969
      %2971 = vrot.lane.b32.xlu0 %v2805, 96
      %v2972 = vpop.permute.xlu0 %2971
      %2973 = vrot.lane.b32.xlu0 %v2806, 96
      %v2974 = vpop.permute.xlu0 %2973
      %2975 = vrot.lane.b32.xlu0 %v2807, 96
      %v2976 = vpop.permute.xlu0 %2975
      %2977 = vrot.lane.b32.xlu0 %v2808, 96
      %v2978 = vpop.permute.xlu0 %2977
      %2979 = vrot.lane.b32.xlu0 %v2809, 96
      %v2980 = vpop.permute.xlu0 %2979
      %2981 = vrot.lane.b32.xlu0 %v2810, 96
      %v2982 = vpop.permute.xlu0 %2981
      %2983 = vrot.lane.b32.xlu0 %v2811, 96
      %v2984 = vpop.permute.xlu0 %2983
      %2985 = vrot.lane.b32.xlu0 %v2812, 96
      %v2986 = vpop.permute.xlu0 %2985
      %2987 = vrot.lane.b32.xlu0 %v2813, 96
      %v2988 = vpop.permute.xlu0 %2987
      %2989 = vrot.lane.b32.xlu0 %v2814, 96
      %v2990 = vpop.permute.xlu0 %2989
      %2991 = vrot.lane.b32.xlu0 %v2815, 96
      %v2992 = vpop.permute.xlu0 %2991
      %2993 = vrot.lane.b32.xlu0 %v2816, 96
      %v2994 = vpop.permute.xlu0 %2993
      %2995 = vrot.lane.b32.xlu0 %v2965, 96
      %v2996 = vpop.permute.xlu0 %2995
      %2997 = vrot.lane.b32.xlu0 %v2966, 96
      %v2998 = vpop.permute.xlu0 %2997
      %v2999 = vadd.f32 %v2949, %v2968
      %v3000 = vadd.f32 %v2950, %v2970
      %v3001 = vadd.f32 %v2951, %v2972
      %v3002 = vadd.f32 %v2952, %v2974
      %v3003 = vadd.f32 %v2953, %v2976
      %v3004 = vadd.f32 %v2954, %v2978
      %v3005 = vadd.f32 %v2955, %v2980
      %v3006 = vadd.f32 %v2956, %v2982
      %v3007 = vadd.f32 %v2957, %v2984
      %v3008 = vadd.f32 %v2958, %v2986
      %v3009 = vadd.f32 %v2959, %v2988
      %v3010 = vadd.f32 %v2960, %v2990
      %v3011 = vadd.f32 %v2961, %v2992
      %v3012 = vadd.f32 %v2962, %v2994
      %v3013 = vadd.f32 %v2963, %v2996
      %v3014 = vadd.f32 %v2964, %v2998
      %v3015 = vld [vmem:[#allocation3 + $0x4b] sm:$0xff]
      %v3016 = vld [vmem:[#allocation3 + $0x53] sm:$0xff]
      %v3017 = vld [vmem:[#allocation3 + $0x5b] sm:$0xff]
      %v3018 = vld [vmem:[#allocation3 + $0x63] sm:$0xff]
      %v3019 = vld [vmem:[#allocation3 + $0x6b] sm:$0xff]
      %v3020 = vld [vmem:[#allocation3 + $0x73] sm:$0xff]
      %v3021 = vld [vmem:[#allocation3 + $0x7b] sm:$0xff]
      %v3022 = vld [vmem:[#allocation3 + $0x83] sm:$0xff]
      %v3023 = vld [vmem:[#allocation3 + $0x8b] sm:$0xff]
      %v3024 = vld [vmem:[#allocation3 + $0x93] sm:$0xff]
      %v3025 = vld [vmem:[#allocation3 + $0x9b] sm:$0xff]
      %v3026 = vld [vmem:[#allocation3 + $0xa3] sm:$0xff]
      %v3027 = vld [vmem:[#allocation3 + $0xab] sm:$0xff]
      %v3028 = vld [vmem:[#allocation3 + $0xb3] sm:$0xff]
      %v3029 = vld [vmem:[#allocation3 + $0xbb] sm:$0xff]
      %v3030 = vld [vmem:[#allocation3 + $0xc3] sm:$0xff]
      %3031 = vrot.lane.b32.xlu0 %v3015, 112
      %v3032 = vpop.permute.xlu0 %3031
      %3033 = vrot.lane.b32.xlu0 %v3016, 112
      %v3034 = vpop.permute.xlu0 %3033
      %3035 = vrot.lane.b32.xlu0 %v3017, 112
      %v3036 = vpop.permute.xlu0 %3035
      %3037 = vrot.lane.b32.xlu0 %v3018, 112
      %v3038 = vpop.permute.xlu0 %3037
      %3039 = vrot.lane.b32.xlu0 %v3019, 112
      %v3040 = vpop.permute.xlu0 %3039
      %3041 = vrot.lane.b32.xlu0 %v3020, 112
      %v3042 = vpop.permute.xlu0 %3041
      %3043 = vrot.lane.b32.xlu0 %v3021, 112
      %v3044 = vpop.permute.xlu0 %3043
      %3045 = vrot.lane.b32.xlu0 %v3022, 112
      %v3046 = vpop.permute.xlu0 %3045
      %3047 = vrot.lane.b32.xlu0 %v3023, 112
      %v3048 = vpop.permute.xlu0 %3047
      %3049 = vrot.lane.b32.xlu0 %v3024, 112
      %v3050 = vpop.permute.xlu0 %3049
      %3051 = vrot.lane.b32.xlu0 %v3025, 112
      %v3052 = vpop.permute.xlu0 %3051
      %3053 = vrot.lane.b32.xlu0 %v3026, 112
      %v3054 = vpop.permute.xlu0 %3053
      %3055 = vrot.lane.b32.xlu0 %v3027, 112
      %v3056 = vpop.permute.xlu0 %3055
      %3057 = vrot.lane.b32.xlu0 %v3028, 112
      %v3058 = vpop.permute.xlu0 %3057
      %3059 = vrot.lane.b32.xlu0 %v3029, 112
      %v3060 = vpop.permute.xlu0 %3059
      %3061 = vrot.lane.b32.xlu0 %v3030, 112
      %v3062 = vpop.permute.xlu0 %3061
      %v3063 = vadd.f32 %v2999, %v3032
      %v3064 = vadd.f32 %v3000, %v3034
      %v3065 = vadd.f32 %v3001, %v3036
      %v3066 = vadd.f32 %v3002, %v3038
      %v3067 = vadd.f32 %v3003, %v3040
      %v3068 = vadd.f32 %v3004, %v3042
      %v3069 = vadd.f32 %v3005, %v3044
      %v3070 = vadd.f32 %v3006, %v3046
      %v3071 = vadd.f32 %v3007, %v3048
      %v3072 = vadd.f32 %v3008, %v3050
      %v3073 = vadd.f32 %v3009, %v3052
      %v3074 = vadd.f32 %v3010, %v3054
      %v3075 = vadd.f32 %v3011, %v3056
      %v3076 = vadd.f32 %v3012, %v3058
      %v3077 = vadd.f32 %v3013, %v3060
      %v3078 = vadd.f32 %v3014, %v3062
      %s3079 = scalar_lea.vmem %s3, 256
      %v3080 = vld [vmem:[%s3079] sm:$0xff]
      %v3081 = vld [vmem:[%s3079 + $0x8] sm:$0xff]
      %v3082 = vld [vmem:[%s3079 + $0x10] sm:$0xff]
      %v3083 = vld [vmem:[%s3079 + $0x18] sm:$0xff]
      %v3084 = vld [vmem:[%s3079 + $0x20] sm:$0xff]
      %v3085 = vld [vmem:[%s3079 + $0x28] sm:$0xff]
      %v3086 = vld [vmem:[%s3079 + $0x30] sm:$0xff]
      %v3087 = vld [vmem:[%s3079 + $0x38] sm:$0xff]
      %v3088 = vld [vmem:[%s3079 + $0x40] sm:$0xff]
      %v3089 = vld [vmem:[%s3079 + $0x48] sm:$0xff]
      %v3090 = vld [vmem:[%s3079 + $0x50] sm:$0xff]
      %v3091 = vld [vmem:[%s3079 + $0x58] sm:$0xff]
      %v3092 = vld [vmem:[%s3079 + $0x60] sm:$0xff]
      %v3093 = vld [vmem:[%s3079 + $0x68] sm:$0xff]
      %v3094 = vld [vmem:[%s3079 + $0x70] sm:$0xff]
      %v3095 = vld [vmem:[%s3079 + $0x78] sm:$0xff]
      %3096 = vmatpush.msra.mxu0 %v3095
      %3097 = vmatpush.msra.mxu0 %v3094
      %3098 = vmatpush.msra.mxu0 %v3093
      %3099 = vmatpush.msra.mxu0 %v3092
      %3100 = vmatpush.msra.mxu0 %v3091
      %3101 = vmatpush.msra.mxu0 %v3090
      %3102 = vmatpush.msra.mxu0 %v3089
      %3103 = vmatpush.msra.mxu0 %v3088
      %3104 = vmatpush.msra.mxu0 %v3087
      %3105 = vmatpush.msra.mxu0 %v3086
      %3106 = vmatpush.msra.mxu0 %v3085
      %3107 = vmatpush.msra.mxu0 %v3084
      %3108 = vmatpush.msra.mxu0 %v3083
      %3109 = vmatpush.msra.mxu0 %v3082
      %3110 = vmatpush.msra.mxu0 %v3081
      %3111 = vmatpush.msra.mxu0 %v3080
      %3112 = vmatmul.f32.gmra.mxu0 %v3063
      %v3113 = vpop.f32.mrf.mxu0
      %v3114 = vadd.f32 0.0, %v3113
      %3115 = vmatmul.f32.gmra.mxu0 %v3064
      %v3116 = vpop.f32.mrf.mxu0
      %v3117 = vadd.f32 0.0, %v3116
      %3118 = vmatmul.f32.gmra.mxu0 %v3065
      %v3119 = vpop.f32.mrf.mxu0
      %v3120 = vadd.f32 0.0, %v3119
      %3121 = vmatmul.f32.gmra.mxu0 %v3066
      %v3122 = vpop.f32.mrf.mxu0
      %v3123 = vadd.f32 0.0, %v3122
      %3124 = vmatmul.f32.gmra.mxu0 %v3067
      %v3125 = vpop.f32.mrf.mxu0
      %v3126 = vadd.f32 0.0, %v3125
      %3127 = vmatmul.f32.gmra.mxu0 %v3068
      %v3128 = vpop.f32.mrf.mxu0
      %v3129 = vadd.f32 0.0, %v3128
      %3130 = vmatmul.f32.gmra.mxu0 %v3069
      %v3131 = vpop.f32.mrf.mxu0
      %v3132 = vadd.f32 0.0, %v3131
      %3133 = vmatmul.f32.gmra.mxu0 %v3070
      %v3134 = vpop.f32.mrf.mxu0
      %v3135 = vadd.f32 0.0, %v3134
      %3136 = vmatmul.f32.gmra.mxu0 %v3071
      %v3137 = vpop.f32.mrf.mxu0
      %v3138 = vadd.f32 0.0, %v3137
      %3139 = vmatmul.f32.gmra.mxu0 %v3072
      %v3140 = vpop.f32.mrf.mxu0
      %v3141 = vadd.f32 0.0, %v3140
      %3142 = vmatmul.f32.gmra.mxu0 %v3073
      %v3143 = vpop.f32.mrf.mxu0
      %v3144 = vadd.f32 0.0, %v3143
      %3145 = vmatmul.f32.gmra.mxu0 %v3074
      %v3146 = vpop.f32.mrf.mxu0
      %v3147 = vadd.f32 0.0, %v3146
      %3148 = vmatmul.f32.gmra.mxu0 %v3075
      %v3149 = vpop.f32.mrf.mxu0
      %v3150 = vadd.f32 0.0, %v3149
      %3151 = vmatmul.f32.gmra.mxu0 %v3076
      %v3152 = vpop.f32.mrf.mxu0
      %v3153 = vadd.f32 0.0, %v3152
      %3154 = vmatmul.f32.gmra.mxu0 %v3077
      %v3155 = vpop.f32.mrf.mxu0
      %v3156 = vadd.f32 0.0, %v3155
      %3157 = vmatmul.f32.gmra.mxu0 %v3078
      %v3158 = vpop.f32.mrf.mxu0
      %v3159 = vadd.f32 0.0, %v3158
      %3160 = vdwg.mxu0
      %v3161 = vadd.f32 %v2610, %v3114
      %v3162 = vadd.f32 %v2613, %v3117
      %v3163 = vadd.f32 %v2616, %v3120
      %v3164 = vadd.f32 %v2619, %v3123
      %v3165 = vadd.f32 %v2622, %v3126
      %v3166 = vadd.f32 %v2625, %v3129
      %v3167 = vadd.f32 %v2628, %v3132
      %v3168 = vadd.f32 %v2631, %v3135
      %v3169 = vadd.f32 %v2634, %v3138
      %v3170 = vadd.f32 %v2637, %v3141
      %v3171 = vadd.f32 %v2640, %v3144
      %v3172 = vadd.f32 %v2643, %v3147
      %v3173 = vadd.f32 %v2646, %v3150
      %v3174 = vadd.f32 %v2649, %v3153
      %v3175 = vadd.f32 %v2652, %v3156
      %v3176 = vadd.f32 %v2655, %v3159
      %v3177 = vld [vmem:[#allocation3 + $0x4c] sm:$0xff]
      %v3178 = vld [vmem:[#allocation3 + $0x54] sm:$0xff]
      %v3179 = vld [vmem:[#allocation3 + $0x5c] sm:$0xff]
      %v3180 = vld [vmem:[#allocation3 + $0x64] sm:$0xff]
      %v3181 = vld [vmem:[#allocation3 + $0x6c] sm:$0xff]
      %v3182 = vld [vmem:[#allocation3 + $0x74] sm:$0xff]
      %v3183 = vld [vmem:[#allocation3 + $0x7c] sm:$0xff]
      %v3184 = vld [vmem:[#allocation3 + $0x84] sm:$0xff]
      %v3185 = vld [vmem:[#allocation3 + $0x8c] sm:$0xff]
      %v3186 = vld [vmem:[#allocation3 + $0x94] sm:$0xff]
      %v3187 = vld [vmem:[#allocation3 + $0x9c] sm:$0xff]
      %v3188 = vld [vmem:[#allocation3 + $0xa4] sm:$0xff]
      %v3189 = vld [vmem:[#allocation3 + $0xac] sm:$0xff]
      %v3190 = vld [vmem:[#allocation3 + $0xb4] sm:$0xff]
      %v3191 = vld [vmem:[#allocation3 + $0xbc] sm:$0xff]
      %v3192 = vld [vmem:[#allocation3 + $0xc4] sm:$0xff]
      %s3193 = scalar_lea.vmem %s3, 384
      %v3194 = vld [vmem:[%s3193] sm:$0xff]
      %v3195 = vld [vmem:[%s3193 + $0x8] sm:$0xff]
      %v3196 = vld [vmem:[%s3193 + $0x10] sm:$0xff]
      %v3197 = vld [vmem:[%s3193 + $0x18] sm:$0xff]
      %v3198 = vld [vmem:[%s3193 + $0x20] sm:$0xff]
      %v3199 = vld [vmem:[%s3193 + $0x28] sm:$0xff]
      %v3200 = vld [vmem:[%s3193 + $0x30] sm:$0xff]
      %v3201 = vld [vmem:[%s3193 + $0x38] sm:$0xff]
      %v3202 = vld [vmem:[%s3193 + $0x40] sm:$0xff]
      %v3203 = vld [vmem:[%s3193 + $0x48] sm:$0xff]
      %v3204 = vld [vmem:[%s3193 + $0x50] sm:$0xff]
      %v3205 = vld [vmem:[%s3193 + $0x58] sm:$0xff]
      %v3206 = vld [vmem:[%s3193 + $0x60] sm:$0xff]
      %v3207 = vld [vmem:[%s3193 + $0x68] sm:$0xff]
      %v3208 = vld [vmem:[%s3193 + $0x70] sm:$0xff]
      %v3209 = vld [vmem:[%s3193 + $0x78] sm:$0xff]
      %3210 = vmatpush.msra.mxu0 %v3209
      %3211 = vmatpush.msra.mxu0 %v3208
      %3212 = vmatpush.msra.mxu0 %v3207
      %3213 = vmatpush.msra.mxu0 %v3206
      %3214 = vmatpush.msra.mxu0 %v3205
      %3215 = vmatpush.msra.mxu0 %v3204
      %3216 = vmatpush.msra.mxu0 %v3203
      %3217 = vmatpush.msra.mxu0 %v3202
      %3218 = vmatpush.msra.mxu0 %v3201
      %3219 = vmatpush.msra.mxu0 %v3200
      %3220 = vmatpush.msra.mxu0 %v3199
      %3221 = vmatpush.msra.mxu0 %v3198
      %3222 = vmatpush.msra.mxu0 %v3197
      %3223 = vmatpush.msra.mxu0 %v3196
      %3224 = vmatpush.msra.mxu0 %v3195
      %3225 = vmatpush.msra.mxu0 %v3194
      %3226 = vmatmul.f32.gmra.mxu0 %v3177
      %v3227 = vpop.f32.mrf.mxu0
      %v3228 = vadd.f32 0.0, %v3227
      %3229 = vmatmul.f32.gmra.mxu0 %v3178
      %v3230 = vpop.f32.mrf.mxu0
      %v3231 = vadd.f32 0.0, %v3230
      %3232 = vmatmul.f32.gmra.mxu0 %v3179
      %v3233 = vpop.f32.mrf.mxu0
      %v3234 = vadd.f32 0.0, %v3233
      %3235 = vmatmul.f32.gmra.mxu0 %v3180
      %v3236 = vpop.f32.mrf.mxu0
      %v3237 = vadd.f32 0.0, %v3236
      %3238 = vmatmul.f32.gmra.mxu0 %v3181
      %v3239 = vpop.f32.mrf.mxu0
      %v3240 = vadd.f32 0.0, %v3239
      %3241 = vmatmul.f32.gmra.mxu0 %v3182
      %v3242 = vpop.f32.mrf.mxu0
      %v3243 = vadd.f32 0.0, %v3242
      %3244 = vmatmul.f32.gmra.mxu0 %v3183
      %v3245 = vpop.f32.mrf.mxu0
      %v3246 = vadd.f32 0.0, %v3245
      %3247 = vmatmul.f32.gmra.mxu0 %v3184
      %v3248 = vpop.f32.mrf.mxu0
      %v3249 = vadd.f32 0.0, %v3248
      %3250 = vmatmul.f32.gmra.mxu0 %v3185
      %v3251 = vpop.f32.mrf.mxu0
      %v3252 = vadd.f32 0.0, %v3251
      %3253 = vmatmul.f32.gmra.mxu0 %v3186
      %v3254 = vpop.f32.mrf.mxu0
      %v3255 = vadd.f32 0.0, %v3254
      %3256 = vmatmul.f32.gmra.mxu0 %v3187
      %v3257 = vpop.f32.mrf.mxu0
      %v3258 = vadd.f32 0.0, %v3257
      %3259 = vmatmul.f32.gmra.mxu0 %v3188
      %v3260 = vpop.f32.mrf.mxu0
      %v3261 = vadd.f32 0.0, %v3260
      %3262 = vmatmul.f32.gmra.mxu0 %v3189
      %v3263 = vpop.f32.mrf.mxu0
      %v3264 = vadd.f32 0.0, %v3263
      %3265 = vmatmul.f32.gmra.mxu0 %v3190
      %v3266 = vpop.f32.mrf.mxu0
      %v3267 = vadd.f32 0.0, %v3266
      %3268 = vmatmul.f32.gmra.mxu0 %v3191
      %v3269 = vpop.f32.mrf.mxu0
      %v3270 = vadd.f32 0.0, %v3269
      %3271 = vmatmul.f32.gmra.mxu0 %v3192
      %v3272 = vpop.f32.mrf.mxu0
      %v3273 = vadd.f32 0.0, %v3272
      %3274 = vdwg.mxu0
      %v3275 = vadd.f32 %v3161, %v3228
      %v3276 = vadd.f32 %v3162, %v3231
      %v3277 = vadd.f32 %v3163, %v3234
      %v3278 = vadd.f32 %v3164, %v3237
      %v3279 = vadd.f32 %v3165, %v3240
      %v3280 = vadd.f32 %v3166, %v3243
      %v3281 = vadd.f32 %v3167, %v3246
      %v3282 = vadd.f32 %v3168, %v3249
      %v3283 = vadd.f32 %v3169, %v3252
      %v3284 = vadd.f32 %v3170, %v3255
      %v3285 = vadd.f32 %v3171, %v3258
      %v3286 = vadd.f32 %v3172, %v3261
      %v3287 = vadd.f32 %v3173, %v3264
      %v3288 = vadd.f32 %v3174, %v3267
      %v3289 = vadd.f32 %v3175, %v3270
      %v3290 = vadd.f32 %v3176, %v3273
      %v3292 = vperm.slane %v284, 0
      %v3294 = vadd.f32 %v3275, %v3292
      %v3295 = vadd.f32 %v3276, %v3292
      %v3296 = vadd.f32 %v3277, %v3292
      %v3297 = vadd.f32 %v3278, %v3292
      %v3298 = vadd.f32 %v3279, %v3292
      %v3299 = vadd.f32 %v3280, %v3292
      %v3300 = vadd.f32 %v3281, %v3292
      %v3301 = vadd.f32 %v3282, %v3292
      %v3302 = vadd.f32 %v3283, %v3292
      %v3303 = vadd.f32 %v3284, %v3292
      %v3304 = vadd.f32 %v3285, %v3292
      %v3305 = vadd.f32 %v3286, %v3292
      %v3306 = vadd.f32 %v3287, %v3292
      %v3307 = vadd.f32 %v3288, %v3292
      %v3308 = vadd.f32 %v3289, %v3292
      %v3309 = vadd.f32 %v3290, %v3292
      %v3310 = vmax.f32 %v3294, 0.0
      %v3311 = vmax.f32 %v3295, 0.0
      %v3312 = vmax.f32 %v3296, 0.0
      %v3313 = vmax.f32 %v3297, 0.0
      %v3314 = vmax.f32 %v3298, 0.0
      %v3315 = vmax.f32 %v3299, 0.0
      %v3316 = vmax.f32 %v3300, 0.0
      %v3317 = vmax.f32 %v3301, 0.0
      %v3318 = vmax.f32 %v3302, 0.0
      %v3319 = vmax.f32 %v3303, 0.0
      %v3320 = vmax.f32 %v3304, 0.0
      %v3321 = vmax.f32 %v3305, 0.0
      %v3322 = vmax.f32 %v3306, 0.0
      %v3323 = vmax.f32 %v3307, 0.0
      %v3324 = vmax.f32 %v3308, 0.0
      %v3325 = vmax.f32 %v3309, 0.0
      %3326 = vst [vmem:[#allocation4] sm:$0xff] %v3310
      %3327 = vst [vmem:[#allocation4 + $0x8] sm:$0xff] %v3311
      %3328 = vst [vmem:[#allocation4 + $0x10] sm:$0xff] %v3312
      %3329 = vst [vmem:[#allocation4 + $0x18] sm:$0xff] %v3313
      %3330 = vst [vmem:[#allocation4 + $0x20] sm:$0xff] %v3314
      %3331 = vst [vmem:[#allocation4 + $0x28] sm:$0xff] %v3315
      %3332 = vst [vmem:[#allocation4 + $0x30] sm:$0xff] %v3316
      %3333 = vst [vmem:[#allocation4 + $0x38] sm:$0xff] %v3317
      %3334 = vst [vmem:[#allocation4 + $0x40] sm:$0xff] %v3318
      %3335 = vst [vmem:[#allocation4 + $0x48] sm:$0xff] %v3319
      %3336 = vst [vmem:[#allocation4 + $0x50] sm:$0xff] %v3320
      %3337 = vst [vmem:[#allocation4 + $0x58] sm:$0xff] %v3321
      %3338 = vst [vmem:[#allocation4 + $0x60] sm:$0xff] %v3322
      %3339 = vst [vmem:[#allocation4 + $0x68] sm:$0xff] %v3323
      %3340 = vst [vmem:[#allocation4 + $0x70] sm:$0xff] %v3324
      %3341 = vst [vmem:[#allocation4 + $0x78] sm:$0xff] %v3325
      %v3342 = vld [vmem:[#allocation3 + $0x80] sm:$0xff]
      %v3343 = vld [vmem:[#allocation3 + $0x88] sm:$0xff]
      %v3344 = vld [vmem:[#allocation3 + $0x90] sm:$0xff]
      %v3345 = vld [vmem:[#allocation3 + $0x98] sm:$0xff]
      %v3346 = vld [vmem:[#allocation3 + $0xa0] sm:$0xff]
      %v3347 = vld [vmem:[#allocation3 + $0xa8] sm:$0xff]
      %v3348 = vld [vmem:[#allocation3 + $0xb0] sm:$0xff]
      %v3349 = vld [vmem:[#allocation3 + $0xb8] sm:$0xff]
      %v3350 = vld [vmem:[#allocation3 + $0xc0] sm:$0xff]
      %v3351 = vld [vmem:[#allocation3 + $0xc8] sm:$0xff]
      %v3352 = vld [vmem:[#allocation3 + $0xd0] sm:$0xff]
      %v3353 = vld [vmem:[#allocation3 + $0xd8] sm:$0xff]
      %v3354 = vld [vmem:[#allocation3 + $0xe0] sm:$0xff]
      %v3355 = vld [vmem:[#allocation3 + $0xe8] sm:$0xff]
      %v3356 = vld [vmem:[#allocation3 + $0xf0] sm:$0xff]
      %v3357 = vld [vmem:[#allocation3 + $0xf8] sm:$0xff]
      %v3358 = vld [vmem:[#allocation3 + $0x81] sm:$0xff]
      %v3359 = vld [vmem:[#allocation3 + $0x89] sm:$0xff]
      %v3360 = vld [vmem:[#allocation3 + $0x91] sm:$0xff]
      %v3361 = vld [vmem:[#allocation3 + $0x99] sm:$0xff]
      %v3362 = vld [vmem:[#allocation3 + $0xa1] sm:$0xff]
      %v3363 = vld [vmem:[#allocation3 + $0xa9] sm:$0xff]
      %v3364 = vld [vmem:[#allocation3 + $0xb1] sm:$0xff]
      %v3365 = vld [vmem:[#allocation3 + $0xb9] sm:$0xff]
      %v3366 = vld [vmem:[#allocation3 + $0xc1] sm:$0xff]
      %v3367 = vld [vmem:[#allocation3 + $0xc9] sm:$0xff]
      %v3368 = vld [vmem:[#allocation3 + $0xd1] sm:$0xff]
      %v3369 = vld [vmem:[#allocation3 + $0xd9] sm:$0xff]
      %v3370 = vld [vmem:[#allocation3 + $0xe1] sm:$0xff]
      %v3371 = vld [vmem:[#allocation3 + $0xe9] sm:$0xff]
      %v3372 = vld [vmem:[#allocation3 + $0xf1] sm:$0xff]
      %v3373 = vld [vmem:[#allocation3 + $0xf9] sm:$0xff]
      %3374 = vrot.lane.b32.xlu0 %v3358, 16
      %v3375 = vpop.permute.xlu0 %3374
      %3376 = vrot.lane.b32.xlu0 %v3359, 16
      %v3377 = vpop.permute.xlu0 %3376
      %3378 = vrot.lane.b32.xlu0 %v3360, 16
      %v3379 = vpop.permute.xlu0 %3378
      %3380 = vrot.lane.b32.xlu0 %v3361, 16
      %v3381 = vpop.permute.xlu0 %3380
      %3382 = vrot.lane.b32.xlu0 %v3362, 16
      %v3383 = vpop.permute.xlu0 %3382
      %3384 = vrot.lane.b32.xlu0 %v3363, 16
      %v3385 = vpop.permute.xlu0 %3384
      %3386 = vrot.lane.b32.xlu0 %v3364, 16
      %v3387 = vpop.permute.xlu0 %3386
      %3388 = vrot.lane.b32.xlu0 %v3365, 16
      %v3389 = vpop.permute.xlu0 %3388
      %3390 = vrot.lane.b32.xlu0 %v3366, 16
      %v3391 = vpop.permute.xlu0 %3390
      %3392 = vrot.lane.b32.xlu0 %v3367, 16
      %v3393 = vpop.permute.xlu0 %3392
      %3394 = vrot.lane.b32.xlu0 %v3368, 16
      %v3395 = vpop.permute.xlu0 %3394
      %3396 = vrot.lane.b32.xlu0 %v3369, 16
      %v3397 = vpop.permute.xlu0 %3396
      %3398 = vrot.lane.b32.xlu0 %v3370, 16
      %v3399 = vpop.permute.xlu0 %3398
      %3400 = vrot.lane.b32.xlu0 %v3371, 16
      %v3401 = vpop.permute.xlu0 %3400
      %3402 = vrot.lane.b32.xlu0 %v3372, 16
      %v3403 = vpop.permute.xlu0 %3402
      %3404 = vrot.lane.b32.xlu0 %v3373, 16
      %v3405 = vpop.permute.xlu0 %3404
      %v3406 = vadd.f32 %v3342, %v3375
      %v3407 = vadd.f32 %v3343, %v3377
      %v3408 = vadd.f32 %v3344, %v3379
      %v3409 = vadd.f32 %v3345, %v3381
      %v3410 = vadd.f32 %v3346, %v3383
      %v3411 = vadd.f32 %v3347, %v3385
      %v3412 = vadd.f32 %v3348, %v3387
      %v3413 = vadd.f32 %v3349, %v3389
      %v3414 = vadd.f32 %v3350, %v3391
      %v3415 = vadd.f32 %v3351, %v3393
      %v3416 = vadd.f32 %v3352, %v3395
      %v3417 = vadd.f32 %v3353, %v3397
      %v3418 = vadd.f32 %v3354, %v3399
      %v3419 = vadd.f32 %v3355, %v3401
      %v3420 = vadd.f32 %v3356, %v3403
      %v3421 = vadd.f32 %v3357, %v3405
      %v3422 = vld [vmem:[#allocation3 + $0x82] sm:$0xff]
      %v3423 = vld [vmem:[#allocation3 + $0x8a] sm:$0xff]
      %v3424 = vld [vmem:[#allocation3 + $0x92] sm:$0xff]
      %v3425 = vld [vmem:[#allocation3 + $0x9a] sm:$0xff]
      %v3426 = vld [vmem:[#allocation3 + $0xa2] sm:$0xff]
      %v3427 = vld [vmem:[#allocation3 + $0xaa] sm:$0xff]
      %v3428 = vld [vmem:[#allocation3 + $0xb2] sm:$0xff]
      %v3429 = vld [vmem:[#allocation3 + $0xba] sm:$0xff]
      %v3430 = vld [vmem:[#allocation3 + $0xc2] sm:$0xff]
      %v3431 = vld [vmem:[#allocation3 + $0xca] sm:$0xff]
      %v3432 = vld [vmem:[#allocation3 + $0xd2] sm:$0xff]
      %v3433 = vld [vmem:[#allocation3 + $0xda] sm:$0xff]
      %v3434 = vld [vmem:[#allocation3 + $0xe2] sm:$0xff]
      %v3435 = vld [vmem:[#allocation3 + $0xea] sm:$0xff]
      %v3436 = vld [vmem:[#allocation3 + $0xf2] sm:$0xff]
      %v3437 = vld [vmem:[#allocation3 + $0xfa] sm:$0xff]
      %3438 = vrot.lane.b32.xlu0 %v3422, 32
      %v3439 = vpop.permute.xlu0 %3438
      %3440 = vrot.lane.b32.xlu0 %v3423, 32
      %v3441 = vpop.permute.xlu0 %3440
      %3442 = vrot.lane.b32.xlu0 %v3424, 32
      %v3443 = vpop.permute.xlu0 %3442
      %3444 = vrot.lane.b32.xlu0 %v3425, 32
      %v3445 = vpop.permute.xlu0 %3444
      %3446 = vrot.lane.b32.xlu0 %v3426, 32
      %v3447 = vpop.permute.xlu0 %3446
      %3448 = vrot.lane.b32.xlu0 %v3427, 32
      %v3449 = vpop.permute.xlu0 %3448
      %3450 = vrot.lane.b32.xlu0 %v3428, 32
      %v3451 = vpop.permute.xlu0 %3450
      %3452 = vrot.lane.b32.xlu0 %v3429, 32
      %v3453 = vpop.permute.xlu0 %3452
      %3454 = vrot.lane.b32.xlu0 %v3430, 32
      %v3455 = vpop.permute.xlu0 %3454
      %3456 = vrot.lane.b32.xlu0 %v3431, 32
      %v3457 = vpop.permute.xlu0 %3456
      %3458 = vrot.lane.b32.xlu0 %v3432, 32
      %v3459 = vpop.permute.xlu0 %3458
      %3460 = vrot.lane.b32.xlu0 %v3433, 32
      %v3461 = vpop.permute.xlu0 %3460
      %3462 = vrot.lane.b32.xlu0 %v3434, 32
      %v3463 = vpop.permute.xlu0 %3462
      %3464 = vrot.lane.b32.xlu0 %v3435, 32
      %v3465 = vpop.permute.xlu0 %3464
      %3466 = vrot.lane.b32.xlu0 %v3436, 32
      %v3467 = vpop.permute.xlu0 %3466
      %3468 = vrot.lane.b32.xlu0 %v3437, 32
      %v3469 = vpop.permute.xlu0 %3468
      %v3470 = vadd.f32 %v3406, %v3439
      %v3471 = vadd.f32 %v3407, %v3441
      %v3472 = vadd.f32 %v3408, %v3443
      %v3473 = vadd.f32 %v3409, %v3445
      %v3474 = vadd.f32 %v3410, %v3447
      %v3475 = vadd.f32 %v3411, %v3449
      %v3476 = vadd.f32 %v3412, %v3451
      %v3477 = vadd.f32 %v3413, %v3453
      %v3478 = vadd.f32 %v3414, %v3455
      %v3479 = vadd.f32 %v3415, %v3457
      %v3480 = vadd.f32 %v3416, %v3459
      %v3481 = vadd.f32 %v3417, %v3461
      %v3482 = vadd.f32 %v3418, %v3463
      %v3483 = vadd.f32 %v3419, %v3465
      %v3484 = vadd.f32 %v3420, %v3467
      %v3485 = vadd.f32 %v3421, %v3469
      %v3486 = vld [vmem:[#allocation3 + $0x83] sm:$0xff]
      %v3487 = vld [vmem:[#allocation3 + $0x8b] sm:$0xff]
      %v3488 = vld [vmem:[#allocation3 + $0x93] sm:$0xff]
      %v3489 = vld [vmem:[#allocation3 + $0x9b] sm:$0xff]
      %v3490 = vld [vmem:[#allocation3 + $0xa3] sm:$0xff]
      %v3491 = vld [vmem:[#allocation3 + $0xab] sm:$0xff]
      %v3492 = vld [vmem:[#allocation3 + $0xb3] sm:$0xff]
      %v3493 = vld [vmem:[#allocation3 + $0xbb] sm:$0xff]
      %v3494 = vld [vmem:[#allocation3 + $0xc3] sm:$0xff]
      %v3495 = vld [vmem:[#allocation3 + $0xcb] sm:$0xff]
      %v3496 = vld [vmem:[#allocation3 + $0xd3] sm:$0xff]
      %v3497 = vld [vmem:[#allocation3 + $0xdb] sm:$0xff]
      %v3498 = vld [vmem:[#allocation3 + $0xe3] sm:$0xff]
      %v3499 = vld [vmem:[#allocation3 + $0xeb] sm:$0xff]
      %v3500 = vld [vmem:[#allocation3 + $0xf3] sm:$0xff]
      %v3501 = vld [vmem:[#allocation3 + $0xfb] sm:$0xff]
      %3502 = vrot.lane.b32.xlu0 %v3486, 48
      %v3503 = vpop.permute.xlu0 %3502
      %3504 = vrot.lane.b32.xlu0 %v3487, 48
      %v3505 = vpop.permute.xlu0 %3504
      %3506 = vrot.lane.b32.xlu0 %v3488, 48
      %v3507 = vpop.permute.xlu0 %3506
      %3508 = vrot.lane.b32.xlu0 %v3489, 48
      %v3509 = vpop.permute.xlu0 %3508
      %3510 = vrot.lane.b32.xlu0 %v3490, 48
      %v3511 = vpop.permute.xlu0 %3510
      %3512 = vrot.lane.b32.xlu0 %v3491, 48
      %v3513 = vpop.permute.xlu0 %3512
      %3514 = vrot.lane.b32.xlu0 %v3492, 48
      %v3515 = vpop.permute.xlu0 %3514
      %3516 = vrot.lane.b32.xlu0 %v3493, 48
      %v3517 = vpop.permute.xlu0 %3516
      %3518 = vrot.lane.b32.xlu0 %v3494, 48
      %v3519 = vpop.permute.xlu0 %3518
      %3520 = vrot.lane.b32.xlu0 %v3495, 48
      %v3521 = vpop.permute.xlu0 %3520
      %3522 = vrot.lane.b32.xlu0 %v3496, 48
      %v3523 = vpop.permute.xlu0 %3522
      %3524 = vrot.lane.b32.xlu0 %v3497, 48
      %v3525 = vpop.permute.xlu0 %3524
      %3526 = vrot.lane.b32.xlu0 %v3498, 48
      %v3527 = vpop.permute.xlu0 %3526
      %3528 = vrot.lane.b32.xlu0 %v3499, 48
      %v3529 = vpop.permute.xlu0 %3528
      %3530 = vrot.lane.b32.xlu0 %v3500, 48
      %v3531 = vpop.permute.xlu0 %3530
      %3532 = vrot.lane.b32.xlu0 %v3501, 48
      %v3533 = vpop.permute.xlu0 %3532
      %v3534 = vadd.f32 %v3470, %v3503
      %v3535 = vadd.f32 %v3471, %v3505
      %v3536 = vadd.f32 %v3472, %v3507
      %v3537 = vadd.f32 %v3473, %v3509
      %v3538 = vadd.f32 %v3474, %v3511
      %v3539 = vadd.f32 %v3475, %v3513
      %v3540 = vadd.f32 %v3476, %v3515
      %v3541 = vadd.f32 %v3477, %v3517
      %v3542 = vadd.f32 %v3478, %v3519
      %v3543 = vadd.f32 %v3479, %v3521
      %v3544 = vadd.f32 %v3480, %v3523
      %v3545 = vadd.f32 %v3481, %v3525
      %v3546 = vadd.f32 %v3482, %v3527
      %v3547 = vadd.f32 %v3483, %v3529
      %v3548 = vadd.f32 %v3484, %v3531
      %v3549 = vadd.f32 %v3485, %v3533
      %v3550 = vld [vmem:[#allocation3 + $0x84] sm:$0xff]
      %v3551 = vld [vmem:[#allocation3 + $0x8c] sm:$0xff]
      %v3552 = vld [vmem:[#allocation3 + $0x94] sm:$0xff]
      %v3553 = vld [vmem:[#allocation3 + $0x9c] sm:$0xff]
      %v3554 = vld [vmem:[#allocation3 + $0xa4] sm:$0xff]
      %v3555 = vld [vmem:[#allocation3 + $0xac] sm:$0xff]
      %v3556 = vld [vmem:[#allocation3 + $0xb4] sm:$0xff]
      %v3557 = vld [vmem:[#allocation3 + $0xbc] sm:$0xff]
      %v3558 = vld [vmem:[#allocation3 + $0xc4] sm:$0xff]
      %v3559 = vld [vmem:[#allocation3 + $0xcc] sm:$0xff]
      %v3560 = vld [vmem:[#allocation3 + $0xd4] sm:$0xff]
      %v3561 = vld [vmem:[#allocation3 + $0xdc] sm:$0xff]
      %v3562 = vld [vmem:[#allocation3 + $0xe4] sm:$0xff]
      %v3563 = vld [vmem:[#allocation3 + $0xec] sm:$0xff]
      %v3564 = vld [vmem:[#allocation3 + $0xf4] sm:$0xff]
      %v3565 = vld [vmem:[#allocation3 + $0xfc] sm:$0xff]
      %3566 = vrot.lane.b32.xlu0 %v3550, 64
      %v3567 = vpop.permute.xlu0 %3566
      %3568 = vrot.lane.b32.xlu0 %v3551, 64
      %v3569 = vpop.permute.xlu0 %3568
      %3570 = vrot.lane.b32.xlu0 %v3552, 64
      %v3571 = vpop.permute.xlu0 %3570
      %3572 = vrot.lane.b32.xlu0 %v3553, 64
      %v3573 = vpop.permute.xlu0 %3572
      %3574 = vrot.lane.b32.xlu0 %v3554, 64
      %v3575 = vpop.permute.xlu0 %3574
      %3576 = vrot.lane.b32.xlu0 %v3555, 64
      %v3577 = vpop.permute.xlu0 %3576
      %3578 = vrot.lane.b32.xlu0 %v3556, 64
      %v3579 = vpop.permute.xlu0 %3578
      %3580 = vrot.lane.b32.xlu0 %v3557, 64
      %v3581 = vpop.permute.xlu0 %3580
      %3582 = vrot.lane.b32.xlu0 %v3558, 64
      %v3583 = vpop.permute.xlu0 %3582
      %3584 = vrot.lane.b32.xlu0 %v3559, 64
      %v3585 = vpop.permute.xlu0 %3584
      %3586 = vrot.lane.b32.xlu0 %v3560, 64
      %v3587 = vpop.permute.xlu0 %3586
      %3588 = vrot.lane.b32.xlu0 %v3561, 64
      %v3589 = vpop.permute.xlu0 %3588
      %3590 = vrot.lane.b32.xlu0 %v3562, 64
      %v3591 = vpop.permute.xlu0 %3590
      %3592 = vrot.lane.b32.xlu0 %v3563, 64
      %v3593 = vpop.permute.xlu0 %3592
      %3594 = vrot.lane.b32.xlu0 %v3564, 64
      %v3595 = vpop.permute.xlu0 %3594
      %3596 = vrot.lane.b32.xlu0 %v3565, 64
      %v3597 = vpop.permute.xlu0 %3596
      %v3598 = vadd.f32 %v3534, %v3567
      %v3599 = vadd.f32 %v3535, %v3569
      %v3600 = vadd.f32 %v3536, %v3571
      %v3601 = vadd.f32 %v3537, %v3573
      %v3602 = vadd.f32 %v3538, %v3575
      %v3603 = vadd.f32 %v3539, %v3577
      %v3604 = vadd.f32 %v3540, %v3579
      %v3605 = vadd.f32 %v3541, %v3581
      %v3606 = vadd.f32 %v3542, %v3583
      %v3607 = vadd.f32 %v3543, %v3585
      %v3608 = vadd.f32 %v3544, %v3587
      %v3609 = vadd.f32 %v3545, %v3589
      %v3610 = vadd.f32 %v3546, %v3591
      %v3611 = vadd.f32 %v3547, %v3593
      %v3612 = vadd.f32 %v3548, %v3595
      %v3613 = vadd.f32 %v3549, %v3597
      %v3614 = vld [vmem:[#allocation3 + $0x102] sm:$0xff]
      %v3615 = vld [vmem:[#allocation3 + $0x10a] sm:$0xff]
      %3616 = vrot.lane.b32.xlu0 %v3424, 80
      %v3617 = vpop.permute.xlu0 %3616
      %3618 = vrot.lane.b32.xlu0 %v3425, 80
      %v3619 = vpop.permute.xlu0 %3618
      %3620 = vrot.lane.b32.xlu0 %v3426, 80
      %v3621 = vpop.permute.xlu0 %3620
      %3622 = vrot.lane.b32.xlu0 %v3427, 80
      %v3623 = vpop.permute.xlu0 %3622
      %3624 = vrot.lane.b32.xlu0 %v3428, 80
      %v3625 = vpop.permute.xlu0 %3624
      %3626 = vrot.lane.b32.xlu0 %v3429, 80
      %v3627 = vpop.permute.xlu0 %3626
      %3628 = vrot.lane.b32.xlu0 %v3430, 80
      %v3629 = vpop.permute.xlu0 %3628
      %3630 = vrot.lane.b32.xlu0 %v3431, 80
      %v3631 = vpop.permute.xlu0 %3630
      %3632 = vrot.lane.b32.xlu0 %v3432, 80
      %v3633 = vpop.permute.xlu0 %3632
      %3634 = vrot.lane.b32.xlu0 %v3433, 80
      %v3635 = vpop.permute.xlu0 %3634
      %3636 = vrot.lane.b32.xlu0 %v3434, 80
      %v3637 = vpop.permute.xlu0 %3636
      %3638 = vrot.lane.b32.xlu0 %v3435, 80
      %v3639 = vpop.permute.xlu0 %3638
      %3640 = vrot.lane.b32.xlu0 %v3436, 80
      %v3641 = vpop.permute.xlu0 %3640
      %3642 = vrot.lane.b32.xlu0 %v3437, 80
      %v3643 = vpop.permute.xlu0 %3642
      %3644 = vrot.lane.b32.xlu0 %v3614, 80
      %v3645 = vpop.permute.xlu0 %3644
      %3646 = vrot.lane.b32.xlu0 %v3615, 80
      %v3647 = vpop.permute.xlu0 %3646
      %v3648 = vadd.f32 %v3598, %v3617
      %v3649 = vadd.f32 %v3599, %v3619
      %v3650 = vadd.f32 %v3600, %v3621
      %v3651 = vadd.f32 %v3601, %v3623
      %v3652 = vadd.f32 %v3602, %v3625
      %v3653 = vadd.f32 %v3603, %v3627
      %v3654 = vadd.f32 %v3604, %v3629
      %v3655 = vadd.f32 %v3605, %v3631
      %v3656 = vadd.f32 %v3606, %v3633
      %v3657 = vadd.f32 %v3607, %v3635
      %v3658 = vadd.f32 %v3608, %v3637
      %v3659 = vadd.f32 %v3609, %v3639
      %v3660 = vadd.f32 %v3610, %v3641
      %v3661 = vadd.f32 %v3611, %v3643
      %v3662 = vadd.f32 %v3612, %v3645
      %v3663 = vadd.f32 %v3613, %v3647
      %v3664 = vld [vmem:[#allocation3 + $0x103] sm:$0xff]
      %v3665 = vld [vmem:[#allocation3 + $0x10b] sm:$0xff]
      %3666 = vrot.lane.b32.xlu0 %v3488, 96
      %v3667 = vpop.permute.xlu0 %3666
      %3668 = vrot.lane.b32.xlu0 %v3489, 96
      %v3669 = vpop.permute.xlu0 %3668
      %3670 = vrot.lane.b32.xlu0 %v3490, 96
      %v3671 = vpop.permute.xlu0 %3670
      %3672 = vrot.lane.b32.xlu0 %v3491, 96
      %v3673 = vpop.permute.xlu0 %3672
      %3674 = vrot.lane.b32.xlu0 %v3492, 96
      %v3675 = vpop.permute.xlu0 %3674
      %3676 = vrot.lane.b32.xlu0 %v3493, 96
      %v3677 = vpop.permute.xlu0 %3676
      %3678 = vrot.lane.b32.xlu0 %v3494, 96
      %v3679 = vpop.permute.xlu0 %3678
      %3680 = vrot.lane.b32.xlu0 %v3495, 96
      %v3681 = vpop.permute.xlu0 %3680
      %3682 = vrot.lane.b32.xlu0 %v3496, 96
      %v3683 = vpop.permute.xlu0 %3682
      %3684 = vrot.lane.b32.xlu0 %v3497, 96
      %v3685 = vpop.permute.xlu0 %3684
      %3686 = vrot.lane.b32.xlu0 %v3498, 96
      %v3687 = vpop.permute.xlu0 %3686
      %3688 = vrot.lane.b32.xlu0 %v3499, 96
      %v3689 = vpop.permute.xlu0 %3688
      %3690 = vrot.lane.b32.xlu0 %v3500, 96
      %v3691 = vpop.permute.xlu0 %3690
      %3692 = vrot.lane.b32.xlu0 %v3501, 96
      %v3693 = vpop.permute.xlu0 %3692
      %3694 = vrot.lane.b32.xlu0 %v3664, 96
      %v3695 = vpop.permute.xlu0 %3694
      %3696 = vrot.lane.b32.xlu0 %v3665, 96
      %v3697 = vpop.permute.xlu0 %3696
      %v3698 = vadd.f32 %v3648, %v3667
      %v3699 = vadd.f32 %v3649, %v3669
      %v3700 = vadd.f32 %v3650, %v3671
      %v3701 = vadd.f32 %v3651, %v3673
      %v3702 = vadd.f32 %v3652, %v3675
      %v3703 = vadd.f32 %v3653, %v3677
      %v3704 = vadd.f32 %v3654, %v3679
      %v3705 = vadd.f32 %v3655, %v3681
      %v3706 = vadd.f32 %v3656, %v3683
      %v3707 = vadd.f32 %v3657, %v3685
      %v3708 = vadd.f32 %v3658, %v3687
      %v3709 = vadd.f32 %v3659, %v3689
      %v3710 = vadd.f32 %v3660, %v3691
      %v3711 = vadd.f32 %v3661, %v3693
      %v3712 = vadd.f32 %v3662, %v3695
      %v3713 = vadd.f32 %v3663, %v3697
      %v3714 = vld [vmem:[#allocation3 + $0x104] sm:$0xff]
      %v3715 = vld [vmem:[#allocation3 + $0x10c] sm:$0xff]
      %3716 = vrot.lane.b32.xlu0 %v3552, 112
      %v3717 = vpop.permute.xlu0 %3716
      %3718 = vrot.lane.b32.xlu0 %v3553, 112
      %v3719 = vpop.permute.xlu0 %3718
      %3720 = vrot.lane.b32.xlu0 %v3554, 112
      %v3721 = vpop.permute.xlu0 %3720
      %3722 = vrot.lane.b32.xlu0 %v3555, 112
      %v3723 = vpop.permute.xlu0 %3722
      %3724 = vrot.lane.b32.xlu0 %v3556, 112
      %v3725 = vpop.permute.xlu0 %3724
      %3726 = vrot.lane.b32.xlu0 %v3557, 112
      %v3727 = vpop.permute.xlu0 %3726
      %3728 = vrot.lane.b32.xlu0 %v3558, 112
      %v3729 = vpop.permute.xlu0 %3728
      %3730 = vrot.lane.b32.xlu0 %v3559, 112
      %v3731 = vpop.permute.xlu0 %3730
      %3732 = vrot.lane.b32.xlu0 %v3560, 112
      %v3733 = vpop.permute.xlu0 %3732
      %3734 = vrot.lane.b32.xlu0 %v3561, 112
      %v3735 = vpop.permute.xlu0 %3734
      %3736 = vrot.lane.b32.xlu0 %v3562, 112
      %v3737 = vpop.permute.xlu0 %3736
      %3738 = vrot.lane.b32.xlu0 %v3563, 112
      %v3739 = vpop.permute.xlu0 %3738
      %3740 = vrot.lane.b32.xlu0 %v3564, 112
      %v3741 = vpop.permute.xlu0 %3740
      %3742 = vrot.lane.b32.xlu0 %v3565, 112
      %v3743 = vpop.permute.xlu0 %3742
      %3744 = vrot.lane.b32.xlu0 %v3714, 112
      %v3745 = vpop.permute.xlu0 %3744
      %3746 = vrot.lane.b32.xlu0 %v3715, 112
      %v3747 = vpop.permute.xlu0 %3746
      %v3748 = vadd.f32 %v3698, %v3717
      %v3749 = vadd.f32 %v3699, %v3719
      %v3750 = vadd.f32 %v3700, %v3721
      %v3751 = vadd.f32 %v3701, %v3723
      %v3752 = vadd.f32 %v3702, %v3725
      %v3753 = vadd.f32 %v3703, %v3727
      %v3754 = vadd.f32 %v3704, %v3729
      %v3755 = vadd.f32 %v3705, %v3731
      %v3756 = vadd.f32 %v3706, %v3733
      %v3757 = vadd.f32 %v3707, %v3735
      %v3758 = vadd.f32 %v3708, %v3737
      %v3759 = vadd.f32 %v3709, %v3739
      %v3760 = vadd.f32 %v3710, %v3741
      %v3761 = vadd.f32 %v3711, %v3743
      %v3762 = vadd.f32 %v3712, %v3745
      %v3763 = vadd.f32 %v3713, %v3747
      %v3764 = vld [vmem:[%s3] sm:$0xff]
      %v3765 = vld [vmem:[%s3 + $0x8] sm:$0xff]
      %v3766 = vld [vmem:[%s3 + $0x10] sm:$0xff]
      %v3767 = vld [vmem:[%s3 + $0x18] sm:$0xff]
      %v3768 = vld [vmem:[%s3 + $0x20] sm:$0xff]
      %v3769 = vld [vmem:[%s3 + $0x28] sm:$0xff]
      %v3770 = vld [vmem:[%s3 + $0x30] sm:$0xff]
      %v3771 = vld [vmem:[%s3 + $0x38] sm:$0xff]
      %v3772 = vld [vmem:[%s3 + $0x40] sm:$0xff]
      %v3773 = vld [vmem:[%s3 + $0x48] sm:$0xff]
      %v3774 = vld [vmem:[%s3 + $0x50] sm:$0xff]
      %v3775 = vld [vmem:[%s3 + $0x58] sm:$0xff]
      %v3776 = vld [vmem:[%s3 + $0x60] sm:$0xff]
      %v3777 = vld [vmem:[%s3 + $0x68] sm:$0xff]
      %v3778 = vld [vmem:[%s3 + $0x70] sm:$0xff]
      %v3779 = vld [vmem:[%s3 + $0x78] sm:$0xff]
      %v3780 = vld [vmem:[#allocation3 + $0x95] sm:$0xff]
      %v3781 = vld [vmem:[#allocation3 + $0x9d] sm:$0xff]
      %v3782 = vld [vmem:[#allocation3 + $0xa5] sm:$0xff]
      %v3783 = vld [vmem:[#allocation3 + $0xad] sm:$0xff]
      %v3784 = vld [vmem:[#allocation3 + $0xb5] sm:$0xff]
      %v3785 = vld [vmem:[#allocation3 + $0xbd] sm:$0xff]
      %v3786 = vld [vmem:[#allocation3 + $0xc5] sm:$0xff]
      %v3787 = vld [vmem:[#allocation3 + $0xcd] sm:$0xff]
      %v3788 = vld [vmem:[#allocation3 + $0xd5] sm:$0xff]
      %v3789 = vld [vmem:[#allocation3 + $0xdd] sm:$0xff]
      %v3790 = vld [vmem:[#allocation3 + $0xe5] sm:$0xff]
      %v3791 = vld [vmem:[#allocation3 + $0xed] sm:$0xff]
      %v3792 = vld [vmem:[#allocation3 + $0xf5] sm:$0xff]
      %v3793 = vld [vmem:[#allocation3 + $0xfd] sm:$0xff]
      %v3794 = vld [vmem:[#allocation3 + $0x105] sm:$0xff]
      %v3795 = vld [vmem:[#allocation3 + $0x10d] sm:$0xff]
      %v3796 = vld [vmem:[#allocation3 + $0x96] sm:$0xff]
      %v3797 = vld [vmem:[#allocation3 + $0x9e] sm:$0xff]
      %v3798 = vld [vmem:[#allocation3 + $0xa6] sm:$0xff]
      %v3799 = vld [vmem:[#allocation3 + $0xae] sm:$0xff]
      %v3800 = vld [vmem:[#allocation3 + $0xb6] sm:$0xff]
      %v3801 = vld [vmem:[#allocation3 + $0xbe] sm:$0xff]
      %v3802 = vld [vmem:[#allocation3 + $0xc6] sm:$0xff]
      %v3803 = vld [vmem:[#allocation3 + $0xce] sm:$0xff]
      %v3804 = vld [vmem:[#allocation3 + $0xd6] sm:$0xff]
      %v3805 = vld [vmem:[#allocation3 + $0xde] sm:$0xff]
      %v3806 = vld [vmem:[#allocation3 + $0xe6] sm:$0xff]
      %v3807 = vld [vmem:[#allocation3 + $0xee] sm:$0xff]
      %v3808 = vld [vmem:[#allocation3 + $0xf6] sm:$0xff]
      %v3809 = vld [vmem:[#allocation3 + $0xfe] sm:$0xff]
      %v3810 = vld [vmem:[#allocation3 + $0x106] sm:$0xff]
      %v3811 = vld [vmem:[#allocation3 + $0x10e] sm:$0xff]
      %3812 = vrot.lane.b32.xlu0 %v3796, 16
      %v3813 = vpop.permute.xlu0 %3812
      %3814 = vrot.lane.b32.xlu0 %v3797, 16
      %v3815 = vpop.permute.xlu0 %3814
      %3816 = vrot.lane.b32.xlu0 %v3798, 16
      %v3817 = vpop.permute.xlu0 %3816
      %3818 = vrot.lane.b32.xlu0 %v3799, 16
      %v3819 = vpop.permute.xlu0 %3818
      %3820 = vrot.lane.b32.xlu0 %v3800, 16
      %v3821 = vpop.permute.xlu0 %3820
      %3822 = vrot.lane.b32.xlu0 %v3801, 16
      %v3823 = vpop.permute.xlu0 %3822
      %3824 = vrot.lane.b32.xlu0 %v3802, 16
      %v3825 = vpop.permute.xlu0 %3824
      %3826 = vrot.lane.b32.xlu0 %v3803, 16
      %v3827 = vpop.permute.xlu0 %3826
      %3828 = vrot.lane.b32.xlu0 %v3804, 16
      %v3829 = vpop.permute.xlu0 %3828
      %3830 = vrot.lane.b32.xlu0 %v3805, 16
      %v3831 = vpop.permute.xlu0 %3830
      %3832 = vrot.lane.b32.xlu0 %v3806, 16
      %v3833 = vpop.permute.xlu0 %3832
      %3834 = vrot.lane.b32.xlu0 %v3807, 16
      %v3835 = vpop.permute.xlu0 %3834
      %3836 = vrot.lane.b32.xlu0 %v3808, 16
      %v3837 = vpop.permute.xlu0 %3836
      %3838 = vrot.lane.b32.xlu0 %v3809, 16
      %v3839 = vpop.permute.xlu0 %3838
      %3840 = vrot.lane.b32.xlu0 %v3810, 16
      %v3841 = vpop.permute.xlu0 %3840
      %3842 = vrot.lane.b32.xlu0 %v3811, 16
      %v3843 = vpop.permute.xlu0 %3842
      %v3844 = vadd.f32 %v3780, %v3813
      %v3845 = vadd.f32 %v3781, %v3815
      %v3846 = vadd.f32 %v3782, %v3817
      %v3847 = vadd.f32 %v3783, %v3819
      %v3848 = vadd.f32 %v3784, %v3821
      %v3849 = vadd.f32 %v3785, %v3823
      %v3850 = vadd.f32 %v3786, %v3825
      %v3851 = vadd.f32 %v3787, %v3827
      %v3852 = vadd.f32 %v3788, %v3829
      %v3853 = vadd.f32 %v3789, %v3831
      %v3854 = vadd.f32 %v3790, %v3833
      %v3855 = vadd.f32 %v3791, %v3835
      %v3856 = vadd.f32 %v3792, %v3837
      %v3857 = vadd.f32 %v3793, %v3839
      %v3858 = vadd.f32 %v3794, %v3841
      %v3859 = vadd.f32 %v3795, %v3843
      %v3860 = vld [vmem:[#allocation3 + $0x114] sm:$0xff]
      %v3861 = vld [vmem:[#allocation3 + $0x11c] sm:$0xff]
      %3862 = vrot.lane.b32.xlu0 %v3554, 32
      %v3863 = vpop.permute.xlu0 %3862
      %3864 = vrot.lane.b32.xlu0 %v3555, 32
      %v3865 = vpop.permute.xlu0 %3864
      %3866 = vrot.lane.b32.xlu0 %v3556, 32
      %v3867 = vpop.permute.xlu0 %3866
      %3868 = vrot.lane.b32.xlu0 %v3557, 32
      %v3869 = vpop.permute.xlu0 %3868
      %3870 = vrot.lane.b32.xlu0 %v3558, 32
      %v3871 = vpop.permute.xlu0 %3870
      %3872 = vrot.lane.b32.xlu0 %v3559, 32
      %v3873 = vpop.permute.xlu0 %3872
      %3874 = vrot.lane.b32.xlu0 %v3560, 32
      %v3875 = vpop.permute.xlu0 %3874
      %3876 = vrot.lane.b32.xlu0 %v3561, 32
      %v3877 = vpop.permute.xlu0 %3876
      %3878 = vrot.lane.b32.xlu0 %v3562, 32
      %v3879 = vpop.permute.xlu0 %3878
      %3880 = vrot.lane.b32.xlu0 %v3563, 32
      %v3881 = vpop.permute.xlu0 %3880
      %3882 = vrot.lane.b32.xlu0 %v3564, 32
      %v3883 = vpop.permute.xlu0 %3882
      %3884 = vrot.lane.b32.xlu0 %v3565, 32
      %v3885 = vpop.permute.xlu0 %3884
      %3886 = vrot.lane.b32.xlu0 %v3714, 32
      %v3887 = vpop.permute.xlu0 %3886
      %3888 = vrot.lane.b32.xlu0 %v3715, 32
      %v3889 = vpop.permute.xlu0 %3888
      %3890 = vrot.lane.b32.xlu0 %v3860, 32
      %v3891 = vpop.permute.xlu0 %3890
      %3892 = vrot.lane.b32.xlu0 %v3861, 32
      %v3893 = vpop.permute.xlu0 %3892
      %v3894 = vadd.f32 %v3844, %v3863
      %v3895 = vadd.f32 %v3845, %v3865
      %v3896 = vadd.f32 %v3846, %v3867
      %v3897 = vadd.f32 %v3847, %v3869
      %v3898 = vadd.f32 %v3848, %v3871
      %v3899 = vadd.f32 %v3849, %v3873
      %v3900 = vadd.f32 %v3850, %v3875
      %v3901 = vadd.f32 %v3851, %v3877
      %v3902 = vadd.f32 %v3852, %v3879
      %v3903 = vadd.f32 %v3853, %v3881
      %v3904 = vadd.f32 %v3854, %v3883
      %v3905 = vadd.f32 %v3855, %v3885
      %v3906 = vadd.f32 %v3856, %v3887
      %v3907 = vadd.f32 %v3857, %v3889
      %v3908 = vadd.f32 %v3858, %v3891
      %v3909 = vadd.f32 %v3859, %v3893
      %v3910 = vld [vmem:[#allocation3 + $0x115] sm:$0xff]
      %v3911 = vld [vmem:[#allocation3 + $0x11d] sm:$0xff]
      %3912 = vrot.lane.b32.xlu0 %v3782, 48
      %v3913 = vpop.permute.xlu0 %3912
      %3914 = vrot.lane.b32.xlu0 %v3783, 48
      %v3915 = vpop.permute.xlu0 %3914
      %3916 = vrot.lane.b32.xlu0 %v3784, 48
      %v3917 = vpop.permute.xlu0 %3916
      %3918 = vrot.lane.b32.xlu0 %v3785, 48
      %v3919 = vpop.permute.xlu0 %3918
      %3920 = vrot.lane.b32.xlu0 %v3786, 48
      %v3921 = vpop.permute.xlu0 %3920
      %3922 = vrot.lane.b32.xlu0 %v3787, 48
      %v3923 = vpop.permute.xlu0 %3922
      %3924 = vrot.lane.b32.xlu0 %v3788, 48
      %v3925 = vpop.permute.xlu0 %3924
      %3926 = vrot.lane.b32.xlu0 %v3789, 48
      %v3927 = vpop.permute.xlu0 %3926
      %3928 = vrot.lane.b32.xlu0 %v3790, 48
      %v3929 = vpop.permute.xlu0 %3928
      %3930 = vrot.lane.b32.xlu0 %v3791, 48
      %v3931 = vpop.permute.xlu0 %3930
      %3932 = vrot.lane.b32.xlu0 %v3792, 48
      %v3933 = vpop.permute.xlu0 %3932
      %3934 = vrot.lane.b32.xlu0 %v3793, 48
      %v3935 = vpop.permute.xlu0 %3934
      %3936 = vrot.lane.b32.xlu0 %v3794, 48
      %v3937 = vpop.permute.xlu0 %3936
      %3938 = vrot.lane.b32.xlu0 %v3795, 48
      %v3939 = vpop.permute.xlu0 %3938
      %3940 = vrot.lane.b32.xlu0 %v3910, 48
      %v3941 = vpop.permute.xlu0 %3940
      %3942 = vrot.lane.b32.xlu0 %v3911, 48
      %v3943 = vpop.permute.xlu0 %3942
      %v3944 = vadd.f32 %v3894, %v3913
      %v3945 = vadd.f32 %v3895, %v3915
      %v3946 = vadd.f32 %v3896, %v3917
      %v3947 = vadd.f32 %v3897, %v3919
      %v3948 = vadd.f32 %v3898, %v3921
      %v3949 = vadd.f32 %v3899, %v3923
      %v3950 = vadd.f32 %v3900, %v3925
      %v3951 = vadd.f32 %v3901, %v3927
      %v3952 = vadd.f32 %v3902, %v3929
      %v3953 = vadd.f32 %v3903, %v3931
      %v3954 = vadd.f32 %v3904, %v3933
      %v3955 = vadd.f32 %v3905, %v3935
      %v3956 = vadd.f32 %v3906, %v3937
      %v3957 = vadd.f32 %v3907, %v3939
      %v3958 = vadd.f32 %v3908, %v3941
      %v3959 = vadd.f32 %v3909, %v3943
      %v3960 = vld [vmem:[#allocation3 + $0x116] sm:$0xff]
      %v3961 = vld [vmem:[#allocation3 + $0x11e] sm:$0xff]
      %3962 = vrot.lane.b32.xlu0 %v3798, 64
      %v3963 = vpop.permute.xlu0 %3962
      %3964 = vrot.lane.b32.xlu0 %v3799, 64
      %v3965 = vpop.permute.xlu0 %3964
      %3966 = vrot.lane.b32.xlu0 %v3800, 64
      %v3967 = vpop.permute.xlu0 %3966
      %3968 = vrot.lane.b32.xlu0 %v3801, 64
      %v3969 = vpop.permute.xlu0 %3968
      %3970 = vrot.lane.b32.xlu0 %v3802, 64
      %v3971 = vpop.permute.xlu0 %3970
      %3972 = vrot.lane.b32.xlu0 %v3803, 64
      %v3973 = vpop.permute.xlu0 %3972
      %3974 = vrot.lane.b32.xlu0 %v3804, 64
      %v3975 = vpop.permute.xlu0 %3974
      %3976 = vrot.lane.b32.xlu0 %v3805, 64
      %v3977 = vpop.permute.xlu0 %3976
      %3978 = vrot.lane.b32.xlu0 %v3806, 64
      %v3979 = vpop.permute.xlu0 %3978
      %3980 = vrot.lane.b32.xlu0 %v3807, 64
      %v3981 = vpop.permute.xlu0 %3980
      %3982 = vrot.lane.b32.xlu0 %v3808, 64
      %v3983 = vpop.permute.xlu0 %3982
      %3984 = vrot.lane.b32.xlu0 %v3809, 64
      %v3985 = vpop.permute.xlu0 %3984
      %3986 = vrot.lane.b32.xlu0 %v3810, 64
      %v3987 = vpop.permute.xlu0 %3986
      %3988 = vrot.lane.b32.xlu0 %v3811, 64
      %v3989 = vpop.permute.xlu0 %3988
      %3990 = vrot.lane.b32.xlu0 %v3960, 64
      %v3991 = vpop.permute.xlu0 %3990
      %3992 = vrot.lane.b32.xlu0 %v3961, 64
      %v3993 = vpop.permute.xlu0 %3992
      %v3994 = vadd.f32 %v3944, %v3963
      %v3995 = vadd.f32 %v3945, %v3965
      %v3996 = vadd.f32 %v3946, %v3967
      %v3997 = vadd.f32 %v3947, %v3969
      %v3998 = vadd.f32 %v3948, %v3971
      %v3999 = vadd.f32 %v3949, %v3973
      %v4000 = vadd.f32 %v3950, %v3975
      %v4001 = vadd.f32 %v3951, %v3977
      %v4002 = vadd.f32 %v3952, %v3979
      %v4003 = vadd.f32 %v3953, %v3981
      %v4004 = vadd.f32 %v3954, %v3983
      %v4005 = vadd.f32 %v3955, %v3985
      %v4006 = vadd.f32 %v3956, %v3987
      %v4007 = vadd.f32 %v3957, %v3989
      %v4008 = vadd.f32 %v3958, %v3991
      %v4009 = vadd.f32 %v3959, %v3993
      %v4010 = vld [vmem:[#allocation3 + $0xa7] sm:$0xff]
      %v4011 = vld [vmem:[#allocation3 + $0xaf] sm:$0xff]
      %v4012 = vld [vmem:[#allocation3 + $0xb7] sm:$0xff]
      %v4013 = vld [vmem:[#allocation3 + $0xbf] sm:$0xff]
      %v4014 = vld [vmem:[#allocation3 + $0xc7] sm:$0xff]
      %v4015 = vld [vmem:[#allocation3 + $0xcf] sm:$0xff]
      %v4016 = vld [vmem:[#allocation3 + $0xd7] sm:$0xff]
      %v4017 = vld [vmem:[#allocation3 + $0xdf] sm:$0xff]
      %v4018 = vld [vmem:[#allocation3 + $0xe7] sm:$0xff]
      %v4019 = vld [vmem:[#allocation3 + $0xef] sm:$0xff]
      %v4020 = vld [vmem:[#allocation3 + $0xf7] sm:$0xff]
      %v4021 = vld [vmem:[#allocation3 + $0xff] sm:$0xff]
      %v4022 = vld [vmem:[#allocation3 + $0x107] sm:$0xff]
      %v4023 = vld [vmem:[#allocation3 + $0x10f] sm:$0xff]
      %v4024 = vld [vmem:[#allocation3 + $0x117] sm:$0xff]
      %v4025 = vld [vmem:[#allocation3 + $0x11f] sm:$0xff]
      %4026 = vrot.lane.b32.xlu0 %v4010, 80
      %v4027 = vpop.permute.xlu0 %4026
      %4028 = vrot.lane.b32.xlu0 %v4011, 80
      %v4029 = vpop.permute.xlu0 %4028
      %4030 = vrot.lane.b32.xlu0 %v4012, 80
      %v4031 = vpop.permute.xlu0 %4030
      %4032 = vrot.lane.b32.xlu0 %v4013, 80
      %v4033 = vpop.permute.xlu0 %4032
      %4034 = vrot.lane.b32.xlu0 %v4014, 80
      %v4035 = vpop.permute.xlu0 %4034
      %4036 = vrot.lane.b32.xlu0 %v4015, 80
      %v4037 = vpop.permute.xlu0 %4036
      %4038 = vrot.lane.b32.xlu0 %v4016, 80
      %v4039 = vpop.permute.xlu0 %4038
      %4040 = vrot.lane.b32.xlu0 %v4017, 80
      %v4041 = vpop.permute.xlu0 %4040
      %4042 = vrot.lane.b32.xlu0 %v4018, 80
      %v4043 = vpop.permute.xlu0 %4042
      %4044 = vrot.lane.b32.xlu0 %v4019, 80
      %v4045 = vpop.permute.xlu0 %4044
      %4046 = vrot.lane.b32.xlu0 %v4020, 80
      %v4047 = vpop.permute.xlu0 %4046
      %4048 = vrot.lane.b32.xlu0 %v4021, 80
      %v4049 = vpop.permute.xlu0 %4048
      %4050 = vrot.lane.b32.xlu0 %v4022, 80
      %v4051 = vpop.permute.xlu0 %4050
      %4052 = vrot.lane.b32.xlu0 %v4023, 80
      %v4053 = vpop.permute.xlu0 %4052
      %4054 = vrot.lane.b32.xlu0 %v4024, 80
      %v4055 = vpop.permute.xlu0 %4054
      %4056 = vrot.lane.b32.xlu0 %v4025, 80
      %v4057 = vpop.permute.xlu0 %4056
      %v4058 = vadd.f32 %v3994, %v4027
      %v4059 = vadd.f32 %v3995, %v4029
      %v4060 = vadd.f32 %v3996, %v4031
      %v4061 = vadd.f32 %v3997, %v4033
      %v4062 = vadd.f32 %v3998, %v4035
      %v4063 = vadd.f32 %v3999, %v4037
      %v4064 = vadd.f32 %v4000, %v4039
      %v4065 = vadd.f32 %v4001, %v4041
      %v4066 = vadd.f32 %v4002, %v4043
      %v4067 = vadd.f32 %v4003, %v4045
      %v4068 = vadd.f32 %v4004, %v4047
      %v4069 = vadd.f32 %v4005, %v4049
      %v4070 = vadd.f32 %v4006, %v4051
      %v4071 = vadd.f32 %v4007, %v4053
      %v4072 = vadd.f32 %v4008, %v4055
      %v4073 = vadd.f32 %v4009, %v4057
      %v4074 = vld [vmem:[#allocation3 + $0x100] sm:$0xff]
      %v4075 = vld [vmem:[#allocation3 + $0x108] sm:$0xff]
      %v4076 = vld [vmem:[#allocation3 + $0x110] sm:$0xff]
      %v4077 = vld [vmem:[#allocation3 + $0x118] sm:$0xff]
      %v4078 = vld [vmem:[#allocation3 + $0x120] sm:$0xff]
      %4079 = vrot.lane.b32.xlu0 %v3347, 96
      %v4080 = vpop.permute.xlu0 %4079
      %4081 = vrot.lane.b32.xlu0 %v3348, 96
      %v4082 = vpop.permute.xlu0 %4081
      %4083 = vrot.lane.b32.xlu0 %v3349, 96
      %v4084 = vpop.permute.xlu0 %4083
      %4085 = vrot.lane.b32.xlu0 %v3350, 96
      %v4086 = vpop.permute.xlu0 %4085
      %4087 = vrot.lane.b32.xlu0 %v3351, 96
      %v4088 = vpop.permute.xlu0 %4087
      %4089 = vrot.lane.b32.xlu0 %v3352, 96
      %v4090 = vpop.permute.xlu0 %4089
      %4091 = vrot.lane.b32.xlu0 %v3353, 96
      %v4092 = vpop.permute.xlu0 %4091
      %4093 = vrot.lane.b32.xlu0 %v3354, 96
      %v4094 = vpop.permute.xlu0 %4093
      %4095 = vrot.lane.b32.xlu0 %v3355, 96
      %v4096 = vpop.permute.xlu0 %4095
      %4097 = vrot.lane.b32.xlu0 %v3356, 96
      %v4098 = vpop.permute.xlu0 %4097
      %4099 = vrot.lane.b32.xlu0 %v3357, 96
      %v4100 = vpop.permute.xlu0 %4099
      %4101 = vrot.lane.b32.xlu0 %v4074, 96
      %v4102 = vpop.permute.xlu0 %4101
      %4103 = vrot.lane.b32.xlu0 %v4075, 96
      %v4104 = vpop.permute.xlu0 %4103
      %4105 = vrot.lane.b32.xlu0 %v4076, 96
      %v4106 = vpop.permute.xlu0 %4105
      %4107 = vrot.lane.b32.xlu0 %v4077, 96
      %v4108 = vpop.permute.xlu0 %4107
      %4109 = vrot.lane.b32.xlu0 %v4078, 96
      %v4110 = vpop.permute.xlu0 %4109
      %v4111 = vadd.f32 %v4058, %v4080
      %v4112 = vadd.f32 %v4059, %v4082
      %v4113 = vadd.f32 %v4060, %v4084
      %v4114 = vadd.f32 %v4061, %v4086
      %v4115 = vadd.f32 %v4062, %v4088
      %v4116 = vadd.f32 %v4063, %v4090
      %v4117 = vadd.f32 %v4064, %v4092
      %v4118 = vadd.f32 %v4065, %v4094
      %v4119 = vadd.f32 %v4066, %v4096
      %v4120 = vadd.f32 %v4067, %v4098
      %v4121 = vadd.f32 %v4068, %v4100
      %v4122 = vadd.f32 %v4069, %v4102
      %v4123 = vadd.f32 %v4070, %v4104
      %v4124 = vadd.f32 %v4071, %v4106
      %v4125 = vadd.f32 %v4072, %v4108
      %v4126 = vadd.f32 %v4073, %v4110
      %v4127 = vld [vmem:[#allocation3 + $0x126] sm:$0xff]
      %v4128 = vld [vmem:[#allocation3 + $0x12e] sm:$0xff]
      %4129 = vrot.lane.b32.xlu0 %v3800, 112
      %v4130 = vpop.permute.xlu0 %4129
      %4131 = vrot.lane.b32.xlu0 %v3801, 112
      %v4132 = vpop.permute.xlu0 %4131
      %4133 = vrot.lane.b32.xlu0 %v3802, 112
      %v4134 = vpop.permute.xlu0 %4133
      %4135 = vrot.lane.b32.xlu0 %v3803, 112
      %v4136 = vpop.permute.xlu0 %4135
      %4137 = vrot.lane.b32.xlu0 %v3804, 112
      %v4138 = vpop.permute.xlu0 %4137
      %4139 = vrot.lane.b32.xlu0 %v3805, 112
      %v4140 = vpop.permute.xlu0 %4139
      %4141 = vrot.lane.b32.xlu0 %v3806, 112
      %v4142 = vpop.permute.xlu0 %4141
      %4143 = vrot.lane.b32.xlu0 %v3807, 112
      %v4144 = vpop.permute.xlu0 %4143
      %4145 = vrot.lane.b32.xlu0 %v3808, 112
      %v4146 = vpop.permute.xlu0 %4145
      %4147 = vrot.lane.b32.xlu0 %v3809, 112
      %v4148 = vpop.permute.xlu0 %4147
      %4149 = vrot.lane.b32.xlu0 %v3810, 112
      %v4150 = vpop.permute.xlu0 %4149
      %4151 = vrot.lane.b32.xlu0 %v3811, 112
      %v4152 = vpop.permute.xlu0 %4151
      %4153 = vrot.lane.b32.xlu0 %v3960, 112
      %v4154 = vpop.permute.xlu0 %4153
      %4155 = vrot.lane.b32.xlu0 %v3961, 112
      %v4156 = vpop.permute.xlu0 %4155
      %4157 = vrot.lane.b32.xlu0 %v4127, 112
      %v4158 = vpop.permute.xlu0 %4157
      %4159 = vrot.lane.b32.xlu0 %v4128, 112
      %v4160 = vpop.permute.xlu0 %4159
      %v4161 = vadd.f32 %v4111, %v4130
      %v4162 = vadd.f32 %v4112, %v4132
      %v4163 = vadd.f32 %v4113, %v4134
      %v4164 = vadd.f32 %v4114, %v4136
      %v4165 = vadd.f32 %v4115, %v4138
      %v4166 = vadd.f32 %v4116, %v4140
      %v4167 = vadd.f32 %v4117, %v4142
      %v4168 = vadd.f32 %v4118, %v4144
      %v4169 = vadd.f32 %v4119, %v4146
      %v4170 = vadd.f32 %v4120, %v4148
      %v4171 = vadd.f32 %v4121, %v4150
      %v4172 = vadd.f32 %v4122, %v4152
      %v4173 = vadd.f32 %v4123, %v4154
      %v4174 = vadd.f32 %v4124, %v4156
      %v4175 = vadd.f32 %v4125, %v4158
      %v4176 = vadd.f32 %v4126, %v4160
      %v4177 = vld [vmem:[%s2510] sm:$0xff]
      %v4178 = vld [vmem:[%s2510 + $0x8] sm:$0xff]
      %v4179 = vld [vmem:[%s2510 + $0x10] sm:$0xff]
      %v4180 = vld [vmem:[%s2510 + $0x18] sm:$0xff]
      %v4181 = vld [vmem:[%s2510 + $0x20] sm:$0xff]
      %v4182 = vld [vmem:[%s2510 + $0x28] sm:$0xff]
      %v4183 = vld [vmem:[%s2510 + $0x30] sm:$0xff]
      %v4184 = vld [vmem:[%s2510 + $0x38] sm:$0xff]
      %v4185 = vld [vmem:[%s2510 + $0x40] sm:$0xff]
      %v4186 = vld [vmem:[%s2510 + $0x48] sm:$0xff]
      %v4187 = vld [vmem:[%s2510 + $0x50] sm:$0xff]
      %v4188 = vld [vmem:[%s2510 + $0x58] sm:$0xff]
      %v4189 = vld [vmem:[%s2510 + $0x60] sm:$0xff]
      %v4190 = vld [vmem:[%s2510 + $0x68] sm:$0xff]
      %v4191 = vld [vmem:[%s2510 + $0x70] sm:$0xff]
      %v4192 = vld [vmem:[%s2510 + $0x78] sm:$0xff]
      %4193 = vmatpush.msra.mxu0 %v4192
      %4194 = vmatpush.msra.mxu0 %v4191
      %4195 = vmatpush.msra.mxu0 %v4190
      %4196 = vmatpush.msra.mxu0 %v4189
      %4197 = vmatpush.msra.mxu0 %v4188
      %4198 = vmatpush.msra.mxu0 %v4187
      %4199 = vmatpush.msra.mxu0 %v4186
      %4200 = vmatpush.msra.mxu0 %v4185
      %4201 = vmatpush.msra.mxu0 %v4184
      %4202 = vmatpush.msra.mxu0 %v4183
      %4203 = vmatpush.msra.mxu0 %v4182
      %4204 = vmatpush.msra.mxu0 %v4181
      %4205 = vmatpush.msra.mxu0 %v4180
      %4206 = vmatpush.msra.mxu0 %v4179
      %4207 = vmatpush.msra.mxu0 %v4178
      %4208 = vmatpush.msra.mxu0 %v4177
      %4209 = vmatmul.f32.gmra.mxu0 %v4161
      %v4210 = vpop.f32.mrf.mxu0
      %v4211 = vadd.f32 0.0, %v4210
      %4212 = vmatmul.f32.gmra.mxu0 %v4162
      %v4213 = vpop.f32.mrf.mxu0
      %v4214 = vadd.f32 0.0, %v4213
      %4215 = vmatmul.f32.gmra.mxu0 %v4163
      %v4216 = vpop.f32.mrf.mxu0
      %v4217 = vadd.f32 0.0, %v4216
      %4218 = vmatmul.f32.gmra.mxu0 %v4164
      %v4219 = vpop.f32.mrf.mxu0
      %v4220 = vadd.f32 0.0, %v4219
      %4221 = vmatmul.f32.gmra.mxu0 %v4165
      %v4222 = vpop.f32.mrf.mxu0
      %v4223 = vadd.f32 0.0, %v4222
      %4224 = vmatmul.f32.gmra.mxu0 %v4166
      %v4225 = vpop.f32.mrf.mxu0
      %v4226 = vadd.f32 0.0, %v4225
      %4227 = vmatmul.f32.gmra.mxu0 %v4167
      %v4228 = vpop.f32.mrf.mxu0
      %v4229 = vadd.f32 0.0, %v4228
      %4230 = vmatmul.f32.gmra.mxu0 %v4168
      %v4231 = vpop.f32.mrf.mxu0
      %v4232 = vadd.f32 0.0, %v4231
      %4233 = vmatmul.f32.gmra.mxu0 %v4169
      %v4234 = vpop.f32.mrf.mxu0
      %v4235 = vadd.f32 0.0, %v4234
      %4236 = vmatmul.f32.gmra.mxu0 %v4170
      %v4237 = vpop.f32.mrf.mxu0
      %v4238 = vadd.f32 0.0, %v4237
      %4239 = vmatmul.f32.gmra.mxu0 %v4171
      %v4240 = vpop.f32.mrf.mxu0
      %v4241 = vadd.f32 0.0, %v4240
      %4242 = vmatmul.f32.gmra.mxu0 %v4172
      %v4243 = vpop.f32.mrf.mxu0
      %v4244 = vadd.f32 0.0, %v4243
      %4245 = vmatmul.f32.gmra.mxu0 %v4173
      %v4246 = vpop.f32.mrf.mxu0
      %v4247 = vadd.f32 0.0, %v4246
      %4248 = vmatmul.f32.gmra.mxu0 %v4174
      %v4249 = vpop.f32.mrf.mxu0
      %v4250 = vadd.f32 0.0, %v4249
      %4251 = vmatmul.f32.gmra.mxu0 %v4175
      %v4252 = vpop.f32.mrf.mxu0
      %v4253 = vadd.f32 0.0, %v4252
      %4254 = vmatmul.f32.gmra.mxu0 %v4176
      %v4255 = vpop.f32.mrf.mxu0
      %v4256 = vadd.f32 0.0, %v4255
      %4257 = vdwg.mxu0
      %4258 = vmatpush.msra.mxu0 %v3779
      %4259 = vmatpush.msra.mxu0 %v3778
      %4260 = vmatpush.msra.mxu0 %v3777
      %4261 = vmatpush.msra.mxu0 %v3776
      %4262 = vmatpush.msra.mxu0 %v3775
      %4263 = vmatpush.msra.mxu0 %v3774
      %4264 = vmatpush.msra.mxu0 %v3773
      %4265 = vmatpush.msra.mxu0 %v3772
      %4266 = vmatpush.msra.mxu0 %v3771
      %4267 = vmatpush.msra.mxu0 %v3770
      %4268 = vmatpush.msra.mxu0 %v3769
      %4269 = vmatpush.msra.mxu0 %v3768
      %4270 = vmatpush.msra.mxu0 %v3767
      %4271 = vmatpush.msra.mxu0 %v3766
      %4272 = vmatpush.msra.mxu0 %v3765
      %4273 = vmatpush.msra.mxu0 %v3764
      %4274 = vmatmul.f32.gmra.mxu0 %v3748
      %v4275 = vpop.f32.mrf.mxu0
      %v4276 = vadd.f32 %v4211, %v4275
      %4277 = vmatmul.f32.gmra.mxu0 %v3749
      %v4278 = vpop.f32.mrf.mxu0
      %v4279 = vadd.f32 %v4214, %v4278
      %4280 = vmatmul.f32.gmra.mxu0 %v3750
      %v4281 = vpop.f32.mrf.mxu0
      %v4282 = vadd.f32 %v4217, %v4281
      %4283 = vmatmul.f32.gmra.mxu0 %v3751
      %v4284 = vpop.f32.mrf.mxu0
      %v4285 = vadd.f32 %v4220, %v4284
      %4286 = vmatmul.f32.gmra.mxu0 %v3752
      %v4287 = vpop.f32.mrf.mxu0
      %v4288 = vadd.f32 %v4223, %v4287
      %4289 = vmatmul.f32.gmra.mxu0 %v3753
      %v4290 = vpop.f32.mrf.mxu0
      %v4291 = vadd.f32 %v4226, %v4290
      %4292 = vmatmul.f32.gmra.mxu0 %v3754
      %v4293 = vpop.f32.mrf.mxu0
      %v4294 = vadd.f32 %v4229, %v4293
      %4295 = vmatmul.f32.gmra.mxu0 %v3755
      %v4296 = vpop.f32.mrf.mxu0
      %v4297 = vadd.f32 %v4232, %v4296
      %4298 = vmatmul.f32.gmra.mxu0 %v3756
      %v4299 = vpop.f32.mrf.mxu0
      %v4300 = vadd.f32 %v4235, %v4299
      %4301 = vmatmul.f32.gmra.mxu0 %v3757
      %v4302 = vpop.f32.mrf.mxu0
      %v4303 = vadd.f32 %v4238, %v4302
      %4304 = vmatmul.f32.gmra.mxu0 %v3758
      %v4305 = vpop.f32.mrf.mxu0
      %v4306 = vadd.f32 %v4241, %v4305
      %4307 = vmatmul.f32.gmra.mxu0 %v3759
      %v4308 = vpop.f32.mrf.mxu0
      %v4309 = vadd.f32 %v4244, %v4308
      %4310 = vmatmul.f32.gmra.mxu0 %v3760
      %v4311 = vpop.f32.mrf.mxu0
      %v4312 = vadd.f32 %v4247, %v4311
      %4313 = vmatmul.f32.gmra.mxu0 %v3761
      %v4314 = vpop.f32.mrf.mxu0
      %v4315 = vadd.f32 %v4250, %v4314
      %4316 = vmatmul.f32.gmra.mxu0 %v3762
      %v4317 = vpop.f32.mrf.mxu0
      %v4318 = vadd.f32 %v4253, %v4317
      %4319 = vmatmul.f32.gmra.mxu0 %v3763
      %v4320 = vpop.f32.mrf.mxu0
      %v4321 = vadd.f32 %v4256, %v4320
      %4322 = vdwg.mxu0
      %v4323 = vld [vmem:[#allocation3 + $0xb7] sm:$0xff]
      %v4324 = vld [vmem:[#allocation3 + $0xbf] sm:$0xff]
      %v4325 = vld [vmem:[#allocation3 + $0xc7] sm:$0xff]
      %v4326 = vld [vmem:[#allocation3 + $0xcf] sm:$0xff]
      %v4327 = vld [vmem:[#allocation3 + $0xd7] sm:$0xff]
      %v4328 = vld [vmem:[#allocation3 + $0xdf] sm:$0xff]
      %v4329 = vld [vmem:[#allocation3 + $0xe7] sm:$0xff]
      %v4330 = vld [vmem:[#allocation3 + $0xef] sm:$0xff]
      %v4331 = vld [vmem:[#allocation3 + $0xf7] sm:$0xff]
      %v4332 = vld [vmem:[#allocation3 + $0xff] sm:$0xff]
      %v4333 = vld [vmem:[#allocation3 + $0x107] sm:$0xff]
      %v4334 = vld [vmem:[#allocation3 + $0x10f] sm:$0xff]
      %v4335 = vld [vmem:[#allocation3 + $0x117] sm:$0xff]
      %v4336 = vld [vmem:[#allocation3 + $0x11f] sm:$0xff]
      %v4337 = vld [vmem:[#allocation3 + $0x127] sm:$0xff]
      %v4338 = vld [vmem:[#allocation3 + $0x12f] sm:$0xff]
      %v4339 = vld [vmem:[#allocation3 + $0xb8] sm:$0xff]
      %v4340 = vld [vmem:[#allocation3 + $0xc0] sm:$0xff]
      %v4341 = vld [vmem:[#allocation3 + $0xc8] sm:$0xff]
      %v4342 = vld [vmem:[#allocation3 + $0xd0] sm:$0xff]
      %v4343 = vld [vmem:[#allocation3 + $0xd8] sm:$0xff]
      %v4344 = vld [vmem:[#allocation3 + $0xe0] sm:$0xff]
      %v4345 = vld [vmem:[#allocation3 + $0xe8] sm:$0xff]
      %v4346 = vld [vmem:[#allocation3 + $0xf0] sm:$0xff]
      %v4347 = vld [vmem:[#allocation3 + $0xf8] sm:$0xff]
      %v4348 = vld [vmem:[#allocation3 + $0x100] sm:$0xff]
      %v4349 = vld [vmem:[#allocation3 + $0x108] sm:$0xff]
      %v4350 = vld [vmem:[#allocation3 + $0x110] sm:$0xff]
      %v4351 = vld [vmem:[#allocation3 + $0x118] sm:$0xff]
      %v4352 = vld [vmem:[#allocation3 + $0x120] sm:$0xff]
      %v4353 = vld [vmem:[#allocation3 + $0x128] sm:$0xff]
      %v4354 = vld [vmem:[#allocation3 + $0x130] sm:$0xff]
      %4355 = vrot.lane.b32.xlu0 %v4339, 16
      %v4356 = vpop.permute.xlu0 %4355
      %4357 = vrot.lane.b32.xlu0 %v4340, 16
      %v4358 = vpop.permute.xlu0 %4357
      %4359 = vrot.lane.b32.xlu0 %v4341, 16
      %v4360 = vpop.permute.xlu0 %4359
      %4361 = vrot.lane.b32.xlu0 %v4342, 16
      %v4362 = vpop.permute.xlu0 %4361
      %4363 = vrot.lane.b32.xlu0 %v4343, 16
      %v4364 = vpop.permute.xlu0 %4363
      %4365 = vrot.lane.b32.xlu0 %v4344, 16
      %v4366 = vpop.permute.xlu0 %4365
      %4367 = vrot.lane.b32.xlu0 %v4345, 16
      %v4368 = vpop.permute.xlu0 %4367
      %4369 = vrot.lane.b32.xlu0 %v4346, 16
      %v4370 = vpop.permute.xlu0 %4369
      %4371 = vrot.lane.b32.xlu0 %v4347, 16
      %v4372 = vpop.permute.xlu0 %4371
      %4373 = vrot.lane.b32.xlu0 %v4348, 16
      %v4374 = vpop.permute.xlu0 %4373
      %4375 = vrot.lane.b32.xlu0 %v4349, 16
      %v4376 = vpop.permute.xlu0 %4375
      %4377 = vrot.lane.b32.xlu0 %v4350, 16
      %v4378 = vpop.permute.xlu0 %4377
      %4379 = vrot.lane.b32.xlu0 %v4351, 16
      %v4380 = vpop.permute.xlu0 %4379
      %4381 = vrot.lane.b32.xlu0 %v4352, 16
      %v4382 = vpop.permute.xlu0 %4381
      %4383 = vrot.lane.b32.xlu0 %v4353, 16
      %v4384 = vpop.permute.xlu0 %4383
      %4385 = vrot.lane.b32.xlu0 %v4354, 16
      %v4386 = vpop.permute.xlu0 %4385
      %v4387 = vadd.f32 %v4323, %v4356
      %v4388 = vadd.f32 %v4324, %v4358
      %v4389 = vadd.f32 %v4325, %v4360
      %v4390 = vadd.f32 %v4326, %v4362
      %v4391 = vadd.f32 %v4327, %v4364
      %v4392 = vadd.f32 %v4328, %v4366
      %v4393 = vadd.f32 %v4329, %v4368
      %v4394 = vadd.f32 %v4330, %v4370
      %v4395 = vadd.f32 %v4331, %v4372
      %v4396 = vadd.f32 %v4332, %v4374
      %v4397 = vadd.f32 %v4333, %v4376
      %v4398 = vadd.f32 %v4334, %v4378
      %v4399 = vadd.f32 %v4335, %v4380
      %v4400 = vadd.f32 %v4336, %v4382
      %v4401 = vadd.f32 %v4337, %v4384
      %v4402 = vadd.f32 %v4338, %v4386
      %v4403 = vld [vmem:[#allocation3 + $0xb9] sm:$0xff]
      %v4404 = vld [vmem:[#allocation3 + $0xc1] sm:$0xff]
      %v4405 = vld [vmem:[#allocation3 + $0xc9] sm:$0xff]
      %v4406 = vld [vmem:[#allocation3 + $0xd1] sm:$0xff]
      %v4407 = vld [vmem:[#allocation3 + $0xd9] sm:$0xff]
      %v4408 = vld [vmem:[#allocation3 + $0xe1] sm:$0xff]
      %v4409 = vld [vmem:[#allocation3 + $0xe9] sm:$0xff]
      %v4410 = vld [vmem:[#allocation3 + $0xf1] sm:$0xff]
      %v4411 = vld [vmem:[#allocation3 + $0xf9] sm:$0xff]
      %v4412 = vld [vmem:[#allocation3 + $0x101] sm:$0xff]
      %v4413 = vld [vmem:[#allocation3 + $0x109] sm:$0xff]
      %v4414 = vld [vmem:[#allocation3 + $0x111] sm:$0xff]
      %v4415 = vld [vmem:[#allocation3 + $0x119] sm:$0xff]
      %v4416 = vld [vmem:[#allocation3 + $0x121] sm:$0xff]
      %v4417 = vld [vmem:[#allocation3 + $0x129] sm:$0xff]
      %v4418 = vld [vmem:[#allocation3 + $0x131] sm:$0xff]
      %4419 = vrot.lane.b32.xlu0 %v4403, 32
      %v4420 = vpop.permute.xlu0 %4419
      %4421 = vrot.lane.b32.xlu0 %v4404, 32
      %v4422 = vpop.permute.xlu0 %4421
      %4423 = vrot.lane.b32.xlu0 %v4405, 32
      %v4424 = vpop.permute.xlu0 %4423
      %4425 = vrot.lane.b32.xlu0 %v4406, 32
      %v4426 = vpop.permute.xlu0 %4425
      %4427 = vrot.lane.b32.xlu0 %v4407, 32
      %v4428 = vpop.permute.xlu0 %4427
      %4429 = vrot.lane.b32.xlu0 %v4408, 32
      %v4430 = vpop.permute.xlu0 %4429
      %4431 = vrot.lane.b32.xlu0 %v4409, 32
      %v4432 = vpop.permute.xlu0 %4431
      %4433 = vrot.lane.b32.xlu0 %v4410, 32
      %v4434 = vpop.permute.xlu0 %4433
      %4435 = vrot.lane.b32.xlu0 %v4411, 32
      %v4436 = vpop.permute.xlu0 %4435
      %4437 = vrot.lane.b32.xlu0 %v4412, 32
      %v4438 = vpop.permute.xlu0 %4437
      %4439 = vrot.lane.b32.xlu0 %v4413, 32
      %v4440 = vpop.permute.xlu0 %4439
      %4441 = vrot.lane.b32.xlu0 %v4414, 32
      %v4442 = vpop.permute.xlu0 %4441
      %4443 = vrot.lane.b32.xlu0 %v4415, 32
      %v4444 = vpop.permute.xlu0 %4443
      %4445 = vrot.lane.b32.xlu0 %v4416, 32
      %v4446 = vpop.permute.xlu0 %4445
      %4447 = vrot.lane.b32.xlu0 %v4417, 32
      %v4448 = vpop.permute.xlu0 %4447
      %4449 = vrot.lane.b32.xlu0 %v4418, 32
      %v4450 = vpop.permute.xlu0 %4449
      %v4451 = vadd.f32 %v4387, %v4420
      %v4452 = vadd.f32 %v4388, %v4422
      %v4453 = vadd.f32 %v4389, %v4424
      %v4454 = vadd.f32 %v4390, %v4426
      %v4455 = vadd.f32 %v4391, %v4428
      %v4456 = vadd.f32 %v4392, %v4430
      %v4457 = vadd.f32 %v4393, %v4432
      %v4458 = vadd.f32 %v4394, %v4434
      %v4459 = vadd.f32 %v4395, %v4436
      %v4460 = vadd.f32 %v4396, %v4438
      %v4461 = vadd.f32 %v4397, %v4440
      %v4462 = vadd.f32 %v4398, %v4442
      %v4463 = vadd.f32 %v4399, %v4444
      %v4464 = vadd.f32 %v4400, %v4446
      %v4465 = vadd.f32 %v4401, %v4448
      %v4466 = vadd.f32 %v4402, %v4450
      %v4467 = vld [vmem:[#allocation3 + $0xba] sm:$0xff]
      %v4468 = vld [vmem:[#allocation3 + $0xc2] sm:$0xff]
      %v4469 = vld [vmem:[#allocation3 + $0xca] sm:$0xff]
      %v4470 = vld [vmem:[#allocation3 + $0xd2] sm:$0xff]
      %v4471 = vld [vmem:[#allocation3 + $0xda] sm:$0xff]
      %v4472 = vld [vmem:[#allocation3 + $0xe2] sm:$0xff]
      %v4473 = vld [vmem:[#allocation3 + $0xea] sm:$0xff]
      %v4474 = vld [vmem:[#allocation3 + $0xf2] sm:$0xff]
      %v4475 = vld [vmem:[#allocation3 + $0xfa] sm:$0xff]
      %v4476 = vld [vmem:[#allocation3 + $0x102] sm:$0xff]
      %v4477 = vld [vmem:[#allocation3 + $0x10a] sm:$0xff]
      %v4478 = vld [vmem:[#allocation3 + $0x112] sm:$0xff]
      %v4479 = vld [vmem:[#allocation3 + $0x11a] sm:$0xff]
      %v4480 = vld [vmem:[#allocation3 + $0x122] sm:$0xff]
      %v4481 = vld [vmem:[#allocation3 + $0x12a] sm:$0xff]
      %v4482 = vld [vmem:[#allocation3 + $0x132] sm:$0xff]
      %4483 = vrot.lane.b32.xlu0 %v4467, 48
      %v4484 = vpop.permute.xlu0 %4483
      %4485 = vrot.lane.b32.xlu0 %v4468, 48
      %v4486 = vpop.permute.xlu0 %4485
      %4487 = vrot.lane.b32.xlu0 %v4469, 48
      %v4488 = vpop.permute.xlu0 %4487
      %4489 = vrot.lane.b32.xlu0 %v4470, 48
      %v4490 = vpop.permute.xlu0 %4489
      %4491 = vrot.lane.b32.xlu0 %v4471, 48
      %v4492 = vpop.permute.xlu0 %4491
      %4493 = vrot.lane.b32.xlu0 %v4472, 48
      %v4494 = vpop.permute.xlu0 %4493
      %4495 = vrot.lane.b32.xlu0 %v4473, 48
      %v4496 = vpop.permute.xlu0 %4495
      %4497 = vrot.lane.b32.xlu0 %v4474, 48
      %v4498 = vpop.permute.xlu0 %4497
      %4499 = vrot.lane.b32.xlu0 %v4475, 48
      %v4500 = vpop.permute.xlu0 %4499
      %4501 = vrot.lane.b32.xlu0 %v4476, 48
      %v4502 = vpop.permute.xlu0 %4501
      %4503 = vrot.lane.b32.xlu0 %v4477, 48
      %v4504 = vpop.permute.xlu0 %4503
      %4505 = vrot.lane.b32.xlu0 %v4478, 48
      %v4506 = vpop.permute.xlu0 %4505
      %4507 = vrot.lane.b32.xlu0 %v4479, 48
      %v4508 = vpop.permute.xlu0 %4507
      %4509 = vrot.lane.b32.xlu0 %v4480, 48
      %v4510 = vpop.permute.xlu0 %4509
      %4511 = vrot.lane.b32.xlu0 %v4481, 48
      %v4512 = vpop.permute.xlu0 %4511
      %4513 = vrot.lane.b32.xlu0 %v4482, 48
      %v4514 = vpop.permute.xlu0 %4513
      %v4515 = vadd.f32 %v4451, %v4484
      %v4516 = vadd.f32 %v4452, %v4486
      %v4517 = vadd.f32 %v4453, %v4488
      %v4518 = vadd.f32 %v4454, %v4490
      %v4519 = vadd.f32 %v4455, %v4492
      %v4520 = vadd.f32 %v4456, %v4494
      %v4521 = vadd.f32 %v4457, %v4496
      %v4522 = vadd.f32 %v4458, %v4498
      %v4523 = vadd.f32 %v4459, %v4500
      %v4524 = vadd.f32 %v4460, %v4502
      %v4525 = vadd.f32 %v4461, %v4504
      %v4526 = vadd.f32 %v4462, %v4506
      %v4527 = vadd.f32 %v4463, %v4508
      %v4528 = vadd.f32 %v4464, %v4510
      %v4529 = vadd.f32 %v4465, %v4512
      %v4530 = vadd.f32 %v4466, %v4514
      %v4531 = vld [vmem:[#allocation3 + $0x138] sm:$0xff]
      %v4532 = vld [vmem:[#allocation3 + $0x140] sm:$0xff]
      %4533 = vrot.lane.b32.xlu0 %v4341, 64
      %v4534 = vpop.permute.xlu0 %4533
      %4535 = vrot.lane.b32.xlu0 %v4342, 64
      %v4536 = vpop.permute.xlu0 %4535
      %4537 = vrot.lane.b32.xlu0 %v4343, 64
      %v4538 = vpop.permute.xlu0 %4537
      %4539 = vrot.lane.b32.xlu0 %v4344, 64
      %v4540 = vpop.permute.xlu0 %4539
      %4541 = vrot.lane.b32.xlu0 %v4345, 64
      %v4542 = vpop.permute.xlu0 %4541
      %4543 = vrot.lane.b32.xlu0 %v4346, 64
      %v4544 = vpop.permute.xlu0 %4543
      %4545 = vrot.lane.b32.xlu0 %v4347, 64
      %v4546 = vpop.permute.xlu0 %4545
      %4547 = vrot.lane.b32.xlu0 %v4348, 64
      %v4548 = vpop.permute.xlu0 %4547
      %4549 = vrot.lane.b32.xlu0 %v4349, 64
      %v4550 = vpop.permute.xlu0 %4549
      %4551 = vrot.lane.b32.xlu0 %v4350, 64
      %v4552 = vpop.permute.xlu0 %4551
      %4553 = vrot.lane.b32.xlu0 %v4351, 64
      %v4554 = vpop.permute.xlu0 %4553
      %4555 = vrot.lane.b32.xlu0 %v4352, 64
      %v4556 = vpop.permute.xlu0 %4555
      %4557 = vrot.lane.b32.xlu0 %v4353, 64
      %v4558 = vpop.permute.xlu0 %4557
      %4559 = vrot.lane.b32.xlu0 %v4354, 64
      %v4560 = vpop.permute.xlu0 %4559
      %4561 = vrot.lane.b32.xlu0 %v4531, 64
      %v4562 = vpop.permute.xlu0 %4561
      %4563 = vrot.lane.b32.xlu0 %v4532, 64
      %v4564 = vpop.permute.xlu0 %4563
      %v4565 = vadd.f32 %v4515, %v4534
      %v4566 = vadd.f32 %v4516, %v4536
      %v4567 = vadd.f32 %v4517, %v4538
      %v4568 = vadd.f32 %v4518, %v4540
      %v4569 = vadd.f32 %v4519, %v4542
      %v4570 = vadd.f32 %v4520, %v4544
      %v4571 = vadd.f32 %v4521, %v4546
      %v4572 = vadd.f32 %v4522, %v4548
      %v4573 = vadd.f32 %v4523, %v4550
      %v4574 = vadd.f32 %v4524, %v4552
      %v4575 = vadd.f32 %v4525, %v4554
      %v4576 = vadd.f32 %v4526, %v4556
      %v4577 = vadd.f32 %v4527, %v4558
      %v4578 = vadd.f32 %v4528, %v4560
      %v4579 = vadd.f32 %v4529, %v4562
      %v4580 = vadd.f32 %v4530, %v4564
      %v4581 = vld [vmem:[#allocation3 + $0x139] sm:$0xff]
      %v4582 = vld [vmem:[#allocation3 + $0x141] sm:$0xff]
      %4583 = vrot.lane.b32.xlu0 %v4405, 80
      %v4584 = vpop.permute.xlu0 %4583
      %4585 = vrot.lane.b32.xlu0 %v4406, 80
      %v4586 = vpop.permute.xlu0 %4585
      %4587 = vrot.lane.b32.xlu0 %v4407, 80
      %v4588 = vpop.permute.xlu0 %4587
      %4589 = vrot.lane.b32.xlu0 %v4408, 80
      %v4590 = vpop.permute.xlu0 %4589
      %4591 = vrot.lane.b32.xlu0 %v4409, 80
      %v4592 = vpop.permute.xlu0 %4591
      %4593 = vrot.lane.b32.xlu0 %v4410, 80
      %v4594 = vpop.permute.xlu0 %4593
      %4595 = vrot.lane.b32.xlu0 %v4411, 80
      %v4596 = vpop.permute.xlu0 %4595
      %4597 = vrot.lane.b32.xlu0 %v4412, 80
      %v4598 = vpop.permute.xlu0 %4597
      %4599 = vrot.lane.b32.xlu0 %v4413, 80
      %v4600 = vpop.permute.xlu0 %4599
      %4601 = vrot.lane.b32.xlu0 %v4414, 80
      %v4602 = vpop.permute.xlu0 %4601
      %4603 = vrot.lane.b32.xlu0 %v4415, 80
      %v4604 = vpop.permute.xlu0 %4603
      %4605 = vrot.lane.b32.xlu0 %v4416, 80
      %v4606 = vpop.permute.xlu0 %4605
      %4607 = vrot.lane.b32.xlu0 %v4417, 80
      %v4608 = vpop.permute.xlu0 %4607
      %4609 = vrot.lane.b32.xlu0 %v4418, 80
      %v4610 = vpop.permute.xlu0 %4609
      %4611 = vrot.lane.b32.xlu0 %v4581, 80
      %v4612 = vpop.permute.xlu0 %4611
      %4613 = vrot.lane.b32.xlu0 %v4582, 80
      %v4614 = vpop.permute.xlu0 %4613
      %v4615 = vadd.f32 %v4565, %v4584
      %v4616 = vadd.f32 %v4566, %v4586
      %v4617 = vadd.f32 %v4567, %v4588
      %v4618 = vadd.f32 %v4568, %v4590
      %v4619 = vadd.f32 %v4569, %v4592
      %v4620 = vadd.f32 %v4570, %v4594
      %v4621 = vadd.f32 %v4571, %v4596
      %v4622 = vadd.f32 %v4572, %v4598
      %v4623 = vadd.f32 %v4573, %v4600
      %v4624 = vadd.f32 %v4574, %v4602
      %v4625 = vadd.f32 %v4575, %v4604
      %v4626 = vadd.f32 %v4576, %v4606
      %v4627 = vadd.f32 %v4577, %v4608
      %v4628 = vadd.f32 %v4578, %v4610
      %v4629 = vadd.f32 %v4579, %v4612
      %v4630 = vadd.f32 %v4580, %v4614
      %v4631 = vld [vmem:[#allocation3 + $0x13a] sm:$0xff]
      %v4632 = vld [vmem:[#allocation3 + $0x142] sm:$0xff]
      %4633 = vrot.lane.b32.xlu0 %v4469, 96
      %v4634 = vpop.permute.xlu0 %4633
      %4635 = vrot.lane.b32.xlu0 %v4470, 96
      %v4636 = vpop.permute.xlu0 %4635
      %4637 = vrot.lane.b32.xlu0 %v4471, 96
      %v4638 = vpop.permute.xlu0 %4637
      %4639 = vrot.lane.b32.xlu0 %v4472, 96
      %v4640 = vpop.permute.xlu0 %4639
      %4641 = vrot.lane.b32.xlu0 %v4473, 96
      %v4642 = vpop.permute.xlu0 %4641
      %4643 = vrot.lane.b32.xlu0 %v4474, 96
      %v4644 = vpop.permute.xlu0 %4643
      %4645 = vrot.lane.b32.xlu0 %v4475, 96
      %v4646 = vpop.permute.xlu0 %4645
      %4647 = vrot.lane.b32.xlu0 %v4476, 96
      %v4648 = vpop.permute.xlu0 %4647
      %4649 = vrot.lane.b32.xlu0 %v4477, 96
      %v4650 = vpop.permute.xlu0 %4649
      %4651 = vrot.lane.b32.xlu0 %v4478, 96
      %v4652 = vpop.permute.xlu0 %4651
      %4653 = vrot.lane.b32.xlu0 %v4479, 96
      %v4654 = vpop.permute.xlu0 %4653
      %4655 = vrot.lane.b32.xlu0 %v4480, 96
      %v4656 = vpop.permute.xlu0 %4655
      %4657 = vrot.lane.b32.xlu0 %v4481, 96
      %v4658 = vpop.permute.xlu0 %4657
      %4659 = vrot.lane.b32.xlu0 %v4482, 96
      %v4660 = vpop.permute.xlu0 %4659
      %4661 = vrot.lane.b32.xlu0 %v4631, 96
      %v4662 = vpop.permute.xlu0 %4661
      %4663 = vrot.lane.b32.xlu0 %v4632, 96
      %v4664 = vpop.permute.xlu0 %4663
      %v4665 = vadd.f32 %v4615, %v4634
      %v4666 = vadd.f32 %v4616, %v4636
      %v4667 = vadd.f32 %v4617, %v4638
      %v4668 = vadd.f32 %v4618, %v4640
      %v4669 = vadd.f32 %v4619, %v4642
      %v4670 = vadd.f32 %v4620, %v4644
      %v4671 = vadd.f32 %v4621, %v4646
      %v4672 = vadd.f32 %v4622, %v4648
      %v4673 = vadd.f32 %v4623, %v4650
      %v4674 = vadd.f32 %v4624, %v4652
      %v4675 = vadd.f32 %v4625, %v4654
      %v4676 = vadd.f32 %v4626, %v4656
      %v4677 = vadd.f32 %v4627, %v4658
      %v4678 = vadd.f32 %v4628, %v4660
      %v4679 = vadd.f32 %v4629, %v4662
      %v4680 = vadd.f32 %v4630, %v4664
      %v4681 = vld [vmem:[#allocation3 + $0xcb] sm:$0xff]
      %v4682 = vld [vmem:[#allocation3 + $0xd3] sm:$0xff]
      %v4683 = vld [vmem:[#allocation3 + $0xdb] sm:$0xff]
      %v4684 = vld [vmem:[#allocation3 + $0xe3] sm:$0xff]
      %v4685 = vld [vmem:[#allocation3 + $0xeb] sm:$0xff]
      %v4686 = vld [vmem:[#allocation3 + $0xf3] sm:$0xff]
      %v4687 = vld [vmem:[#allocation3 + $0xfb] sm:$0xff]
      %v4688 = vld [vmem:[#allocation3 + $0x103] sm:$0xff]
      %v4689 = vld [vmem:[#allocation3 + $0x10b] sm:$0xff]
      %v4690 = vld [vmem:[#allocation3 + $0x113] sm:$0xff]
      %v4691 = vld [vmem:[#allocation3 + $0x11b] sm:$0xff]
      %v4692 = vld [vmem:[#allocation3 + $0x123] sm:$0xff]
      %v4693 = vld [vmem:[#allocation3 + $0x12b] sm:$0xff]
      %v4694 = vld [vmem:[#allocation3 + $0x133] sm:$0xff]
      %v4695 = vld [vmem:[#allocation3 + $0x13b] sm:$0xff]
      %v4696 = vld [vmem:[#allocation3 + $0x143] sm:$0xff]
      %4697 = vrot.lane.b32.xlu0 %v4681, 112
      %v4698 = vpop.permute.xlu0 %4697
      %4699 = vrot.lane.b32.xlu0 %v4682, 112
      %v4700 = vpop.permute.xlu0 %4699
      %4701 = vrot.lane.b32.xlu0 %v4683, 112
      %v4702 = vpop.permute.xlu0 %4701
      %4703 = vrot.lane.b32.xlu0 %v4684, 112
      %v4704 = vpop.permute.xlu0 %4703
      %4705 = vrot.lane.b32.xlu0 %v4685, 112
      %v4706 = vpop.permute.xlu0 %4705
      %4707 = vrot.lane.b32.xlu0 %v4686, 112
      %v4708 = vpop.permute.xlu0 %4707
      %4709 = vrot.lane.b32.xlu0 %v4687, 112
      %v4710 = vpop.permute.xlu0 %4709
      %4711 = vrot.lane.b32.xlu0 %v4688, 112
      %v4712 = vpop.permute.xlu0 %4711
      %4713 = vrot.lane.b32.xlu0 %v4689, 112
      %v4714 = vpop.permute.xlu0 %4713
      %4715 = vrot.lane.b32.xlu0 %v4690, 112
      %v4716 = vpop.permute.xlu0 %4715
      %4717 = vrot.lane.b32.xlu0 %v4691, 112
      %v4718 = vpop.permute.xlu0 %4717
      %4719 = vrot.lane.b32.xlu0 %v4692, 112
      %v4720 = vpop.permute.xlu0 %4719
      %4721 = vrot.lane.b32.xlu0 %v4693, 112
      %v4722 = vpop.permute.xlu0 %4721
      %4723 = vrot.lane.b32.xlu0 %v4694, 112
      %v4724 = vpop.permute.xlu0 %4723
      %4725 = vrot.lane.b32.xlu0 %v4695, 112
      %v4726 = vpop.permute.xlu0 %4725
      %4727 = vrot.lane.b32.xlu0 %v4696, 112
      %v4728 = vpop.permute.xlu0 %4727
      %v4729 = vadd.f32 %v4665, %v4698
      %v4730 = vadd.f32 %v4666, %v4700
      %v4731 = vadd.f32 %v4667, %v4702
      %v4732 = vadd.f32 %v4668, %v4704
      %v4733 = vadd.f32 %v4669, %v4706
      %v4734 = vadd.f32 %v4670, %v4708
      %v4735 = vadd.f32 %v4671, %v4710
      %v4736 = vadd.f32 %v4672, %v4712
      %v4737 = vadd.f32 %v4673, %v4714
      %v4738 = vadd.f32 %v4674, %v4716
      %v4739 = vadd.f32 %v4675, %v4718
      %v4740 = vadd.f32 %v4676, %v4720
      %v4741 = vadd.f32 %v4677, %v4722
      %v4742 = vadd.f32 %v4678, %v4724
      %v4743 = vadd.f32 %v4679, %v4726
      %v4744 = vadd.f32 %v4680, %v4728
      %v4745 = vld [vmem:[%s3079] sm:$0xff]
      %v4746 = vld [vmem:[%s3079 + $0x8] sm:$0xff]
      %v4747 = vld [vmem:[%s3079 + $0x10] sm:$0xff]
      %v4748 = vld [vmem:[%s3079 + $0x18] sm:$0xff]
      %v4749 = vld [vmem:[%s3079 + $0x20] sm:$0xff]
      %v4750 = vld [vmem:[%s3079 + $0x28] sm:$0xff]
      %v4751 = vld [vmem:[%s3079 + $0x30] sm:$0xff]
      %v4752 = vld [vmem:[%s3079 + $0x38] sm:$0xff]
      %v4753 = vld [vmem:[%s3079 + $0x40] sm:$0xff]
      %v4754 = vld [vmem:[%s3079 + $0x48] sm:$0xff]
      %v4755 = vld [vmem:[%s3079 + $0x50] sm:$0xff]
      %v4756 = vld [vmem:[%s3079 + $0x58] sm:$0xff]
      %v4757 = vld [vmem:[%s3079 + $0x60] sm:$0xff]
      %v4758 = vld [vmem:[%s3079 + $0x68] sm:$0xff]
      %v4759 = vld [vmem:[%s3079 + $0x70] sm:$0xff]
      %v4760 = vld [vmem:[%s3079 + $0x78] sm:$0xff]
      %4761 = vmatpush.msra.mxu0 %v4760
      %4762 = vmatpush.msra.mxu0 %v4759
      %4763 = vmatpush.msra.mxu0 %v4758
      %4764 = vmatpush.msra.mxu0 %v4757
      %4765 = vmatpush.msra.mxu0 %v4756
      %4766 = vmatpush.msra.mxu0 %v4755
      %4767 = vmatpush.msra.mxu0 %v4754
      %4768 = vmatpush.msra.mxu0 %v4753
      %4769 = vmatpush.msra.mxu0 %v4752
      %4770 = vmatpush.msra.mxu0 %v4751
      %4771 = vmatpush.msra.mxu0 %v4750
      %4772 = vmatpush.msra.mxu0 %v4749
      %4773 = vmatpush.msra.mxu0 %v4748
      %4774 = vmatpush.msra.mxu0 %v4747
      %4775 = vmatpush.msra.mxu0 %v4746
      %4776 = vmatpush.msra.mxu0 %v4745
      %4777 = vmatmul.f32.gmra.mxu0 %v4729
      %v4778 = vpop.f32.mrf.mxu0
      %v4779 = vadd.f32 0.0, %v4778
      %4780 = vmatmul.f32.gmra.mxu0 %v4730
      %v4781 = vpop.f32.mrf.mxu0
      %v4782 = vadd.f32 0.0, %v4781
      %4783 = vmatmul.f32.gmra.mxu0 %v4731
      %v4784 = vpop.f32.mrf.mxu0
      %v4785 = vadd.f32 0.0, %v4784
      %4786 = vmatmul.f32.gmra.mxu0 %v4732
      %v4787 = vpop.f32.mrf.mxu0
      %v4788 = vadd.f32 0.0, %v4787
      %4789 = vmatmul.f32.gmra.mxu0 %v4733
      %v4790 = vpop.f32.mrf.mxu0
      %v4791 = vadd.f32 0.0, %v4790
      %4792 = vmatmul.f32.gmra.mxu0 %v4734
      %v4793 = vpop.f32.mrf.mxu0
      %v4794 = vadd.f32 0.0, %v4793
      %4795 = vmatmul.f32.gmra.mxu0 %v4735
      %v4796 = vpop.f32.mrf.mxu0
      %v4797 = vadd.f32 0.0, %v4796
      %4798 = vmatmul.f32.gmra.mxu0 %v4736
      %v4799 = vpop.f32.mrf.mxu0
      %v4800 = vadd.f32 0.0, %v4799
      %4801 = vmatmul.f32.gmra.mxu0 %v4737
      %v4802 = vpop.f32.mrf.mxu0
      %v4803 = vadd.f32 0.0, %v4802
      %4804 = vmatmul.f32.gmra.mxu0 %v4738
      %v4805 = vpop.f32.mrf.mxu0
      %v4806 = vadd.f32 0.0, %v4805
      %4807 = vmatmul.f32.gmra.mxu0 %v4739
      %v4808 = vpop.f32.mrf.mxu0
      %v4809 = vadd.f32 0.0, %v4808
      %4810 = vmatmul.f32.gmra.mxu0 %v4740
      %v4811 = vpop.f32.mrf.mxu0
      %v4812 = vadd.f32 0.0, %v4811
      %4813 = vmatmul.f32.gmra.mxu0 %v4741
      %v4814 = vpop.f32.mrf.mxu0
      %v4815 = vadd.f32 0.0, %v4814
      %4816 = vmatmul.f32.gmra.mxu0 %v4742
      %v4817 = vpop.f32.mrf.mxu0
      %v4818 = vadd.f32 0.0, %v4817
      %4819 = vmatmul.f32.gmra.mxu0 %v4743
      %v4820 = vpop.f32.mrf.mxu0
      %v4821 = vadd.f32 0.0, %v4820
      %4822 = vmatmul.f32.gmra.mxu0 %v4744
      %v4823 = vpop.f32.mrf.mxu0
      %v4824 = vadd.f32 0.0, %v4823
      %4825 = vdwg.mxu0
      %v4826 = vadd.f32 %v4276, %v4779
      %v4827 = vadd.f32 %v4279, %v4782
      %v4828 = vadd.f32 %v4282, %v4785
      %v4829 = vadd.f32 %v4285, %v4788
      %v4830 = vadd.f32 %v4288, %v4791
      %v4831 = vadd.f32 %v4291, %v4794
      %v4832 = vadd.f32 %v4294, %v4797
      %v4833 = vadd.f32 %v4297, %v4800
      %v4834 = vadd.f32 %v4300, %v4803
      %v4835 = vadd.f32 %v4303, %v4806
      %v4836 = vadd.f32 %v4306, %v4809
      %v4837 = vadd.f32 %v4309, %v4812
      %v4838 = vadd.f32 %v4312, %v4815
      %v4839 = vadd.f32 %v4315, %v4818
      %v4840 = vadd.f32 %v4318, %v4821
      %v4841 = vadd.f32 %v4321, %v4824
      %v4842 = vld [vmem:[#allocation3 + $0xcc] sm:$0xff]
      %v4843 = vld [vmem:[#allocation3 + $0xd4] sm:$0xff]
      %v4844 = vld [vmem:[#allocation3 + $0xdc] sm:$0xff]
      %v4845 = vld [vmem:[#allocation3 + $0xe4] sm:$0xff]
      %v4846 = vld [vmem:[#allocation3 + $0xec] sm:$0xff]
      %v4847 = vld [vmem:[#allocation3 + $0xf4] sm:$0xff]
      %v4848 = vld [vmem:[#allocation3 + $0xfc] sm:$0xff]
      %v4849 = vld [vmem:[#allocation3 + $0x104] sm:$0xff]
      %v4850 = vld [vmem:[#allocation3 + $0x10c] sm:$0xff]
      %v4851 = vld [vmem:[#allocation3 + $0x114] sm:$0xff]
      %v4852 = vld [vmem:[#allocation3 + $0x11c] sm:$0xff]
      %v4853 = vld [vmem:[#allocation3 + $0x124] sm:$0xff]
      %v4854 = vld [vmem:[#allocation3 + $0x12c] sm:$0xff]
      %v4855 = vld [vmem:[#allocation3 + $0x134] sm:$0xff]
      %v4856 = vld [vmem:[#allocation3 + $0x13c] sm:$0xff]
      %v4857 = vld [vmem:[#allocation3 + $0x144] sm:$0xff]
      %v4858 = vld [vmem:[%s3193] sm:$0xff]
      %v4859 = vld [vmem:[%s3193 + $0x8] sm:$0xff]
      %v4860 = vld [vmem:[%s3193 + $0x10] sm:$0xff]
      %v4861 = vld [vmem:[%s3193 + $0x18] sm:$0xff]
      %v4862 = vld [vmem:[%s3193 + $0x20] sm:$0xff]
      %v4863 = vld [vmem:[%s3193 + $0x28] sm:$0xff]
      %v4864 = vld [vmem:[%s3193 + $0x30] sm:$0xff]
      %v4865 = vld [vmem:[%s3193 + $0x38] sm:$0xff]
      %v4866 = vld [vmem:[%s3193 + $0x40] sm:$0xff]
      %v4867 = vld [vmem:[%s3193 + $0x48] sm:$0xff]
      %v4868 = vld [vmem:[%s3193 + $0x50] sm:$0xff]
      %v4869 = vld [vmem:[%s3193 + $0x58] sm:$0xff]
      %v4870 = vld [vmem:[%s3193 + $0x60] sm:$0xff]
      %v4871 = vld [vmem:[%s3193 + $0x68] sm:$0xff]
      %v4872 = vld [vmem:[%s3193 + $0x70] sm:$0xff]
      %v4873 = vld [vmem:[%s3193 + $0x78] sm:$0xff]
      %4874 = vmatpush.msra.mxu0 %v4873
      %4875 = vmatpush.msra.mxu0 %v4872
      %4876 = vmatpush.msra.mxu0 %v4871
      %4877 = vmatpush.msra.mxu0 %v4870
      %4878 = vmatpush.msra.mxu0 %v4869
      %4879 = vmatpush.msra.mxu0 %v4868
      %4880 = vmatpush.msra.mxu0 %v4867
      %4881 = vmatpush.msra.mxu0 %v4866
      %4882 = vmatpush.msra.mxu0 %v4865
      %4883 = vmatpush.msra.mxu0 %v4864
      %4884 = vmatpush.msra.mxu0 %v4863
      %4885 = vmatpush.msra.mxu0 %v4862
      %4886 = vmatpush.msra.mxu0 %v4861
      %4887 = vmatpush.msra.mxu0 %v4860
      %4888 = vmatpush.msra.mxu0 %v4859
      %4889 = vmatpush.msra.mxu0 %v4858
      %4890 = vmatmul.f32.gmra.mxu0 %v4842
      %v4891 = vpop.f32.mrf.mxu0
      %v4892 = vadd.f32 0.0, %v4891
      %4893 = vmatmul.f32.gmra.mxu0 %v4843
      %v4894 = vpop.f32.mrf.mxu0
      %v4895 = vadd.f32 0.0, %v4894
      %4896 = vmatmul.f32.gmra.mxu0 %v4844
      %v4897 = vpop.f32.mrf.mxu0
      %v4898 = vadd.f32 0.0, %v4897
      %4899 = vmatmul.f32.gmra.mxu0 %v4845
      %v4900 = vpop.f32.mrf.mxu0
      %v4901 = vadd.f32 0.0, %v4900
      %4902 = vmatmul.f32.gmra.mxu0 %v4846
      %v4903 = vpop.f32.mrf.mxu0
      %v4904 = vadd.f32 0.0, %v4903
      %4905 = vmatmul.f32.gmra.mxu0 %v4847
      %v4906 = vpop.f32.mrf.mxu0
      %v4907 = vadd.f32 0.0, %v4906
      %4908 = vmatmul.f32.gmra.mxu0 %v4848
      %v4909 = vpop.f32.mrf.mxu0
      %v4910 = vadd.f32 0.0, %v4909
      %4911 = vmatmul.f32.gmra.mxu0 %v4849
      %v4912 = vpop.f32.mrf.mxu0
      %v4913 = vadd.f32 0.0, %v4912
      %4914 = vmatmul.f32.gmra.mxu0 %v4850
      %v4915 = vpop.f32.mrf.mxu0
      %v4916 = vadd.f32 0.0, %v4915
      %4917 = vmatmul.f32.gmra.mxu0 %v4851
      %v4918 = vpop.f32.mrf.mxu0
      %v4919 = vadd.f32 0.0, %v4918
      %4920 = vmatmul.f32.gmra.mxu0 %v4852
      %v4921 = vpop.f32.mrf.mxu0
      %v4922 = vadd.f32 0.0, %v4921
      %4923 = vmatmul.f32.gmra.mxu0 %v4853
      %v4924 = vpop.f32.mrf.mxu0
      %v4925 = vadd.f32 0.0, %v4924
      %4926 = vmatmul.f32.gmra.mxu0 %v4854
      %v4927 = vpop.f32.mrf.mxu0
      %v4928 = vadd.f32 0.0, %v4927
      %4929 = vmatmul.f32.gmra.mxu0 %v4855
      %v4930 = vpop.f32.mrf.mxu0
      %v4931 = vadd.f32 0.0, %v4930
      %4932 = vmatmul.f32.gmra.mxu0 %v4856
      %v4933 = vpop.f32.mrf.mxu0
      %v4934 = vadd.f32 0.0, %v4933
      %4935 = vmatmul.f32.gmra.mxu0 %v4857
      %v4936 = vpop.f32.mrf.mxu0
      %v4937 = vadd.f32 0.0, %v4936
      %4938 = vdwg.mxu0
      %v4939 = vadd.f32 %v4826, %v4892
      %v4940 = vadd.f32 %v4827, %v4895
      %v4941 = vadd.f32 %v4828, %v4898
      %v4942 = vadd.f32 %v4829, %v4901
      %v4943 = vadd.f32 %v4830, %v4904
      %v4944 = vadd.f32 %v4831, %v4907
      %v4945 = vadd.f32 %v4832, %v4910
      %v4946 = vadd.f32 %v4833, %v4913
      %v4947 = vadd.f32 %v4834, %v4916
      %v4948 = vadd.f32 %v4835, %v4919
      %v4949 = vadd.f32 %v4836, %v4922
      %v4950 = vadd.f32 %v4837, %v4925
      %v4951 = vadd.f32 %v4838, %v4928
      %v4952 = vadd.f32 %v4839, %v4931
      %v4953 = vadd.f32 %v4840, %v4934
      %v4954 = vadd.f32 %v4841, %v4937
      %v4955 = vadd.f32 %v4939, %v3292
      %v4956 = vadd.f32 %v4940, %v3292
      %v4957 = vadd.f32 %v4941, %v3292
      %v4958 = vadd.f32 %v4942, %v3292
      %v4959 = vadd.f32 %v4943, %v3292
      %v4960 = vadd.f32 %v4944, %v3292
      %v4961 = vadd.f32 %v4945, %v3292
      %v4962 = vadd.f32 %v4946, %v3292
      %v4963 = vadd.f32 %v4947, %v3292
      %v4964 = vadd.f32 %v4948, %v3292
      %v4965 = vadd.f32 %v4949, %v3292
      %v4966 = vadd.f32 %v4950, %v3292
      %v4967 = vadd.f32 %v4951, %v3292
      %v4968 = vadd.f32 %v4952, %v3292
      %v4969 = vadd.f32 %v4953, %v3292
      %v4970 = vadd.f32 %v4954, %v3292
      %v4971 = vmax.f32 %v4955, 0.0
      %v4972 = vmax.f32 %v4956, 0.0
      %v4973 = vmax.f32 %v4957, 0.0
      %v4974 = vmax.f32 %v4958, 0.0
      %v4975 = vmax.f32 %v4959, 0.0
      %v4976 = vmax.f32 %v4960, 0.0
      %v4977 = vmax.f32 %v4961, 0.0
      %v4978 = vmax.f32 %v4962, 0.0
      %v4979 = vmax.f32 %v4963, 0.0
      %v4980 = vmax.f32 %v4964, 0.0
      %v4981 = vmax.f32 %v4965, 0.0
      %v4982 = vmax.f32 %v4966, 0.0
      %v4983 = vmax.f32 %v4967, 0.0
      %v4984 = vmax.f32 %v4968, 0.0
      %v4985 = vmax.f32 %v4969, 0.0
      %v4986 = vmax.f32 %v4970, 0.0
      %4987 = vst [vmem:[#allocation4 + $0x80] sm:$0xff] %v4971
      %4988 = vst [vmem:[#allocation4 + $0x88] sm:$0xff] %v4972
      %4989 = vst [vmem:[#allocation4 + $0x90] sm:$0xff] %v4973
      %4990 = vst [vmem:[#allocation4 + $0x98] sm:$0xff] %v4974
      %4991 = vst [vmem:[#allocation4 + $0xa0] sm:$0xff] %v4975
      %4992 = vst [vmem:[#allocation4 + $0xa8] sm:$0xff] %v4976
      %4993 = vst [vmem:[#allocation4 + $0xb0] sm:$0xff] %v4977
      %4994 = vst [vmem:[#allocation4 + $0xb8] sm:$0xff] %v4978
      %4995 = vst [vmem:[#allocation4 + $0xc0] sm:$0xff] %v4979
      %4996 = vst [vmem:[#allocation4 + $0xc8] sm:$0xff] %v4980
      %4997 = vst [vmem:[#allocation4 + $0xd0] sm:$0xff] %v4981
      %4998 = vst [vmem:[#allocation4 + $0xd8] sm:$0xff] %v4982
      %4999 = vst [vmem:[#allocation4 + $0xe0] sm:$0xff] %v4983
      %5000 = vst [vmem:[#allocation4 + $0xe8] sm:$0xff] %v4984
      %5001 = vst [vmem:[#allocation4 + $0xf0] sm:$0xff] %v4985
      %5002 = vst [vmem:[#allocation4 + $0xf8] sm:$0xff] %v4986
      %v5003 = vld [vmem:[#allocation4] ss:$2 sm:$0x7f]
      %s5004 = scalar_lea.vmem [#allocation4], 1
      %v5005 = vld [vmem:[%s5004] ss:$2 sm:$0x7f]
      %s5006 = scalar_lea.vmem [#allocation4], 18
      %v5007 = vld [vmem:[%s5006] ss:$2 sm:$0x7f]
      %s5008 = scalar_lea.vmem [#allocation4], 19
      %v5009 = vld [vmem:[%s5008] ss:$2 sm:$0x7f]
      %v5010 = vmax.f32 %v5003, %v5005
      %v5011 = vmax.f32 %v5007, %v5009
      %v5012 = vmax.f32 %v5010, %v5011
      %v5013 = vld [vmem:[%s5] sm:$0xff]
      %v5014 = vld [vmem:[%s5 + $0x8] sm:$0xff]
      %v5015 = vperm.slane %v5012, 0
      %v5016 = vmul.f32 %v5013, %v5015
      %v5017 = vmul.f32 %v5014, %v5015
      %v5018 = vadd.f32 %v5016, 0.0
      %v5019 = vadd.f32 %v5017, 0.0
      %s5020 = scalar_lea.vmem %s5, 16
      %v5021 = vld [vmem:[%s5020] sm:$0xff]
      %v5022 = vld [vmem:[%s5020 + $0x8] sm:$0xff]
      %v5023 = vperm.slane %v5012, 1
      %v5024 = vmul.f32 %v5021, %v5023
      %v5025 = vmul.f32 %v5022, %v5023
      %v5026 = vadd.f32 %v5018, %v5024
      %v5027 = vadd.f32 %v5019, %v5025
      %s5028 = scalar_lea.vmem %s5, 32
      %v5029 = vld [vmem:[%s5028] sm:$0xff]
      %v5030 = vld [vmem:[%s5028 + $0x8] sm:$0xff]
      %v5031 = vperm.slane %v5012, 2
      %v5032 = vmul.f32 %v5029, %v5031
      %v5033 = vmul.f32 %v5030, %v5031
      %v5034 = vadd.f32 %v5026, %v5032
      %v5035 = vadd.f32 %v5027, %v5033
      %s5036 = scalar_lea.vmem %s5, 48
      %v5037 = vld [vmem:[%s5036] sm:$0xff]
      %v5038 = vld [vmem:[%s5036 + $0x8] sm:$0xff]
      %v5039 = vperm.slane %v5012, 3
      %v5040 = vmul.f32 %v5037, %v5039
      %v5041 = vmul.f32 %v5038, %v5039
      %v5042 = vadd.f32 %v5034, %v5040
      %v5043 = vadd.f32 %v5035, %v5041
      %s5044 = scalar_lea.vmem %s5, 64
      %v5045 = vld [vmem:[%s5044] sm:$0xff]
      %v5046 = vld [vmem:[%s5044 + $0x8] sm:$0xff]
      %v5047 = vperm.slane %v5012, 4
      %v5048 = vmul.f32 %v5045, %v5047
      %v5049 = vmul.f32 %v5046, %v5047
      %v5050 = vadd.f32 %v5042, %v5048
      %v5051 = vadd.f32 %v5043, %v5049
      %s5052 = scalar_lea.vmem %s5, 80
      %v5053 = vld [vmem:[%s5052] sm:$0xff]
      %v5054 = vld [vmem:[%s5052 + $0x8] sm:$0xff]
      %v5055 = vperm.slane %v5012, 5
      %v5056 = vmul.f32 %v5053, %v5055
      %v5057 = vmul.f32 %v5054, %v5055
      %v5058 = vadd.f32 %v5050, %v5056
      %v5059 = vadd.f32 %v5051, %v5057
      %s5060 = scalar_lea.vmem %s5, 96
      %v5061 = vld [vmem:[%s5060] sm:$0xff]
      %v5062 = vld [vmem:[%s5060 + $0x8] sm:$0xff]
      %v5063 = vperm.slane %v5012, 6
      %v5064 = vmul.f32 %v5061, %v5063
      %v5065 = vmul.f32 %v5062, %v5063
      %v5066 = vadd.f32 %v5058, %v5064
      %v5067 = vadd.f32 %v5059, %v5065
      %s5068 = scalar_lea.vmem [#allocation4], 36
      %v5069 = vld [vmem:[%s5068] ss:$2 sm:$0x7f]
      %s5070 = scalar_lea.vmem [#allocation4], 37
      %v5071 = vld [vmem:[%s5070] ss:$2 sm:$0x7f]
      %s5072 = scalar_lea.vmem [#allocation4], 54
      %v5073 = vld [vmem:[%s5072] ss:$2 sm:$0x7f]
      %s5074 = scalar_lea.vmem [#allocation4], 55
      %v5075 = vld [vmem:[%s5074] ss:$2 sm:$0x7f]
      %v5076 = vmax.f32 %v5069, %v5071
      %v5077 = vmax.f32 %v5073, %v5075
      %v5078 = vmax.f32 %v5076, %v5077
      %s5079 = scalar_lea.vmem %s5, 112
      %v5080 = vld [vmem:[%s5079] sm:$0xff]
      %v5081 = vld [vmem:[%s5079 + $0x8] sm:$0xff]
      %v5082 = vperm.slane %v5078, 0
      %v5083 = vmul.f32 %v5080, %v5082
      %v5084 = vmul.f32 %v5081, %v5082
      %v5085 = vadd.f32 %v5066, %v5083
      %v5086 = vadd.f32 %v5067, %v5084
      %s5087 = scalar_lea.vmem %s5, 128
      %v5088 = vld [vmem:[%s5087] sm:$0xff]
      %v5089 = vld [vmem:[%s5087 + $0x8] sm:$0xff]
      %v5090 = vperm.slane %v5078, 1
      %v5091 = vmul.f32 %v5088, %v5090
      %v5092 = vmul.f32 %v5089, %v5090
      %v5093 = vadd.f32 %v5085, %v5091
      %v5094 = vadd.f32 %v5086, %v5092
      %s5095 = scalar_lea.vmem %s5, 144
      %v5096 = vld [vmem:[%s5095] sm:$0xff]
      %v5097 = vld [vmem:[%s5095 + $0x8] sm:$0xff]
      %v5098 = vperm.slane %v5078, 2
      %v5099 = vmul.f32 %v5096, %v5098
      %v5100 = vmul.f32 %v5097, %v5098
      %v5101 = vadd.f32 %v5093, %v5099
      %v5102 = vadd.f32 %v5094, %v5100
      %s5103 = scalar_lea.vmem %s5, 160
      %v5104 = vld [vmem:[%s5103] sm:$0xff]
      %v5105 = vld [vmem:[%s5103 + $0x8] sm:$0xff]
      %v5106 = vperm.slane %v5078, 3
      %v5107 = vmul.f32 %v5104, %v5106
      %v5108 = vmul.f32 %v5105, %v5106
      %v5109 = vadd.f32 %v5101, %v5107
      %v5110 = vadd.f32 %v5102, %v5108
      %s5111 = scalar_lea.vmem %s5, 176
      %v5112 = vld [vmem:[%s5111] sm:$0xff]
      %v5113 = vld [vmem:[%s5111 + $0x8] sm:$0xff]
      %v5114 = vperm.slane %v5078, 4
      %v5115 = vmul.f32 %v5112, %v5114
      %v5116 = vmul.f32 %v5113, %v5114
      %v5117 = vadd.f32 %v5109, %v5115
      %v5118 = vadd.f32 %v5110, %v5116
      %s5119 = scalar_lea.vmem %s5, 192
      %v5120 = vld [vmem:[%s5119] sm:$0xff]
      %v5121 = vld [vmem:[%s5119 + $0x8] sm:$0xff]
      %v5122 = vperm.slane %v5078, 5
      %v5123 = vmul.f32 %v5120, %v5122
      %v5124 = vmul.f32 %v5121, %v5122
      %v5125 = vadd.f32 %v5117, %v5123
      %v5126 = vadd.f32 %v5118, %v5124
      %s5127 = scalar_lea.vmem %s5, 208
      %v5128 = vld [vmem:[%s5127] sm:$0xff]
      %v5129 = vld [vmem:[%s5127 + $0x8] sm:$0xff]
      %v5130 = vperm.slane %v5078, 6
      %v5131 = vmul.f32 %v5128, %v5130
      %v5132 = vmul.f32 %v5129, %v5130
      %v5133 = vadd.f32 %v5125, %v5131
      %v5134 = vadd.f32 %v5126, %v5132
      %s5135 = scalar_lea.vmem [#allocation4], 72
      %v5136 = vld [vmem:[%s5135] ss:$2 sm:$0x7f]
      %s5137 = scalar_lea.vmem [#allocation4], 73
      %v5138 = vld [vmem:[%s5137] ss:$2 sm:$0x7f]
      %s5139 = scalar_lea.vmem [#allocation4], 90
      %v5140 = vld [vmem:[%s5139] ss:$2 sm:$0x7f]
      %s5141 = scalar_lea.vmem [#allocation4], 91
      %v5142 = vld [vmem:[%s5141] ss:$2 sm:$0x7f]
      %v5143 = vmax.f32 %v5136, %v5138
      %v5144 = vmax.f32 %v5140, %v5142
      %v5145 = vmax.f32 %v5143, %v5144
      %s5146 = scalar_lea.vmem %s5, 224
      %v5147 = vld [vmem:[%s5146] sm:$0xff]
      %v5148 = vld [vmem:[%s5146 + $0x8] sm:$0xff]
      %v5149 = vperm.slane %v5145, 0
      %v5150 = vmul.f32 %v5147, %v5149
      %v5151 = vmul.f32 %v5148, %v5149
      %v5152 = vadd.f32 %v5133, %v5150
      %v5153 = vadd.f32 %v5134, %v5151
      %s5154 = scalar_lea.vmem %s5, 240
      %v5155 = vld [vmem:[%s5154] sm:$0xff]
      %v5156 = vld [vmem:[%s5154 + $0x8] sm:$0xff]
      %v5157 = vperm.slane %v5145, 1
      %v5158 = vmul.f32 %v5155, %v5157
      %v5159 = vmul.f32 %v5156, %v5157
      %v5160 = vadd.f32 %v5152, %v5158
      %v5161 = vadd.f32 %v5153, %v5159
      %s5162 = scalar_lea.vmem %s5, 256
      %v5163 = vld [vmem:[%s5162] sm:$0xff]
      %v5164 = vld [vmem:[%s5162 + $0x8] sm:$0xff]
      %v5165 = vperm.slane %v5145, 2
      %v5166 = vmul.f32 %v5163, %v5165
      %v5167 = vmul.f32 %v5164, %v5165
      %v5168 = vadd.f32 %v5160, %v5166
      %v5169 = vadd.f32 %v5161, %v5167
      %s5170 = scalar_lea.vmem %s5, 272
      %v5171 = vld [vmem:[%s5170] sm:$0xff]
      %v5172 = vld [vmem:[%s5170 + $0x8] sm:$0xff]
      %v5173 = vperm.slane %v5145, 3
      %v5174 = vmul.f32 %v5171, %v5173
      %v5175 = vmul.f32 %v5172, %v5173
      %v5176 = vadd.f32 %v5168, %v5174
      %v5177 = vadd.f32 %v5169, %v5175
      %s5178 = scalar_lea.vmem %s5, 288
      %v5179 = vld [vmem:[%s5178] sm:$0xff]
      %v5180 = vld [vmem:[%s5178 + $0x8] sm:$0xff]
      %v5181 = vperm.slane %v5145, 4
      %v5182 = vmul.f32 %v5179, %v5181
      %v5183 = vmul.f32 %v5180, %v5181
      %v5184 = vadd.f32 %v5176, %v5182
      %v5185 = vadd.f32 %v5177, %v5183
      %s5186 = scalar_lea.vmem %s5, 304
      %v5187 = vld [vmem:[%s5186] sm:$0xff]
      %v5188 = vld [vmem:[%s5186 + $0x8] sm:$0xff]
      %v5189 = vperm.slane %v5145, 5
      %v5190 = vmul.f32 %v5187, %v5189
      %v5191 = vmul.f32 %v5188, %v5189
      %v5192 = vadd.f32 %v5184, %v5190
      %v5193 = vadd.f32 %v5185, %v5191
      %s5194 = scalar_lea.vmem %s5, 320
      %v5195 = vld [vmem:[%s5194] sm:$0xff]
      %v5196 = vld [vmem:[%s5194 + $0x8] sm:$0xff]
      %v5197 = vperm.slane %v5145, 6
      %v5198 = vmul.f32 %v5195, %v5197
      %v5199 = vmul.f32 %v5196, %v5197
      %v5200 = vadd.f32 %v5192, %v5198
      %v5201 = vadd.f32 %v5193, %v5199
      %s5202 = scalar_lea.vmem [#allocation4], 108
      %v5203 = vld [vmem:[%s5202] ss:$2 sm:$0x7f]
      %s5204 = scalar_lea.vmem [#allocation4], 109
      %v5205 = vld [vmem:[%s5204] ss:$2 sm:$0x7f]
      %s5206 = scalar_lea.vmem [#allocation4], 126
      %v5207 = vld [vmem:[%s5206] ss:$2 sm:$0x7f]
      %s5208 = scalar_lea.vmem [#allocation4], 127
      %v5209 = vld [vmem:[%s5208] ss:$2 sm:$0x7f]
      %v5210 = vmax.f32 %v5203, %v5205
      %v5211 = vmax.f32 %v5207, %v5209
      %v5212 = vmax.f32 %v5210, %v5211
      %s5213 = scalar_lea.vmem %s5, 336
      %v5214 = vld [vmem:[%s5213] sm:$0xff]
      %v5215 = vld [vmem:[%s5213 + $0x8] sm:$0xff]
      %v5216 = vperm.slane %v5212, 0
      %v5217 = vmul.f32 %v5214, %v5216
      %v5218 = vmul.f32 %v5215, %v5216
      %v5219 = vadd.f32 %v5200, %v5217
      %v5220 = vadd.f32 %v5201, %v5218
      %s5221 = scalar_lea.vmem %s5, 352
      %v5222 = vld [vmem:[%s5221] sm:$0xff]
      %v5223 = vld [vmem:[%s5221 + $0x8] sm:$0xff]
      %v5224 = vperm.slane %v5212, 1
      %v5225 = vmul.f32 %v5222, %v5224
      %v5226 = vmul.f32 %v5223, %v5224
      %v5227 = vadd.f32 %v5219, %v5225
      %v5228 = vadd.f32 %v5220, %v5226
      %s5229 = scalar_lea.vmem %s5, 368
      %v5230 = vld [vmem:[%s5229] sm:$0xff]
      %v5231 = vld [vmem:[%s5229 + $0x8] sm:$0xff]
      %v5232 = vperm.slane %v5212, 2
      %v5233 = vmul.f32 %v5230, %v5232
      %v5234 = vmul.f32 %v5231, %v5232
      %v5235 = vadd.f32 %v5227, %v5233
      %v5236 = vadd.f32 %v5228, %v5234
      %s5237 = scalar_lea.vmem %s5, 384
      %v5238 = vld [vmem:[%s5237] sm:$0xff]
      %v5239 = vld [vmem:[%s5237 + $0x8] sm:$0xff]
      %v5240 = vperm.slane %v5212, 3
      %v5241 = vmul.f32 %v5238, %v5240
      %v5242 = vmul.f32 %v5239, %v5240
      %v5243 = vadd.f32 %v5235, %v5241
      %v5244 = vadd.f32 %v5236, %v5242
      %s5245 = scalar_lea.vmem %s5, 400
      %v5246 = vld [vmem:[%s5245] sm:$0xff]
      %v5247 = vld [vmem:[%s5245 + $0x8] sm:$0xff]
      %v5248 = vperm.slane %v5212, 4
      %v5249 = vmul.f32 %v5246, %v5248
      %v5250 = vmul.f32 %v5247, %v5248
      %v5251 = vadd.f32 %v5243, %v5249
      %v5252 = vadd.f32 %v5244, %v5250
      %s5253 = scalar_lea.vmem %s5, 416
      %v5254 = vld [vmem:[%s5253] sm:$0xff]
      %v5255 = vld [vmem:[%s5253 + $0x8] sm:$0xff]
      %v5256 = vperm.slane %v5212, 5
      %v5257 = vmul.f32 %v5254, %v5256
      %v5258 = vmul.f32 %v5255, %v5256
      %v5259 = vadd.f32 %v5251, %v5257
      %v5260 = vadd.f32 %v5252, %v5258
      %s5261 = scalar_lea.vmem %s5, 432
      %v5262 = vld [vmem:[%s5261] sm:$0xff]
      %v5263 = vld [vmem:[%s5261 + $0x8] sm:$0xff]
      %v5264 = vperm.slane %v5212, 6
      %v5265 = vmul.f32 %v5262, %v5264
      %v5266 = vmul.f32 %v5263, %v5264
      %v5267 = vadd.f32 %v5259, %v5265
      %v5268 = vadd.f32 %v5260, %v5266
      %s5269 = scalar_lea.vmem [#allocation4], 144
      %v5270 = vld [vmem:[%s5269] ss:$2 sm:$0x7f]
      %s5271 = scalar_lea.vmem [#allocation4], 145
      %v5272 = vld [vmem:[%s5271] ss:$2 sm:$0x7f]
      %s5273 = scalar_lea.vmem [#allocation4], 162
      %v5274 = vld [vmem:[%s5273] ss:$2 sm:$0x7f]
      %s5275 = scalar_lea.vmem [#allocation4], 163
      %v5276 = vld [vmem:[%s5275] ss:$2 sm:$0x7f]
      %v5277 = vmax.f32 %v5270, %v5272
      %v5278 = vmax.f32 %v5274, %v5276
      %v5279 = vmax.f32 %v5277, %v5278
      %s5280 = scalar_lea.vmem %s5, 448
      %v5281 = vld [vmem:[%s5280] sm:$0xff]
      %v5282 = vld [vmem:[%s5280 + $0x8] sm:$0xff]
      %v5283 = vperm.slane %v5279, 0
      %v5284 = vmul.f32 %v5281, %v5283
      %v5285 = vmul.f32 %v5282, %v5283
      %v5286 = vadd.f32 %v5267, %v5284
      %v5287 = vadd.f32 %v5268, %v5285
      %s5288 = scalar_lea.vmem %s5, 464
      %v5289 = vld [vmem:[%s5288] sm:$0xff]
      %v5290 = vld [vmem:[%s5288 + $0x8] sm:$0xff]
      %v5291 = vperm.slane %v5279, 1
      %v5292 = vmul.f32 %v5289, %v5291
      %v5293 = vmul.f32 %v5290, %v5291
      %v5294 = vadd.f32 %v5286, %v5292
      %v5295 = vadd.f32 %v5287, %v5293
      %s5296 = scalar_lea.vmem %s5, 480
      %v5297 = vld [vmem:[%s5296] sm:$0xff]
      %v5298 = vld [vmem:[%s5296 + $0x8] sm:$0xff]
      %v5299 = vperm.slane %v5279, 2
      %v5300 = vmul.f32 %v5297, %v5299
      %v5301 = vmul.f32 %v5298, %v5299
      %v5302 = vadd.f32 %v5294, %v5300
      %v5303 = vadd.f32 %v5295, %v5301
      %s5304 = scalar_lea.vmem %s5, 496
      %v5305 = vld [vmem:[%s5304] sm:$0xff]
      %v5306 = vld [vmem:[%s5304 + $0x8] sm:$0xff]
      %v5307 = vperm.slane %v5279, 3
      %v5308 = vmul.f32 %v5305, %v5307
      %v5309 = vmul.f32 %v5306, %v5307
      %v5310 = vadd.f32 %v5302, %v5308
      %v5311 = vadd.f32 %v5303, %v5309
      %s5312 = scalar_lea.vmem %s5, 512
      %v5313 = vld [vmem:[%s5312] sm:$0xff]
      %v5314 = vld [vmem:[%s5312 + $0x8] sm:$0xff]
      %v5315 = vperm.slane %v5279, 4
      %v5316 = vmul.f32 %v5313, %v5315
      %v5317 = vmul.f32 %v5314, %v5315
      %v5318 = vadd.f32 %v5310, %v5316
      %v5319 = vadd.f32 %v5311, %v5317
      %s5320 = scalar_lea.vmem %s5, 528
      %v5321 = vld [vmem:[%s5320] sm:$0xff]
      %v5322 = vld [vmem:[%s5320 + $0x8] sm:$0xff]
      %v5323 = vperm.slane %v5279, 5
      %v5324 = vmul.f32 %v5321, %v5323
      %v5325 = vmul.f32 %v5322, %v5323
      %v5326 = vadd.f32 %v5318, %v5324
      %v5327 = vadd.f32 %v5319, %v5325
      %s5328 = scalar_lea.vmem %s5, 544
      %v5329 = vld [vmem:[%s5328] sm:$0xff]
      %v5330 = vld [vmem:[%s5328 + $0x8] sm:$0xff]
      %v5331 = vperm.slane %v5279, 6
      %v5332 = vmul.f32 %v5329, %v5331
      %v5333 = vmul.f32 %v5330, %v5331
      %v5334 = vadd.f32 %v5326, %v5332
      %v5335 = vadd.f32 %v5327, %v5333
      %s5336 = scalar_lea.vmem [#allocation4], 180
      %v5337 = vld [vmem:[%s5336] ss:$2 sm:$0x7f]
      %s5338 = scalar_lea.vmem [#allocation4], 181
      %v5339 = vld [vmem:[%s5338] ss:$2 sm:$0x7f]
      %s5340 = scalar_lea.vmem [#allocation4], 198
      %v5341 = vld [vmem:[%s5340] ss:$2 sm:$0x7f]
      %s5342 = scalar_lea.vmem [#allocation4], 199
      %v5343 = vld [vmem:[%s5342] ss:$2 sm:$0x7f]
      %v5344 = vmax.f32 %v5337, %v5339
      %v5345 = vmax.f32 %v5341, %v5343
      %v5346 = vmax.f32 %v5344, %v5345
      %s5347 = scalar_lea.vmem %s5, 560
      %v5348 = vld [vmem:[%s5347] sm:$0xff]
      %v5349 = vld [vmem:[%s5347 + $0x8] sm:$0xff]
      %v5350 = vperm.slane %v5346, 0
      %v5351 = vmul.f32 %v5348, %v5350
      %v5352 = vmul.f32 %v5349, %v5350
      %v5353 = vadd.f32 %v5334, %v5351
      %v5354 = vadd.f32 %v5335, %v5352
      %s5355 = scalar_lea.vmem %s5, 576
      %v5356 = vld [vmem:[%s5355] sm:$0xff]
      %v5357 = vld [vmem:[%s5355 + $0x8] sm:$0xff]
      %v5358 = vperm.slane %v5346, 1
      %v5359 = vmul.f32 %v5356, %v5358
      %v5360 = vmul.f32 %v5357, %v5358
      %v5361 = vadd.f32 %v5353, %v5359
      %v5362 = vadd.f32 %v5354, %v5360
      %s5363 = scalar_lea.vmem %s5, 592
      %v5364 = vld [vmem:[%s5363] sm:$0xff]
      %v5365 = vld [vmem:[%s5363 + $0x8] sm:$0xff]
      %v5366 = vperm.slane %v5346, 2
      %v5367 = vmul.f32 %v5364, %v5366
      %v5368 = vmul.f32 %v5365, %v5366
      %v5369 = vadd.f32 %v5361, %v5367
      %v5370 = vadd.f32 %v5362, %v5368
      %s5371 = scalar_lea.vmem %s5, 608
      %v5372 = vld [vmem:[%s5371] sm:$0xff]
      %v5373 = vld [vmem:[%s5371 + $0x8] sm:$0xff]
      %v5374 = vperm.slane %v5346, 3
      %v5375 = vmul.f32 %v5372, %v5374
      %v5376 = vmul.f32 %v5373, %v5374
      %v5377 = vadd.f32 %v5369, %v5375
      %v5378 = vadd.f32 %v5370, %v5376
      %s5379 = scalar_lea.vmem %s5, 624
      %v5380 = vld [vmem:[%s5379] sm:$0xff]
      %v5381 = vld [vmem:[%s5379 + $0x8] sm:$0xff]
      %v5382 = vperm.slane %v5346, 4
      %v5383 = vmul.f32 %v5380, %v5382
      %v5384 = vmul.f32 %v5381, %v5382
      %v5385 = vadd.f32 %v5377, %v5383
      %v5386 = vadd.f32 %v5378, %v5384
      %s5387 = scalar_lea.vmem %s5, 640
      %v5388 = vld [vmem:[%s5387] sm:$0xff]
      %v5389 = vld [vmem:[%s5387 + $0x8] sm:$0xff]
      %v5390 = vperm.slane %v5346, 5
      %v5391 = vmul.f32 %v5388, %v5390
      %v5392 = vmul.f32 %v5389, %v5390
      %v5393 = vadd.f32 %v5385, %v5391
      %v5394 = vadd.f32 %v5386, %v5392
      %s5395 = scalar_lea.vmem %s5, 656
      %v5396 = vld [vmem:[%s5395] sm:$0xff]
      %v5397 = vld [vmem:[%s5395 + $0x8] sm:$0xff]
      %v5398 = vperm.slane %v5346, 6
      %v5399 = vmul.f32 %v5396, %v5398
      %v5400 = vmul.f32 %v5397, %v5398
      %v5401 = vadd.f32 %v5393, %v5399
      %v5402 = vadd.f32 %v5394, %v5400
      %s5403 = scalar_lea.vmem [#allocation4], 216
      %v5404 = vld [vmem:[%s5403] ss:$2 sm:$0x7f]
      %s5405 = scalar_lea.vmem [#allocation4], 217
      %v5406 = vld [vmem:[%s5405] ss:$2 sm:$0x7f]
      %s5407 = scalar_lea.vmem [#allocation4], 234
      %v5408 = vld [vmem:[%s5407] ss:$2 sm:$0x7f]
      %s5409 = scalar_lea.vmem [#allocation4], 235
      %v5410 = vld [vmem:[%s5409] ss:$2 sm:$0x7f]
      %v5411 = vmax.f32 %v5404, %v5406
      %v5412 = vmax.f32 %v5408, %v5410
      %v5413 = vmax.f32 %v5411, %v5412
      %s5414 = scalar_lea.vmem %s5, 672
      %v5415 = vld [vmem:[%s5414] sm:$0xff]
      %v5416 = vld [vmem:[%s5414 + $0x8] sm:$0xff]
      %v5417 = vperm.slane %v5413, 0
      %v5418 = vmul.f32 %v5415, %v5417
      %v5419 = vmul.f32 %v5416, %v5417
      %v5420 = vadd.f32 %v5401, %v5418
      %v5421 = vadd.f32 %v5402, %v5419
      %s5422 = scalar_lea.vmem %s5, 688
      %v5423 = vld [vmem:[%s5422] sm:$0xff]
      %v5424 = vld [vmem:[%s5422 + $0x8] sm:$0xff]
      %v5425 = vperm.slane %v5413, 1
      %v5426 = vmul.f32 %v5423, %v5425
      %v5427 = vmul.f32 %v5424, %v5425
      %v5428 = vadd.f32 %v5420, %v5426
      %v5429 = vadd.f32 %v5421, %v5427
      %s5430 = scalar_lea.vmem %s5, 704
      %v5431 = vld [vmem:[%s5430] sm:$0xff]
      %v5432 = vld [vmem:[%s5430 + $0x8] sm:$0xff]
      %v5433 = vperm.slane %v5413, 2
      %v5434 = vmul.f32 %v5431, %v5433
      %v5435 = vmul.f32 %v5432, %v5433
      %v5436 = vadd.f32 %v5428, %v5434
      %v5437 = vadd.f32 %v5429, %v5435
      %s5438 = scalar_lea.vmem %s5, 720
      %v5439 = vld [vmem:[%s5438] sm:$0xff]
      %v5440 = vld [vmem:[%s5438 + $0x8] sm:$0xff]
      %v5441 = vperm.slane %v5413, 3
      %v5442 = vmul.f32 %v5439, %v5441
      %v5443 = vmul.f32 %v5440, %v5441
      %v5444 = vadd.f32 %v5436, %v5442
      %v5445 = vadd.f32 %v5437, %v5443
      %s5446 = scalar_lea.vmem %s5, 736
      %v5447 = vld [vmem:[%s5446] sm:$0xff]
      %v5448 = vld [vmem:[%s5446 + $0x8] sm:$0xff]
      %v5449 = vperm.slane %v5413, 4
      %v5450 = vmul.f32 %v5447, %v5449
      %v5451 = vmul.f32 %v5448, %v5449
      %v5452 = vadd.f32 %v5444, %v5450
      %v5453 = vadd.f32 %v5445, %v5451
      %s5454 = scalar_lea.vmem %s5, 752
      %v5455 = vld [vmem:[%s5454] sm:$0xff]
      %v5456 = vld [vmem:[%s5454 + $0x8] sm:$0xff]
      %v5457 = vperm.slane %v5413, 5
      %v5458 = vmul.f32 %v5455, %v5457
      %v5459 = vmul.f32 %v5456, %v5457
      %v5460 = vadd.f32 %v5452, %v5458
      %v5461 = vadd.f32 %v5453, %v5459
      %s5462 = scalar_lea.vmem %s5, 768
      %v5463 = vld [vmem:[%s5462] sm:$0xff]
      %v5464 = vld [vmem:[%s5462 + $0x8] sm:$0xff]
      %v5465 = vperm.slane %v5413, 6
      %v5466 = vmul.f32 %v5463, %v5465
      %v5467 = vmul.f32 %v5464, %v5465
      %v5468 = vadd.f32 %v5460, %v5466
      %v5469 = vadd.f32 %v5461, %v5467
      %5470 = vadd.xlane.f32.xlu0 %v5468
      %v5471 = vpop.xlane.xlu0 %5470
      %5472 = vadd.xlane.f32.xlu0 %v5469
      %v5473 = vpop.xlane.xlu0 %5472
      %v5474 = vld [vmem:[%s6] sm:$0xff]
      %v5475 = vld [vmem:[%s6 + $0x8] sm:$0xff]
      %v5476 = vadd.f32 %v5471, %v5474
      %v5477 = vadd.f32 %v5473, %v5475
      %5478 = vst [vmem:[%s278] sm:$0xff] %v5476
      %5479 = vst [vmem:[%s278 + $0x8] sm:$0xff] %v5477
      %p5480 = scmp.lt.s32.totalorder %s18, 1
      %s5481 = scalar_select %p5480, %s18, 1
      %s5482 = smul.addr %s5481, 2
      %s5483 = smul.addr %s5482, 8
      %s5484 = scalar_lea.vmem %s7, %s5483
      // Predicated region
      $region49: #{cnn_forward.1} parent=47 // pred_check
        %p5485 = pneg %p188
      $region50: #{cnn_forward.1} parent=47 // pred_check_branch
        %5487 = sbr.rel (%p5485) target = $region52
      $region51: #{cnn_forward.1} parent=47 // pred_region
        _
      $region52: #{cnn_forward.1} parent=47 // pred_fallthru
        _
    $region48: #{cnn_forward.1} parent=5 // pred_fallthru
      _
    %p5488 = scmp.le.s32.totalorder 2, %s13
    // Predicated region
    $region53: #{cnn_forward.1} parent=5 // pred_check
      %p5489 = pneg %p5488
    $region54: #{cnn_forward.1} parent=5 // pred_check_branch
      %5491 = sbr.rel (%p5489) target = $region56
    $region55: #{cnn_forward.1} parent=5 // pred_region
      %s5492 = ssub.s32 %s13, 2
      // Predicated region
      $region57: #{cnn_forward.1} parent=55 // pred_check
        %p5493 = pneg %p194
      $region58: #{cnn_forward.1} parent=55 // pred_check_branch
        %5495 = sbr.rel (%p5493) target = $region60
      $region59: #{cnn_forward.1} parent=55 // pred_region
        %p5496 = scmp.lt.s32.totalorder %s19, 1
        %s5497 = scalar_select %p5496, %s19, 1
        %s5498 = smul.addr %s5497, 2
        %s5499 = smul.addr %s5498, 8
        %s5500 = scalar_lea.vmem %s7, %s5499
      $region60: #{cnn_forward.1} parent=55 // pred_fallthru
        _
    $region56: #{cnn_forward.1} parent=5 // pred_fallthru
      _
  $region6: #{cnn_forward.1} parent=0 // loop_footer
    %s17 = sadd.s32 1, %s13
  $region7: #{cnn_forward.1} parent=0 // loop_footer_branch
    %12 = sbr.rel target = $region3
  $region8: #{cnn_forward.1} parent=0 // loop_exit
    _

</llo_original>
